<compile_context>
chip_gen: v5e
topology: v5e:2x2
jax: 0.10.0
libtpu: 0.0.40
codegen_flags: <defaults>
</compile_context>

<pallas_src>
import math

import jax
import jax.numpy as jnp
from jax import lax
from jax.experimental import pallas as pl
from jax.experimental.pallas import tpu as pltpu


# ---------------------------------------------------------------------------
# Fused kernel
# ---------------------------------------------------------------------------
def _make_fused_kernel(n_layer, T, Bp, Hp):
    """Fused LSTM(+Linear) kernel for static (n_layer, T, Bp, Hp)."""

    def _sigmoid(x):
        # One tanh (single EUP op) instead of exp + reciprocal on the serial
        # per-timestep chain.  Mathematically identical to sigmoid.
        return 0.5 * jnp.tanh(0.5 * x) + 0.5

    def kernel(*refs):
        # ---- unpack refs: inputs, output, scratch -------------------------
        x_ref = refs[0]                               # (T*Bp, Dp)  bf16, time-major rows
        lref = refs[1:1 + 3 * n_layer]                # per layer: W, U, b
        lw_ref = refs[1 + 3 * n_layer]                # (Hp, Yp)    bf16
        lb_ref = refs[2 + 3 * n_layer]                # (1, Yp)     f32
        out_ref = refs[3 + 3 * n_layer]               # (Bp, Yp)    f32
        proj_scr = refs[4 + 3 * n_layer]              # (T*Bp, 4Hp) f32
        hall_scr = refs[5 + 3 * n_layer]              # (T*Bp, Hp)  f32

        def recurrence(u_ref, write_hall):
            """Time loop for one layer.  proj_scr already holds
            x_t @ W_ih^T + (b_ih + b_hh) for every t; only the h @ W_hh^T
            matmul is sequentially dependent.  h/c live in vregs."""
            h = jnp.zeros((Bp, Hp), jnp.float32)
            c = jnp.zeros((Bp, Hp), jnp.float32)

            def step(t, h, c):
                row = t * Bp
                if not isinstance(row, int):          # dynamic (fori) path
                    row = pl.multiple_of(row, 8)
                gates = (proj_scr[pl.ds(row, Bp), :]
                         + jnp.dot(h.astype(jnp.bfloat16), u_ref[...],
                                   preferred_element_type=jnp.float32))
                # Hp is a multiple of 128 -> lane-tile aligned gate slices.
                i = _sigmoid(gates[:, 0:Hp])
                f = _sigmoid(gates[:, Hp:2 * Hp])
                g = jnp.tanh(gates[:, 2 * Hp:3 * Hp])
                o = _sigmoid(gates[:, 3 * Hp:4 * Hp])
                c = f * c + i * g
                h = o * jnp.tanh(c)
                if write_hall:                        # skipped on last layer
                    hall_scr[pl.ds(row, Bp), :] = h   # f32, 8-row aligned store
                return h, c

            if T <= 16:                               # small T: static unroll
                for t in range(T):
                    h, c = step(t, h, c)
            else:                                     # large T: bounded live ranges
                h, c = lax.fori_loop(0, T, lambda t, hc: step(t, *hc),
                                     (h, c), unroll=4)
            return h

        # ---- layer 0: hoisted input projection (one bf16 GEMM over all T) -
        proj_scr[...] = (jnp.dot(x_ref[...], lref[0][...],
                                 preferred_element_type=jnp.float32)
                         + lref[2][...])
        h_last = recurrence(lref[1], write_hall=(n_layer > 1))

        # ---- layers 1 .. n_layer-1 ----------------------------------------
        for l in range(1, n_layer):
            w_ref = lref[3 * l]
            u_ref = lref[3 * l + 1]
            b_ref = lref[3 * l + 2]
            proj_scr[...] = (jnp.dot(hall_scr[...].astype(jnp.bfloat16),
                                     w_ref[...],
                                     preferred_element_type=jnp.float32)
                             + b_ref[...])
            h_last = recurrence(u_ref, write_hall=(l < n_layer - 1))

        # ---- final Linear on last timestep's hidden of the last layer -----
        out_ref[...] = (jnp.dot(h_last.astype(jnp.bfloat16), lw_ref[...],
                                preferred_element_type=jnp.float32)
                        + lb_ref[...]).astype(out_ref.dtype)

    return kernel


# ---------------------------------------------------------------------------
# Parameter preparation (done once, not per forward call)
# ---------------------------------------------------------------------------
def _round_up(n, m):
    return ((n + m - 1) // m) * m


def _pad_gate_cols(m, H, Hp):
    """m: (R, 4H) with gate order [i,f,g,o] -> (R, 4Hp), each gate zero-padded."""
    if Hp == H:
        return m
    R = m.shape[0]
    m4 = m.reshape(R, 4, H)
    m4 = jnp.pad(m4, ((0, 0), (0, 0), (0, Hp - H)))
    return m4.reshape(R, 4 * Hp)


def init_params(key, xdim, hdim, ydim, n_layer):
    """Deterministic init mirroring PyTorch uniform(-1/sqrt(H), 1/sqrt(H))."""
    params = {"layers": []}
    bound = 1.0 / float(hdim) ** 0.5
    for l in range(n_layer):
        d_in = xdim if l == 0 else hdim
        key, k1, k2, k3, k4 = jax.random.split(key, 5)
        w_ih = jax.random.uniform(k1, (4 * hdim, d_in), jnp.float32, -bound, bound)
        w_hh = jax.random.uniform(k2, (4 * hdim, hdim), jnp.float32, -bound, bound)
        b_ih = jax.random.uniform(k3, (4 * hdim,), jnp.float32, -bound, bound)
        b_hh = jax.random.uniform(k4, (4 * hdim,), jnp.float32, -bound, bound)
        params["layers"].append((w_ih, w_hh, b_ih, b_hh))
    key, k1, k2 = jax.random.split(key, 3)
    params["lin_w"] = jax.random.uniform(k1, (ydim, hdim), jnp.float32, -bound, bound)
    params["lin_b"] = jax.random.uniform(k2, (ydim,), jnp.float32, -bound, bound)
    return params


def prepare_params(params):
    """Transpose + pad + bf16-cast PyTorch-layout params into kernel layout (once)."""
    xdim = params["layers"][0][0].shape[1]              # w_ih_0: (4H, xdim)
    H = params["layers"][0][1].shape[1]                  # w_hh:   (4H, H)
    Hp = _round_up(H, 128)
    Dp = _round_up(xdim, 128)
    layers = []
    for l, (w_ih, w_hh, b_ih, b_hh) in enumerate(params["layers"]):
        w = _pad_gate_cols(jnp.transpose(w_ih), H, Hp)    # (d_in, 4Hp)
        d_in_p = Dp if l == 0 else Hp                     # lane/K-aligned input dim
        if w.shape[0] != d_in_p:
            w = jnp.pad(w, ((0, d_in_p - w.shape[0]), (0, 0)))
        u = _pad_gate_cols(jnp.transpose(w_hh), H, Hp)    # (H, 4Hp)
        if Hp != H:
            u = jnp.pad(u, ((0, Hp - H), (0, 0)))         # (Hp, 4Hp)
        b = _pad_gate_cols((b_ih + b_hh).reshape(1, 4 * H), H, Hp)   # f32 (1, 4Hp)
        layers.append((w.astype(jnp.bfloat16), u.astype(jnp.bfloat16), b))
    Y = params["lin_w"].shape[0]
    Yp = _round_up(Y, 128)
    lw = jnp.pad(jnp.transpose(params["lin_w"]),
                 ((0, Hp - H), (0, Yp - Y)))              # (Hp, Yp)
    lb = jnp.pad(params["lin_b"], (0, Yp - Y)).reshape(1, Yp)
    return {"layers": layers, "lin_w": lw.astype(jnp.bfloat16), "lin_b": lb,
            "H": H, "Hp": Hp, "Dp": Dp, "Y": Y, "Yp": Yp}


# ---------------------------------------------------------------------------
# Forward passes
# ---------------------------------------------------------------------------
def lstm_forward_pallas(prep, x_btd):
    """x_btd: (B, T, xdim) -> (B, ydim).  Semantics of Lstm.forward (dropout=0)."""
    B, T, D = x_btd.shape
    Hp, Dp, Y, Yp = prep["Hp"], prep["Dp"], prep["Y"], prep["Yp"]
    Bp = _round_up(B, 8)                                  # 8-sublane aligned batch
    n_layer = len(prep["layers"])

    # time-major rows (row t*Bp + b); zero-pad batch -> Bp and features -> Dp,
    # cast to bf16 once (matmul operand).
    x_p = jnp.pad(x_btd, ((0, Bp - B), (0, 0), (0, Dp - D)))
    x2d = jnp.transpose(x_p, (1, 0, 2)).reshape(T * Bp, Dp).astype(jnp.bfloat16)

    args = [x2d]
    in_specs = [pl.BlockSpec(x2d.shape, lambda: (0, 0))]
    for (w, u, b) in prep["layers"]:
        args += [w, u, b]
        in_specs += [pl.BlockSpec(w.shape, lambda: (0, 0)),
                     pl.BlockSpec(u.shape, lambda: (0, 0)),
                     pl.BlockSpec(b.shape, lambda: (0, 0))]
    args += [prep["lin_w"], prep["lin_b"]]
    in_specs += [pl.BlockSpec(prep["lin_w"].shape, lambda: (0, 0)),
                 pl.BlockSpec(prep["lin_b"].shape, lambda: (0, 0))]

    scratch_shapes = [
        pltpu.VMEM((T * Bp, 4 * Hp), jnp.float32),   # hoisted input projections
        pltpu.VMEM((T * Bp, Hp), jnp.float32),       # all h of current layer
    ]
    out_shape = jax.ShapeDtypeStruct((Bp, Yp), jnp.float32)

    # VMEM budget derived from the actual shapes (inputs counted x2 for
    # buffering headroom), floored at 32 MiB and capped at 100 MiB.
    in_bytes = sum(2 * a.size * a.dtype.itemsize for a in args)
    scratch_bytes = (T * Bp * 4 * Hp + T * Bp * Hp) * 4
    out_bytes = 2 * Bp * Yp * 4
    vmem_limit = max(32 << 20,
                     min(in_bytes + scratch_bytes + out_bytes + (4 << 20),
                         100 << 20))

    kernel = _make_fused_kernel(n_layer=n_layer, T=T, Bp=Bp, Hp=Hp)

    out = pl.pallas_call(
        kernel,
        out_shape=out_shape,
        in_specs=in_specs,
        out_specs=pl.BlockSpec((Bp, Yp), lambda: (0, 0)),
        scratch_shapes=scratch_shapes,
        compiler_params=pltpu.CompilerParams(vmem_limit_bytes=int(vmem_limit)),
    )(*args)
    # drop padded batch rows and padded output columns
    return out[:B, :Y]


def lstm_forward_ref(params, x_btd, matmul_dtype=jnp.float32):
    """Pure-JAX reference (lax.scan).  matmul_dtype=bf16 mirrors the kernel's
    mixed precision (bf16 matmul operands, f32 accumulation / state)."""
    B = x_btd.shape[0]
    cast = lambda a: a.astype(matmul_dtype)
    x = x_btd
    for (w_ih, w_hh, b_ih, b_hh) in params["layers"]:
        H = w_hh.shape[1]

        def step(carry, x_t, w_ih=w_ih, w_hh=w_hh, b_ih=b_ih, b_hh=b_hh):
            h, c = carry
            gates = (jnp.dot(cast(x_t), cast(w_ih).T,
                             preferred_element_type=jnp.float32)
                     + jnp.dot(cast(h), cast(w_hh).T,
                               preferred_element_type=jnp.float32)
                     + b_ih + b_hh)
            i, f, g, o = jnp.split(gates, 4, axis=-1)
            i, f, o = jax.nn.sigmoid(i), jax.nn.sigmoid(f), jax.nn.sigmoid(o)
            g = jnp.tanh(g)
            c = f * c + i * g
            h = o * jnp.tanh(c)
            return (h, c), h

        init = (jnp.zeros((B, H), jnp.float32), jnp.zeros((B, H), jnp.float32))
        _, ys = lax.scan(step, init, jnp.transpose(x, (1, 0, 2)))
        x = jnp.transpose(ys, (1, 0, 2))
    return (jnp.dot(cast(x[:, -1, :]), cast(params["lin_w"]).T,
                    preferred_element_type=jnp.float32) + params["lin_b"])


# ---------------------------------------------------------------------------
if __name__ == "__main__":
    B, T = 2, 8
    XDIM, HDIM, YDIM, N_LAYER = 28, 32, 3, 3   # small hdim for the test

    key = jax.random.PRNGKey(0)
    key, xkey, pkey = jax.random.split(key, 3)
    x = jax.random.normal(xkey, (B, T, XDIM), jnp.float32)
    params = init_params(pkey, XDIM, HDIM, YDIM, N_LAYER)
    prep = prepare_params(params)

    out = jax.block_until_ready(lstm_forward_pallas(prep, x))
    ref_bf16 = jax.block_until_ready(lstm_forward_ref(params, x, jnp.bfloat16))
    ref_f32 = jax.block_until_ready(lstm_forward_ref(params, x, jnp.float32))

    assert out.shape == (B, YDIM), out.shape
    # Kernel and bf16-matmul reference apply the same casts -> tight match.
    assert jnp.allclose(out, ref_bf16, rtol=1e-3, atol=1e-3), (out, ref_bf16)
    # Loose sanity check against the full-f32 semantics.
    assert jnp.allclose(out, ref_f32, rtol=3e-2, atol=3e-2), (out, ref_f32)
    print("KERNEL_OK")
</pallas_src>

<mosaic_0001>
module attributes {stable_mosaic.version = 11 : i64} {
  func.func @kernel(%arg0: memref<64x128xbf16, #tpu.memory_space<vmem>>, %arg1: memref<128x512xbf16, #tpu.memory_space<vmem>>, %arg2: memref<128x512xbf16, #tpu.memory_space<vmem>>, %arg3: memref<1x512xf32, #tpu.memory_space<vmem>>, %arg4: memref<128x512xbf16, #tpu.memory_space<vmem>>, %arg5: memref<128x512xbf16, #tpu.memory_space<vmem>>, %arg6: memref<1x512xf32, #tpu.memory_space<vmem>>, %arg7: memref<128x512xbf16, #tpu.memory_space<vmem>>, %arg8: memref<128x512xbf16, #tpu.memory_space<vmem>>, %arg9: memref<1x512xf32, #tpu.memory_space<vmem>>, %arg10: memref<128x128xbf16, #tpu.memory_space<vmem>>, %arg11: memref<1x128xf32, #tpu.memory_space<vmem>>, %arg12: memref<8x128xf32, #tpu.memory_space<vmem>>, %arg13: memref<64x512xf32, #tpu.memory_space<vmem>>, %arg14: memref<64x128xf32, #tpu.memory_space<vmem>>) attributes {dimension_semantics = [], scalar_prefetch = 0 : i64, scratch_operands = 2 : i64, tpu.core_type = #tpu.core_type<tc>} {
    %c0 = arith.constant 0 : index
    %c0_0 = arith.constant 0 : index
    %0 = vector.load %arg0[%c0, %c0_0] : memref<64x128xbf16, #tpu.memory_space<vmem>>, vector<64x128xbf16>
    %c0_1 = arith.constant 0 : index
    %c0_2 = arith.constant 0 : index
    %1 = vector.load %arg1[%c0_1, %c0_2] : memref<128x512xbf16, #tpu.memory_space<vmem>>, vector<128x512xbf16>
    %cst = arith.constant dense<0.000000e+00> : vector<64x512xf32>
    %2 = tpu.matmul %0, %1, %cst {dimension_numbers = #tpu.dot_dimension_numbers<[1], [0], [0], [1], [0, 0, 1, 1], [], []>} : vector<64x128xbf16>, vector<128x512xbf16>, vector<64x512xf32> -> vector<64x512xf32>
    %c0_3 = arith.constant 0 : index
    %c0_4 = arith.constant 0 : index
    %3 = vector.load %arg3[%c0_3, %c0_4] : memref<1x512xf32, #tpu.memory_space<vmem>>, vector<1x512xf32>
    %4 = vector.broadcast %3 : vector<1x512xf32> to vector<64x512xf32>
    %5 = arith.addf %2, %4 : vector<64x512xf32>
    %c0_5 = arith.constant 0 : index
    %c0_6 = arith.constant 0 : index
    %6 = vector.load %arg13[%c0_5, %c0_6] : memref<64x512xf32, #tpu.memory_space<vmem>>, vector<64x512xf32>
    tpu.vector_store %arg13[%c0_5, %c0_6], %5 {strides = array<i32>} : memref<64x512xf32, #tpu.memory_space<vmem>>, vector<64x512xf32>,
    %cst_7 = arith.constant 0.000000e+00 : f32
    %7 = vector.broadcast %cst_7 : f32 to vector<8x128xf32>
    %cst_8 = arith.constant 0.000000e+00 : f32
    %8 = vector.broadcast %cst_8 : f32 to vector<8x128xf32>
    %c0_9 = arith.constant 0 : index
    %c0_10 = arith.constant 0 : index
    %9 = vector.load %arg13[%c0_9, %c0_10] : memref<64x512xf32, #tpu.memory_space<vmem>>, vector<8x512xf32>
    %10 = arith.truncf %7 : vector<8x128xf32> to vector<8x128xbf16>
    %c0_11 = arith.constant 0 : index
    %c0_12 = arith.constant 0 : index
    %11 = vector.load %arg2[%c0_11, %c0_12] : memref<128x512xbf16, #tpu.memory_space<vmem>>, vector<128x512xbf16>
    %cst_13 = arith.constant dense<0.000000e+00> : vector<8x512xf32>
    %12 = tpu.matmul %10, %11, %cst_13 {dimension_numbers = #tpu.dot_dimension_numbers<[1], [0], [0], [1], [0, 0, 1, 1], [], []>} : vector<8x128xbf16>, vector<128x512xbf16>, vector<8x512xf32> -> vector<8x512xf32>
    %13 = arith.addf %9, %12 : vector<8x512xf32>
    %14 = vector.extract_strided_slice %13 {offsets = [0, 0], sizes = [8, 128], strides = [1, 1]} : vector<8x512xf32> to vector<8x128xf32>
    %cst_14 = arith.constant 5.000000e-01 : f32
    %15 = vector.broadcast %cst_14 : f32 to vector<8x128xf32>
    %16 = arith.mulf %15, %14 : vector<8x128xf32>
    %17 = math.tanh %16 : vector<8x128xf32>
    %cst_15 = arith.constant 5.000000e-01 : f32
    %18 = vector.broadcast %cst_15 : f32 to vector<8x128xf32>
    %19 = arith.mulf %18, %17 : vector<8x128xf32>
    %cst_16 = arith.constant 5.000000e-01 : f32
    %20 = vector.broadcast %cst_16 : f32 to vector<8x128xf32>
    %21 = arith.addf %19, %20 : vector<8x128xf32>
    %22 = vector.extract_strided_slice %13 {offsets = [0, 128], sizes = [8, 128], strides = [1, 1]} : vector<8x512xf32> to vector<8x128xf32>
    %cst_17 = arith.constant 5.000000e-01 : f32
    %23 = vector.broadcast %cst_17 : f32 to vector<8x128xf32>
    %24 = arith.mulf %23, %22 : vector<8x128xf32>
    %25 = math.tanh %24 : vector<8x128xf32>
    %cst_18 = arith.constant 5.000000e-01 : f32
    %26 = vector.broadcast %cst_18 : f32 to vector<8x128xf32>
    %27 = arith.mulf %26, %25 : vector<8x128xf32>
    %cst_19 = arith.constant 5.000000e-01 : f32
    %28 = vector.broadcast %cst_19 : f32 to vector<8x128xf32>
    %29 = arith.addf %27, %28 : vector<8x128xf32>
    %30 = vector.extract_strided_slice %13 {offsets = [0, 256], sizes = [8, 128], strides = [1, 1]} : vector<8x512xf32> to vector<8x128xf32>
    %31 = math.tanh %30 : vector<8x128xf32>
    %32 = vector.extract_strided_slice %13 {offsets = [0, 384], sizes = [8, 128], strides = [1, 1]} : vector<8x512xf32> to vector<8x128xf32>
    %cst_20 = arith.constant 5.000000e-01 : f32
    %33 = vector.broadcast %cst_20 : f32 to vector<8x128xf32>
    %34 = arith.mulf %33, %32 : vector<8x128xf32>
    %35 = math.tanh %34 : vector<8x128xf32>
    %cst_21 = arith.constant 5.000000e-01 : f32
    %36 = vector.broadcast %cst_21 : f32 to vector<8x128xf32>
    %37 = arith.mulf %36, %35 : vector<8x128xf32>
    %cst_22 = arith.constant 5.000000e-01 : f32
    %38 = vector.broadcast %cst_22 : f32 to vector<8x128xf32>
    %39 = arith.addf %37, %38 : vector<8x128xf32>
    %40 = arith.mulf %29, %8 : vector<8x128xf32>
    %41 = arith.mulf %21, %31 : vector<8x128xf32>
    %42 = arith.addf %40, %41 : vector<8x128xf32>
    %43 = math.tanh %42 : vector<8x128xf32>
    %44 = arith.mulf %39, %43 : vector<8x128xf32>
    %c0_23 = arith.constant 0 : index
    %c0_24 = arith.constant 0 : index
    %45 = vector.load %arg14[%c0_23, %c0_24] : memref<64x128xf32, #tpu.memory_space<vmem>>, vector<8x128xf32>
    tpu.vector_store %arg14[%c0_23, %c0_24], %44 {strides = array<i32>} : memref<64x128xf32, #tpu.memory_space<vmem>>, vector<8x128xf32>,
    %c8 = arith.constant 8 : index
    %c0_25 = arith.constant 0 : index
    %46 = vector.load %arg13[%c8, %c0_25] : memref<64x512xf32, #tpu.memory_space<vmem>>, vector<8x512xf32>
    %47 = arith.truncf %44 : vector<8x128xf32> to vector<8x128xbf16>
    %c0_26 = arith.constant 0 : index
    %c0_27 = arith.constant 0 : index
    %48 = vector.load %arg2[%c0_26, %c0_27] : memref<128x512xbf16, #tpu.memory_space<vmem>>, vector<128x512xbf16>
    %cst_28 = arith.constant dense<0.000000e+00> : vector<8x512xf32>
    %49 = tpu.matmul %47, %48, %cst_28 {dimension_numbers = #tpu.dot_dimension_numbers<[1], [0], [0], [1], [0, 0, 1, 1], [], []>} : vector<8x128xbf16>, vector<128x512xbf16>, vector<8x512xf32> -> vector<8x512xf32>
    %50 = arith.addf %46, %49 : vector<8x512xf32>
    %51 = vector.extract_strided_slice %50 {offsets = [0, 0], sizes = [8, 128], strides = [1, 1]} : vector<8x512xf32> to vector<8x128xf32>
    %cst_29 = arith.constant 5.000000e-01 : f32
    %52 = vector.broadcast %cst_29 : f32 to vector<8x128xf32>
    %53 = arith.mulf %52, %51 : vector<8x128xf32>
    %54 = math.tanh %53 : vector<8x128xf32>
    %cst_30 = arith.constant 5.000000e-01 : f32
    %55 = vector.broadcast %cst_30 : f32 to vector<8x128xf32>
    %56 = arith.mulf %55, %54 : vector<8x128xf32>
    %cst_31 = arith.constant 5.000000e-01 : f32
    %57 = vector.broadcast %cst_31 : f32 to vector<8x128xf32>
    %58 = arith.addf %56, %57 : vector<8x128xf32>
    %59 = vector.extract_strided_slice %50 {offsets = [0, 128], sizes = [8, 128], strides = [1, 1]} : vector<8x512xf32> to vector<8x128xf32>
    %cst_32 = arith.constant 5.000000e-01 : f32
    %60 = vector.broadcast %cst_32 : f32 to vector<8x128xf32>
    %61 = arith.mulf %60, %59 : vector<8x128xf32>
    %62 = math.tanh %61 : vector<8x128xf32>
    %cst_33 = arith.constant 5.000000e-01 : f32
    %63 = vector.broadcast %cst_33 : f32 to vector<8x128xf32>
    %64 = arith.mulf %63, %62 : vector<8x128xf32>
    %cst_34 = arith.constant 5.000000e-01 : f32
    %65 = vector.broadcast %cst_34 : f32 to vector<8x128xf32>
    %66 = arith.addf %64, %65 : vector<8x128xf32>
    %67 = vector.extract_strided_slice %50 {offsets = [0, 256], sizes = [8, 128], strides = [1, 1]} : vector<8x512xf32> to vector<8x128xf32>
    %68 = math.tanh %67 : vector<8x128xf32>
    %69 = vector.extract_strided_slice %50 {offsets = [0, 384], sizes = [8, 128], strides = [1, 1]} : vector<8x512xf32> to vector<8x128xf32>
    %cst_35 = arith.constant 5.000000e-01 : f32
    %70 = vector.broadcast %cst_35 : f32 to vector<8x128xf32>
    %71 = arith.mulf %70, %69 : vector<8x128xf32>
    %72 = math.tanh %71 : vector<8x128xf32>
    %cst_36 = arith.constant 5.000000e-01 : f32
    %73 = vector.broadcast %cst_36 : f32 to vector<8x128xf32>
    %74 = arith.mulf %73, %72 : vector<8x128xf32>
    %cst_37 = arith.constant 5.000000e-01 : f32
    %75 = vector.broadcast %cst_37 : f32 to vector<8x128xf32>
    %76 = arith.addf %74, %75 : vector<8x128xf32>
    %77 = arith.mulf %66, %42 : vector<8x128xf32>
    %78 = arith.mulf %58, %68 : vector<8x128xf32>
    %79 = arith.addf %77, %78 : vector<8x128xf32>
    %80 = math.tanh %79 : vector<8x128xf32>
    %81 = arith.mulf %76, %80 : vector<8x128xf32>
    %c8_38 = arith.constant 8 : index
    %c0_39 = arith.constant 0 : index
    %82 = vector.load %arg14[%c8_38, %c0_39] : memref<64x128xf32, #tpu.memory_space<vmem>>, vector<8x128xf32>
    tpu.vector_store %arg14[%c8_38, %c0_39], %81 {strides = array<i32>} : memref<64x128xf32, #tpu.memory_space<vmem>>, vector<8x128xf32>,
    %c16 = arith.constant 16 : index
    %c0_40 = arith.constant 0 : index
    %83 = vector.load %arg13[%c16, %c0_40] : memref<64x512xf32, #tpu.memory_space<vmem>>, vector<8x512xf32>
    %84 = arith.truncf %81 : vector<8x128xf32> to vector<8x128xbf16>
    %c0_41 = arith.constant 0 : index
    %c0_42 = arith.constant 0 : index
    %85 = vector.load %arg2[%c0_41, %c0_42] : memref<128x512xbf16, #tpu.memory_space<vmem>>, vector<128x512xbf16>
    %cst_43 = arith.constant dense<0.000000e+00> : vector<8x512xf32>
    %86 = tpu.matmul %84, %85, %cst_43 {dimension_numbers = #tpu.dot_dimension_numbers<[1], [0], [0], [1], [0, 0, 1, 1], [], []>} : vector<8x128xbf16>, vector<128x512xbf16>, vector<8x512xf32> -> vector<8x512xf32>
    %87 = arith.addf %83, %86 : vector<8x512xf32>
    %88 = vector.extract_strided_slice %87 {offsets = [0, 0], sizes = [8, 128], strides = [1, 1]} : vector<8x512xf32> to vector<8x128xf32>
    %cst_44 = arith.constant 5.000000e-01 : f32
    %89 = vector.broadcast %cst_44 : f32 to vector<8x128xf32>
    %90 = arith.mulf %89, %88 : vector<8x128xf32>
    %91 = math.tanh %90 : vector<8x128xf32>
    %cst_45 = arith.constant 5.000000e-01 : f32
    %92 = vector.broadcast %cst_45 : f32 to vector<8x128xf32>
    %93 = arith.mulf %92, %91 : vector<8x128xf32>
    %cst_46 = arith.constant 5.000000e-01 : f32
    %94 = vector.broadcast %cst_46 : f32 to vector<8x128xf32>
    %95 = arith.addf %93, %94 : vector<8x128xf32>
    %96 = vector.extract_strided_slice %87 {offsets = [0, 128], sizes = [8, 128], strides = [1, 1]} : vector<8x512xf32> to vector<8x128xf32>
    %cst_47 = arith.constant 5.000000e-01 : f32
    %97 = vector.broadcast %cst_47 : f32 to vector<8x128xf32>
    %98 = arith.mulf %97, %96 : vector<8x128xf32>
    %99 = math.tanh %98 : vector<8x128xf32>
    %cst_48 = arith.constant 5.000000e-01 : f32
    %100 = vector.broadcast %cst_48 : f32 to vector<8x128xf32>
    %101 = arith.mulf %100, %99 : vector<8x128xf32>
    %cst_49 = arith.constant 5.000000e-01 : f32
    %102 = vector.broadcast %cst_49 : f32 to vector<8x128xf32>
    %103 = arith.addf %101, %102 : vector<8x128xf32>
    %104 = vector.extract_strided_slice %87 {offsets = [0, 256], sizes = [8, 128], strides = [1, 1]} : vector<8x512xf32> to vector<8x128xf32>
    %105 = math.tanh %104 : vector<8x128xf32>
    %106 = vector.extract_strided_slice %87 {offsets = [0, 384], sizes = [8, 128], strides = [1, 1]} : vector<8x512xf32> to vector<8x128xf32>
    %cst_50 = arith.constant 5.000000e-01 : f32
    %107 = vector.broadcast %cst_50 : f32 to vector<8x128xf32>
    %108 = arith.mulf %107, %106 : vector<8x128xf32>
    %109 = math.tanh %108 : vector<8x128xf32>
    %cst_51 = arith.constant 5.000000e-01 : f32
    %110 = vector.broadcast %cst_51 : f32 to vector<8x128xf32>
    %111 = arith.mulf %110, %109 : vector<8x128xf32>
    %cst_52 = arith.constant 5.000000e-01 : f32
    %112 = vector.broadcast %cst_52 : f32 to vector<8x128xf32>
    %113 = arith.addf %111, %112 : vector<8x128xf32>
    %114 = arith.mulf %103, %79 : vector<8x128xf32>
    %115 = arith.mulf %95, %105 : vector<8x128xf32>
    %116 = arith.addf %114, %115 : vector<8x128xf32>
    %117 = math.tanh %116 : vector<8x128xf32>
    %118 = arith.mulf %113, %117 : vector<8x128xf32>
    %c16_53 = arith.constant 16 : index
    %c0_54 = arith.constant 0 : index
    %119 = vector.load %arg14[%c16_53, %c0_54] : memref<64x128xf32, #tpu.memory_space<vmem>>, vector<8x128xf32>
    tpu.vector_store %arg14[%c16_53, %c0_54], %118 {strides = array<i32>} : memref<64x128xf32, #tpu.memory_space<vmem>>, vector<8x128xf32>,
    %c24 = arith.constant 24 : index
    %c0_55 = arith.constant 0 : index
    %120 = vector.load %arg13[%c24, %c0_55] : memref<64x512xf32, #tpu.memory_space<vmem>>, vector<8x512xf32>
    %121 = arith.truncf %118 : vector<8x128xf32> to vector<8x128xbf16>
    %c0_56 = arith.constant 0 : index
    %c0_57 = arith.constant 0 : index
    %122 = vector.load %arg2[%c0_56, %c0_57] : memref<128x512xbf16, #tpu.memory_space<vmem>>, vector<128x512xbf16>
    %cst_58 = arith.constant dense<0.000000e+00> : vector<8x512xf32>
    %123 = tpu.matmul %121, %122, %cst_58 {dimension_numbers = #tpu.dot_dimension_numbers<[1], [0], [0], [1], [0, 0, 1, 1], [], []>} : vector<8x128xbf16>, vector<128x512xbf16>, vector<8x512xf32> -> vector<8x512xf32>
    %124 = arith.addf %120, %123 : vector<8x512xf32>
    %125 = vector.extract_strided_slice %124 {offsets = [0, 0], sizes = [8, 128], strides = [1, 1]} : vector<8x512xf32> to vector<8x128xf32>
    %cst_59 = arith.constant 5.000000e-01 : f32
    %126 = vector.broadcast %cst_59 : f32 to vector<8x128xf32>
    %127 = arith.mulf %126, %125 : vector<8x128xf32>
    %128 = math.tanh %127 : vector<8x128xf32>
    %cst_60 = arith.constant 5.000000e-01 : f32
    %129 = vector.broadcast %cst_60 : f32 to vector<8x128xf32>
    %130 = arith.mulf %129, %128 : vector<8x128xf32>
    %cst_61 = arith.constant 5.000000e-01 : f32
    %131 = vector.broadcast %cst_61 : f32 to vector<8x128xf32>
    %132 = arith.addf %130, %131 : vector<8x128xf32>
    %133 = vector.extract_strided_slice %124 {offsets = [0, 128], sizes = [8, 128], strides = [1, 1]} : vector<8x512xf32> to vector<8x128xf32>
    %cst_62 = arith.constant 5.000000e-01 : f32
    %134 = vector.broadcast %cst_62 : f32 to vector<8x128xf32>
    %135 = arith.mulf %134, %133 : vector<8x128xf32>
    %136 = math.tanh %135 : vector<8x128xf32>
    %cst_63 = arith.constant 5.000000e-01 : f32
    %137 = vector.broadcast %cst_63 : f32 to vector<8x128xf32>
    %138 = arith.mulf %137, %136 : vector<8x128xf32>
    %cst_64 = arith.constant 5.000000e-01 : f32
    %139 = vector.broadcast %cst_64 : f32 to vector<8x128xf32>
    %140 = arith.addf %138, %139 : vector<8x128xf32>
    %141 = vector.extract_strided_slice %124 {offsets = [0, 256], sizes = [8, 128], strides = [1, 1]} : vector<8x512xf32> to vector<8x128xf32>
    %142 = math.tanh %141 : vector<8x128xf32>
    %143 = vector.extract_strided_slice %124 {offsets = [0, 384], sizes = [8, 128], strides = [1, 1]} : vector<8x512xf32> to vector<8x128xf32>
    %cst_65 = arith.constant 5.000000e-01 : f32
    %144 = vector.broadcast %cst_65 : f32 to vector<8x128xf32>
    %145 = arith.mulf %144, %143 : vector<8x128xf32>
    %146 = math.tanh %145 : vector<8x128xf32>
    %cst_66 = arith.constant 5.000000e-01 : f32
    %147 = vector.broadcast %cst_66 : f32 to vector<8x128xf32>
    %148 = arith.mulf %147, %146 : vector<8x128xf32>
    %cst_67 = arith.constant 5.000000e-01 : f32
    %149 = vector.broadcast %cst_67 : f32 to vector<8x128xf32>
    %150 = arith.addf %148, %149 : vector<8x128xf32>
    %151 = arith.mulf %140, %116 : vector<8x128xf32>
    %152 = arith.mulf %132, %142 : vector<8x128xf32>
    %153 = arith.addf %151, %152 : vector<8x128xf32>
    %154 = math.tanh %153 : vector<8x128xf32>
    %155 = arith.mulf %150, %154 : vector<8x128xf32>
    %c24_68 = arith.constant 24 : index
    %c0_69 = arith.constant 0 : index
    %156 = vector.load %arg14[%c24_68, %c0_69] : memref<64x128xf32, #tpu.memory_space<vmem>>, vector<8x128xf32>
    tpu.vector_store %arg14[%c24_68, %c0_69], %155 {strides = array<i32>} : memref<64x128xf32, #tpu.memory_space<vmem>>, vector<8x128xf32>,
    %c32 = arith.constant 32 : index
    %c0_70 = arith.constant 0 : index
    %157 = vector.load %arg13[%c32, %c0_70] : memref<64x512xf32, #tpu.memory_space<vmem>>, vector<8x512xf32>
    %158 = arith.truncf %155 : vector<8x128xf32> to vector<8x128xbf16>
    %c0_71 = arith.constant 0 : index
    %c0_72 = arith.constant 0 : index
    %159 = vector.load %arg2[%c0_71, %c0_72] : memref<128x512xbf16, #tpu.memory_space<vmem>>, vector<128x512xbf16>
    %cst_73 = arith.constant dense<0.000000e+00> : vector<8x512xf32>
    %160 = tpu.matmul %158, %159, %cst_73 {dimension_numbers = #tpu.dot_dimension_numbers<[1], [0], [0], [1], [0, 0, 1, 1], [], []>} : vector<8x128xbf16>, vector<128x512xbf16>, vector<8x512xf32> -> vector<8x512xf32>
    %161 = arith.addf %157, %160 : vector<8x512xf32>
    %162 = vector.extract_strided_slice %161 {offsets = [0, 0], sizes = [8, 128], strides = [1, 1]} : vector<8x512xf32> to vector<8x128xf32>
    %cst_74 = arith.constant 5.000000e-01 : f32
    %163 = vector.broadcast %cst_74 : f32 to vector<8x128xf32>
    %164 = arith.mulf %163, %162 : vector<8x128xf32>
    %165 = math.tanh %164 : vector<8x128xf32>
    %cst_75 = arith.constant 5.000000e-01 : f32
    %166 = vector.broadcast %cst_75 : f32 to vector<8x128xf32>
    %167 = arith.mulf %166, %165 : vector<8x128xf32>
    %cst_76 = arith.constant 5.000000e-01 : f32
    %168 = vector.broadcast %cst_76 : f32 to vector<8x128xf32>
    %169 = arith.addf %167, %168 : vector<8x128xf32>
    %170 = vector.extract_strided_slice %161 {offsets = [0, 128], sizes = [8, 128], strides = [1, 1]} : vector<8x512xf32> to vector<8x128xf32>
    %cst_77 = arith.constant 5.000000e-01 : f32
    %171 = vector.broadcast %cst_77 : f32 to vector<8x128xf32>
    %172 = arith.mulf %171, %170 : vector<8x128xf32>
    %173 = math.tanh %172 : vector<8x128xf32>
    %cst_78 = arith.constant 5.000000e-01 : f32
    %174 = vector.broadcast %cst_78 : f32 to vector<8x128xf32>
    %175 = arith.mulf %174, %173 : vector<8x128xf32>
    %cst_79 = arith.constant 5.000000e-01 : f32
    %176 = vector.broadcast %cst_79 : f32 to vector<8x128xf32>
    %177 = arith.addf %175, %176 : vector<8x128xf32>
    %178 = vector.extract_strided_slice %161 {offsets = [0, 256], sizes = [8, 128], strides = [1, 1]} : vector<8x512xf32> to vector<8x128xf32>
    %179 = math.tanh %178 : vector<8x128xf32>
    %180 = vector.extract_strided_slice %161 {offsets = [0, 384], sizes = [8, 128], strides = [1, 1]} : vector<8x512xf32> to vector<8x128xf32>
    %cst_80 = arith.constant 5.000000e-01 : f32
    %181 = vector.broadcast %cst_80 : f32 to vector<8x128xf32>
    %182 = arith.mulf %181, %180 : vector<8x128xf32>
    %183 = math.tanh %182 : vector<8x128xf32>
    %cst_81 = arith.constant 5.000000e-01 : f32
    %184 = vector.broadcast %cst_81 : f32 to vector<8x128xf32>
    %185 = arith.mulf %184, %183 : vector<8x128xf32>
    %cst_82 = arith.constant 5.000000e-01 : f32
    %186 = vector.broadcast %cst_82 : f32 to vector<8x128xf32>
    %187 = arith.addf %185, %186 : vector<8x128xf32>
    %188 = arith.mulf %177, %153 : vector<8x128xf32>
    %189 = arith.mulf %169, %179 : vector<8x128xf32>
    %190 = arith.addf %188, %189 : vector<8x128xf32>
    %191 = math.tanh %190 : vector<8x128xf32>
    %192 = arith.mulf %187, %191 : vector<8x128xf32>
    %c32_83 = arith.constant 32 : index
    %c0_84 = arith.constant 0 : index
    %193 = vector.load %arg14[%c32_83, %c0_84] : memref<64x128xf32, #tpu.memory_space<vmem>>, vector<8x128xf32>
    tpu.vector_store %arg14[%c32_83, %c0_84], %192 {strides = array<i32>} : memref<64x128xf32, #tpu.memory_space<vmem>>, vector<8x128xf32>,
    %c40 = arith.constant 40 : index
    %c0_85 = arith.constant 0 : index
    %194 = vector.load %arg13[%c40, %c0_85] : memref<64x512xf32, #tpu.memory_space<vmem>>, vector<8x512xf32>
    %195 = arith.truncf %192 : vector<8x128xf32> to vector<8x128xbf16>
    %c0_86 = arith.constant 0 : index
    %c0_87 = arith.constant 0 : index
    %196 = vector.load %arg2[%c0_86, %c0_87] : memref<128x512xbf16, #tpu.memory_space<vmem>>, vector<128x512xbf16>
    %cst_88 = arith.constant dense<0.000000e+00> : vector<8x512xf32>
    %197 = tpu.matmul %195, %196, %cst_88 {dimension_numbers = #tpu.dot_dimension_numbers<[1], [0], [0], [1], [0, 0, 1, 1], [], []>} : vector<8x128xbf16>, vector<128x512xbf16>, vector<8x512xf32> -> vector<8x512xf32>
    %198 = arith.addf %194, %197 : vector<8x512xf32>
    %199 = vector.extract_strided_slice %198 {offsets = [0, 0], sizes = [8, 128], strides = [1, 1]} : vector<8x512xf32> to vector<8x128xf32>
    %cst_89 = arith.constant 5.000000e-01 : f32
    %200 = vector.broadcast %cst_89 : f32 to vector<8x128xf32>
    %201 = arith.mulf %200, %199 : vector<8x128xf32>
    %202 = math.tanh %201 : vector<8x128xf32>
    %cst_90 = arith.constant 5.000000e-01 : f32
    %203 = vector.broadcast %cst_90 : f32 to vector<8x128xf32>
    %204 = arith.mulf %203, %202 : vector<8x128xf32>
    %cst_91 = arith.constant 5.000000e-01 : f32
    %205 = vector.broadcast %cst_91 : f32 to vector<8x128xf32>
    %206 = arith.addf %204, %205 : vector<8x128xf32>
    %207 = vector.extract_strided_slice %198 {offsets = [0, 128], sizes = [8, 128], strides = [1, 1]} : vector<8x512xf32> to vector<8x128xf32>
    %cst_92 = arith.constant 5.000000e-01 : f32
    %208 = vector.broadcast %cst_92 : f32 to vector<8x128xf32>
    %209 = arith.mulf %208, %207 : vector<8x128xf32>
    %210 = math.tanh %209 : vector<8x128xf32>
    %cst_93 = arith.constant 5.000000e-01 : f32
    %211 = vector.broadcast %cst_93 : f32 to vector<8x128xf32>
    %212 = arith.mulf %211, %210 : vector<8x128xf32>
    %cst_94 = arith.constant 5.000000e-01 : f32
    %213 = vector.broadcast %cst_94 : f32 to vector<8x128xf32>
    %214 = arith.addf %212, %213 : vector<8x128xf32>
    %215 = vector.extract_strided_slice %198 {offsets = [0, 256], sizes = [8, 128], strides = [1, 1]} : vector<8x512xf32> to vector<8x128xf32>
    %216 = math.tanh %215 : vector<8x128xf32>
    %217 = vector.extract_strided_slice %198 {offsets = [0, 384], sizes = [8, 128], strides = [1, 1]} : vector<8x512xf32> to vector<8x128xf32>
    %cst_95 = arith.constant 5.000000e-01 : f32
    %218 = vector.broadcast %cst_95 : f32 to vector<8x128xf32>
    %219 = arith.mulf %218, %217 : vector<8x128xf32>
    %220 = math.tanh %219 : vector<8x128xf32>
    %cst_96 = arith.constant 5.000000e-01 : f32
    %221 = vector.broadcast %cst_96 : f32 to vector<8x128xf32>
    %222 = arith.mulf %221, %220 : vector<8x128xf32>
    %cst_97 = arith.constant 5.000000e-01 : f32
    %223 = vector.broadcast %cst_97 : f32 to vector<8x128xf32>
    %224 = arith.addf %222, %223 : vector<8x128xf32>
    %225 = arith.mulf %214, %190 : vector<8x128xf32>
    %226 = arith.mulf %206, %216 : vector<8x128xf32>
    %227 = arith.addf %225, %226 : vector<8x128xf32>
    %228 = math.tanh %227 : vector<8x128xf32>
    %229 = arith.mulf %224, %228 : vector<8x128xf32>
    %c40_98 = arith.constant 40 : index
    %c0_99 = arith.constant 0 : index
    %230 = vector.load %arg14[%c40_98, %c0_99] : memref<64x128xf32, #tpu.memory_space<vmem>>, vector<8x128xf32>
    tpu.vector_store %arg14[%c40_98, %c0_99], %229 {strides = array<i32>} : memref<64x128xf32, #tpu.memory_space<vmem>>, vector<8x128xf32>,
    %c48 = arith.constant 48 : index
    %c0_100 = arith.constant 0 : index
    %231 = vector.load %arg13[%c48, %c0_100] : memref<64x512xf32, #tpu.memory_space<vmem>>, vector<8x512xf32>
    %232 = arith.truncf %229 : vector<8x128xf32> to vector<8x128xbf16>
    %c0_101 = arith.constant 0 : index
    %c0_102 = arith.constant 0 : index
    %233 = vector.load %arg2[%c0_101, %c0_102] : memref<128x512xbf16, #tpu.memory_space<vmem>>, vector<128x512xbf16>
    %cst_103 = arith.constant dense<0.000000e+00> : vector<8x512xf32>
    %234 = tpu.matmul %232, %233, %cst_103 {dimension_numbers = #tpu.dot_dimension_numbers<[1], [0], [0], [1], [0, 0, 1, 1], [], []>} : vector<8x128xbf16>, vector<128x512xbf16>, vector<8x512xf32> -> vector<8x512xf32>
    %235 = arith.addf %231, %234 : vector<8x512xf32>
    %236 = vector.extract_strided_slice %235 {offsets = [0, 0], sizes = [8, 128], strides = [1, 1]} : vector<8x512xf32> to vector<8x128xf32>
    %cst_104 = arith.constant 5.000000e-01 : f32
    %237 = vector.broadcast %cst_104 : f32 to vector<8x128xf32>
    %238 = arith.mulf %237, %236 : vector<8x128xf32>
    %239 = math.tanh %238 : vector<8x128xf32>
    %cst_105 = arith.constant 5.000000e-01 : f32
    %240 = vector.broadcast %cst_105 : f32 to vector<8x128xf32>
    %241 = arith.mulf %240, %239 : vector<8x128xf32>
    %cst_106 = arith.constant 5.000000e-01 : f32
    %242 = vector.broadcast %cst_106 : f32 to vector<8x128xf32>
    %243 = arith.addf %241, %242 : vector<8x128xf32>
    %244 = vector.extract_strided_slice %235 {offsets = [0, 128], sizes = [8, 128], strides = [1, 1]} : vector<8x512xf32> to vector<8x128xf32>
    %cst_107 = arith.constant 5.000000e-01 : f32
    %245 = vector.broadcast %cst_107 : f32 to vector<8x128xf32>
    %246 = arith.mulf %245, %244 : vector<8x128xf32>
    %247 = math.tanh %246 : vector<8x128xf32>
    %cst_108 = arith.constant 5.000000e-01 : f32
    %248 = vector.broadcast %cst_108 : f32 to vector<8x128xf32>
    %249 = arith.mulf %248, %247 : vector<8x128xf32>
    %cst_109 = arith.constant 5.000000e-01 : f32
    %250 = vector.broadcast %cst_109 : f32 to vector<8x128xf32>
    %251 = arith.addf %249, %250 : vector<8x128xf32>
    %252 = vector.extract_strided_slice %235 {offsets = [0, 256], sizes = [8, 128], strides = [1, 1]} : vector<8x512xf32> to vector<8x128xf32>
    %253 = math.tanh %252 : vector<8x128xf32>
    %254 = vector.extract_strided_slice %235 {offsets = [0, 384], sizes = [8, 128], strides = [1, 1]} : vector<8x512xf32> to vector<8x128xf32>
    %cst_110 = arith.constant 5.000000e-01 : f32
    %255 = vector.broadcast %cst_110 : f32 to vector<8x128xf32>
    %256 = arith.mulf %255, %254 : vector<8x128xf32>
    %257 = math.tanh %256 : vector<8x128xf32>
    %cst_111 = arith.constant 5.000000e-01 : f32
    %258 = vector.broadcast %cst_111 : f32 to vector<8x128xf32>
    %259 = arith.mulf %258, %257 : vector<8x128xf32>
    %cst_112 = arith.constant 5.000000e-01 : f32
    %260 = vector.broadcast %cst_112 : f32 to vector<8x128xf32>
    %261 = arith.addf %259, %260 : vector<8x128xf32>
    %262 = arith.mulf %251, %227 : vector<8x128xf32>
    %263 = arith.mulf %243, %253 : vector<8x128xf32>
    %264 = arith.addf %262, %263 : vector<8x128xf32>
    %265 = math.tanh %264 : vector<8x128xf32>
    %266 = arith.mulf %261, %265 : vector<8x128xf32>
    %c48_113 = arith.constant 48 : index
    %c0_114 = arith.constant 0 : index
    %267 = vector.load %arg14[%c48_113, %c0_114] : memref<64x128xf32, #tpu.memory_space<vmem>>, vector<8x128xf32>
    tpu.vector_store %arg14[%c48_113, %c0_114], %266 {strides = array<i32>} : memref<64x128xf32, #tpu.memory_space<vmem>>, vector<8x128xf32>,
    %c56 = arith.constant 56 : index
    %c0_115 = arith.constant 0 : index
    %268 = vector.load %arg13[%c56, %c0_115] : memref<64x512xf32, #tpu.memory_space<vmem>>, vector<8x512xf32>
    %269 = arith.truncf %266 : vector<8x128xf32> to vector<8x128xbf16>
    %c0_116 = arith.constant 0 : index
    %c0_117 = arith.constant 0 : index
    %270 = vector.load %arg2[%c0_116, %c0_117] : memref<128x512xbf16, #tpu.memory_space<vmem>>, vector<128x512xbf16>
    %cst_118 = arith.constant dense<0.000000e+00> : vector<8x512xf32>
    %271 = tpu.matmul %269, %270, %cst_118 {dimension_numbers = #tpu.dot_dimension_numbers<[1], [0], [0], [1], [0, 0, 1, 1], [], []>} : vector<8x128xbf16>, vector<128x512xbf16>, vector<8x512xf32> -> vector<8x512xf32>
    %272 = arith.addf %268, %271 : vector<8x512xf32>
    %273 = vector.extract_strided_slice %272 {offsets = [0, 0], sizes = [8, 128], strides = [1, 1]} : vector<8x512xf32> to vector<8x128xf32>
    %cst_119 = arith.constant 5.000000e-01 : f32
    %274 = vector.broadcast %cst_119 : f32 to vector<8x128xf32>
    %275 = arith.mulf %274, %273 : vector<8x128xf32>
    %276 = math.tanh %275 : vector<8x128xf32>
    %cst_120 = arith.constant 5.000000e-01 : f32
    %277 = vector.broadcast %cst_120 : f32 to vector<8x128xf32>
    %278 = arith.mulf %277, %276 : vector<8x128xf32>
    %cst_121 = arith.constant 5.000000e-01 : f32
    %279 = vector.broadcast %cst_121 : f32 to vector<8x128xf32>
    %280 = arith.addf %278, %279 : vector<8x128xf32>
    %281 = vector.extract_strided_slice %272 {offsets = [0, 128], sizes = [8, 128], strides = [1, 1]} : vector<8x512xf32> to vector<8x128xf32>
    %cst_122 = arith.constant 5.000000e-01 : f32
    %282 = vector.broadcast %cst_122 : f32 to vector<8x128xf32>
    %283 = arith.mulf %282, %281 : vector<8x128xf32>
    %284 = math.tanh %283 : vector<8x128xf32>
    %cst_123 = arith.constant 5.000000e-01 : f32
    %285 = vector.broadcast %cst_123 : f32 to vector<8x128xf32>
    %286 = arith.mulf %285, %284 : vector<8x128xf32>
    %cst_124 = arith.constant 5.000000e-01 : f32
    %287 = vector.broadcast %cst_124 : f32 to vector<8x128xf32>
    %288 = arith.addf %286, %287 : vector<8x128xf32>
    %289 = vector.extract_strided_slice %272 {offsets = [0, 256], sizes = [8, 128], strides = [1, 1]} : vector<8x512xf32> to vector<8x128xf32>
    %290 = math.tanh %289 : vector<8x128xf32>
    %291 = vector.extract_strided_slice %272 {offsets = [0, 384], sizes = [8, 128], strides = [1, 1]} : vector<8x512xf32> to vector<8x128xf32>
    %cst_125 = arith.constant 5.000000e-01 : f32
    %292 = vector.broadcast %cst_125 : f32 to vector<8x128xf32>
    %293 = arith.mulf %292, %291 : vector<8x128xf32>
    %294 = math.tanh %293 : vector<8x128xf32>
    %cst_126 = arith.constant 5.000000e-01 : f32
    %295 = vector.broadcast %cst_126 : f32 to vector<8x128xf32>
    %296 = arith.mulf %295, %294 : vector<8x128xf32>
    %cst_127 = arith.constant 5.000000e-01 : f32
    %297 = vector.broadcast %cst_127 : f32 to vector<8x128xf32>
    %298 = arith.addf %296, %297 : vector<8x128xf32>
    %299 = arith.mulf %288, %264 : vector<8x128xf32>
    %300 = arith.mulf %280, %290 : vector<8x128xf32>
    %301 = arith.addf %299, %300 : vector<8x128xf32>
    %302 = math.tanh %301 : vector<8x128xf32>
    %303 = arith.mulf %298, %302 : vector<8x128xf32>
    %c56_128 = arith.constant 56 : index
    %c0_129 = arith.constant 0 : index
    %304 = vector.load %arg14[%c56_128, %c0_129] : memref<64x128xf32, #tpu.memory_space<vmem>>, vector<8x128xf32>
    tpu.vector_store %arg14[%c56_128, %c0_129], %303 {strides = array<i32>} : memref<64x128xf32, #tpu.memory_space<vmem>>, vector<8x128xf32>,
    %c0_130 = arith.constant 0 : index
    %c0_131 = arith.constant 0 : index
    %305 = vector.load %arg14[%c0_130, %c0_131] : memref<64x128xf32, #tpu.memory_space<vmem>>, vector<64x128xf32>
    %306 = arith.truncf %305 : vector<64x128xf32> to vector<64x128xbf16>
    %c0_132 = arith.constant 0 : index
    %c0_133 = arith.constant 0 : index
    %307 = vector.load %arg4[%c0_132, %c0_133] : memref<128x512xbf16, #tpu.memory_space<vmem>>, vector<128x512xbf16>
    %cst_134 = arith.constant dense<0.000000e+00> : vector<64x512xf32>
    %308 = tpu.matmul %306, %307, %cst_134 {dimension_numbers = #tpu.dot_dimension_numbers<[1], [0], [0], [1], [0, 0, 1, 1], [], []>} : vector<64x128xbf16>, vector<128x512xbf16>, vector<64x512xf32> -> vector<64x512xf32>
    %c0_135 = arith.constant 0 : index
    %c0_136 = arith.constant 0 : index
    %309 = vector.load %arg6[%c0_135, %c0_136] : memref<1x512xf32, #tpu.memory_space<vmem>>, vector<1x512xf32>
    %310 = vector.broadcast %309 : vector<1x512xf32> to vector<64x512xf32>
    %311 = arith.addf %308, %310 : vector<64x512xf32>
    %c0_137 = arith.constant 0 : index
    %c0_138 = arith.constant 0 : index
    %312 = vector.load %arg13[%c0_137, %c0_138] : memref<64x512xf32, #tpu.memory_space<vmem>>, vector<64x512xf32>
    tpu.vector_store %arg13[%c0_137, %c0_138], %311 {strides = array<i32>} : memref<64x512xf32, #tpu.memory_space<vmem>>, vector<64x512xf32>,
    %cst_139 = arith.constant 0.000000e+00 : f32
    %313 = vector.broadcast %cst_139 : f32 to vector<8x128xf32>
    %cst_140 = arith.constant 0.000000e+00 : f32
    %314 = vector.broadcast %cst_140 : f32 to vector<8x128xf32>
    %c0_141 = arith.constant 0 : index
    %c0_142 = arith.constant 0 : index
    %315 = vector.load %arg13[%c0_141, %c0_142] : memref<64x512xf32, #tpu.memory_space<vmem>>, vector<8x512xf32>
    %316 = arith.truncf %313 : vector<8x128xf32> to vector<8x128xbf16>
    %c0_143 = arith.constant 0 : index
    %c0_144 = arith.constant 0 : index
    %317 = vector.load %arg5[%c0_143, %c0_144] : memref<128x512xbf16, #tpu.memory_space<vmem>>, vector<128x512xbf16>
    %cst_145 = arith.constant dense<0.000000e+00> : vector<8x512xf32>
    %318 = tpu.matmul %316, %317, %cst_145 {dimension_numbers = #tpu.dot_dimension_numbers<[1], [0], [0], [1], [0, 0, 1, 1], [], []>} : vector<8x128xbf16>, vector<128x512xbf16>, vector<8x512xf32> -> vector<8x512xf32>
    %319 = arith.addf %315, %318 : vector<8x512xf32>
    %320 = vector.extract_strided_slice %319 {offsets = [0, 0], sizes = [8, 128], strides = [1, 1]} : vector<8x512xf32> to vector<8x128xf32>
    %cst_146 = arith.constant 5.000000e-01 : f32
    %321 = vector.broadcast %cst_146 : f32 to vector<8x128xf32>
    %322 = arith.mulf %321, %320 : vector<8x128xf32>
    %323 = math.tanh %322 : vector<8x128xf32>
    %cst_147 = arith.constant 5.000000e-01 : f32
    %324 = vector.broadcast %cst_147 : f32 to vector<8x128xf32>
    %325 = arith.mulf %324, %323 : vector<8x128xf32>
    %cst_148 = arith.constant 5.000000e-01 : f32
    %326 = vector.broadcast %cst_148 : f32 to vector<8x128xf32>
    %327 = arith.addf %325, %326 : vector<8x128xf32>
    %328 = vector.extract_strided_slice %319 {offsets = [0, 128], sizes = [8, 128], strides = [1, 1]} : vector<8x512xf32> to vector<8x128xf32>
    %cst_149 = arith.constant 5.000000e-01 : f32
    %329 = vector.broadcast %cst_149 : f32 to vector<8x128xf32>
    %330 = arith.mulf %329, %328 : vector<8x128xf32>
    %331 = math.tanh %330 : vector<8x128xf32>
    %cst_150 = arith.constant 5.000000e-01 : f32
    %332 = vector.broadcast %cst_150 : f32 to vector<8x128xf32>
    %333 = arith.mulf %332, %331 : vector<8x128xf32>
    %cst_151 = arith.constant 5.000000e-01 : f32
    %334 = vector.broadcast %cst_151 : f32 to vector<8x128xf32>
    %335 = arith.addf %333, %334 : vector<8x128xf32>
    %336 = vector.extract_strided_slice %319 {offsets = [0, 256], sizes = [8, 128], strides = [1, 1]} : vector<8x512xf32> to vector<8x128xf32>
    %337 = math.tanh %336 : vector<8x128xf32>
    %338 = vector.extract_strided_slice %319 {offsets = [0, 384], sizes = [8, 128], strides = [1, 1]} : vector<8x512xf32> to vector<8x128xf32>
    %cst_152 = arith.constant 5.000000e-01 : f32
    %339 = vector.broadcast %cst_152 : f32 to vector<8x128xf32>
    %340 = arith.mulf %339, %338 : vector<8x128xf32>
    %341 = math.tanh %340 : vector<8x128xf32>
    %cst_153 = arith.constant 5.000000e-01 : f32
    %342 = vector.broadcast %cst_153 : f32 to vector<8x128xf32>
    %343 = arith.mulf %342, %341 : vector<8x128xf32>
    %cst_154 = arith.constant 5.000000e-01 : f32
    %344 = vector.broadcast %cst_154 : f32 to vector<8x128xf32>
    %345 = arith.addf %343, %344 : vector<8x128xf32>
    %346 = arith.mulf %335, %314 : vector<8x128xf32>
    %347 = arith.mulf %327, %337 : vector<8x128xf32>
    %348 = arith.addf %346, %347 : vector<8x128xf32>
    %349 = math.tanh %348 : vector<8x128xf32>
    %350 = arith.mulf %345, %349 : vector<8x128xf32>
    %c0_155 = arith.constant 0 : index
    %c0_156 = arith.constant 0 : index
    %351 = vector.load %arg14[%c0_155, %c0_156] : memref<64x128xf32, #tpu.memory_space<vmem>>, vector<8x128xf32>
    tpu.vector_store %arg14[%c0_155, %c0_156], %350 {strides = array<i32>} : memref<64x128xf32, #tpu.memory_space<vmem>>, vector<8x128xf32>,
    %c8_157 = arith.constant 8 : index
    %c0_158 = arith.constant 0 : index
    %352 = vector.load %arg13[%c8_157, %c0_158] : memref<64x512xf32, #tpu.memory_space<vmem>>, vector<8x512xf32>
    %353 = arith.truncf %350 : vector<8x128xf32> to vector<8x128xbf16>
    %c0_159 = arith.constant 0 : index
    %c0_160 = arith.constant 0 : index
    %354 = vector.load %arg5[%c0_159, %c0_160] : memref<128x512xbf16, #tpu.memory_space<vmem>>, vector<128x512xbf16>
    %cst_161 = arith.constant dense<0.000000e+00> : vector<8x512xf32>
    %355 = tpu.matmul %353, %354, %cst_161 {dimension_numbers = #tpu.dot_dimension_numbers<[1], [0], [0], [1], [0, 0, 1, 1], [], []>} : vector<8x128xbf16>, vector<128x512xbf16>, vector<8x512xf32> -> vector<8x512xf32>
    %356 = arith.addf %352, %355 : vector<8x512xf32>
    %357 = vector.extract_strided_slice %356 {offsets = [0, 0], sizes = [8, 128], strides = [1, 1]} : vector<8x512xf32> to vector<8x128xf32>
    %cst_162 = arith.constant 5.000000e-01 : f32
    %358 = vector.broadcast %cst_162 : f32 to vector<8x128xf32>
    %359 = arith.mulf %358, %357 : vector<8x128xf32>
    %360 = math.tanh %359 : vector<8x128xf32>
    %cst_163 = arith.constant 5.000000e-01 : f32
    %361 = vector.broadcast %cst_163 : f32 to vector<8x128xf32>
    %362 = arith.mulf %361, %360 : vector<8x128xf32>
    %cst_164 = arith.constant 5.000000e-01 : f32
    %363 = vector.broadcast %cst_164 : f32 to vector<8x128xf32>
    %364 = arith.addf %362, %363 : vector<8x128xf32>
    %365 = vector.extract_strided_slice %356 {offsets = [0, 128], sizes = [8, 128], strides = [1, 1]} : vector<8x512xf32> to vector<8x128xf32>
    %cst_165 = arith.constant 5.000000e-01 : f32
    %366 = vector.broadcast %cst_165 : f32 to vector<8x128xf32>
    %367 = arith.mulf %366, %365 : vector<8x128xf32>
    %368 = math.tanh %367 : vector<8x128xf32>
    %cst_166 = arith.constant 5.000000e-01 : f32
    %369 = vector.broadcast %cst_166 : f32 to vector<8x128xf32>
    %370 = arith.mulf %369, %368 : vector<8x128xf32>
    %cst_167 = arith.constant 5.000000e-01 : f32
    %371 = vector.broadcast %cst_167 : f32 to vector<8x128xf32>
    %372 = arith.addf %370, %371 : vector<8x128xf32>
    %373 = vector.extract_strided_slice %356 {offsets = [0, 256], sizes = [8, 128], strides = [1, 1]} : vector<8x512xf32> to vector<8x128xf32>
    %374 = math.tanh %373 : vector<8x128xf32>
    %375 = vector.extract_strided_slice %356 {offsets = [0, 384], sizes = [8, 128], strides = [1, 1]} : vector<8x512xf32> to vector<8x128xf32>
    %cst_168 = arith.constant 5.000000e-01 : f32
    %376 = vector.broadcast %cst_168 : f32 to vector<8x128xf32>
    %377 = arith.mulf %376, %375 : vector<8x128xf32>
    %378 = math.tanh %377 : vector<8x128xf32>
    %cst_169 = arith.constant 5.000000e-01 : f32
    %379 = vector.broadcast %cst_169 : f32 to vector<8x128xf32>
    %380 = arith.mulf %379, %378 : vector<8x128xf32>
    %cst_170 = arith.constant 5.000000e-01 : f32
    %381 = vector.broadcast %cst_170 : f32 to vector<8x128xf32>
    %382 = arith.addf %380, %381 : vector<8x128xf32>
    %383 = arith.mulf %372, %348 : vector<8x128xf32>
    %384 = arith.mulf %364, %374 : vector<8x128xf32>
    %385 = arith.addf %383, %384 : vector<8x128xf32>
    %386 = math.tanh %385 : vector<8x128xf32>
    %387 = arith.mulf %382, %386 : vector<8x128xf32>
    %c8_171 = arith.constant 8 : index
    %c0_172 = arith.constant 0 : index
    %388 = vector.load %arg14[%c8_171, %c0_172] : memref<64x128xf32, #tpu.memory_space<vmem>>, vector<8x128xf32>
    tpu.vector_store %arg14[%c8_171, %c0_172], %387 {strides = array<i32>} : memref<64x128xf32, #tpu.memory_space<vmem>>, vector<8x128xf32>,
    %c16_173 = arith.constant 16 : index
    %c0_174 = arith.constant 0 : index
    %389 = vector.load %arg13[%c16_173, %c0_174] : memref<64x512xf32, #tpu.memory_space<vmem>>, vector<8x512xf32>
    %390 = arith.truncf %387 : vector<8x128xf32> to vector<8x128xbf16>
    %c0_175 = arith.constant 0 : index
    %c0_176 = arith.constant 0 : index
    %391 = vector.load %arg5[%c0_175, %c0_176] : memref<128x512xbf16, #tpu.memory_space<vmem>>, vector<128x512xbf16>
    %cst_177 = arith.constant dense<0.000000e+00> : vector<8x512xf32>
    %392 = tpu.matmul %390, %391, %cst_177 {dimension_numbers = #tpu.dot_dimension_numbers<[1], [0], [0], [1], [0, 0, 1, 1], [], []>} : vector<8x128xbf16>, vector<128x512xbf16>, vector<8x512xf32> -> vector<8x512xf32>
    %393 = arith.addf %389, %392 : vector<8x512xf32>
    %394 = vector.extract_strided_slice %393 {offsets = [0, 0], sizes = [8, 128], strides = [1, 1]} : vector<8x512xf32> to vector<8x128xf32>
    %cst_178 = arith.constant 5.000000e-01 : f32
    %395 = vector.broadcast %cst_178 : f32 to vector<8x128xf32>
    %396 = arith.mulf %395, %394 : vector<8x128xf32>
    %397 = math.tanh %396 : vector<8x128xf32>
    %cst_179 = arith.constant 5.000000e-01 : f32
    %398 = vector.broadcast %cst_179 : f32 to vector<8x128xf32>
    %399 = arith.mulf %398, %397 : vector<8x128xf32>
    %cst_180 = arith.constant 5.000000e-01 : f32
    %400 = vector.broadcast %cst_180 : f32 to vector<8x128xf32>
    %401 = arith.addf %399, %400 : vector<8x128xf32>
    %402 = vector.extract_strided_slice %393 {offsets = [0, 128], sizes = [8, 128], strides = [1, 1]} : vector<8x512xf32> to vector<8x128xf32>
    %cst_181 = arith.constant 5.000000e-01 : f32
    %403 = vector.broadcast %cst_181 : f32 to vector<8x128xf32>
    %404 = arith.mulf %403, %402 : vector<8x128xf32>
    %405 = math.tanh %404 : vector<8x128xf32>
    %cst_182 = arith.constant 5.000000e-01 : f32
    %406 = vector.broadcast %cst_182 : f32 to vector<8x128xf32>
    %407 = arith.mulf %406, %405 : vector<8x128xf32>
    %cst_183 = arith.constant 5.000000e-01 : f32
    %408 = vector.broadcast %cst_183 : f32 to vector<8x128xf32>
    %409 = arith.addf %407, %408 : vector<8x128xf32>
    %410 = vector.extract_strided_slice %393 {offsets = [0, 256], sizes = [8, 128], strides = [1, 1]} : vector<8x512xf32> to vector<8x128xf32>
    %411 = math.tanh %410 : vector<8x128xf32>
    %412 = vector.extract_strided_slice %393 {offsets = [0, 384], sizes = [8, 128], strides = [1, 1]} : vector<8x512xf32> to vector<8x128xf32>
    %cst_184 = arith.constant 5.000000e-01 : f32
    %413 = vector.broadcast %cst_184 : f32 to vector<8x128xf32>
    %414 = arith.mulf %413, %412 : vector<8x128xf32>
    %415 = math.tanh %414 : vector<8x128xf32>
    %cst_185 = arith.constant 5.000000e-01 : f32
    %416 = vector.broadcast %cst_185 : f32 to vector<8x128xf32>
    %417 = arith.mulf %416, %415 : vector<8x128xf32>
    %cst_186 = arith.constant 5.000000e-01 : f32
    %418 = vector.broadcast %cst_186 : f32 to vector<8x128xf32>
    %419 = arith.addf %417, %418 : vector<8x128xf32>
    %420 = arith.mulf %409, %385 : vector<8x128xf32>
    %421 = arith.mulf %401, %411 : vector<8x128xf32>
    %422 = arith.addf %420, %421 : vector<8x128xf32>
    %423 = math.tanh %422 : vector<8x128xf32>
    %424 = arith.mulf %419, %423 : vector<8x128xf32>
    %c16_187 = arith.constant 16 : index
    %c0_188 = arith.constant 0 : index
    %425 = vector.load %arg14[%c16_187, %c0_188] : memref<64x128xf32, #tpu.memory_space<vmem>>, vector<8x128xf32>
    tpu.vector_store %arg14[%c16_187, %c0_188], %424 {strides = array<i32>} : memref<64x128xf32, #tpu.memory_space<vmem>>, vector<8x128xf32>,
    %c24_189 = arith.constant 24 : index
    %c0_190 = arith.constant 0 : index
    %426 = vector.load %arg13[%c24_189, %c0_190] : memref<64x512xf32, #tpu.memory_space<vmem>>, vector<8x512xf32>
    %427 = arith.truncf %424 : vector<8x128xf32> to vector<8x128xbf16>
    %c0_191 = arith.constant 0 : index
    %c0_192 = arith.constant 0 : index
    %428 = vector.load %arg5[%c0_191, %c0_192] : memref<128x512xbf16, #tpu.memory_space<vmem>>, vector<128x512xbf16>
    %cst_193 = arith.constant dense<0.000000e+00> : vector<8x512xf32>
    %429 = tpu.matmul %427, %428, %cst_193 {dimension_numbers = #tpu.dot_dimension_numbers<[1], [0], [0], [1], [0, 0, 1, 1], [], []>} : vector<8x128xbf16>, vector<128x512xbf16>, vector<8x512xf32> -> vector<8x512xf32>
    %430 = arith.addf %426, %429 : vector<8x512xf32>
    %431 = vector.extract_strided_slice %430 {offsets = [0, 0], sizes = [8, 128], strides = [1, 1]} : vector<8x512xf32> to vector<8x128xf32>
    %cst_194 = arith.constant 5.000000e-01 : f32
    %432 = vector.broadcast %cst_194 : f32 to vector<8x128xf32>
    %433 = arith.mulf %432, %431 : vector<8x128xf32>
    %434 = math.tanh %433 : vector<8x128xf32>
    %cst_195 = arith.constant 5.000000e-01 : f32
    %435 = vector.broadcast %cst_195 : f32 to vector<8x128xf32>
    %436 = arith.mulf %435, %434 : vector<8x128xf32>
    %cst_196 = arith.constant 5.000000e-01 : f32
    %437 = vector.broadcast %cst_196 : f32 to vector<8x128xf32>
    %438 = arith.addf %436, %437 : vector<8x128xf32>
    %439 = vector.extract_strided_slice %430 {offsets = [0, 128], sizes = [8, 128], strides = [1, 1]} : vector<8x512xf32> to vector<8x128xf32>
    %cst_197 = arith.constant 5.000000e-01 : f32
    %440 = vector.broadcast %cst_197 : f32 to vector<8x128xf32>
    %441 = arith.mulf %440, %439 : vector<8x128xf32>
    %442 = math.tanh %441 : vector<8x128xf32>
    %cst_198 = arith.constant 5.000000e-01 : f32
    %443 = vector.broadcast %cst_198 : f32 to vector<8x128xf32>
    %444 = arith.mulf %443, %442 : vector<8x128xf32>
    %cst_199 = arith.constant 5.000000e-01 : f32
    %445 = vector.broadcast %cst_199 : f32 to vector<8x128xf32>
    %446 = arith.addf %444, %445 : vector<8x128xf32>
    %447 = vector.extract_strided_slice %430 {offsets = [0, 256], sizes = [8, 128], strides = [1, 1]} : vector<8x512xf32> to vector<8x128xf32>
    %448 = math.tanh %447 : vector<8x128xf32>
    %449 = vector.extract_strided_slice %430 {offsets = [0, 384], sizes = [8, 128], strides = [1, 1]} : vector<8x512xf32> to vector<8x128xf32>
    %cst_200 = arith.constant 5.000000e-01 : f32
    %450 = vector.broadcast %cst_200 : f32 to vector<8x128xf32>
    %451 = arith.mulf %450, %449 : vector<8x128xf32>
    %452 = math.tanh %451 : vector<8x128xf32>
    %cst_201 = arith.constant 5.000000e-01 : f32
    %453 = vector.broadcast %cst_201 : f32 to vector<8x128xf32>
    %454 = arith.mulf %453, %452 : vector<8x128xf32>
    %cst_202 = arith.constant 5.000000e-01 : f32
    %455 = vector.broadcast %cst_202 : f32 to vector<8x128xf32>
    %456 = arith.addf %454, %455 : vector<8x128xf32>
    %457 = arith.mulf %446, %422 : vector<8x128xf32>
    %458 = arith.mulf %438, %448 : vector<8x128xf32>
    %459 = arith.addf %457, %458 : vector<8x128xf32>
    %460 = math.tanh %459 : vector<8x128xf32>
    %461 = arith.mulf %456, %460 : vector<8x128xf32>
    %c24_203 = arith.constant 24 : index
    %c0_204 = arith.constant 0 : index
    %462 = vector.load %arg14[%c24_203, %c0_204] : memref<64x128xf32, #tpu.memory_space<vmem>>, vector<8x128xf32>
    tpu.vector_store %arg14[%c24_203, %c0_204], %461 {strides = array<i32>} : memref<64x128xf32, #tpu.memory_space<vmem>>, vector<8x128xf32>,
    %c32_205 = arith.constant 32 : index
    %c0_206 = arith.constant 0 : index
    %463 = vector.load %arg13[%c32_205, %c0_206] : memref<64x512xf32, #tpu.memory_space<vmem>>, vector<8x512xf32>
    %464 = arith.truncf %461 : vector<8x128xf32> to vector<8x128xbf16>
    %c0_207 = arith.constant 0 : index
    %c0_208 = arith.constant 0 : index
    %465 = vector.load %arg5[%c0_207, %c0_208] : memref<128x512xbf16, #tpu.memory_space<vmem>>, vector<128x512xbf16>
    %cst_209 = arith.constant dense<0.000000e+00> : vector<8x512xf32>
    %466 = tpu.matmul %464, %465, %cst_209 {dimension_numbers = #tpu.dot_dimension_numbers<[1], [0], [0], [1], [0, 0, 1, 1], [], []>} : vector<8x128xbf16>, vector<128x512xbf16>, vector<8x512xf32> -> vector<8x512xf32>
    %467 = arith.addf %463, %466 : vector<8x512xf32>
    %468 = vector.extract_strided_slice %467 {offsets = [0, 0], sizes = [8, 128], strides = [1, 1]} : vector<8x512xf32> to vector<8x128xf32>
    %cst_210 = arith.constant 5.000000e-01 : f32
    %469 = vector.broadcast %cst_210 : f32 to vector<8x128xf32>
    %470 = arith.mulf %469, %468 : vector<8x128xf32>
    %471 = math.tanh %470 : vector<8x128xf32>
    %cst_211 = arith.constant 5.000000e-01 : f32
    %472 = vector.broadcast %cst_211 : f32 to vector<8x128xf32>
    %473 = arith.mulf %472, %471 : vector<8x128xf32>
    %cst_212 = arith.constant 5.000000e-01 : f32
    %474 = vector.broadcast %cst_212 : f32 to vector<8x128xf32>
    %475 = arith.addf %473, %474 : vector<8x128xf32>
    %476 = vector.extract_strided_slice %467 {offsets = [0, 128], sizes = [8, 128], strides = [1, 1]} : vector<8x512xf32> to vector<8x128xf32>
    %cst_213 = arith.constant 5.000000e-01 : f32
    %477 = vector.broadcast %cst_213 : f32 to vector<8x128xf32>
    %478 = arith.mulf %477, %476 : vector<8x128xf32>
    %479 = math.tanh %478 : vector<8x128xf32>
    %cst_214 = arith.constant 5.000000e-01 : f32
    %480 = vector.broadcast %cst_214 : f32 to vector<8x128xf32>
    %481 = arith.mulf %480, %479 : vector<8x128xf32>
    %cst_215 = arith.constant 5.000000e-01 : f32
    %482 = vector.broadcast %cst_215 : f32 to vector<8x128xf32>
    %483 = arith.addf %481, %482 : vector<8x128xf32>
    %484 = vector.extract_strided_slice %467 {offsets = [0, 256], sizes = [8, 128], strides = [1, 1]} : vector<8x512xf32> to vector<8x128xf32>
    %485 = math.tanh %484 : vector<8x128xf32>
    %486 = vector.extract_strided_slice %467 {offsets = [0, 384], sizes = [8, 128], strides = [1, 1]} : vector<8x512xf32> to vector<8x128xf32>
    %cst_216 = arith.constant 5.000000e-01 : f32
    %487 = vector.broadcast %cst_216 : f32 to vector<8x128xf32>
    %488 = arith.mulf %487, %486 : vector<8x128xf32>
    %489 = math.tanh %488 : vector<8x128xf32>
    %cst_217 = arith.constant 5.000000e-01 : f32
    %490 = vector.broadcast %cst_217 : f32 to vector<8x128xf32>
    %491 = arith.mulf %490, %489 : vector<8x128xf32>
    %cst_218 = arith.constant 5.000000e-01 : f32
    %492 = vector.broadcast %cst_218 : f32 to vector<8x128xf32>
    %493 = arith.addf %491, %492 : vector<8x128xf32>
    %494 = arith.mulf %483, %459 : vector<8x128xf32>
    %495 = arith.mulf %475, %485 : vector<8x128xf32>
    %496 = arith.addf %494, %495 : vector<8x128xf32>
    %497 = math.tanh %496 : vector<8x128xf32>
    %498 = arith.mulf %493, %497 : vector<8x128xf32>
    %c32_219 = arith.constant 32 : index
    %c0_220 = arith.constant 0 : index
    %499 = vector.load %arg14[%c32_219, %c0_220] : memref<64x128xf32, #tpu.memory_space<vmem>>, vector<8x128xf32>
    tpu.vector_store %arg14[%c32_219, %c0_220], %498 {strides = array<i32>} : memref<64x128xf32, #tpu.memory_space<vmem>>, vector<8x128xf32>,
    %c40_221 = arith.constant 40 : index
    %c0_222 = arith.constant 0 : index
    %500 = vector.load %arg13[%c40_221, %c0_222] : memref<64x512xf32, #tpu.memory_space<vmem>>, vector<8x512xf32>
    %501 = arith.truncf %498 : vector<8x128xf32> to vector<8x128xbf16>
    %c0_223 = arith.constant 0 : index
    %c0_224 = arith.constant 0 : index
    %502 = vector.load %arg5[%c0_223, %c0_224] : memref<128x512xbf16, #tpu.memory_space<vmem>>, vector<128x512xbf16>
    %cst_225 = arith.constant dense<0.000000e+00> : vector<8x512xf32>
    %503 = tpu.matmul %501, %502, %cst_225 {dimension_numbers = #tpu.dot_dimension_numbers<[1], [0], [0], [1], [0, 0, 1, 1], [], []>} : vector<8x128xbf16>, vector<128x512xbf16>, vector<8x512xf32> -> vector<8x512xf32>
    %504 = arith.addf %500, %503 : vector<8x512xf32>
    %505 = vector.extract_strided_slice %504 {offsets = [0, 0], sizes = [8, 128], strides = [1, 1]} : vector<8x512xf32> to vector<8x128xf32>
    %cst_226 = arith.constant 5.000000e-01 : f32
    %506 = vector.broadcast %cst_226 : f32 to vector<8x128xf32>
    %507 = arith.mulf %506, %505 : vector<8x128xf32>
    %508 = math.tanh %507 : vector<8x128xf32>
    %cst_227 = arith.constant 5.000000e-01 : f32
    %509 = vector.broadcast %cst_227 : f32 to vector<8x128xf32>
    %510 = arith.mulf %509, %508 : vector<8x128xf32>
    %cst_228 = arith.constant 5.000000e-01 : f32
    %511 = vector.broadcast %cst_228 : f32 to vector<8x128xf32>
    %512 = arith.addf %510, %511 : vector<8x128xf32>
    %513 = vector.extract_strided_slice %504 {offsets = [0, 128], sizes = [8, 128], strides = [1, 1]} : vector<8x512xf32> to vector<8x128xf32>
    %cst_229 = arith.constant 5.000000e-01 : f32
    %514 = vector.broadcast %cst_229 : f32 to vector<8x128xf32>
    %515 = arith.mulf %514, %513 : vector<8x128xf32>
    %516 = math.tanh %515 : vector<8x128xf32>
    %cst_230 = arith.constant 5.000000e-01 : f32
    %517 = vector.broadcast %cst_230 : f32 to vector<8x128xf32>
    %518 = arith.mulf %517, %516 : vector<8x128xf32>
    %cst_231 = arith.constant 5.000000e-01 : f32
    %519 = vector.broadcast %cst_231 : f32 to vector<8x128xf32>
    %520 = arith.addf %518, %519 : vector<8x128xf32>
    %521 = vector.extract_strided_slice %504 {offsets = [0, 256], sizes = [8, 128], strides = [1, 1]} : vector<8x512xf32> to vector<8x128xf32>
    %522 = math.tanh %521 : vector<8x128xf32>
    %523 = vector.extract_strided_slice %504 {offsets = [0, 384], sizes = [8, 128], strides = [1, 1]} : vector<8x512xf32> to vector<8x128xf32>
    %cst_232 = arith.constant 5.000000e-01 : f32
    %524 = vector.broadcast %cst_232 : f32 to vector<8x128xf32>
    %525 = arith.mulf %524, %523 : vector<8x128xf32>
    %526 = math.tanh %525 : vector<8x128xf32>
    %cst_233 = arith.constant 5.000000e-01 : f32
    %527 = vector.broadcast %cst_233 : f32 to vector<8x128xf32>
    %528 = arith.mulf %527, %526 : vector<8x128xf32>
    %cst_234 = arith.constant 5.000000e-01 : f32
    %529 = vector.broadcast %cst_234 : f32 to vector<8x128xf32>
    %530 = arith.addf %528, %529 : vector<8x128xf32>
    %531 = arith.mulf %520, %496 : vector<8x128xf32>
    %532 = arith.mulf %512, %522 : vector<8x128xf32>
    %533 = arith.addf %531, %532 : vector<8x128xf32>
    %534 = math.tanh %533 : vector<8x128xf32>
    %535 = arith.mulf %530, %534 : vector<8x128xf32>
    %c40_235 = arith.constant 40 : index
    %c0_236 = arith.constant 0 : index
    %536 = vector.load %arg14[%c40_235, %c0_236] : memref<64x128xf32, #tpu.memory_space<vmem>>, vector<8x128xf32>
    tpu.vector_store %arg14[%c40_235, %c0_236], %535 {strides = array<i32>} : memref<64x128xf32, #tpu.memory_space<vmem>>, vector<8x128xf32>,
    %c48_237 = arith.constant 48 : index
    %c0_238 = arith.constant 0 : index
    %537 = vector.load %arg13[%c48_237, %c0_238] : memref<64x512xf32, #tpu.memory_space<vmem>>, vector<8x512xf32>
    %538 = arith.truncf %535 : vector<8x128xf32> to vector<8x128xbf16>
    %c0_239 = arith.constant 0 : index
    %c0_240 = arith.constant 0 : index
    %539 = vector.load %arg5[%c0_239, %c0_240] : memref<128x512xbf16, #tpu.memory_space<vmem>>, vector<128x512xbf16>
    %cst_241 = arith.constant dense<0.000000e+00> : vector<8x512xf32>
    %540 = tpu.matmul %538, %539, %cst_241 {dimension_numbers = #tpu.dot_dimension_numbers<[1], [0], [0], [1], [0, 0, 1, 1], [], []>} : vector<8x128xbf16>, vector<128x512xbf16>, vector<8x512xf32> -> vector<8x512xf32>
    %541 = arith.addf %537, %540 : vector<8x512xf32>
    %542 = vector.extract_strided_slice %541 {offsets = [0, 0], sizes = [8, 128], strides = [1, 1]} : vector<8x512xf32> to vector<8x128xf32>
    %cst_242 = arith.constant 5.000000e-01 : f32
    %543 = vector.broadcast %cst_242 : f32 to vector<8x128xf32>
    %544 = arith.mulf %543, %542 : vector<8x128xf32>
    %545 = math.tanh %544 : vector<8x128xf32>
    %cst_243 = arith.constant 5.000000e-01 : f32
    %546 = vector.broadcast %cst_243 : f32 to vector<8x128xf32>
    %547 = arith.mulf %546, %545 : vector<8x128xf32>
    %cst_244 = arith.constant 5.000000e-01 : f32
    %548 = vector.broadcast %cst_244 : f32 to vector<8x128xf32>
    %549 = arith.addf %547, %548 : vector<8x128xf32>
    %550 = vector.extract_strided_slice %541 {offsets = [0, 128], sizes = [8, 128], strides = [1, 1]} : vector<8x512xf32> to vector<8x128xf32>
    %cst_245 = arith.constant 5.000000e-01 : f32
    %551 = vector.broadcast %cst_245 : f32 to vector<8x128xf32>
    %552 = arith.mulf %551, %550 : vector<8x128xf32>
    %553 = math.tanh %552 : vector<8x128xf32>
    %cst_246 = arith.constant 5.000000e-01 : f32
    %554 = vector.broadcast %cst_246 : f32 to vector<8x128xf32>
    %555 = arith.mulf %554, %553 : vector<8x128xf32>
    %cst_247 = arith.constant 5.000000e-01 : f32
    %556 = vector.broadcast %cst_247 : f32 to vector<8x128xf32>
    %557 = arith.addf %555, %556 : vector<8x128xf32>
    %558 = vector.extract_strided_slice %541 {offsets = [0, 256], sizes = [8, 128], strides = [1, 1]} : vector<8x512xf32> to vector<8x128xf32>
    %559 = math.tanh %558 : vector<8x128xf32>
    %560 = vector.extract_strided_slice %541 {offsets = [0, 384], sizes = [8, 128], strides = [1, 1]} : vector<8x512xf32> to vector<8x128xf32>
    %cst_248 = arith.constant 5.000000e-01 : f32
    %561 = vector.broadcast %cst_248 : f32 to vector<8x128xf32>
    %562 = arith.mulf %561, %560 : vector<8x128xf32>
    %563 = math.tanh %562 : vector<8x128xf32>
    %cst_249 = arith.constant 5.000000e-01 : f32
    %564 = vector.broadcast %cst_249 : f32 to vector<8x128xf32>
    %565 = arith.mulf %564, %563 : vector<8x128xf32>
    %cst_250 = arith.constant 5.000000e-01 : f32
    %566 = vector.broadcast %cst_250 : f32 to vector<8x128xf32>
    %567 = arith.addf %565, %566 : vector<8x128xf32>
    %568 = arith.mulf %557, %533 : vector<8x128xf32>
    %569 = arith.mulf %549, %559 : vector<8x128xf32>
    %570 = arith.addf %568, %569 : vector<8x128xf32>
    %571 = math.tanh %570 : vector<8x128xf32>
    %572 = arith.mulf %567, %571 : vector<8x128xf32>
    %c48_251 = arith.constant 48 : index
    %c0_252 = arith.constant 0 : index
    %573 = vector.load %arg14[%c48_251, %c0_252] : memref<64x128xf32, #tpu.memory_space<vmem>>, vector<8x128xf32>
    tpu.vector_store %arg14[%c48_251, %c0_252], %572 {strides = array<i32>} : memref<64x128xf32, #tpu.memory_space<vmem>>, vector<8x128xf32>,
    %c56_253 = arith.constant 56 : index
    %c0_254 = arith.constant 0 : index
    %574 = vector.load %arg13[%c56_253, %c0_254] : memref<64x512xf32, #tpu.memory_space<vmem>>, vector<8x512xf32>
    %575 = arith.truncf %572 : vector<8x128xf32> to vector<8x128xbf16>
    %c0_255 = arith.constant 0 : index
    %c0_256 = arith.constant 0 : index
    %576 = vector.load %arg5[%c0_255, %c0_256] : memref<128x512xbf16, #tpu.memory_space<vmem>>, vector<128x512xbf16>
    %cst_257 = arith.constant dense<0.000000e+00> : vector<8x512xf32>
    %577 = tpu.matmul %575, %576, %cst_257 {dimension_numbers = #tpu.dot_dimension_numbers<[1], [0], [0], [1], [0, 0, 1, 1], [], []>} : vector<8x128xbf16>, vector<128x512xbf16>, vector<8x512xf32> -> vector<8x512xf32>
    %578 = arith.addf %574, %577 : vector<8x512xf32>
    %579 = vector.extract_strided_slice %578 {offsets = [0, 0], sizes = [8, 128], strides = [1, 1]} : vector<8x512xf32> to vector<8x128xf32>
    %cst_258 = arith.constant 5.000000e-01 : f32
    %580 = vector.broadcast %cst_258 : f32 to vector<8x128xf32>
    %581 = arith.mulf %580, %579 : vector<8x128xf32>
    %582 = math.tanh %581 : vector<8x128xf32>
    %cst_259 = arith.constant 5.000000e-01 : f32
    %583 = vector.broadcast %cst_259 : f32 to vector<8x128xf32>
    %584 = arith.mulf %583, %582 : vector<8x128xf32>
    %cst_260 = arith.constant 5.000000e-01 : f32
    %585 = vector.broadcast %cst_260 : f32 to vector<8x128xf32>
    %586 = arith.addf %584, %585 : vector<8x128xf32>
    %587 = vector.extract_strided_slice %578 {offsets = [0, 128], sizes = [8, 128], strides = [1, 1]} : vector<8x512xf32> to vector<8x128xf32>
    %cst_261 = arith.constant 5.000000e-01 : f32
    %588 = vector.broadcast %cst_261 : f32 to vector<8x128xf32>
    %589 = arith.mulf %588, %587 : vector<8x128xf32>
    %590 = math.tanh %589 : vector<8x128xf32>
    %cst_262 = arith.constant 5.000000e-01 : f32
    %591 = vector.broadcast %cst_262 : f32 to vector<8x128xf32>
    %592 = arith.mulf %591, %590 : vector<8x128xf32>
    %cst_263 = arith.constant 5.000000e-01 : f32
    %593 = vector.broadcast %cst_263 : f32 to vector<8x128xf32>
    %594 = arith.addf %592, %593 : vector<8x128xf32>
    %595 = vector.extract_strided_slice %578 {offsets = [0, 256], sizes = [8, 128], strides = [1, 1]} : vector<8x512xf32> to vector<8x128xf32>
    %596 = math.tanh %595 : vector<8x128xf32>
    %597 = vector.extract_strided_slice %578 {offsets = [0, 384], sizes = [8, 128], strides = [1, 1]} : vector<8x512xf32> to vector<8x128xf32>
    %cst_264 = arith.constant 5.000000e-01 : f32
    %598 = vector.broadcast %cst_264 : f32 to vector<8x128xf32>
    %599 = arith.mulf %598, %597 : vector<8x128xf32>
    %600 = math.tanh %599 : vector<8x128xf32>
    %cst_265 = arith.constant 5.000000e-01 : f32
    %601 = vector.broadcast %cst_265 : f32 to vector<8x128xf32>
    %602 = arith.mulf %601, %600 : vector<8x128xf32>
    %cst_266 = arith.constant 5.000000e-01 : f32
    %603 = vector.broadcast %cst_266 : f32 to vector<8x128xf32>
    %604 = arith.addf %602, %603 : vector<8x128xf32>
    %605 = arith.mulf %594, %570 : vector<8x128xf32>
    %606 = arith.mulf %586, %596 : vector<8x128xf32>
    %607 = arith.addf %605, %606 : vector<8x128xf32>
    %608 = math.tanh %607 : vector<8x128xf32>
    %609 = arith.mulf %604, %608 : vector<8x128xf32>
    %c56_267 = arith.constant 56 : index
    %c0_268 = arith.constant 0 : index
    %610 = vector.load %arg14[%c56_267, %c0_268] : memref<64x128xf32, #tpu.memory_space<vmem>>, vector<8x128xf32>
    tpu.vector_store %arg14[%c56_267, %c0_268], %609 {strides = array<i32>} : memref<64x128xf32, #tpu.memory_space<vmem>>, vector<8x128xf32>,
    %c0_269 = arith.constant 0 : index
    %c0_270 = arith.constant 0 : index
    %611 = vector.load %arg14[%c0_269, %c0_270] : memref<64x128xf32, #tpu.memory_space<vmem>>, vector<64x128xf32>
    %612 = arith.truncf %611 : vector<64x128xf32> to vector<64x128xbf16>
    %c0_271 = arith.constant 0 : index
    %c0_272 = arith.constant 0 : index
    %613 = vector.load %arg7[%c0_271, %c0_272] : memref<128x512xbf16, #tpu.memory_space<vmem>>, vector<128x512xbf16>
    %cst_273 = arith.constant dense<0.000000e+00> : vector<64x512xf32>
    %614 = tpu.matmul %612, %613, %cst_273 {dimension_numbers = #tpu.dot_dimension_numbers<[1], [0], [0], [1], [0, 0, 1, 1], [], []>} : vector<64x128xbf16>, vector<128x512xbf16>, vector<64x512xf32> -> vector<64x512xf32>
    %c0_274 = arith.constant 0 : index
    %c0_275 = arith.constant 0 : index
    %615 = vector.load %arg9[%c0_274, %c0_275] : memref<1x512xf32, #tpu.memory_space<vmem>>, vector<1x512xf32>
    %616 = vector.broadcast %615 : vector<1x512xf32> to vector<64x512xf32>
    %617 = arith.addf %614, %616 : vector<64x512xf32>
    %c0_276 = arith.constant 0 : index
    %c0_277 = arith.constant 0 : index
    %618 = vector.load %arg13[%c0_276, %c0_277] : memref<64x512xf32, #tpu.memory_space<vmem>>, vector<64x512xf32>
    tpu.vector_store %arg13[%c0_276, %c0_277], %617 {strides = array<i32>} : memref<64x512xf32, #tpu.memory_space<vmem>>, vector<64x512xf32>,
    %cst_278 = arith.constant 0.000000e+00 : f32
    %619 = vector.broadcast %cst_278 : f32 to vector<8x128xf32>
    %cst_279 = arith.constant 0.000000e+00 : f32
    %620 = vector.broadcast %cst_279 : f32 to vector<8x128xf32>
    %c0_280 = arith.constant 0 : index
    %c0_281 = arith.constant 0 : index
    %621 = vector.load %arg13[%c0_280, %c0_281] : memref<64x512xf32, #tpu.memory_space<vmem>>, vector<8x512xf32>
    %622 = arith.truncf %619 : vector<8x128xf32> to vector<8x128xbf16>
    %c0_282 = arith.constant 0 : index
    %c0_283 = arith.constant 0 : index
    %623 = vector.load %arg8[%c0_282, %c0_283] : memref<128x512xbf16, #tpu.memory_space<vmem>>, vector<128x512xbf16>
    %cst_284 = arith.constant dense<0.000000e+00> : vector<8x512xf32>
    %624 = tpu.matmul %622, %623, %cst_284 {dimension_numbers = #tpu.dot_dimension_numbers<[1], [0], [0], [1], [0, 0, 1, 1], [], []>} : vector<8x128xbf16>, vector<128x512xbf16>, vector<8x512xf32> -> vector<8x512xf32>
    %625 = arith.addf %621, %624 : vector<8x512xf32>
    %626 = vector.extract_strided_slice %625 {offsets = [0, 0], sizes = [8, 128], strides = [1, 1]} : vector<8x512xf32> to vector<8x128xf32>
    %cst_285 = arith.constant 5.000000e-01 : f32
    %627 = vector.broadcast %cst_285 : f32 to vector<8x128xf32>
    %628 = arith.mulf %627, %626 : vector<8x128xf32>
    %629 = math.tanh %628 : vector<8x128xf32>
    %cst_286 = arith.constant 5.000000e-01 : f32
    %630 = vector.broadcast %cst_286 : f32 to vector<8x128xf32>
    %631 = arith.mulf %630, %629 : vector<8x128xf32>
    %cst_287 = arith.constant 5.000000e-01 : f32
    %632 = vector.broadcast %cst_287 : f32 to vector<8x128xf32>
    %633 = arith.addf %631, %632 : vector<8x128xf32>
    %634 = vector.extract_strided_slice %625 {offsets = [0, 128], sizes = [8, 128], strides = [1, 1]} : vector<8x512xf32> to vector<8x128xf32>
    %cst_288 = arith.constant 5.000000e-01 : f32
    %635 = vector.broadcast %cst_288 : f32 to vector<8x128xf32>
    %636 = arith.mulf %635, %634 : vector<8x128xf32>
    %637 = math.tanh %636 : vector<8x128xf32>
    %cst_289 = arith.constant 5.000000e-01 : f32
    %638 = vector.broadcast %cst_289 : f32 to vector<8x128xf32>
    %639 = arith.mulf %638, %637 : vector<8x128xf32>
    %cst_290 = arith.constant 5.000000e-01 : f32
    %640 = vector.broadcast %cst_290 : f32 to vector<8x128xf32>
    %641 = arith.addf %639, %640 : vector<8x128xf32>
    %642 = vector.extract_strided_slice %625 {offsets = [0, 256], sizes = [8, 128], strides = [1, 1]} : vector<8x512xf32> to vector<8x128xf32>
    %643 = math.tanh %642 : vector<8x128xf32>
    %644 = vector.extract_strided_slice %625 {offsets = [0, 384], sizes = [8, 128], strides = [1, 1]} : vector<8x512xf32> to vector<8x128xf32>
    %cst_291 = arith.constant 5.000000e-01 : f32
    %645 = vector.broadcast %cst_291 : f32 to vector<8x128xf32>
    %646 = arith.mulf %645, %644 : vector<8x128xf32>
    %647 = math.tanh %646 : vector<8x128xf32>
    %cst_292 = arith.constant 5.000000e-01 : f32
    %648 = vector.broadcast %cst_292 : f32 to vector<8x128xf32>
    %649 = arith.mulf %648, %647 : vector<8x128xf32>
    %cst_293 = arith.constant 5.000000e-01 : f32
    %650 = vector.broadcast %cst_293 : f32 to vector<8x128xf32>
    %651 = arith.addf %649, %650 : vector<8x128xf32>
    %652 = arith.mulf %641, %620 : vector<8x128xf32>
    %653 = arith.mulf %633, %643 : vector<8x128xf32>
    %654 = arith.addf %652, %653 : vector<8x128xf32>
    %655 = math.tanh %654 : vector<8x128xf32>
    %656 = arith.mulf %651, %655 : vector<8x128xf32>
    %c8_294 = arith.constant 8 : index
    %c0_295 = arith.constant 0 : index
    %657 = vector.load %arg13[%c8_294, %c0_295] : memref<64x512xf32, #tpu.memory_space<vmem>>, vector<8x512xf32>
    %658 = arith.truncf %656 : vector<8x128xf32> to vector<8x128xbf16>
    %c0_296 = arith.constant 0 : index
    %c0_297 = arith.constant 0 : index
    %659 = vector.load %arg8[%c0_296, %c0_297] : memref<128x512xbf16, #tpu.memory_space<vmem>>, vector<128x512xbf16>
    %cst_298 = arith.constant dense<0.000000e+00> : vector<8x512xf32>
    %660 = tpu.matmul %658, %659, %cst_298 {dimension_numbers = #tpu.dot_dimension_numbers<[1], [0], [0], [1], [0, 0, 1, 1], [], []>} : vector<8x128xbf16>, vector<128x512xbf16>, vector<8x512xf32> -> vector<8x512xf32>
    %661 = arith.addf %657, %660 : vector<8x512xf32>
    %662 = vector.extract_strided_slice %661 {offsets = [0, 0], sizes = [8, 128], strides = [1, 1]} : vector<8x512xf32> to vector<8x128xf32>
    %cst_299 = arith.constant 5.000000e-01 : f32
    %663 = vector.broadcast %cst_299 : f32 to vector<8x128xf32>
    %664 = arith.mulf %663, %662 : vector<8x128xf32>
    %665 = math.tanh %664 : vector<8x128xf32>
    %cst_300 = arith.constant 5.000000e-01 : f32
    %666 = vector.broadcast %cst_300 : f32 to vector<8x128xf32>
    %667 = arith.mulf %666, %665 : vector<8x128xf32>
    %cst_301 = arith.constant 5.000000e-01 : f32
    %668 = vector.broadcast %cst_301 : f32 to vector<8x128xf32>
    %669 = arith.addf %667, %668 : vector<8x128xf32>
    %670 = vector.extract_strided_slice %661 {offsets = [0, 128], sizes = [8, 128], strides = [1, 1]} : vector<8x512xf32> to vector<8x128xf32>
    %cst_302 = arith.constant 5.000000e-01 : f32
    %671 = vector.broadcast %cst_302 : f32 to vector<8x128xf32>
    %672 = arith.mulf %671, %670 : vector<8x128xf32>
    %673 = math.tanh %672 : vector<8x128xf32>
    %cst_303 = arith.constant 5.000000e-01 : f32
    %674 = vector.broadcast %cst_303 : f32 to vector<8x128xf32>
    %675 = arith.mulf %674, %673 : vector<8x128xf32>
    %cst_304 = arith.constant 5.000000e-01 : f32
    %676 = vector.broadcast %cst_304 : f32 to vector<8x128xf32>
    %677 = arith.addf %675, %676 : vector<8x128xf32>
    %678 = vector.extract_strided_slice %661 {offsets = [0, 256], sizes = [8, 128], strides = [1, 1]} : vector<8x512xf32> to vector<8x128xf32>
    %679 = math.tanh %678 : vector<8x128xf32>
    %680 = vector.extract_strided_slice %661 {offsets = [0, 384], sizes = [8, 128], strides = [1, 1]} : vector<8x512xf32> to vector<8x128xf32>
    %cst_305 = arith.constant 5.000000e-01 : f32
    %681 = vector.broadcast %cst_305 : f32 to vector<8x128xf32>
    %682 = arith.mulf %681, %680 : vector<8x128xf32>
    %683 = math.tanh %682 : vector<8x128xf32>
    %cst_306 = arith.constant 5.000000e-01 : f32
    %684 = vector.broadcast %cst_306 : f32 to vector<8x128xf32>
    %685 = arith.mulf %684, %683 : vector<8x128xf32>
    %cst_307 = arith.constant 5.000000e-01 : f32
    %686 = vector.broadcast %cst_307 : f32 to vector<8x128xf32>
    %687 = arith.addf %685, %686 : vector<8x128xf32>
    %688 = arith.mulf %677, %654 : vector<8x128xf32>
    %689 = arith.mulf %669, %679 : vector<8x128xf32>
    %690 = arith.addf %688, %689 : vector<8x128xf32>
    %691 = math.tanh %690 : vector<8x128xf32>
    %692 = arith.mulf %687, %691 : vector<8x128xf32>
    %c16_308 = arith.constant 16 : index
    %c0_309 = arith.constant 0 : index
    %693 = vector.load %arg13[%c16_308, %c0_309] : memref<64x512xf32, #tpu.memory_space<vmem>>, vector<8x512xf32>
    %694 = arith.truncf %692 : vector<8x128xf32> to vector<8x128xbf16>
    %c0_310 = arith.constant 0 : index
    %c0_311 = arith.constant 0 : index
    %695 = vector.load %arg8[%c0_310, %c0_311] : memref<128x512xbf16, #tpu.memory_space<vmem>>, vector<128x512xbf16>
    %cst_312 = arith.constant dense<0.000000e+00> : vector<8x512xf32>
    %696 = tpu.matmul %694, %695, %cst_312 {dimension_numbers = #tpu.dot_dimension_numbers<[1], [0], [0], [1], [0, 0, 1, 1], [], []>} : vector<8x128xbf16>, vector<128x512xbf16>, vector<8x512xf32> -> vector<8x512xf32>
    %697 = arith.addf %693, %696 : vector<8x512xf32>
    %698 = vector.extract_strided_slice %697 {offsets = [0, 0], sizes = [8, 128], strides = [1, 1]} : vector<8x512xf32> to vector<8x128xf32>
    %cst_313 = arith.constant 5.000000e-01 : f32
    %699 = vector.broadcast %cst_313 : f32 to vector<8x128xf32>
    %700 = arith.mulf %699, %698 : vector<8x128xf32>
    %701 = math.tanh %700 : vector<8x128xf32>
    %cst_314 = arith.constant 5.000000e-01 : f32
    %702 = vector.broadcast %cst_314 : f32 to vector<8x128xf32>
    %703 = arith.mulf %702, %701 : vector<8x128xf32>
    %cst_315 = arith.constant 5.000000e-01 : f32
    %704 = vector.broadcast %cst_315 : f32 to vector<8x128xf32>
    %705 = arith.addf %703, %704 : vector<8x128xf32>
    %706 = vector.extract_strided_slice %697 {offsets = [0, 128], sizes = [8, 128], strides = [1, 1]} : vector<8x512xf32> to vector<8x128xf32>
    %cst_316 = arith.constant 5.000000e-01 : f32
    %707 = vector.broadcast %cst_316 : f32 to vector<8x128xf32>
    %708 = arith.mulf %707, %706 : vector<8x128xf32>
    %709 = math.tanh %708 : vector<8x128xf32>
    %cst_317 = arith.constant 5.000000e-01 : f32
    %710 = vector.broadcast %cst_317 : f32 to vector<8x128xf32>
    %711 = arith.mulf %710, %709 : vector<8x128xf32>
    %cst_318 = arith.constant 5.000000e-01 : f32
    %712 = vector.broadcast %cst_318 : f32 to vector<8x128xf32>
    %713 = arith.addf %711, %712 : vector<8x128xf32>
    %714 = vector.extract_strided_slice %697 {offsets = [0, 256], sizes = [8, 128], strides = [1, 1]} : vector<8x512xf32> to vector<8x128xf32>
    %715 = math.tanh %714 : vector<8x128xf32>
    %716 = vector.extract_strided_slice %697 {offsets = [0, 384], sizes = [8, 128], strides = [1, 1]} : vector<8x512xf32> to vector<8x128xf32>
    %cst_319 = arith.constant 5.000000e-01 : f32
    %717 = vector.broadcast %cst_319 : f32 to vector<8x128xf32>
    %718 = arith.mulf %717, %716 : vector<8x128xf32>
    %719 = math.tanh %718 : vector<8x128xf32>
    %cst_320 = arith.constant 5.000000e-01 : f32
    %720 = vector.broadcast %cst_320 : f32 to vector<8x128xf32>
    %721 = arith.mulf %720, %719 : vector<8x128xf32>
    %cst_321 = arith.constant 5.000000e-01 : f32
    %722 = vector.broadcast %cst_321 : f32 to vector<8x128xf32>
    %723 = arith.addf %721, %722 : vector<8x128xf32>
    %724 = arith.mulf %713, %690 : vector<8x128xf32>
    %725 = arith.mulf %705, %715 : vector<8x128xf32>
    %726 = arith.addf %724, %725 : vector<8x128xf32>
    %727 = math.tanh %726 : vector<8x128xf32>
    %728 = arith.mulf %723, %727 : vector<8x128xf32>
    %c24_322 = arith.constant 24 : index
    %c0_323 = arith.constant 0 : index
    %729 = vector.load %arg13[%c24_322, %c0_323] : memref<64x512xf32, #tpu.memory_space<vmem>>, vector<8x512xf32>
    %730 = arith.truncf %728 : vector<8x128xf32> to vector<8x128xbf16>
    %c0_324 = arith.constant 0 : index
    %c0_325 = arith.constant 0 : index
    %731 = vector.load %arg8[%c0_324, %c0_325] : memref<128x512xbf16, #tpu.memory_space<vmem>>, vector<128x512xbf16>
    %cst_326 = arith.constant dense<0.000000e+00> : vector<8x512xf32>
    %732 = tpu.matmul %730, %731, %cst_326 {dimension_numbers = #tpu.dot_dimension_numbers<[1], [0], [0], [1], [0, 0, 1, 1], [], []>} : vector<8x128xbf16>, vector<128x512xbf16>, vector<8x512xf32> -> vector<8x512xf32>
    %733 = arith.addf %729, %732 : vector<8x512xf32>
    %734 = vector.extract_strided_slice %733 {offsets = [0, 0], sizes = [8, 128], strides = [1, 1]} : vector<8x512xf32> to vector<8x128xf32>
    %cst_327 = arith.constant 5.000000e-01 : f32
    %735 = vector.broadcast %cst_327 : f32 to vector<8x128xf32>
    %736 = arith.mulf %735, %734 : vector<8x128xf32>
    %737 = math.tanh %736 : vector<8x128xf32>
    %cst_328 = arith.constant 5.000000e-01 : f32
    %738 = vector.broadcast %cst_328 : f32 to vector<8x128xf32>
    %739 = arith.mulf %738, %737 : vector<8x128xf32>
    %cst_329 = arith.constant 5.000000e-01 : f32
    %740 = vector.broadcast %cst_329 : f32 to vector<8x128xf32>
    %741 = arith.addf %739, %740 : vector<8x128xf32>
    %742 = vector.extract_strided_slice %733 {offsets = [0, 128], sizes = [8, 128], strides = [1, 1]} : vector<8x512xf32> to vector<8x128xf32>
    %cst_330 = arith.constant 5.000000e-01 : f32
    %743 = vector.broadcast %cst_330 : f32 to vector<8x128xf32>
    %744 = arith.mulf %743, %742 : vector<8x128xf32>
    %745 = math.tanh %744 : vector<8x128xf32>
    %cst_331 = arith.constant 5.000000e-01 : f32
    %746 = vector.broadcast %cst_331 : f32 to vector<8x128xf32>
    %747 = arith.mulf %746, %745 : vector<8x128xf32>
    %cst_332 = arith.constant 5.000000e-01 : f32
    %748 = vector.broadcast %cst_332 : f32 to vector<8x128xf32>
    %749 = arith.addf %747, %748 : vector<8x128xf32>
    %750 = vector.extract_strided_slice %733 {offsets = [0, 256], sizes = [8, 128], strides = [1, 1]} : vector<8x512xf32> to vector<8x128xf32>
    %751 = math.tanh %750 : vector<8x128xf32>
    %752 = vector.extract_strided_slice %733 {offsets = [0, 384], sizes = [8, 128], strides = [1, 1]} : vector<8x512xf32> to vector<8x128xf32>
    %cst_333 = arith.constant 5.000000e-01 : f32
    %753 = vector.broadcast %cst_333 : f32 to vector<8x128xf32>
    %754 = arith.mulf %753, %752 : vector<8x128xf32>
    %755 = math.tanh %754 : vector<8x128xf32>
    %cst_334 = arith.constant 5.000000e-01 : f32
    %756 = vector.broadcast %cst_334 : f32 to vector<8x128xf32>
    %757 = arith.mulf %756, %755 : vector<8x128xf32>
    %cst_335 = arith.constant 5.000000e-01 : f32
    %758 = vector.broadcast %cst_335 : f32 to vector<8x128xf32>
    %759 = arith.addf %757, %758 : vector<8x128xf32>
    %760 = arith.mulf %749, %726 : vector<8x128xf32>
    %761 = arith.mulf %741, %751 : vector<8x128xf32>
    %762 = arith.addf %760, %761 : vector<8x128xf32>
    %763 = math.tanh %762 : vector<8x128xf32>
    %764 = arith.mulf %759, %763 : vector<8x128xf32>
    %c32_336 = arith.constant 32 : index
    %c0_337 = arith.constant 0 : index
    %765 = vector.load %arg13[%c32_336, %c0_337] : memref<64x512xf32, #tpu.memory_space<vmem>>, vector<8x512xf32>
    %766 = arith.truncf %764 : vector<8x128xf32> to vector<8x128xbf16>
    %c0_338 = arith.constant 0 : index
    %c0_339 = arith.constant 0 : index
    %767 = vector.load %arg8[%c0_338, %c0_339] : memref<128x512xbf16, #tpu.memory_space<vmem>>, vector<128x512xbf16>
    %cst_340 = arith.constant dense<0.000000e+00> : vector<8x512xf32>
    %768 = tpu.matmul %766, %767, %cst_340 {dimension_numbers = #tpu.dot_dimension_numbers<[1], [0], [0], [1], [0, 0, 1, 1], [], []>} : vector<8x128xbf16>, vector<128x512xbf16>, vector<8x512xf32> -> vector<8x512xf32>
    %769 = arith.addf %765, %768 : vector<8x512xf32>
    %770 = vector.extract_strided_slice %769 {offsets = [0, 0], sizes = [8, 128], strides = [1, 1]} : vector<8x512xf32> to vector<8x128xf32>
    %cst_341 = arith.constant 5.000000e-01 : f32
    %771 = vector.broadcast %cst_341 : f32 to vector<8x128xf32>
    %772 = arith.mulf %771, %770 : vector<8x128xf32>
    %773 = math.tanh %772 : vector<8x128xf32>
    %cst_342 = arith.constant 5.000000e-01 : f32
    %774 = vector.broadcast %cst_342 : f32 to vector<8x128xf32>
    %775 = arith.mulf %774, %773 : vector<8x128xf32>
    %cst_343 = arith.constant 5.000000e-01 : f32
    %776 = vector.broadcast %cst_343 : f32 to vector<8x128xf32>
    %777 = arith.addf %775, %776 : vector<8x128xf32>
    %778 = vector.extract_strided_slice %769 {offsets = [0, 128], sizes = [8, 128], strides = [1, 1]} : vector<8x512xf32> to vector<8x128xf32>
    %cst_344 = arith.constant 5.000000e-01 : f32
    %779 = vector.broadcast %cst_344 : f32 to vector<8x128xf32>
    %780 = arith.mulf %779, %778 : vector<8x128xf32>
    %781 = math.tanh %780 : vector<8x128xf32>
    %cst_345 = arith.constant 5.000000e-01 : f32
    %782 = vector.broadcast %cst_345 : f32 to vector<8x128xf32>
    %783 = arith.mulf %782, %781 : vector<8x128xf32>
    %cst_346 = arith.constant 5.000000e-01 : f32
    %784 = vector.broadcast %cst_346 : f32 to vector<8x128xf32>
    %785 = arith.addf %783, %784 : vector<8x128xf32>
    %786 = vector.extract_strided_slice %769 {offsets = [0, 256], sizes = [8, 128], strides = [1, 1]} : vector<8x512xf32> to vector<8x128xf32>
    %787 = math.tanh %786 : vector<8x128xf32>
    %788 = vector.extract_strided_slice %769 {offsets = [0, 384], sizes = [8, 128], strides = [1, 1]} : vector<8x512xf32> to vector<8x128xf32>
    %cst_347 = arith.constant 5.000000e-01 : f32
    %789 = vector.broadcast %cst_347 : f32 to vector<8x128xf32>
    %790 = arith.mulf %789, %788 : vector<8x128xf32>
    %791 = math.tanh %790 : vector<8x128xf32>
    %cst_348 = arith.constant 5.000000e-01 : f32
    %792 = vector.broadcast %cst_348 : f32 to vector<8x128xf32>
    %793 = arith.mulf %792, %791 : vector<8x128xf32>
    %cst_349 = arith.constant 5.000000e-01 : f32
    %794 = vector.broadcast %cst_349 : f32 to vector<8x128xf32>
    %795 = arith.addf %793, %794 : vector<8x128xf32>
    %796 = arith.mulf %785, %762 : vector<8x128xf32>
    %797 = arith.mulf %777, %787 : vector<8x128xf32>
    %798 = arith.addf %796, %797 : vector<8x128xf32>
    %799 = math.tanh %798 : vector<8x128xf32>
    %800 = arith.mulf %795, %799 : vector<8x128xf32>
    %c40_350 = arith.constant 40 : index
    %c0_351 = arith.constant 0 : index
    %801 = vector.load %arg13[%c40_350, %c0_351] : memref<64x512xf32, #tpu.memory_space<vmem>>, vector<8x512xf32>
    %802 = arith.truncf %800 : vector<8x128xf32> to vector<8x128xbf16>
    %c0_352 = arith.constant 0 : index
    %c0_353 = arith.constant 0 : index
    %803 = vector.load %arg8[%c0_352, %c0_353] : memref<128x512xbf16, #tpu.memory_space<vmem>>, vector<128x512xbf16>
    %cst_354 = arith.constant dense<0.000000e+00> : vector<8x512xf32>
    %804 = tpu.matmul %802, %803, %cst_354 {dimension_numbers = #tpu.dot_dimension_numbers<[1], [0], [0], [1], [0, 0, 1, 1], [], []>} : vector<8x128xbf16>, vector<128x512xbf16>, vector<8x512xf32> -> vector<8x512xf32>
    %805 = arith.addf %801, %804 : vector<8x512xf32>
    %806 = vector.extract_strided_slice %805 {offsets = [0, 0], sizes = [8, 128], strides = [1, 1]} : vector<8x512xf32> to vector<8x128xf32>
    %cst_355 = arith.constant 5.000000e-01 : f32
    %807 = vector.broadcast %cst_355 : f32 to vector<8x128xf32>
    %808 = arith.mulf %807, %806 : vector<8x128xf32>
    %809 = math.tanh %808 : vector<8x128xf32>
    %cst_356 = arith.constant 5.000000e-01 : f32
    %810 = vector.broadcast %cst_356 : f32 to vector<8x128xf32>
    %811 = arith.mulf %810, %809 : vector<8x128xf32>
    %cst_357 = arith.constant 5.000000e-01 : f32
    %812 = vector.broadcast %cst_357 : f32 to vector<8x128xf32>
    %813 = arith.addf %811, %812 : vector<8x128xf32>
    %814 = vector.extract_strided_slice %805 {offsets = [0, 128], sizes = [8, 128], strides = [1, 1]} : vector<8x512xf32> to vector<8x128xf32>
    %cst_358 = arith.constant 5.000000e-01 : f32
    %815 = vector.broadcast %cst_358 : f32 to vector<8x128xf32>
    %816 = arith.mulf %815, %814 : vector<8x128xf32>
    %817 = math.tanh %816 : vector<8x128xf32>
    %cst_359 = arith.constant 5.000000e-01 : f32
    %818 = vector.broadcast %cst_359 : f32 to vector<8x128xf32>
    %819 = arith.mulf %818, %817 : vector<8x128xf32>
    %cst_360 = arith.constant 5.000000e-01 : f32
    %820 = vector.broadcast %cst_360 : f32 to vector<8x128xf32>
    %821 = arith.addf %819, %820 : vector<8x128xf32>
    %822 = vector.extract_strided_slice %805 {offsets = [0, 256], sizes = [8, 128], strides = [1, 1]} : vector<8x512xf32> to vector<8x128xf32>
    %823 = math.tanh %822 : vector<8x128xf32>
    %824 = vector.extract_strided_slice %805 {offsets = [0, 384], sizes = [8, 128], strides = [1, 1]} : vector<8x512xf32> to vector<8x128xf32>
    %cst_361 = arith.constant 5.000000e-01 : f32
    %825 = vector.broadcast %cst_361 : f32 to vector<8x128xf32>
    %826 = arith.mulf %825, %824 : vector<8x128xf32>
    %827 = math.tanh %826 : vector<8x128xf32>
    %cst_362 = arith.constant 5.000000e-01 : f32
    %828 = vector.broadcast %cst_362 : f32 to vector<8x128xf32>
    %829 = arith.mulf %828, %827 : vector<8x128xf32>
    %cst_363 = arith.constant 5.000000e-01 : f32
    %830 = vector.broadcast %cst_363 : f32 to vector<8x128xf32>
    %831 = arith.addf %829, %830 : vector<8x128xf32>
    %832 = arith.mulf %821, %798 : vector<8x128xf32>
    %833 = arith.mulf %813, %823 : vector<8x128xf32>
    %834 = arith.addf %832, %833 : vector<8x128xf32>
    %835 = math.tanh %834 : vector<8x128xf32>
    %836 = arith.mulf %831, %835 : vector<8x128xf32>
    %c48_364 = arith.constant 48 : index
    %c0_365 = arith.constant 0 : index
    %837 = vector.load %arg13[%c48_364, %c0_365] : memref<64x512xf32, #tpu.memory_space<vmem>>, vector<8x512xf32>
    %838 = arith.truncf %836 : vector<8x128xf32> to vector<8x128xbf16>
    %c0_366 = arith.constant 0 : index
    %c0_367 = arith.constant 0 : index
    %839 = vector.load %arg8[%c0_366, %c0_367] : memref<128x512xbf16, #tpu.memory_space<vmem>>, vector<128x512xbf16>
    %cst_368 = arith.constant dense<0.000000e+00> : vector<8x512xf32>
    %840 = tpu.matmul %838, %839, %cst_368 {dimension_numbers = #tpu.dot_dimension_numbers<[1], [0], [0], [1], [0, 0, 1, 1], [], []>} : vector<8x128xbf16>, vector<128x512xbf16>, vector<8x512xf32> -> vector<8x512xf32>
    %841 = arith.addf %837, %840 : vector<8x512xf32>
    %842 = vector.extract_strided_slice %841 {offsets = [0, 0], sizes = [8, 128], strides = [1, 1]} : vector<8x512xf32> to vector<8x128xf32>
    %cst_369 = arith.constant 5.000000e-01 : f32
    %843 = vector.broadcast %cst_369 : f32 to vector<8x128xf32>
    %844 = arith.mulf %843, %842 : vector<8x128xf32>
    %845 = math.tanh %844 : vector<8x128xf32>
    %cst_370 = arith.constant 5.000000e-01 : f32
    %846 = vector.broadcast %cst_370 : f32 to vector<8x128xf32>
    %847 = arith.mulf %846, %845 : vector<8x128xf32>
    %cst_371 = arith.constant 5.000000e-01 : f32
    %848 = vector.broadcast %cst_371 : f32 to vector<8x128xf32>
    %849 = arith.addf %847, %848 : vector<8x128xf32>
    %850 = vector.extract_strided_slice %841 {offsets = [0, 128], sizes = [8, 128], strides = [1, 1]} : vector<8x512xf32> to vector<8x128xf32>
    %cst_372 = arith.constant 5.000000e-01 : f32
    %851 = vector.broadcast %cst_372 : f32 to vector<8x128xf32>
    %852 = arith.mulf %851, %850 : vector<8x128xf32>
    %853 = math.tanh %852 : vector<8x128xf32>
    %cst_373 = arith.constant 5.000000e-01 : f32
    %854 = vector.broadcast %cst_373 : f32 to vector<8x128xf32>
    %855 = arith.mulf %854, %853 : vector<8x128xf32>
    %cst_374 = arith.constant 5.000000e-01 : f32
    %856 = vector.broadcast %cst_374 : f32 to vector<8x128xf32>
    %857 = arith.addf %855, %856 : vector<8x128xf32>
    %858 = vector.extract_strided_slice %841 {offsets = [0, 256], sizes = [8, 128], strides = [1, 1]} : vector<8x512xf32> to vector<8x128xf32>
    %859 = math.tanh %858 : vector<8x128xf32>
    %860 = vector.extract_strided_slice %841 {offsets = [0, 384], sizes = [8, 128], strides = [1, 1]} : vector<8x512xf32> to vector<8x128xf32>
    %cst_375 = arith.constant 5.000000e-01 : f32
    %861 = vector.broadcast %cst_375 : f32 to vector<8x128xf32>
    %862 = arith.mulf %861, %860 : vector<8x128xf32>
    %863 = math.tanh %862 : vector<8x128xf32>
    %cst_376 = arith.constant 5.000000e-01 : f32
    %864 = vector.broadcast %cst_376 : f32 to vector<8x128xf32>
    %865 = arith.mulf %864, %863 : vector<8x128xf32>
    %cst_377 = arith.constant 5.000000e-01 : f32
    %866 = vector.broadcast %cst_377 : f32 to vector<8x128xf32>
    %867 = arith.addf %865, %866 : vector<8x128xf32>
    %868 = arith.mulf %857, %834 : vector<8x128xf32>
    %869 = arith.mulf %849, %859 : vector<8x128xf32>
    %870 = arith.addf %868, %869 : vector<8x128xf32>
    %871 = math.tanh %870 : vector<8x128xf32>
    %872 = arith.mulf %867, %871 : vector<8x128xf32>
    %c56_378 = arith.constant 56 : index
    %c0_379 = arith.constant 0 : index
    %873 = vector.load %arg13[%c56_378, %c0_379] : memref<64x512xf32, #tpu.memory_space<vmem>>, vector<8x512xf32>
    %874 = arith.truncf %872 : vector<8x128xf32> to vector<8x128xbf16>
    %c0_380 = arith.constant 0 : index
    %c0_381 = arith.constant 0 : index
    %875 = vector.load %arg8[%c0_380, %c0_381] : memref<128x512xbf16, #tpu.memory_space<vmem>>, vector<128x512xbf16>
    %cst_382 = arith.constant dense<0.000000e+00> : vector<8x512xf32>
    %876 = tpu.matmul %874, %875, %cst_382 {dimension_numbers = #tpu.dot_dimension_numbers<[1], [0], [0], [1], [0, 0, 1, 1], [], []>} : vector<8x128xbf16>, vector<128x512xbf16>, vector<8x512xf32> -> vector<8x512xf32>
    %877 = arith.addf %873, %876 : vector<8x512xf32>
    %878 = vector.extract_strided_slice %877 {offsets = [0, 0], sizes = [8, 128], strides = [1, 1]} : vector<8x512xf32> to vector<8x128xf32>
    %cst_383 = arith.constant 5.000000e-01 : f32
    %879 = vector.broadcast %cst_383 : f32 to vector<8x128xf32>
    %880 = arith.mulf %879, %878 : vector<8x128xf32>
    %881 = math.tanh %880 : vector<8x128xf32>
    %cst_384 = arith.constant 5.000000e-01 : f32
    %882 = vector.broadcast %cst_384 : f32 to vector<8x128xf32>
    %883 = arith.mulf %882, %881 : vector<8x128xf32>
    %cst_385 = arith.constant 5.000000e-01 : f32
    %884 = vector.broadcast %cst_385 : f32 to vector<8x128xf32>
    %885 = arith.addf %883, %884 : vector<8x128xf32>
    %886 = vector.extract_strided_slice %877 {offsets = [0, 128], sizes = [8, 128], strides = [1, 1]} : vector<8x512xf32> to vector<8x128xf32>
    %cst_386 = arith.constant 5.000000e-01 : f32
    %887 = vector.broadcast %cst_386 : f32 to vector<8x128xf32>
    %888 = arith.mulf %887, %886 : vector<8x128xf32>
    %889 = math.tanh %888 : vector<8x128xf32>
    %cst_387 = arith.constant 5.000000e-01 : f32
    %890 = vector.broadcast %cst_387 : f32 to vector<8x128xf32>
    %891 = arith.mulf %890, %889 : vector<8x128xf32>
    %cst_388 = arith.constant 5.000000e-01 : f32
    %892 = vector.broadcast %cst_388 : f32 to vector<8x128xf32>
    %893 = arith.addf %891, %892 : vector<8x128xf32>
    %894 = vector.extract_strided_slice %877 {offsets = [0, 256], sizes = [8, 128], strides = [1, 1]} : vector<8x512xf32> to vector<8x128xf32>
    %895 = math.tanh %894 : vector<8x128xf32>
    %896 = vector.extract_strided_slice %877 {offsets = [0, 384], sizes = [8, 128], strides = [1, 1]} : vector<8x512xf32> to vector<8x128xf32>
    %cst_389 = arith.constant 5.000000e-01 : f32
    %897 = vector.broadcast %cst_389 : f32 to vector<8x128xf32>
    %898 = arith.mulf %897, %896 : vector<8x128xf32>
    %899 = math.tanh %898 : vector<8x128xf32>
    %cst_390 = arith.constant 5.000000e-01 : f32
    %900 = vector.broadcast %cst_390 : f32 to vector<8x128xf32>
    %901 = arith.mulf %900, %899 : vector<8x128xf32>
    %cst_391 = arith.constant 5.000000e-01 : f32
    %902 = vector.broadcast %cst_391 : f32 to vector<8x128xf32>
    %903 = arith.addf %901, %902 : vector<8x128xf32>
    %904 = arith.mulf %893, %870 : vector<8x128xf32>
    %905 = arith.mulf %885, %895 : vector<8x128xf32>
    %906 = arith.addf %904, %905 : vector<8x128xf32>
    %907 = math.tanh %906 : vector<8x128xf32>
    %908 = arith.mulf %903, %907 : vector<8x128xf32>
    %909 = arith.truncf %908 : vector<8x128xf32> to vector<8x128xbf16>
    %c0_392 = arith.constant 0 : index
    %c0_393 = arith.constant 0 : index
    %910 = vector.load %arg10[%c0_392, %c0_393] : memref<128x128xbf16, #tpu.memory_space<vmem>>, vector<128x128xbf16>
    %cst_394 = arith.constant dense<0.000000e+00> : vector<8x128xf32>
    %911 = tpu.matmul %909, %910, %cst_394 {dimension_numbers = #tpu.dot_dimension_numbers<[1], [0], [0], [1], [0, 0, 1, 1], [], []>} : vector<8x128xbf16>, vector<128x128xbf16>, vector<8x128xf32> -> vector<8x128xf32>
    %c0_395 = arith.constant 0 : index
    %c0_396 = arith.constant 0 : index
    %912 = vector.load %arg11[%c0_395, %c0_396] : memref<1x128xf32, #tpu.memory_space<vmem>>, vector<1x128xf32>
    %913 = vector.broadcast %912 : vector<1x128xf32> to vector<8x128xf32>
    %914 = arith.addf %911, %913 : vector<8x128xf32>
    %c0_397 = arith.constant 0 : index
    %c0_398 = arith.constant 0 : index
    %915 = vector.load %arg12[%c0_397, %c0_398] : memref<8x128xf32, #tpu.memory_space<vmem>>, vector<8x128xf32>
    tpu.vector_store %arg12[%c0_397, %c0_398], %914 {strides = array<i32>} : memref<8x128xf32, #tpu.memory_space<vmem>>, vector<8x128xf32>,
    return
  }
}

</mosaic_0001>

<llo_original>
// kernel: tpu_custom_call.1
$region0: #{tpu_custom_call.1}
  #allocation0 [shape = 'u32[]', space=smem, size = 0x4, offset = 0x4, fixed_abs, tag = 'smem constant byte address 0x4 - core index']
  #allocation1 [shape = 'u32[72,128]{1,0:T(1,128)}', space=vmem, size = 0x9000, scoped, tag = 'internal scratch']
  #allocation2 [shape = 'f32[64,512]{1,0:T(8,128)}', space=vmem, size = 0x20000, scoped, tag = 'scratch operand']
  #allocation3 [shape = 'f32[64,128]{1,0:T(8,128)}', space=vmem, size = 0x8000, scoped, tag = 'scratch operand']
  %s0 = inlined_call_operand.hbm [shape: bf16[64,128], index: 0, kind: input, shape index: {}]
  %s1 = inlined_call_operand.hbm [shape: bf16[128,512], index: 1, kind: input, shape index: {}]
  %s2 = inlined_call_operand.hbm [shape: bf16[128,512], index: 2, kind: input, shape index: {}]
  %s3 = inlined_call_operand.hbm [shape: f32[1,512], index: 3, kind: input, shape index: {}]
  %s4 = inlined_call_operand.hbm [shape: bf16[128,512], index: 4, kind: input, shape index: {}]
  %s5 = inlined_call_operand.hbm [shape: bf16[128,512], index: 5, kind: input, shape index: {}]
  %s6 = inlined_call_operand.vmem [shape: f32[1,512], index: 6, kind: input, shape index: {}]
  %s7 = inlined_call_operand.hbm [shape: bf16[128,512], index: 7, kind: input, shape index: {}]
  %s8 = inlined_call_operand.hbm [shape: bf16[128,512], index: 8, kind: input, shape index: {}]
  %s9 = inlined_call_operand.vmem [shape: f32[1,512], index: 9, kind: input, shape index: {}]
  %s10 = inlined_call_operand.hbm [shape: bf16[128,128], index: 10, kind: input, shape index: {}]
  %s11 = inlined_call_operand.vmem [shape: f32[1,128], index: 11, kind: input, shape index: {}]
  %s12 = inlined_call_operand.hbm [shape: f32[8,128], index: 12, kind: output, shape index: {}]
  %s13 = sld [smem:[#allocation0]]
  $region94: #{tpu_custom_call.1} parent=0
    _
  %s15 = ssub.s32 1, %s13
  %s16 = scalar_select 0, %s15, %s13
  $region1: #{tpu_custom_call.1} parent=0
    #allocation4 [shape = 'u8[16384]{0}', space=vmem, size = 0x4000, scoped, tag = 'input window, operand 0, single buffered']
    #allocation5 [shape = 's32[1]{0}', space=sflag, size = 0x4, scoped, tag = 'scoped memory for tpu_custom_call.1']
    #allocation6 [shape = 's32[1]{0}', space=sflag, size = 0x4, scoped, tag = 'scoped memory for tpu_custom_call.1']
    #allocation7 [shape = 'u8[131072]{0}', space=vmem, size = 0x20000, scoped, tag = 'input window, operand 1, single buffered']
    #allocation8 [shape = 's32[1]{0}', space=sflag, size = 0x4, scoped, tag = 'scoped memory for tpu_custom_call.1']
    #allocation9 [shape = 'u8[131072]{0}', space=vmem, size = 0x20000, scoped, tag = 'input window, operand 2, single buffered']
    #allocation10 [shape = 'u8[2048]{0}', space=vmem, size = 0x800, scoped, tag = 'input window, operand 3, single buffered']
    #allocation11 [shape = 's32[1]{0}', space=sflag, size = 0x4, scoped, tag = 'scoped memory for tpu_custom_call.1']
    #allocation12 [shape = 'u8[131072]{0}', space=vmem, size = 0x20000, scoped, tag = 'input window, operand 4, single buffered']
    #allocation13 [shape = 'u8[131072]{0}', space=vmem, size = 0x20000, scoped, tag = 'input window, operand 5, single buffered']
    #allocation14 [shape = 's32[1]{0}', space=sflag, size = 0x4, scoped, tag = 'scoped memory for tpu_custom_call.1']
    #allocation15 [shape = 'u8[131072]{0}', space=vmem, size = 0x20000, scoped, tag = 'input window, operand 7, single buffered']
    #allocation16 [shape = 'u8[131072]{0}', space=vmem, size = 0x20000, scoped, tag = 'input window, operand 8, single buffered']
    #allocation17 [shape = 's32[1]{0}', space=sflag, size = 0x4, scoped, tag = 'scoped memory for tpu_custom_call.1']
    #allocation18 [shape = 'u8[32768]{0}', space=vmem, size = 0x8000, scoped, tag = 'input window, operand 10, single buffered']
    #allocation19 [shape = 'u8[4096]{0}', space=vmem, size = 0x1000, scoped, tag = 'output window, operand 0, single buffered']
    %17 = vsyncpa [#allocation5], 0
    %18 = vsyncpa [#allocation8], 0
    %19 = vsyncpa [#allocation11], 0
    %20 = vsyncpa [#allocation14], 0
    %21 = vsyncpa [#allocation17], 0
    %22 = vsyncpa [#allocation6], 0
    // Predicated region
    $region2: #{tpu_custom_call.1} parent=1 // pred_check
      _
    $region3: #{tpu_custom_call.1} parent=1 // pred_check_branch
      %24 = sbr.rel (0) target = $region5
    $region4: #{tpu_custom_call.1} parent=1 // pred_region
      %26 = vsyncadd [#allocation5], 0
      %s27 = sshll.u32 %s0, 4
      %s28 = int_to_ptr.hbm [resolvable:$true] %s27
      %s29 = sshll.u32 [#allocation4], 4
      %s30 = int_to_ptr.vmem [resolvable:$true] %s29
      %35 = dma.hbm_to_vmem [thread:$0]  %s28, 512, %s30, [#allocation5], 64, 64, 4
    $region5: #{tpu_custom_call.1} parent=1 // pred_fallthru
      _
    // Predicated region
    $region6: #{tpu_custom_call.1} parent=1 // pred_check
      _
    $region7: #{tpu_custom_call.1} parent=1 // pred_check_branch
      %37 = sbr.rel (0) target = $region9
    $region8: #{tpu_custom_call.1} parent=1 // pred_region
      %39 = vsyncadd [#allocation8], 0
      %s40 = sshll.u32 %s1, 4
      %s41 = int_to_ptr.hbm [resolvable:$true] %s40
      %s42 = sshll.u32 [#allocation7], 4
      %s43 = int_to_ptr.vmem [resolvable:$true] %s42
      %48 = dma.hbm_to_vmem [thread:$0]  %s41, 4096, %s43, [#allocation8], 256, 256, 16
    $region9: #{tpu_custom_call.1} parent=1 // pred_fallthru
      _
    // Predicated region
    $region10: #{tpu_custom_call.1} parent=1 // pred_check
      _
    $region11: #{tpu_custom_call.1} parent=1 // pred_check_branch
      %50 = sbr.rel (0) target = $region13
    $region12: #{tpu_custom_call.1} parent=1 // pred_region
      %52 = vsyncadd [#allocation8], 0
      %s53 = sshll.u32 %s2, 4
      %s54 = int_to_ptr.hbm [resolvable:$true] %s53
      %s55 = sshll.u32 [#allocation9], 4
      %s56 = int_to_ptr.vmem [resolvable:$true] %s55
      %61 = dma.hbm_to_vmem [thread:$0]  %s54, 4096, %s56, [#allocation8], 256, 256, 16
    $region13: #{tpu_custom_call.1} parent=1 // pred_fallthru
      _
    // Predicated region
    $region14: #{tpu_custom_call.1} parent=1 // pred_check
      _
    $region15: #{tpu_custom_call.1} parent=1 // pred_check_branch
      %63 = sbr.rel (0) target = $region17
    $region16: #{tpu_custom_call.1} parent=1 // pred_region
      %65 = vsyncadd [#allocation11], 0
      %s67 = sshll.u32 %s3, 4
      %s68 = int_to_ptr.hbm [resolvable:$true] %s67
      %s69 = sshll.u32 [#allocation10], 4
      %s70 = int_to_ptr.vmem [resolvable:$true] %s69
      %72 = dma.hbm_to_vmem [thread:$0]  %s68, 64, %s70, [#allocation11]
    $region17: #{tpu_custom_call.1} parent=1 // pred_fallthru
      _
    // Predicated region
    $region18: #{tpu_custom_call.1} parent=1 // pred_check
      _
    $region19: #{tpu_custom_call.1} parent=1 // pred_check_branch
      %74 = sbr.rel (0) target = $region21
    $region20: #{tpu_custom_call.1} parent=1 // pred_region
      %76 = vsyncadd [#allocation11], 0
      %s77 = sshll.u32 %s4, 4
      %s78 = int_to_ptr.hbm [resolvable:$true] %s77
      %s79 = sshll.u32 [#allocation12], 4
      %s80 = int_to_ptr.vmem [resolvable:$true] %s79
      %85 = dma.hbm_to_vmem [thread:$0]  %s78, 4096, %s80, [#allocation11], 256, 256, 16
    $region21: #{tpu_custom_call.1} parent=1 // pred_fallthru
      _
    // Predicated region
    $region22: #{tpu_custom_call.1} parent=1 // pred_check
      _
    $region23: #{tpu_custom_call.1} parent=1 // pred_check_branch
      %87 = sbr.rel (0) target = $region25
    $region24: #{tpu_custom_call.1} parent=1 // pred_region
      %89 = vsyncadd [#allocation14], 0
      %s90 = sshll.u32 %s5, 4
      %s91 = int_to_ptr.hbm [resolvable:$true] %s90
      %s92 = sshll.u32 [#allocation13], 4
      %s93 = int_to_ptr.vmem [resolvable:$true] %s92
      %98 = dma.hbm_to_vmem [thread:$0]  %s91, 4096, %s93, [#allocation14], 256, 256, 16
    $region25: #{tpu_custom_call.1} parent=1 // pred_fallthru
      _
    // Predicated region
    $region26: #{tpu_custom_call.1} parent=1 // pred_check
      _
    $region27: #{tpu_custom_call.1} parent=1 // pred_check_branch
      %100 = sbr.rel (0) target = $region29
    $region28: #{tpu_custom_call.1} parent=1 // pred_region
      _
    $region29: #{tpu_custom_call.1} parent=1 // pred_fallthru
      _
    // Predicated region
    $region30: #{tpu_custom_call.1} parent=1 // pred_check
      _
    $region31: #{tpu_custom_call.1} parent=1 // pred_check_branch
      %102 = sbr.rel (0) target = $region33
    $region32: #{tpu_custom_call.1} parent=1 // pred_region
      %104 = vsyncadd [#allocation14], 0
      %s105 = sshll.u32 %s7, 4
      %s106 = int_to_ptr.hbm [resolvable:$true] %s105
      %s107 = sshll.u32 [#allocation15], 4
      %s108 = int_to_ptr.vmem [resolvable:$true] %s107
      %113 = dma.hbm_to_vmem [thread:$0]  %s106, 4096, %s108, [#allocation14], 256, 256, 16
    $region33: #{tpu_custom_call.1} parent=1 // pred_fallthru
      _
    // Predicated region
    $region34: #{tpu_custom_call.1} parent=1 // pred_check
      _
    $region35: #{tpu_custom_call.1} parent=1 // pred_check_branch
      %115 = sbr.rel (0) target = $region37
    $region36: #{tpu_custom_call.1} parent=1 // pred_region
      %117 = vsyncadd [#allocation17], 0
      %s118 = sshll.u32 %s8, 4
      %s119 = int_to_ptr.hbm [resolvable:$true] %s118
      %s120 = sshll.u32 [#allocation16], 4
      %s121 = int_to_ptr.vmem [resolvable:$true] %s120
      %126 = dma.hbm_to_vmem [thread:$0]  %s119, 4096, %s121, [#allocation17], 256, 256, 16
    $region37: #{tpu_custom_call.1} parent=1 // pred_fallthru
      _
    // Predicated region
    $region38: #{tpu_custom_call.1} parent=1 // pred_check
      _
    $region39: #{tpu_custom_call.1} parent=1 // pred_check_branch
      %128 = sbr.rel (0) target = $region41
    $region40: #{tpu_custom_call.1} parent=1 // pred_region
      _
    $region41: #{tpu_custom_call.1} parent=1 // pred_fallthru
      _
    // Predicated region
    $region42: #{tpu_custom_call.1} parent=1 // pred_check
      _
    $region43: #{tpu_custom_call.1} parent=1 // pred_check_branch
      %130 = sbr.rel (0) target = $region45
    $region44: #{tpu_custom_call.1} parent=1 // pred_region
      %132 = vsyncadd [#allocation17], 0
      %s133 = sshll.u32 %s10, 4
      %s134 = int_to_ptr.hbm [resolvable:$true] %s133
      %s135 = sshll.u32 [#allocation18], 4
      %s136 = int_to_ptr.vmem [resolvable:$true] %s135
      %141 = dma.hbm_to_vmem [thread:$0]  %s134, 1024, %s136, [#allocation17], 64, 64, 4
    $region45: #{tpu_custom_call.1} parent=1 // pred_fallthru
      _
    // Predicated region
    $region46: #{tpu_custom_call.1} parent=1 // pred_check
      _
    $region47: #{tpu_custom_call.1} parent=1 // pred_check_branch
      %143 = sbr.rel (0) target = $region49
    $region48: #{tpu_custom_call.1} parent=1 // pred_region
      _
    $region49: #{tpu_custom_call.1} parent=1 // pred_fallthru
      _
    // Predicated region
    $region50: #{tpu_custom_call.1} parent=1 // pred_check
      _
    $region51: #{tpu_custom_call.1} parent=1 // pred_check_branch
      %145 = sbr.rel (0) target = $region53
    $region52: #{tpu_custom_call.1} parent=1 // pred_region
      %147 = dma.done [#allocation5], 512
    $region53: #{tpu_custom_call.1} parent=1 // pred_fallthru
      _
    // Predicated region
    $region54: #{tpu_custom_call.1} parent=1 // pred_check
      _
    $region55: #{tpu_custom_call.1} parent=1 // pred_check_branch
      %149 = sbr.rel (0) target = $region57
    $region56: #{tpu_custom_call.1} parent=1 // pred_region
      %151 = dma.done [#allocation8], 4096
    $region57: #{tpu_custom_call.1} parent=1 // pred_fallthru
      _
    // Predicated region
    $region58: #{tpu_custom_call.1} parent=1 // pred_check
      _
    $region59: #{tpu_custom_call.1} parent=1 // pred_check_branch
      %153 = sbr.rel (0) target = $region61
    $region60: #{tpu_custom_call.1} parent=1 // pred_region
      %155 = dma.done [#allocation8], 4096
    $region61: #{tpu_custom_call.1} parent=1 // pred_fallthru
      _
    // Predicated region
    $region62: #{tpu_custom_call.1} parent=1 // pred_check
      _
    $region63: #{tpu_custom_call.1} parent=1 // pred_check_branch
      %157 = sbr.rel (0) target = $region65
    $region64: #{tpu_custom_call.1} parent=1 // pred_region
      %159 = dma.done [#allocation11], 64
    $region65: #{tpu_custom_call.1} parent=1 // pred_fallthru
      _
    // Predicated region
    $region66: #{tpu_custom_call.1} parent=1 // pred_check
      _
    $region67: #{tpu_custom_call.1} parent=1 // pred_check_branch
      %161 = sbr.rel (0) target = $region69
    $region68: #{tpu_custom_call.1} parent=1 // pred_region
      %163 = dma.done [#allocation11], 4096
    $region69: #{tpu_custom_call.1} parent=1 // pred_fallthru
      _
    // Predicated region
    $region70: #{tpu_custom_call.1} parent=1 // pred_check
      _
    $region71: #{tpu_custom_call.1} parent=1 // pred_check_branch
      %165 = sbr.rel (0) target = $region73
    $region72: #{tpu_custom_call.1} parent=1 // pred_region
      %167 = dma.done [#allocation14], 4096
    $region73: #{tpu_custom_call.1} parent=1 // pred_fallthru
      _
    // Predicated region
    $region74: #{tpu_custom_call.1} parent=1 // pred_check
      _
    $region75: #{tpu_custom_call.1} parent=1 // pred_check_branch
      %169 = sbr.rel (0) target = $region77
    $region76: #{tpu_custom_call.1} parent=1 // pred_region
      %171 = dma.done [#allocation14], 4096
    $region77: #{tpu_custom_call.1} parent=1 // pred_fallthru
      _
    // Predicated region
    $region78: #{tpu_custom_call.1} parent=1 // pred_check
      _
    $region79: #{tpu_custom_call.1} parent=1 // pred_check_branch
      %173 = sbr.rel (0) target = $region81
    $region80: #{tpu_custom_call.1} parent=1 // pred_region
      %175 = dma.done [#allocation17], 4096
    $region81: #{tpu_custom_call.1} parent=1 // pred_fallthru
      _
    // Predicated region
    $region82: #{tpu_custom_call.1} parent=1 // pred_check
      _
    $region83: #{tpu_custom_call.1} parent=1 // pred_check_branch
      %177 = sbr.rel (0) target = $region85
    $region84: #{tpu_custom_call.1} parent=1 // pred_region
      %179 = dma.done [#allocation17], 1024
    $region85: #{tpu_custom_call.1} parent=1 // pred_fallthru
      _
    %v181 = vld [vmem:[#allocation4] sm:$0xf]
    %v182 = vld [vmem:[#allocation4 + $0x4] sm:$0xf]
    %v183 = vld [vmem:[#allocation4 + $0x8] sm:$0xf]
    %v184 = vld [vmem:[#allocation4 + $0xc] sm:$0xf]
    %v185 = vld [vmem:[#allocation4 + $0x10] sm:$0xf]
    %v186 = vld [vmem:[#allocation4 + $0x14] sm:$0xf]
    %v187 = vld [vmem:[#allocation4 + $0x18] sm:$0xf]
    %v188 = vld [vmem:[#allocation4 + $0x1c] sm:$0xf]
    %v189 = vld [vmem:[#allocation7] sm:$0xff]
    %v190 = vld [vmem:[#allocation7 + $0x8] sm:$0xff]
    %v191 = vld [vmem:[#allocation7 + $0x10] sm:$0xff]
    %v192 = vld [vmem:[#allocation7 + $0x18] sm:$0xff]
    %v193 = vld [vmem:[#allocation7 + $0x20] sm:$0xff]
    %v194 = vld [vmem:[#allocation7 + $0x28] sm:$0xff]
    %v195 = vld [vmem:[#allocation7 + $0x30] sm:$0xff]
    %v196 = vld [vmem:[#allocation7 + $0x38] sm:$0xff]
    %v197 = vld [vmem:[#allocation7 + $0x40] sm:$0xff]
    %v198 = vld [vmem:[#allocation7 + $0x48] sm:$0xff]
    %v199 = vld [vmem:[#allocation7 + $0x50] sm:$0xff]
    %v200 = vld [vmem:[#allocation7 + $0x58] sm:$0xff]
    %v201 = vld [vmem:[#allocation7 + $0x60] sm:$0xff]
    %v202 = vld [vmem:[#allocation7 + $0x68] sm:$0xff]
    %v203 = vld [vmem:[#allocation7 + $0x70] sm:$0xff]
    %v204 = vld [vmem:[#allocation7 + $0x78] sm:$0xff]
    %v205 = vld [vmem:[#allocation7 + $0x80] sm:$0xff]
    %v206 = vld [vmem:[#allocation7 + $0x88] sm:$0xff]
    %v207 = vld [vmem:[#allocation7 + $0x90] sm:$0xff]
    %v208 = vld [vmem:[#allocation7 + $0x98] sm:$0xff]
    %v209 = vld [vmem:[#allocation7 + $0xa0] sm:$0xff]
    %v210 = vld [vmem:[#allocation7 + $0xa8] sm:$0xff]
    %v211 = vld [vmem:[#allocation7 + $0xb0] sm:$0xff]
    %v212 = vld [vmem:[#allocation7 + $0xb8] sm:$0xff]
    %v213 = vld [vmem:[#allocation7 + $0xc0] sm:$0xff]
    %v214 = vld [vmem:[#allocation7 + $0xc8] sm:$0xff]
    %v215 = vld [vmem:[#allocation7 + $0xd0] sm:$0xff]
    %v216 = vld [vmem:[#allocation7 + $0xd8] sm:$0xff]
    %v217 = vld [vmem:[#allocation7 + $0xe0] sm:$0xff]
    %v218 = vld [vmem:[#allocation7 + $0xe8] sm:$0xff]
    %v219 = vld [vmem:[#allocation7 + $0xf0] sm:$0xff]
    %v220 = vld [vmem:[#allocation7 + $0xf8] sm:$0xff]
    %v221 = vld [vmem:[#allocation10] sm:$0xf]
    %v223 = vperm.slane %v221, 0
    %v224 = vperm.slane %v221, 1
    %v225 = vperm.slane %v221, 2
    %v226 = vperm.slane %v221, 3
    %v239 = vunpack.c.l.b16 %v181
    %v240 = vunpack.c.l.b16 %v182
    %v241 = vunpack.c.l.b16 %v183
    %v242 = vunpack.c.l.b16 %v184
    %v243 = vunpack.c.l.b16 %v185
    %v244 = vunpack.c.l.b16 %v186
    %v245 = vunpack.c.l.b16 %v187
    %v246 = vunpack.c.l.b16 %v188
    %v247 = vpack.c.b16 %v240, %v239
    %v248 = vpack.c.b16 %v242, %v241
    %v249 = vpack.c.b16 %v244, %v243
    %v250 = vpack.c.b16 %v246, %v245
    %v287 = vunpack.c.l.b16 %v189
    %v288 = vunpack.c.h.b16 %v189
    %v289 = vunpack.c.l.b16 %v190
    %v290 = vunpack.c.h.b16 %v190
    %v291 = vunpack.c.l.b16 %v191
    %v292 = vunpack.c.h.b16 %v191
    %v293 = vunpack.c.l.b16 %v192
    %v294 = vunpack.c.h.b16 %v192
    %v295 = vunpack.c.l.b16 %v193
    %v296 = vunpack.c.h.b16 %v193
    %v297 = vunpack.c.l.b16 %v194
    %v298 = vunpack.c.h.b16 %v194
    %v299 = vunpack.c.l.b16 %v195
    %v300 = vunpack.c.h.b16 %v195
    %v301 = vunpack.c.l.b16 %v196
    %v302 = vunpack.c.h.b16 %v196
    %v303 = vunpack.c.l.b16 %v197
    %v304 = vunpack.c.h.b16 %v197
    %v305 = vunpack.c.l.b16 %v198
    %v306 = vunpack.c.h.b16 %v198
    %v307 = vunpack.c.l.b16 %v199
    %v308 = vunpack.c.h.b16 %v199
    %v309 = vunpack.c.l.b16 %v200
    %v310 = vunpack.c.h.b16 %v200
    %v311 = vunpack.c.l.b16 %v201
    %v312 = vunpack.c.h.b16 %v201
    %v313 = vunpack.c.l.b16 %v202
    %v314 = vunpack.c.h.b16 %v202
    %v315 = vunpack.c.l.b16 %v203
    %v316 = vunpack.c.h.b16 %v203
    %v317 = vunpack.c.l.b16 %v204
    %v318 = vunpack.c.h.b16 %v204
    %v319 = vunpack.c.l.b16 %v205
    %v320 = vunpack.c.h.b16 %v205
    %v321 = vunpack.c.l.b16 %v206
    %v322 = vunpack.c.h.b16 %v206
    %v323 = vunpack.c.l.b16 %v207
    %v324 = vunpack.c.h.b16 %v207
    %v325 = vunpack.c.l.b16 %v208
    %v326 = vunpack.c.h.b16 %v208
    %v327 = vunpack.c.l.b16 %v209
    %v328 = vunpack.c.h.b16 %v209
    %v329 = vunpack.c.l.b16 %v210
    %v330 = vunpack.c.h.b16 %v210
    %v331 = vunpack.c.l.b16 %v211
    %v332 = vunpack.c.h.b16 %v211
    %v333 = vunpack.c.l.b16 %v212
    %v334 = vunpack.c.h.b16 %v212
    %v335 = vunpack.c.l.b16 %v213
    %v336 = vunpack.c.h.b16 %v213
    %v337 = vunpack.c.l.b16 %v214
    %v338 = vunpack.c.h.b16 %v214
    %v339 = vunpack.c.l.b16 %v215
    %v340 = vunpack.c.h.b16 %v215
    %v341 = vunpack.c.l.b16 %v216
    %v342 = vunpack.c.h.b16 %v216
    %v343 = vunpack.c.l.b16 %v217
    %v344 = vunpack.c.h.b16 %v217
    %v345 = vunpack.c.l.b16 %v218
    %v346 = vunpack.c.h.b16 %v218
    %v347 = vunpack.c.l.b16 %v219
    %v348 = vunpack.c.h.b16 %v219
    %v349 = vunpack.c.l.b16 %v220
    %v350 = vunpack.c.h.b16 %v220
    %v351 = vpack.c.b16 %v291, %v287
    %v352 = vpack.c.b16 %v292, %v288
    %v353 = vpack.c.b16 %v293, %v289
    %v354 = vpack.c.b16 %v294, %v290
    %v355 = vpack.c.b16 %v299, %v295
    %v356 = vpack.c.b16 %v300, %v296
    %v357 = vpack.c.b16 %v301, %v297
    %v358 = vpack.c.b16 %v302, %v298
    %v359 = vpack.c.b16 %v307, %v303
    %v360 = vpack.c.b16 %v308, %v304
    %v361 = vpack.c.b16 %v309, %v305
    %v362 = vpack.c.b16 %v310, %v306
    %v363 = vpack.c.b16 %v315, %v311
    %v364 = vpack.c.b16 %v316, %v312
    %v365 = vpack.c.b16 %v317, %v313
    %v366 = vpack.c.b16 %v318, %v314
    %v367 = vpack.c.b16 %v323, %v319
    %v368 = vpack.c.b16 %v324, %v320
    %v369 = vpack.c.b16 %v325, %v321
    %v370 = vpack.c.b16 %v326, %v322
    %v371 = vpack.c.b16 %v331, %v327
    %v372 = vpack.c.b16 %v332, %v328
    %v373 = vpack.c.b16 %v333, %v329
    %v374 = vpack.c.b16 %v334, %v330
    %v375 = vpack.c.b16 %v339, %v335
    %v376 = vpack.c.b16 %v340, %v336
    %v377 = vpack.c.b16 %v341, %v337
    %v378 = vpack.c.b16 %v342, %v338
    %v379 = vpack.c.b16 %v347, %v343
    %v380 = vpack.c.b16 %v348, %v344
    %v381 = vpack.c.b16 %v349, %v345
    %v382 = vpack.c.b16 %v350, %v346
    %415 = vmatpush.bf16.msra.mxu0 %v379
    %416 = vmatpush.bf16.msra.mxu0 %v375
    %417 = vmatpush.bf16.msra.mxu0 %v371
    %418 = vmatpush.bf16.msra.mxu0 %v367
    %419 = vmatpush.bf16.msra.mxu0 %v363
    %420 = vmatpush.bf16.msra.mxu0 %v359
    %421 = vmatpush.bf16.msra.mxu0 %v355
    %422 = vmatpush.bf16.msra.mxu0 %v351
    %423 = vmatmul.bf16.gmra.mxu0 %v247
    %v424 = vpop.f32.mrf.mxu0
    %v425 = vadd.f32 %v223, %v424
    %v426 = vpop.f32.mrf.mxu0
    %v427 = vadd.f32 %v223, %v426
    %428 = vmatmul.bf16.gmra.mxu0 %v248
    %v429 = vpop.f32.mrf.mxu0
    %v430 = vadd.f32 %v223, %v429
    %v431 = vpop.f32.mrf.mxu0
    %v432 = vadd.f32 %v223, %v431
    %433 = vmatmul.bf16.gmra.mxu0 %v249
    %v434 = vpop.f32.mrf.mxu0
    %v435 = vadd.f32 %v223, %v434
    %v436 = vpop.f32.mrf.mxu0
    %v437 = vadd.f32 %v223, %v436
    %438 = vmatmul.bf16.gmra.mxu0 %v250
    %v439 = vpop.f32.mrf.mxu0
    %v440 = vadd.f32 %v223, %v439
    %v441 = vpop.f32.mrf.mxu0
    %v442 = vadd.f32 %v223, %v441
    %443 = vdwg.mxu0
    %444 = vmatpush.bf16.msra.mxu0 %v380
    %445 = vmatpush.bf16.msra.mxu0 %v376
    %446 = vmatpush.bf16.msra.mxu0 %v372
    %447 = vmatpush.bf16.msra.mxu0 %v368
    %448 = vmatpush.bf16.msra.mxu0 %v364
    %449 = vmatpush.bf16.msra.mxu0 %v360
    %450 = vmatpush.bf16.msra.mxu0 %v356
    %451 = vmatpush.bf16.msra.mxu0 %v352
    %452 = vmatmul.bf16.gmra.mxu0 %v247
    %v453 = vpop.f32.mrf.mxu0
    %v454 = vadd.f32 %v224, %v453
    %v455 = vpop.f32.mrf.mxu0
    %v456 = vadd.f32 %v224, %v455
    %457 = vmatmul.bf16.gmra.mxu0 %v248
    %v458 = vpop.f32.mrf.mxu0
    %v459 = vadd.f32 %v224, %v458
    %v460 = vpop.f32.mrf.mxu0
    %v461 = vadd.f32 %v224, %v460
    %462 = vmatmul.bf16.gmra.mxu0 %v249
    %v463 = vpop.f32.mrf.mxu0
    %v464 = vadd.f32 %v224, %v463
    %v465 = vpop.f32.mrf.mxu0
    %v466 = vadd.f32 %v224, %v465
    %467 = vmatmul.bf16.gmra.mxu0 %v250
    %v468 = vpop.f32.mrf.mxu0
    %v469 = vadd.f32 %v224, %v468
    %v470 = vpop.f32.mrf.mxu0
    %v471 = vadd.f32 %v224, %v470
    %472 = vdwg.mxu0
    %473 = vmatpush.bf16.msra.mxu0 %v381
    %474 = vmatpush.bf16.msra.mxu0 %v377
    %475 = vmatpush.bf16.msra.mxu0 %v373
    %476 = vmatpush.bf16.msra.mxu0 %v369
    %477 = vmatpush.bf16.msra.mxu0 %v365
    %478 = vmatpush.bf16.msra.mxu0 %v361
    %479 = vmatpush.bf16.msra.mxu0 %v357
    %480 = vmatpush.bf16.msra.mxu0 %v353
    %481 = vmatmul.bf16.gmra.mxu0 %v247
    %v482 = vpop.f32.mrf.mxu0
    %v483 = vadd.f32 %v225, %v482
    %v484 = vpop.f32.mrf.mxu0
    %v485 = vadd.f32 %v225, %v484
    %486 = vmatmul.bf16.gmra.mxu0 %v248
    %v487 = vpop.f32.mrf.mxu0
    %v488 = vadd.f32 %v225, %v487
    %v489 = vpop.f32.mrf.mxu0
    %v490 = vadd.f32 %v225, %v489
    %491 = vmatmul.bf16.gmra.mxu0 %v249
    %v492 = vpop.f32.mrf.mxu0
    %v493 = vadd.f32 %v225, %v492
    %v494 = vpop.f32.mrf.mxu0
    %v495 = vadd.f32 %v225, %v494
    %496 = vmatmul.bf16.gmra.mxu0 %v250
    %v497 = vpop.f32.mrf.mxu0
    %v498 = vadd.f32 %v225, %v497
    %v499 = vpop.f32.mrf.mxu0
    %v500 = vadd.f32 %v225, %v499
    %501 = vdwg.mxu0
    %502 = vmatpush.bf16.msra.mxu0 %v382
    %503 = vmatpush.bf16.msra.mxu0 %v378
    %504 = vmatpush.bf16.msra.mxu0 %v374
    %505 = vmatpush.bf16.msra.mxu0 %v370
    %506 = vmatpush.bf16.msra.mxu0 %v366
    %507 = vmatpush.bf16.msra.mxu0 %v362
    %508 = vmatpush.bf16.msra.mxu0 %v358
    %509 = vmatpush.bf16.msra.mxu0 %v354
    %510 = vmatmul.bf16.gmra.mxu0 %v247
    %v511 = vpop.f32.mrf.mxu0
    %v512 = vadd.f32 %v226, %v511
    %v513 = vpop.f32.mrf.mxu0
    %v514 = vadd.f32 %v226, %v513
    %515 = vmatmul.bf16.gmra.mxu0 %v248
    %v516 = vpop.f32.mrf.mxu0
    %v517 = vadd.f32 %v226, %v516
    %v518 = vpop.f32.mrf.mxu0
    %v519 = vadd.f32 %v226, %v518
    %520 = vmatmul.bf16.gmra.mxu0 %v249
    %v521 = vpop.f32.mrf.mxu0
    %v522 = vadd.f32 %v226, %v521
    %v523 = vpop.f32.mrf.mxu0
    %v524 = vadd.f32 %v226, %v523
    %525 = vmatmul.bf16.gmra.mxu0 %v250
    %v526 = vpop.f32.mrf.mxu0
    %v527 = vadd.f32 %v226, %v526
    %v528 = vpop.f32.mrf.mxu0
    %v529 = vadd.f32 %v226, %v528
    %530 = vdwg.mxu0
    %531 = vst [vmem:[#allocation2] sm:$0xff] %v425
    %532 = vst [vmem:[#allocation2 + $0x8] sm:$0xff] %v454
    %533 = vst [vmem:[#allocation2 + $0x10] sm:$0xff] %v483
    %534 = vst [vmem:[#allocation2 + $0x18] sm:$0xff] %v512
    %535 = vst [vmem:[#allocation2 + $0x20] sm:$0xff] %v427
    %536 = vst [vmem:[#allocation2 + $0x28] sm:$0xff] %v456
    %537 = vst [vmem:[#allocation2 + $0x30] sm:$0xff] %v485
    %538 = vst [vmem:[#allocation2 + $0x38] sm:$0xff] %v514
    %539 = vst [vmem:[#allocation2 + $0x40] sm:$0xff] %v430
    %540 = vst [vmem:[#allocation2 + $0x48] sm:$0xff] %v459
    %541 = vst [vmem:[#allocation2 + $0x50] sm:$0xff] %v488
    %542 = vst [vmem:[#allocation2 + $0x58] sm:$0xff] %v517
    %543 = vst [vmem:[#allocation2 + $0x60] sm:$0xff] %v432
    %544 = vst [vmem:[#allocation2 + $0x68] sm:$0xff] %v461
    %545 = vst [vmem:[#allocation2 + $0x70] sm:$0xff] %v490
    %546 = vst [vmem:[#allocation2 + $0x78] sm:$0xff] %v519
    %547 = vst [vmem:[#allocation2 + $0x80] sm:$0xff] %v435
    %548 = vst [vmem:[#allocation2 + $0x88] sm:$0xff] %v464
    %549 = vst [vmem:[#allocation2 + $0x90] sm:$0xff] %v493
    %550 = vst [vmem:[#allocation2 + $0x98] sm:$0xff] %v522
    %551 = vst [vmem:[#allocation2 + $0xa0] sm:$0xff] %v437
    %552 = vst [vmem:[#allocation2 + $0xa8] sm:$0xff] %v466
    %553 = vst [vmem:[#allocation2 + $0xb0] sm:$0xff] %v495
    %554 = vst [vmem:[#allocation2 + $0xb8] sm:$0xff] %v524
    %555 = vst [vmem:[#allocation2 + $0xc0] sm:$0xff] %v440
    %556 = vst [vmem:[#allocation2 + $0xc8] sm:$0xff] %v469
    %557 = vst [vmem:[#allocation2 + $0xd0] sm:$0xff] %v498
    %558 = vst [vmem:[#allocation2 + $0xd8] sm:$0xff] %v527
    %559 = vst [vmem:[#allocation2 + $0xe0] sm:$0xff] %v442
    %560 = vst [vmem:[#allocation2 + $0xe8] sm:$0xff] %v471
    %561 = vst [vmem:[#allocation2 + $0xf0] sm:$0xff] %v500
    %562 = vst [vmem:[#allocation2 + $0xf8] sm:$0xff] %v529
    %v563 = vld [vmem:[#allocation2] sm:$0xff]
    %v564 = vld [vmem:[#allocation2 + $0x8] sm:$0xff]
    %v565 = vld [vmem:[#allocation2 + $0x10] sm:$0xff]
    %v566 = vld [vmem:[#allocation2 + $0x18] sm:$0xff]
    %v567 = vld [vmem:[#allocation9] sm:$0xff]
    %v568 = vld [vmem:[#allocation9 + $0x8] sm:$0xff]
    %v569 = vld [vmem:[#allocation9 + $0x10] sm:$0xff]
    %v570 = vld [vmem:[#allocation9 + $0x18] sm:$0xff]
    %v571 = vld [vmem:[#allocation9 + $0x20] sm:$0xff]
    %v572 = vld [vmem:[#allocation9 + $0x28] sm:$0xff]
    %v573 = vld [vmem:[#allocation9 + $0x30] sm:$0xff]
    %v574 = vld [vmem:[#allocation9 + $0x38] sm:$0xff]
    %v575 = vld [vmem:[#allocation9 + $0x40] sm:$0xff]
    %v576 = vld [vmem:[#allocation9 + $0x48] sm:$0xff]
    %v577 = vld [vmem:[#allocation9 + $0x50] sm:$0xff]
    %v578 = vld [vmem:[#allocation9 + $0x58] sm:$0xff]
    %v579 = vld [vmem:[#allocation9 + $0x60] sm:$0xff]
    %v580 = vld [vmem:[#allocation9 + $0x68] sm:$0xff]
    %v581 = vld [vmem:[#allocation9 + $0x70] sm:$0xff]
    %v582 = vld [vmem:[#allocation9 + $0x78] sm:$0xff]
    %v583 = vld [vmem:[#allocation9 + $0x80] sm:$0xff]
    %v584 = vld [vmem:[#allocation9 + $0x88] sm:$0xff]
    %v585 = vld [vmem:[#allocation9 + $0x90] sm:$0xff]
    %v586 = vld [vmem:[#allocation9 + $0x98] sm:$0xff]
    %v587 = vld [vmem:[#allocation9 + $0xa0] sm:$0xff]
    %v588 = vld [vmem:[#allocation9 + $0xa8] sm:$0xff]
    %v589 = vld [vmem:[#allocation9 + $0xb0] sm:$0xff]
    %v590 = vld [vmem:[#allocation9 + $0xb8] sm:$0xff]
    %v591 = vld [vmem:[#allocation9 + $0xc0] sm:$0xff]
    %v592 = vld [vmem:[#allocation9 + $0xc8] sm:$0xff]
    %v593 = vld [vmem:[#allocation9 + $0xd0] sm:$0xff]
    %v594 = vld [vmem:[#allocation9 + $0xd8] sm:$0xff]
    %v595 = vld [vmem:[#allocation9 + $0xe0] sm:$0xff]
    %v596 = vld [vmem:[#allocation9 + $0xe8] sm:$0xff]
    %v597 = vld [vmem:[#allocation9 + $0xf0] sm:$0xff]
    %v598 = vld [vmem:[#allocation9 + $0xf8] sm:$0xff]
    %v631 = vunpack.c.l.b16 %v567
    %v632 = vunpack.c.h.b16 %v567
    %v633 = vunpack.c.l.b16 %v568
    %v634 = vunpack.c.h.b16 %v568
    %v635 = vunpack.c.l.b16 %v569
    %v636 = vunpack.c.h.b16 %v569
    %v637 = vunpack.c.l.b16 %v570
    %v638 = vunpack.c.h.b16 %v570
    %v639 = vunpack.c.l.b16 %v571
    %v640 = vunpack.c.h.b16 %v571
    %v641 = vunpack.c.l.b16 %v572
    %v642 = vunpack.c.h.b16 %v572
    %v643 = vunpack.c.l.b16 %v573
    %v644 = vunpack.c.h.b16 %v573
    %v645 = vunpack.c.l.b16 %v574
    %v646 = vunpack.c.h.b16 %v574
    %v647 = vunpack.c.l.b16 %v575
    %v648 = vunpack.c.h.b16 %v575
    %v649 = vunpack.c.l.b16 %v576
    %v650 = vunpack.c.h.b16 %v576
    %v651 = vunpack.c.l.b16 %v577
    %v652 = vunpack.c.h.b16 %v577
    %v653 = vunpack.c.l.b16 %v578
    %v654 = vunpack.c.h.b16 %v578
    %v655 = vunpack.c.l.b16 %v579
    %v656 = vunpack.c.h.b16 %v579
    %v657 = vunpack.c.l.b16 %v580
    %v658 = vunpack.c.h.b16 %v580
    %v659 = vunpack.c.l.b16 %v581
    %v660 = vunpack.c.h.b16 %v581
    %v661 = vunpack.c.l.b16 %v582
    %v662 = vunpack.c.h.b16 %v582
    %v663 = vunpack.c.l.b16 %v583
    %v664 = vunpack.c.h.b16 %v583
    %v665 = vunpack.c.l.b16 %v584
    %v666 = vunpack.c.h.b16 %v584
    %v667 = vunpack.c.l.b16 %v585
    %v668 = vunpack.c.h.b16 %v585
    %v669 = vunpack.c.l.b16 %v586
    %v670 = vunpack.c.h.b16 %v586
    %v671 = vunpack.c.l.b16 %v587
    %v672 = vunpack.c.h.b16 %v587
    %v673 = vunpack.c.l.b16 %v588
    %v674 = vunpack.c.h.b16 %v588
    %v675 = vunpack.c.l.b16 %v589
    %v676 = vunpack.c.h.b16 %v589
    %v677 = vunpack.c.l.b16 %v590
    %v678 = vunpack.c.h.b16 %v590
    %v679 = vunpack.c.l.b16 %v591
    %v680 = vunpack.c.h.b16 %v591
    %v681 = vunpack.c.l.b16 %v592
    %v682 = vunpack.c.h.b16 %v592
    %v683 = vunpack.c.l.b16 %v593
    %v684 = vunpack.c.h.b16 %v593
    %v685 = vunpack.c.l.b16 %v594
    %v686 = vunpack.c.h.b16 %v594
    %v687 = vunpack.c.l.b16 %v595
    %v688 = vunpack.c.h.b16 %v595
    %v689 = vunpack.c.l.b16 %v596
    %v690 = vunpack.c.h.b16 %v596
    %v691 = vunpack.c.l.b16 %v597
    %v692 = vunpack.c.h.b16 %v597
    %v693 = vunpack.c.l.b16 %v598
    %v694 = vunpack.c.h.b16 %v598
    %v695 = vpack.c.b16 %v635, %v631
    %v696 = vpack.c.b16 %v636, %v632
    %v697 = vpack.c.b16 %v637, %v633
    %v698 = vpack.c.b16 %v638, %v634
    %v699 = vpack.c.b16 %v643, %v639
    %v700 = vpack.c.b16 %v644, %v640
    %v701 = vpack.c.b16 %v645, %v641
    %v702 = vpack.c.b16 %v646, %v642
    %v703 = vpack.c.b16 %v651, %v647
    %v704 = vpack.c.b16 %v652, %v648
    %v705 = vpack.c.b16 %v653, %v649
    %v706 = vpack.c.b16 %v654, %v650
    %v707 = vpack.c.b16 %v659, %v655
    %v708 = vpack.c.b16 %v660, %v656
    %v709 = vpack.c.b16 %v661, %v657
    %v710 = vpack.c.b16 %v662, %v658
    %v711 = vpack.c.b16 %v667, %v663
    %v712 = vpack.c.b16 %v668, %v664
    %v713 = vpack.c.b16 %v669, %v665
    %v714 = vpack.c.b16 %v670, %v666
    %v715 = vpack.c.b16 %v675, %v671
    %v716 = vpack.c.b16 %v676, %v672
    %v717 = vpack.c.b16 %v677, %v673
    %v718 = vpack.c.b16 %v678, %v674
    %v719 = vpack.c.b16 %v683, %v679
    %v720 = vpack.c.b16 %v684, %v680
    %v721 = vpack.c.b16 %v685, %v681
    %v722 = vpack.c.b16 %v686, %v682
    %v723 = vpack.c.b16 %v691, %v687
    %v724 = vpack.c.b16 %v692, %v688
    %v725 = vpack.c.b16 %v693, %v689
    %v726 = vpack.c.b16 %v694, %v690
    %759 = vmatpush.bf16.msra.mxu0 %v723
    %760 = vmatpush.bf16.msra.mxu0 %v719
    %761 = vmatpush.bf16.msra.mxu0 %v715
    %762 = vmatpush.bf16.msra.mxu0 %v711
    %763 = vmatpush.bf16.msra.mxu0 %v707
    %764 = vmatpush.bf16.msra.mxu0 %v703
    %765 = vmatpush.bf16.msra.mxu0 %v699
    %766 = vmatpush.bf16.msra.mxu0 %v695
    %767 = vmatmul.bf16.gmra.mxu0 0
    %v768 = vpop.f32.mrf.mxu0
    %v769 = vadd.f32 0.0, %v768
    %v770 = vpop.f32.mrf.mxu0
    %771 = vdwg.mxu0
    %772 = vmatpush.bf16.msra.mxu0 %v724
    %773 = vmatpush.bf16.msra.mxu0 %v720
    %774 = vmatpush.bf16.msra.mxu0 %v716
    %775 = vmatpush.bf16.msra.mxu0 %v712
    %776 = vmatpush.bf16.msra.mxu0 %v708
    %777 = vmatpush.bf16.msra.mxu0 %v704
    %778 = vmatpush.bf16.msra.mxu0 %v700
    %779 = vmatpush.bf16.msra.mxu0 %v696
    %780 = vmatmul.bf16.gmra.mxu0 0
    %v781 = vpop.f32.mrf.mxu0
    %v782 = vadd.f32 0.0, %v781
    %v783 = vpop.f32.mrf.mxu0
    %784 = vdwg.mxu0
    %785 = vmatpush.bf16.msra.mxu0 %v725
    %786 = vmatpush.bf16.msra.mxu0 %v721
    %787 = vmatpush.bf16.msra.mxu0 %v717
    %788 = vmatpush.bf16.msra.mxu0 %v713
    %789 = vmatpush.bf16.msra.mxu0 %v709
    %790 = vmatpush.bf16.msra.mxu0 %v705
    %791 = vmatpush.bf16.msra.mxu0 %v701
    %792 = vmatpush.bf16.msra.mxu0 %v697
    %793 = vmatmul.bf16.gmra.mxu0 0
    %v794 = vpop.f32.mrf.mxu0
    %v795 = vadd.f32 0.0, %v794
    %v796 = vpop.f32.mrf.mxu0
    %797 = vdwg.mxu0
    %798 = vmatpush.bf16.msra.mxu0 %v726
    %799 = vmatpush.bf16.msra.mxu0 %v722
    %800 = vmatpush.bf16.msra.mxu0 %v718
    %801 = vmatpush.bf16.msra.mxu0 %v714
    %802 = vmatpush.bf16.msra.mxu0 %v710
    %803 = vmatpush.bf16.msra.mxu0 %v706
    %804 = vmatpush.bf16.msra.mxu0 %v702
    %805 = vmatpush.bf16.msra.mxu0 %v698
    %806 = vmatmul.bf16.gmra.mxu0 0
    %v807 = vpop.f32.mrf.mxu0
    %v808 = vadd.f32 0.0, %v807
    %v809 = vpop.f32.mrf.mxu0
    %810 = vdwg.mxu0
    %v811 = vadd.f32 %v563, %v769
    %v812 = vadd.f32 %v564, %v782
    %v813 = vadd.f32 %v565, %v795
    %v814 = vadd.f32 %v566, %v808
    %v815 = vmul.f32 %v811, 0.5
    %v816 = vtanh.pop %v815
    %v817 = vmul.f32 %v816, 0.5
    %v818 = vadd.f32 %v817, 0.5
    %v819 = vmul.f32 %v812, 0.5
    %v820 = vtanh.pop %v819
    %v821 = vmul.f32 %v820, 0.5
    %v822 = vadd.f32 %v821, 0.5
    %v823 = vtanh.pop %v813
    %v824 = vmul.f32 %v814, 0.5
    %v825 = vtanh.pop %v824
    %v826 = vmul.f32 %v825, 0.5
    %v827 = vadd.f32 %v826, 0.5
    %v828 = vmul.f32 %v822, 0.0
    %v829 = vmul.f32 %v818, %v823
    %v830 = vadd.f32 %v828, %v829
    %v831 = vtanh.pop %v830
    %v832 = vmul.f32 %v827, %v831
    %833 = vst [vmem:[#allocation3] sm:$0xff] %v832
    %v834 = vld [vmem:[#allocation2 + $0x20] sm:$0xff]
    %v835 = vld [vmem:[#allocation2 + $0x28] sm:$0xff]
    %v836 = vld [vmem:[#allocation2 + $0x30] sm:$0xff]
    %v837 = vld [vmem:[#allocation2 + $0x38] sm:$0xff]
    %v838 = vpack.c.bf16 %v832, %v832
    %v839 = vld [vmem:[#allocation9] sm:$0xff]
    %v840 = vld [vmem:[#allocation9 + $0x8] sm:$0xff]
    %v841 = vld [vmem:[#allocation9 + $0x10] sm:$0xff]
    %v842 = vld [vmem:[#allocation9 + $0x18] sm:$0xff]
    %v843 = vld [vmem:[#allocation9 + $0x20] sm:$0xff]
    %v844 = vld [vmem:[#allocation9 + $0x28] sm:$0xff]
    %v845 = vld [vmem:[#allocation9 + $0x30] sm:$0xff]
    %v846 = vld [vmem:[#allocation9 + $0x38] sm:$0xff]
    %v847 = vld [vmem:[#allocation9 + $0x40] sm:$0xff]
    %v848 = vld [vmem:[#allocation9 + $0x48] sm:$0xff]
    %v849 = vld [vmem:[#allocation9 + $0x50] sm:$0xff]
    %v850 = vld [vmem:[#allocation9 + $0x58] sm:$0xff]
    %v851 = vld [vmem:[#allocation9 + $0x60] sm:$0xff]
    %v852 = vld [vmem:[#allocation9 + $0x68] sm:$0xff]
    %v853 = vld [vmem:[#allocation9 + $0x70] sm:$0xff]
    %v854 = vld [vmem:[#allocation9 + $0x78] sm:$0xff]
    %v855 = vld [vmem:[#allocation9 + $0x80] sm:$0xff]
    %v856 = vld [vmem:[#allocation9 + $0x88] sm:$0xff]
    %v857 = vld [vmem:[#allocation9 + $0x90] sm:$0xff]
    %v858 = vld [vmem:[#allocation9 + $0x98] sm:$0xff]
    %v859 = vld [vmem:[#allocation9 + $0xa0] sm:$0xff]
    %v860 = vld [vmem:[#allocation9 + $0xa8] sm:$0xff]
    %v861 = vld [vmem:[#allocation9 + $0xb0] sm:$0xff]
    %v862 = vld [vmem:[#allocation9 + $0xb8] sm:$0xff]
    %v863 = vld [vmem:[#allocation9 + $0xc0] sm:$0xff]
    %v864 = vld [vmem:[#allocation9 + $0xc8] sm:$0xff]
    %v865 = vld [vmem:[#allocation9 + $0xd0] sm:$0xff]
    %v866 = vld [vmem:[#allocation9 + $0xd8] sm:$0xff]
    %v867 = vld [vmem:[#allocation9 + $0xe0] sm:$0xff]
    %v868 = vld [vmem:[#allocation9 + $0xe8] sm:$0xff]
    %v869 = vld [vmem:[#allocation9 + $0xf0] sm:$0xff]
    %v870 = vld [vmem:[#allocation9 + $0xf8] sm:$0xff]
    %v903 = vunpack.c.l.b16 %v839
    %v904 = vunpack.c.h.b16 %v839
    %v905 = vunpack.c.l.b16 %v840
    %v906 = vunpack.c.h.b16 %v840
    %v907 = vunpack.c.l.b16 %v841
    %v908 = vunpack.c.h.b16 %v841
    %v909 = vunpack.c.l.b16 %v842
    %v910 = vunpack.c.h.b16 %v842
    %v911 = vunpack.c.l.b16 %v843
    %v912 = vunpack.c.h.b16 %v843
    %v913 = vunpack.c.l.b16 %v844
    %v914 = vunpack.c.h.b16 %v844
    %v915 = vunpack.c.l.b16 %v845
    %v916 = vunpack.c.h.b16 %v845
    %v917 = vunpack.c.l.b16 %v846
    %v918 = vunpack.c.h.b16 %v846
    %v919 = vunpack.c.l.b16 %v847
    %v920 = vunpack.c.h.b16 %v847
    %v921 = vunpack.c.l.b16 %v848
    %v922 = vunpack.c.h.b16 %v848
    %v923 = vunpack.c.l.b16 %v849
    %v924 = vunpack.c.h.b16 %v849
    %v925 = vunpack.c.l.b16 %v850
    %v926 = vunpack.c.h.b16 %v850
    %v927 = vunpack.c.l.b16 %v851
    %v928 = vunpack.c.h.b16 %v851
    %v929 = vunpack.c.l.b16 %v852
    %v930 = vunpack.c.h.b16 %v852
    %v931 = vunpack.c.l.b16 %v853
    %v932 = vunpack.c.h.b16 %v853
    %v933 = vunpack.c.l.b16 %v854
    %v934 = vunpack.c.h.b16 %v854
    %v935 = vunpack.c.l.b16 %v855
    %v936 = vunpack.c.h.b16 %v855
    %v937 = vunpack.c.l.b16 %v856
    %v938 = vunpack.c.h.b16 %v856
    %v939 = vunpack.c.l.b16 %v857
    %v940 = vunpack.c.h.b16 %v857
    %v941 = vunpack.c.l.b16 %v858
    %v942 = vunpack.c.h.b16 %v858
    %v943 = vunpack.c.l.b16 %v859
    %v944 = vunpack.c.h.b16 %v859
    %v945 = vunpack.c.l.b16 %v860
    %v946 = vunpack.c.h.b16 %v860
    %v947 = vunpack.c.l.b16 %v861
    %v948 = vunpack.c.h.b16 %v861
    %v949 = vunpack.c.l.b16 %v862
    %v950 = vunpack.c.h.b16 %v862
    %v951 = vunpack.c.l.b16 %v863
    %v952 = vunpack.c.h.b16 %v863
    %v953 = vunpack.c.l.b16 %v864
    %v954 = vunpack.c.h.b16 %v864
    %v955 = vunpack.c.l.b16 %v865
    %v956 = vunpack.c.h.b16 %v865
    %v957 = vunpack.c.l.b16 %v866
    %v958 = vunpack.c.h.b16 %v866
    %v959 = vunpack.c.l.b16 %v867
    %v960 = vunpack.c.h.b16 %v867
    %v961 = vunpack.c.l.b16 %v868
    %v962 = vunpack.c.h.b16 %v868
    %v963 = vunpack.c.l.b16 %v869
    %v964 = vunpack.c.h.b16 %v869
    %v965 = vunpack.c.l.b16 %v870
    %v966 = vunpack.c.h.b16 %v870
    %v967 = vpack.c.b16 %v907, %v903
    %v968 = vpack.c.b16 %v908, %v904
    %v969 = vpack.c.b16 %v909, %v905
    %v970 = vpack.c.b16 %v910, %v906
    %v971 = vpack.c.b16 %v915, %v911
    %v972 = vpack.c.b16 %v916, %v912
    %v973 = vpack.c.b16 %v917, %v913
    %v974 = vpack.c.b16 %v918, %v914
    %v975 = vpack.c.b16 %v923, %v919
    %v976 = vpack.c.b16 %v924, %v920
    %v977 = vpack.c.b16 %v925, %v921
    %v978 = vpack.c.b16 %v926, %v922
    %v979 = vpack.c.b16 %v931, %v927
    %v980 = vpack.c.b16 %v932, %v928
    %v981 = vpack.c.b16 %v933, %v929
    %v982 = vpack.c.b16 %v934, %v930
    %v983 = vpack.c.b16 %v939, %v935
    %v984 = vpack.c.b16 %v940, %v936
    %v985 = vpack.c.b16 %v941, %v937
    %v986 = vpack.c.b16 %v942, %v938
    %v987 = vpack.c.b16 %v947, %v943
    %v988 = vpack.c.b16 %v948, %v944
    %v989 = vpack.c.b16 %v949, %v945
    %v990 = vpack.c.b16 %v950, %v946
    %v991 = vpack.c.b16 %v955, %v951
    %v992 = vpack.c.b16 %v956, %v952
    %v993 = vpack.c.b16 %v957, %v953
    %v994 = vpack.c.b16 %v958, %v954
    %v995 = vpack.c.b16 %v963, %v959
    %v996 = vpack.c.b16 %v964, %v960
    %v997 = vpack.c.b16 %v965, %v961
    %v998 = vpack.c.b16 %v966, %v962
    %1031 = vmatpush.bf16.msra.mxu0 %v995
    %1032 = vmatpush.bf16.msra.mxu0 %v991
    %1033 = vmatpush.bf16.msra.mxu0 %v987
    %1034 = vmatpush.bf16.msra.mxu0 %v983
    %1035 = vmatpush.bf16.msra.mxu0 %v979
    %1036 = vmatpush.bf16.msra.mxu0 %v975
    %1037 = vmatpush.bf16.msra.mxu0 %v971
    %1038 = vmatpush.bf16.msra.mxu0 %v967
    %1039 = vmatmul.bf16.gmra.mxu0 %v838
    %v1040 = vpop.f32.mrf.mxu0
    %v1041 = vadd.f32 0.0, %v1040
    %v1042 = vpop.f32.mrf.mxu0
    %1043 = vdwg.mxu0
    %1044 = vmatpush.bf16.msra.mxu0 %v996
    %1045 = vmatpush.bf16.msra.mxu0 %v992
    %1046 = vmatpush.bf16.msra.mxu0 %v988
    %1047 = vmatpush.bf16.msra.mxu0 %v984
    %1048 = vmatpush.bf16.msra.mxu0 %v980
    %1049 = vmatpush.bf16.msra.mxu0 %v976
    %1050 = vmatpush.bf16.msra.mxu0 %v972
    %1051 = vmatpush.bf16.msra.mxu0 %v968
    %1052 = vmatmul.bf16.gmra.mxu0 %v838
    %v1053 = vpop.f32.mrf.mxu0
    %v1054 = vadd.f32 0.0, %v1053
    %v1055 = vpop.f32.mrf.mxu0
    %1056 = vdwg.mxu0
    %1057 = vmatpush.bf16.msra.mxu0 %v997
    %1058 = vmatpush.bf16.msra.mxu0 %v993
    %1059 = vmatpush.bf16.msra.mxu0 %v989
    %1060 = vmatpush.bf16.msra.mxu0 %v985
    %1061 = vmatpush.bf16.msra.mxu0 %v981
    %1062 = vmatpush.bf16.msra.mxu0 %v977
    %1063 = vmatpush.bf16.msra.mxu0 %v973
    %1064 = vmatpush.bf16.msra.mxu0 %v969
    %1065 = vmatmul.bf16.gmra.mxu0 %v838
    %v1066 = vpop.f32.mrf.mxu0
    %v1067 = vadd.f32 0.0, %v1066
    %v1068 = vpop.f32.mrf.mxu0
    %1069 = vdwg.mxu0
    %1070 = vmatpush.bf16.msra.mxu0 %v998
    %1071 = vmatpush.bf16.msra.mxu0 %v994
    %1072 = vmatpush.bf16.msra.mxu0 %v990
    %1073 = vmatpush.bf16.msra.mxu0 %v986
    %1074 = vmatpush.bf16.msra.mxu0 %v982
    %1075 = vmatpush.bf16.msra.mxu0 %v978
    %1076 = vmatpush.bf16.msra.mxu0 %v974
    %1077 = vmatpush.bf16.msra.mxu0 %v970
    %1078 = vmatmul.bf16.gmra.mxu0 %v838
    %v1079 = vpop.f32.mrf.mxu0
    %v1080 = vadd.f32 0.0, %v1079
    %v1081 = vpop.f32.mrf.mxu0
    %1082 = vdwg.mxu0
    %v1083 = vadd.f32 %v834, %v1041
    %v1084 = vadd.f32 %v835, %v1054
    %v1085 = vadd.f32 %v836, %v1067
    %v1086 = vadd.f32 %v837, %v1080
    %v1087 = vmul.f32 %v1083, 0.5
    %v1088 = vtanh.pop %v1087
    %v1089 = vmul.f32 %v1088, 0.5
    %v1090 = vadd.f32 %v1089, 0.5
    %v1091 = vmul.f32 %v1084, 0.5
    %v1092 = vtanh.pop %v1091
    %v1093 = vmul.f32 %v1092, 0.5
    %v1094 = vadd.f32 %v1093, 0.5
    %v1095 = vtanh.pop %v1085
    %v1096 = vmul.f32 %v1086, 0.5
    %v1097 = vtanh.pop %v1096
    %v1098 = vmul.f32 %v1097, 0.5
    %v1099 = vadd.f32 %v1098, 0.5
    %v1100 = vmul.f32 %v1094, %v830
    %v1101 = vmul.f32 %v1090, %v1095
    %v1102 = vadd.f32 %v1100, %v1101
    %v1103 = vtanh.pop %v1102
    %v1104 = vmul.f32 %v1099, %v1103
    %1105 = vst [vmem:[#allocation3 + $0x8] sm:$0xff] %v1104
    %v1106 = vld [vmem:[#allocation2 + $0x40] sm:$0xff]
    %v1107 = vld [vmem:[#allocation2 + $0x48] sm:$0xff]
    %v1108 = vld [vmem:[#allocation2 + $0x50] sm:$0xff]
    %v1109 = vld [vmem:[#allocation2 + $0x58] sm:$0xff]
    %v1110 = vpack.c.bf16 %v1104, %v1104
    %v1111 = vld [vmem:[#allocation9] sm:$0xff]
    %v1112 = vld [vmem:[#allocation9 + $0x8] sm:$0xff]
    %v1113 = vld [vmem:[#allocation9 + $0x10] sm:$0xff]
    %v1114 = vld [vmem:[#allocation9 + $0x18] sm:$0xff]
    %v1115 = vld [vmem:[#allocation9 + $0x20] sm:$0xff]
    %v1116 = vld [vmem:[#allocation9 + $0x28] sm:$0xff]
    %v1117 = vld [vmem:[#allocation9 + $0x30] sm:$0xff]
    %v1118 = vld [vmem:[#allocation9 + $0x38] sm:$0xff]
    %v1119 = vld [vmem:[#allocation9 + $0x40] sm:$0xff]
    %v1120 = vld [vmem:[#allocation9 + $0x48] sm:$0xff]
    %v1121 = vld [vmem:[#allocation9 + $0x50] sm:$0xff]
    %v1122 = vld [vmem:[#allocation9 + $0x58] sm:$0xff]
    %v1123 = vld [vmem:[#allocation9 + $0x60] sm:$0xff]
    %v1124 = vld [vmem:[#allocation9 + $0x68] sm:$0xff]
    %v1125 = vld [vmem:[#allocation9 + $0x70] sm:$0xff]
    %v1126 = vld [vmem:[#allocation9 + $0x78] sm:$0xff]
    %v1127 = vld [vmem:[#allocation9 + $0x80] sm:$0xff]
    %v1128 = vld [vmem:[#allocation9 + $0x88] sm:$0xff]
    %v1129 = vld [vmem:[#allocation9 + $0x90] sm:$0xff]
    %v1130 = vld [vmem:[#allocation9 + $0x98] sm:$0xff]
    %v1131 = vld [vmem:[#allocation9 + $0xa0] sm:$0xff]
    %v1132 = vld [vmem:[#allocation9 + $0xa8] sm:$0xff]
    %v1133 = vld [vmem:[#allocation9 + $0xb0] sm:$0xff]
    %v1134 = vld [vmem:[#allocation9 + $0xb8] sm:$0xff]
    %v1135 = vld [vmem:[#allocation9 + $0xc0] sm:$0xff]
    %v1136 = vld [vmem:[#allocation9 + $0xc8] sm:$0xff]
    %v1137 = vld [vmem:[#allocation9 + $0xd0] sm:$0xff]
    %v1138 = vld [vmem:[#allocation9 + $0xd8] sm:$0xff]
    %v1139 = vld [vmem:[#allocation9 + $0xe0] sm:$0xff]
    %v1140 = vld [vmem:[#allocation9 + $0xe8] sm:$0xff]
    %v1141 = vld [vmem:[#allocation9 + $0xf0] sm:$0xff]
    %v1142 = vld [vmem:[#allocation9 + $0xf8] sm:$0xff]
    %v1175 = vunpack.c.l.b16 %v1111
    %v1176 = vunpack.c.h.b16 %v1111
    %v1177 = vunpack.c.l.b16 %v1112
    %v1178 = vunpack.c.h.b16 %v1112
    %v1179 = vunpack.c.l.b16 %v1113
    %v1180 = vunpack.c.h.b16 %v1113
    %v1181 = vunpack.c.l.b16 %v1114
    %v1182 = vunpack.c.h.b16 %v1114
    %v1183 = vunpack.c.l.b16 %v1115
    %v1184 = vunpack.c.h.b16 %v1115
    %v1185 = vunpack.c.l.b16 %v1116
    %v1186 = vunpack.c.h.b16 %v1116
    %v1187 = vunpack.c.l.b16 %v1117
    %v1188 = vunpack.c.h.b16 %v1117
    %v1189 = vunpack.c.l.b16 %v1118
    %v1190 = vunpack.c.h.b16 %v1118
    %v1191 = vunpack.c.l.b16 %v1119
    %v1192 = vunpack.c.h.b16 %v1119
    %v1193 = vunpack.c.l.b16 %v1120
    %v1194 = vunpack.c.h.b16 %v1120
    %v1195 = vunpack.c.l.b16 %v1121
    %v1196 = vunpack.c.h.b16 %v1121
    %v1197 = vunpack.c.l.b16 %v1122
    %v1198 = vunpack.c.h.b16 %v1122
    %v1199 = vunpack.c.l.b16 %v1123
    %v1200 = vunpack.c.h.b16 %v1123
    %v1201 = vunpack.c.l.b16 %v1124
    %v1202 = vunpack.c.h.b16 %v1124
    %v1203 = vunpack.c.l.b16 %v1125
    %v1204 = vunpack.c.h.b16 %v1125
    %v1205 = vunpack.c.l.b16 %v1126
    %v1206 = vunpack.c.h.b16 %v1126
    %v1207 = vunpack.c.l.b16 %v1127
    %v1208 = vunpack.c.h.b16 %v1127
    %v1209 = vunpack.c.l.b16 %v1128
    %v1210 = vunpack.c.h.b16 %v1128
    %v1211 = vunpack.c.l.b16 %v1129
    %v1212 = vunpack.c.h.b16 %v1129
    %v1213 = vunpack.c.l.b16 %v1130
    %v1214 = vunpack.c.h.b16 %v1130
    %v1215 = vunpack.c.l.b16 %v1131
    %v1216 = vunpack.c.h.b16 %v1131
    %v1217 = vunpack.c.l.b16 %v1132
    %v1218 = vunpack.c.h.b16 %v1132
    %v1219 = vunpack.c.l.b16 %v1133
    %v1220 = vunpack.c.h.b16 %v1133
    %v1221 = vunpack.c.l.b16 %v1134
    %v1222 = vunpack.c.h.b16 %v1134
    %v1223 = vunpack.c.l.b16 %v1135
    %v1224 = vunpack.c.h.b16 %v1135
    %v1225 = vunpack.c.l.b16 %v1136
    %v1226 = vunpack.c.h.b16 %v1136
    %v1227 = vunpack.c.l.b16 %v1137
    %v1228 = vunpack.c.h.b16 %v1137
    %v1229 = vunpack.c.l.b16 %v1138
    %v1230 = vunpack.c.h.b16 %v1138
    %v1231 = vunpack.c.l.b16 %v1139
    %v1232 = vunpack.c.h.b16 %v1139
    %v1233 = vunpack.c.l.b16 %v1140
    %v1234 = vunpack.c.h.b16 %v1140
    %v1235 = vunpack.c.l.b16 %v1141
    %v1236 = vunpack.c.h.b16 %v1141
    %v1237 = vunpack.c.l.b16 %v1142
    %v1238 = vunpack.c.h.b16 %v1142
    %v1239 = vpack.c.b16 %v1179, %v1175
    %v1240 = vpack.c.b16 %v1180, %v1176
    %v1241 = vpack.c.b16 %v1181, %v1177
    %v1242 = vpack.c.b16 %v1182, %v1178
    %v1243 = vpack.c.b16 %v1187, %v1183
    %v1244 = vpack.c.b16 %v1188, %v1184
    %v1245 = vpack.c.b16 %v1189, %v1185
    %v1246 = vpack.c.b16 %v1190, %v1186
    %v1247 = vpack.c.b16 %v1195, %v1191
    %v1248 = vpack.c.b16 %v1196, %v1192
    %v1249 = vpack.c.b16 %v1197, %v1193
    %v1250 = vpack.c.b16 %v1198, %v1194
    %v1251 = vpack.c.b16 %v1203, %v1199
    %v1252 = vpack.c.b16 %v1204, %v1200
    %v1253 = vpack.c.b16 %v1205, %v1201
    %v1254 = vpack.c.b16 %v1206, %v1202
    %v1255 = vpack.c.b16 %v1211, %v1207
    %v1256 = vpack.c.b16 %v1212, %v1208
    %v1257 = vpack.c.b16 %v1213, %v1209
    %v1258 = vpack.c.b16 %v1214, %v1210
    %v1259 = vpack.c.b16 %v1219, %v1215
    %v1260 = vpack.c.b16 %v1220, %v1216
    %v1261 = vpack.c.b16 %v1221, %v1217
    %v1262 = vpack.c.b16 %v1222, %v1218
    %v1263 = vpack.c.b16 %v1227, %v1223
    %v1264 = vpack.c.b16 %v1228, %v1224
    %v1265 = vpack.c.b16 %v1229, %v1225
    %v1266 = vpack.c.b16 %v1230, %v1226
    %v1267 = vpack.c.b16 %v1235, %v1231
    %v1268 = vpack.c.b16 %v1236, %v1232
    %v1269 = vpack.c.b16 %v1237, %v1233
    %v1270 = vpack.c.b16 %v1238, %v1234
    %1303 = vmatpush.bf16.msra.mxu0 %v1267
    %1304 = vmatpush.bf16.msra.mxu0 %v1263
    %1305 = vmatpush.bf16.msra.mxu0 %v1259
    %1306 = vmatpush.bf16.msra.mxu0 %v1255
    %1307 = vmatpush.bf16.msra.mxu0 %v1251
    %1308 = vmatpush.bf16.msra.mxu0 %v1247
    %1309 = vmatpush.bf16.msra.mxu0 %v1243
    %1310 = vmatpush.bf16.msra.mxu0 %v1239
    %1311 = vmatmul.bf16.gmra.mxu0 %v1110
    %v1312 = vpop.f32.mrf.mxu0
    %v1313 = vadd.f32 0.0, %v1312
    %v1314 = vpop.f32.mrf.mxu0
    %1315 = vdwg.mxu0
    %1316 = vmatpush.bf16.msra.mxu0 %v1268
    %1317 = vmatpush.bf16.msra.mxu0 %v1264
    %1318 = vmatpush.bf16.msra.mxu0 %v1260
    %1319 = vmatpush.bf16.msra.mxu0 %v1256
    %1320 = vmatpush.bf16.msra.mxu0 %v1252
    %1321 = vmatpush.bf16.msra.mxu0 %v1248
    %1322 = vmatpush.bf16.msra.mxu0 %v1244
    %1323 = vmatpush.bf16.msra.mxu0 %v1240
    %1324 = vmatmul.bf16.gmra.mxu0 %v1110
    %v1325 = vpop.f32.mrf.mxu0
    %v1326 = vadd.f32 0.0, %v1325
    %v1327 = vpop.f32.mrf.mxu0
    %1328 = vdwg.mxu0
    %1329 = vmatpush.bf16.msra.mxu0 %v1269
    %1330 = vmatpush.bf16.msra.mxu0 %v1265
    %1331 = vmatpush.bf16.msra.mxu0 %v1261
    %1332 = vmatpush.bf16.msra.mxu0 %v1257
    %1333 = vmatpush.bf16.msra.mxu0 %v1253
    %1334 = vmatpush.bf16.msra.mxu0 %v1249
    %1335 = vmatpush.bf16.msra.mxu0 %v1245
    %1336 = vmatpush.bf16.msra.mxu0 %v1241
    %1337 = vmatmul.bf16.gmra.mxu0 %v1110
    %v1338 = vpop.f32.mrf.mxu0
    %v1339 = vadd.f32 0.0, %v1338
    %v1340 = vpop.f32.mrf.mxu0
    %1341 = vdwg.mxu0
    %1342 = vmatpush.bf16.msra.mxu0 %v1270
    %1343 = vmatpush.bf16.msra.mxu0 %v1266
    %1344 = vmatpush.bf16.msra.mxu0 %v1262
    %1345 = vmatpush.bf16.msra.mxu0 %v1258
    %1346 = vmatpush.bf16.msra.mxu0 %v1254
    %1347 = vmatpush.bf16.msra.mxu0 %v1250
    %1348 = vmatpush.bf16.msra.mxu0 %v1246
    %1349 = vmatpush.bf16.msra.mxu0 %v1242
    %1350 = vmatmul.bf16.gmra.mxu0 %v1110
    %v1351 = vpop.f32.mrf.mxu0
    %v1352 = vadd.f32 0.0, %v1351
    %v1353 = vpop.f32.mrf.mxu0
    %1354 = vdwg.mxu0
    %v1355 = vadd.f32 %v1106, %v1313
    %v1356 = vadd.f32 %v1107, %v1326
    %v1357 = vadd.f32 %v1108, %v1339
    %v1358 = vadd.f32 %v1109, %v1352
    %v1359 = vmul.f32 %v1355, 0.5
    %v1360 = vtanh.pop %v1359
    %v1361 = vmul.f32 %v1360, 0.5
    %v1362 = vadd.f32 %v1361, 0.5
    %v1363 = vmul.f32 %v1356, 0.5
    %v1364 = vtanh.pop %v1363
    %v1365 = vmul.f32 %v1364, 0.5
    %v1366 = vadd.f32 %v1365, 0.5
    %v1367 = vtanh.pop %v1357
    %v1368 = vmul.f32 %v1358, 0.5
    %v1369 = vtanh.pop %v1368
    %v1370 = vmul.f32 %v1369, 0.5
    %v1371 = vadd.f32 %v1370, 0.5
    %v1372 = vmul.f32 %v1366, %v1102
    %v1373 = vmul.f32 %v1362, %v1367
    %v1374 = vadd.f32 %v1372, %v1373
    %v1375 = vtanh.pop %v1374
    %v1376 = vmul.f32 %v1371, %v1375
    %1377 = vst [vmem:[#allocation3 + $0x10] sm:$0xff] %v1376
    %v1378 = vld [vmem:[#allocation2 + $0x60] sm:$0xff]
    %v1379 = vld [vmem:[#allocation2 + $0x68] sm:$0xff]
    %v1380 = vld [vmem:[#allocation2 + $0x70] sm:$0xff]
    %v1381 = vld [vmem:[#allocation2 + $0x78] sm:$0xff]
    %v1382 = vpack.c.bf16 %v1376, %v1376
    %v1383 = vld [vmem:[#allocation9] sm:$0xff]
    %v1384 = vld [vmem:[#allocation9 + $0x8] sm:$0xff]
    %v1385 = vld [vmem:[#allocation9 + $0x10] sm:$0xff]
    %v1386 = vld [vmem:[#allocation9 + $0x18] sm:$0xff]
    %v1387 = vld [vmem:[#allocation9 + $0x20] sm:$0xff]
    %v1388 = vld [vmem:[#allocation9 + $0x28] sm:$0xff]
    %v1389 = vld [vmem:[#allocation9 + $0x30] sm:$0xff]
    %v1390 = vld [vmem:[#allocation9 + $0x38] sm:$0xff]
    %v1391 = vld [vmem:[#allocation9 + $0x40] sm:$0xff]
    %v1392 = vld [vmem:[#allocation9 + $0x48] sm:$0xff]
    %v1393 = vld [vmem:[#allocation9 + $0x50] sm:$0xff]
    %v1394 = vld [vmem:[#allocation9 + $0x58] sm:$0xff]
    %v1395 = vld [vmem:[#allocation9 + $0x60] sm:$0xff]
    %v1396 = vld [vmem:[#allocation9 + $0x68] sm:$0xff]
    %v1397 = vld [vmem:[#allocation9 + $0x70] sm:$0xff]
    %v1398 = vld [vmem:[#allocation9 + $0x78] sm:$0xff]
    %v1399 = vld [vmem:[#allocation9 + $0x80] sm:$0xff]
    %v1400 = vld [vmem:[#allocation9 + $0x88] sm:$0xff]
    %v1401 = vld [vmem:[#allocation9 + $0x90] sm:$0xff]
    %v1402 = vld [vmem:[#allocation9 + $0x98] sm:$0xff]
    %v1403 = vld [vmem:[#allocation9 + $0xa0] sm:$0xff]
    %v1404 = vld [vmem:[#allocation9 + $0xa8] sm:$0xff]
    %v1405 = vld [vmem:[#allocation9 + $0xb0] sm:$0xff]
    %v1406 = vld [vmem:[#allocation9 + $0xb8] sm:$0xff]
    %v1407 = vld [vmem:[#allocation9 + $0xc0] sm:$0xff]
    %v1408 = vld [vmem:[#allocation9 + $0xc8] sm:$0xff]
    %v1409 = vld [vmem:[#allocation9 + $0xd0] sm:$0xff]
    %v1410 = vld [vmem:[#allocation9 + $0xd8] sm:$0xff]
    %v1411 = vld [vmem:[#allocation9 + $0xe0] sm:$0xff]
    %v1412 = vld [vmem:[#allocation9 + $0xe8] sm:$0xff]
    %v1413 = vld [vmem:[#allocation9 + $0xf0] sm:$0xff]
    %v1414 = vld [vmem:[#allocation9 + $0xf8] sm:$0xff]
    %v1447 = vunpack.c.l.b16 %v1383
    %v1448 = vunpack.c.h.b16 %v1383
    %v1449 = vunpack.c.l.b16 %v1384
    %v1450 = vunpack.c.h.b16 %v1384
    %v1451 = vunpack.c.l.b16 %v1385
    %v1452 = vunpack.c.h.b16 %v1385
    %v1453 = vunpack.c.l.b16 %v1386
    %v1454 = vunpack.c.h.b16 %v1386
    %v1455 = vunpack.c.l.b16 %v1387
    %v1456 = vunpack.c.h.b16 %v1387
    %v1457 = vunpack.c.l.b16 %v1388
    %v1458 = vunpack.c.h.b16 %v1388
    %v1459 = vunpack.c.l.b16 %v1389
    %v1460 = vunpack.c.h.b16 %v1389
    %v1461 = vunpack.c.l.b16 %v1390
    %v1462 = vunpack.c.h.b16 %v1390
    %v1463 = vunpack.c.l.b16 %v1391
    %v1464 = vunpack.c.h.b16 %v1391
    %v1465 = vunpack.c.l.b16 %v1392
    %v1466 = vunpack.c.h.b16 %v1392
    %v1467 = vunpack.c.l.b16 %v1393
    %v1468 = vunpack.c.h.b16 %v1393
    %v1469 = vunpack.c.l.b16 %v1394
    %v1470 = vunpack.c.h.b16 %v1394
    %v1471 = vunpack.c.l.b16 %v1395
    %v1472 = vunpack.c.h.b16 %v1395
    %v1473 = vunpack.c.l.b16 %v1396
    %v1474 = vunpack.c.h.b16 %v1396
    %v1475 = vunpack.c.l.b16 %v1397
    %v1476 = vunpack.c.h.b16 %v1397
    %v1477 = vunpack.c.l.b16 %v1398
    %v1478 = vunpack.c.h.b16 %v1398
    %v1479 = vunpack.c.l.b16 %v1399
    %v1480 = vunpack.c.h.b16 %v1399
    %v1481 = vunpack.c.l.b16 %v1400
    %v1482 = vunpack.c.h.b16 %v1400
    %v1483 = vunpack.c.l.b16 %v1401
    %v1484 = vunpack.c.h.b16 %v1401
    %v1485 = vunpack.c.l.b16 %v1402
    %v1486 = vunpack.c.h.b16 %v1402
    %v1487 = vunpack.c.l.b16 %v1403
    %v1488 = vunpack.c.h.b16 %v1403
    %v1489 = vunpack.c.l.b16 %v1404
    %v1490 = vunpack.c.h.b16 %v1404
    %v1491 = vunpack.c.l.b16 %v1405
    %v1492 = vunpack.c.h.b16 %v1405
    %v1493 = vunpack.c.l.b16 %v1406
    %v1494 = vunpack.c.h.b16 %v1406
    %v1495 = vunpack.c.l.b16 %v1407
    %v1496 = vunpack.c.h.b16 %v1407
    %v1497 = vunpack.c.l.b16 %v1408
    %v1498 = vunpack.c.h.b16 %v1408
    %v1499 = vunpack.c.l.b16 %v1409
    %v1500 = vunpack.c.h.b16 %v1409
    %v1501 = vunpack.c.l.b16 %v1410
    %v1502 = vunpack.c.h.b16 %v1410
    %v1503 = vunpack.c.l.b16 %v1411
    %v1504 = vunpack.c.h.b16 %v1411
    %v1505 = vunpack.c.l.b16 %v1412
    %v1506 = vunpack.c.h.b16 %v1412
    %v1507 = vunpack.c.l.b16 %v1413
    %v1508 = vunpack.c.h.b16 %v1413
    %v1509 = vunpack.c.l.b16 %v1414
    %v1510 = vunpack.c.h.b16 %v1414
    %v1511 = vpack.c.b16 %v1451, %v1447
    %v1512 = vpack.c.b16 %v1452, %v1448
    %v1513 = vpack.c.b16 %v1453, %v1449
    %v1514 = vpack.c.b16 %v1454, %v1450
    %v1515 = vpack.c.b16 %v1459, %v1455
    %v1516 = vpack.c.b16 %v1460, %v1456
    %v1517 = vpack.c.b16 %v1461, %v1457
    %v1518 = vpack.c.b16 %v1462, %v1458
    %v1519 = vpack.c.b16 %v1467, %v1463
    %v1520 = vpack.c.b16 %v1468, %v1464
    %v1521 = vpack.c.b16 %v1469, %v1465
    %v1522 = vpack.c.b16 %v1470, %v1466
    %v1523 = vpack.c.b16 %v1475, %v1471
    %v1524 = vpack.c.b16 %v1476, %v1472
    %v1525 = vpack.c.b16 %v1477, %v1473
    %v1526 = vpack.c.b16 %v1478, %v1474
    %v1527 = vpack.c.b16 %v1483, %v1479
    %v1528 = vpack.c.b16 %v1484, %v1480
    %v1529 = vpack.c.b16 %v1485, %v1481
    %v1530 = vpack.c.b16 %v1486, %v1482
    %v1531 = vpack.c.b16 %v1491, %v1487
    %v1532 = vpack.c.b16 %v1492, %v1488
    %v1533 = vpack.c.b16 %v1493, %v1489
    %v1534 = vpack.c.b16 %v1494, %v1490
    %v1535 = vpack.c.b16 %v1499, %v1495
    %v1536 = vpack.c.b16 %v1500, %v1496
    %v1537 = vpack.c.b16 %v1501, %v1497
    %v1538 = vpack.c.b16 %v1502, %v1498
    %v1539 = vpack.c.b16 %v1507, %v1503
    %v1540 = vpack.c.b16 %v1508, %v1504
    %v1541 = vpack.c.b16 %v1509, %v1505
    %v1542 = vpack.c.b16 %v1510, %v1506
    %1575 = vmatpush.bf16.msra.mxu0 %v1539
    %1576 = vmatpush.bf16.msra.mxu0 %v1535
    %1577 = vmatpush.bf16.msra.mxu0 %v1531
    %1578 = vmatpush.bf16.msra.mxu0 %v1527
    %1579 = vmatpush.bf16.msra.mxu0 %v1523
    %1580 = vmatpush.bf16.msra.mxu0 %v1519
    %1581 = vmatpush.bf16.msra.mxu0 %v1515
    %1582 = vmatpush.bf16.msra.mxu0 %v1511
    %1583 = vmatmul.bf16.gmra.mxu0 %v1382
    %v1584 = vpop.f32.mrf.mxu0
    %v1585 = vadd.f32 0.0, %v1584
    %v1586 = vpop.f32.mrf.mxu0
    %1587 = vdwg.mxu0
    %1588 = vmatpush.bf16.msra.mxu0 %v1540
    %1589 = vmatpush.bf16.msra.mxu0 %v1536
    %1590 = vmatpush.bf16.msra.mxu0 %v1532
    %1591 = vmatpush.bf16.msra.mxu0 %v1528
    %1592 = vmatpush.bf16.msra.mxu0 %v1524
    %1593 = vmatpush.bf16.msra.mxu0 %v1520
    %1594 = vmatpush.bf16.msra.mxu0 %v1516
    %1595 = vmatpush.bf16.msra.mxu0 %v1512
    %1596 = vmatmul.bf16.gmra.mxu0 %v1382
    %v1597 = vpop.f32.mrf.mxu0
    %v1598 = vadd.f32 0.0, %v1597
    %v1599 = vpop.f32.mrf.mxu0
    %1600 = vdwg.mxu0
    %1601 = vmatpush.bf16.msra.mxu0 %v1541
    %1602 = vmatpush.bf16.msra.mxu0 %v1537
    %1603 = vmatpush.bf16.msra.mxu0 %v1533
    %1604 = vmatpush.bf16.msra.mxu0 %v1529
    %1605 = vmatpush.bf16.msra.mxu0 %v1525
    %1606 = vmatpush.bf16.msra.mxu0 %v1521
    %1607 = vmatpush.bf16.msra.mxu0 %v1517
    %1608 = vmatpush.bf16.msra.mxu0 %v1513
    %1609 = vmatmul.bf16.gmra.mxu0 %v1382
    %v1610 = vpop.f32.mrf.mxu0
    %v1611 = vadd.f32 0.0, %v1610
    %v1612 = vpop.f32.mrf.mxu0
    %1613 = vdwg.mxu0
    %1614 = vmatpush.bf16.msra.mxu0 %v1542
    %1615 = vmatpush.bf16.msra.mxu0 %v1538
    %1616 = vmatpush.bf16.msra.mxu0 %v1534
    %1617 = vmatpush.bf16.msra.mxu0 %v1530
    %1618 = vmatpush.bf16.msra.mxu0 %v1526
    %1619 = vmatpush.bf16.msra.mxu0 %v1522
    %1620 = vmatpush.bf16.msra.mxu0 %v1518
    %1621 = vmatpush.bf16.msra.mxu0 %v1514
    %1622 = vmatmul.bf16.gmra.mxu0 %v1382
    %v1623 = vpop.f32.mrf.mxu0
    %v1624 = vadd.f32 0.0, %v1623
    %v1625 = vpop.f32.mrf.mxu0
    %1626 = vdwg.mxu0
    %v1627 = vadd.f32 %v1378, %v1585
    %v1628 = vadd.f32 %v1379, %v1598
    %v1629 = vadd.f32 %v1380, %v1611
    %v1630 = vadd.f32 %v1381, %v1624
    %v1631 = vmul.f32 %v1627, 0.5
    %v1632 = vtanh.pop %v1631
    %v1633 = vmul.f32 %v1632, 0.5
    %v1634 = vadd.f32 %v1633, 0.5
    %v1635 = vmul.f32 %v1628, 0.5
    %v1636 = vtanh.pop %v1635
    %v1637 = vmul.f32 %v1636, 0.5
    %v1638 = vadd.f32 %v1637, 0.5
    %v1639 = vtanh.pop %v1629
    %v1640 = vmul.f32 %v1630, 0.5
    %v1641 = vtanh.pop %v1640
    %v1642 = vmul.f32 %v1641, 0.5
    %v1643 = vadd.f32 %v1642, 0.5
    %v1644 = vmul.f32 %v1638, %v1374
    %v1645 = vmul.f32 %v1634, %v1639
    %v1646 = vadd.f32 %v1644, %v1645
    %v1647 = vtanh.pop %v1646
    %v1648 = vmul.f32 %v1643, %v1647
    %1649 = vst [vmem:[#allocation3 + $0x18] sm:$0xff] %v1648
    %v1650 = vld [vmem:[#allocation2 + $0x80] sm:$0xff]
    %v1651 = vld [vmem:[#allocation2 + $0x88] sm:$0xff]
    %v1652 = vld [vmem:[#allocation2 + $0x90] sm:$0xff]
    %v1653 = vld [vmem:[#allocation2 + $0x98] sm:$0xff]
    %v1654 = vpack.c.bf16 %v1648, %v1648
    %v1655 = vld [vmem:[#allocation9] sm:$0xff]
    %v1656 = vld [vmem:[#allocation9 + $0x8] sm:$0xff]
    %v1657 = vld [vmem:[#allocation9 + $0x10] sm:$0xff]
    %v1658 = vld [vmem:[#allocation9 + $0x18] sm:$0xff]
    %v1659 = vld [vmem:[#allocation9 + $0x20] sm:$0xff]
    %v1660 = vld [vmem:[#allocation9 + $0x28] sm:$0xff]
    %v1661 = vld [vmem:[#allocation9 + $0x30] sm:$0xff]
    %v1662 = vld [vmem:[#allocation9 + $0x38] sm:$0xff]
    %v1663 = vld [vmem:[#allocation9 + $0x40] sm:$0xff]
    %v1664 = vld [vmem:[#allocation9 + $0x48] sm:$0xff]
    %v1665 = vld [vmem:[#allocation9 + $0x50] sm:$0xff]
    %v1666 = vld [vmem:[#allocation9 + $0x58] sm:$0xff]
    %v1667 = vld [vmem:[#allocation9 + $0x60] sm:$0xff]
    %v1668 = vld [vmem:[#allocation9 + $0x68] sm:$0xff]
    %v1669 = vld [vmem:[#allocation9 + $0x70] sm:$0xff]
    %v1670 = vld [vmem:[#allocation9 + $0x78] sm:$0xff]
    %v1671 = vld [vmem:[#allocation9 + $0x80] sm:$0xff]
    %v1672 = vld [vmem:[#allocation9 + $0x88] sm:$0xff]
    %v1673 = vld [vmem:[#allocation9 + $0x90] sm:$0xff]
    %v1674 = vld [vmem:[#allocation9 + $0x98] sm:$0xff]
    %v1675 = vld [vmem:[#allocation9 + $0xa0] sm:$0xff]
    %v1676 = vld [vmem:[#allocation9 + $0xa8] sm:$0xff]
    %v1677 = vld [vmem:[#allocation9 + $0xb0] sm:$0xff]
    %v1678 = vld [vmem:[#allocation9 + $0xb8] sm:$0xff]
    %v1679 = vld [vmem:[#allocation9 + $0xc0] sm:$0xff]
    %v1680 = vld [vmem:[#allocation9 + $0xc8] sm:$0xff]
    %v1681 = vld [vmem:[#allocation9 + $0xd0] sm:$0xff]
    %v1682 = vld [vmem:[#allocation9 + $0xd8] sm:$0xff]
    %v1683 = vld [vmem:[#allocation9 + $0xe0] sm:$0xff]
    %v1684 = vld [vmem:[#allocation9 + $0xe8] sm:$0xff]
    %v1685 = vld [vmem:[#allocation9 + $0xf0] sm:$0xff]
    %v1686 = vld [vmem:[#allocation9 + $0xf8] sm:$0xff]
    %v1719 = vunpack.c.l.b16 %v1655
    %v1720 = vunpack.c.h.b16 %v1655
    %v1721 = vunpack.c.l.b16 %v1656
    %v1722 = vunpack.c.h.b16 %v1656
    %v1723 = vunpack.c.l.b16 %v1657
    %v1724 = vunpack.c.h.b16 %v1657
    %v1725 = vunpack.c.l.b16 %v1658
    %v1726 = vunpack.c.h.b16 %v1658
    %v1727 = vunpack.c.l.b16 %v1659
    %v1728 = vunpack.c.h.b16 %v1659
    %v1729 = vunpack.c.l.b16 %v1660
    %v1730 = vunpack.c.h.b16 %v1660
    %v1731 = vunpack.c.l.b16 %v1661
    %v1732 = vunpack.c.h.b16 %v1661
    %v1733 = vunpack.c.l.b16 %v1662
    %v1734 = vunpack.c.h.b16 %v1662
    %v1735 = vunpack.c.l.b16 %v1663
    %v1736 = vunpack.c.h.b16 %v1663
    %v1737 = vunpack.c.l.b16 %v1664
    %v1738 = vunpack.c.h.b16 %v1664
    %v1739 = vunpack.c.l.b16 %v1665
    %v1740 = vunpack.c.h.b16 %v1665
    %v1741 = vunpack.c.l.b16 %v1666
    %v1742 = vunpack.c.h.b16 %v1666
    %v1743 = vunpack.c.l.b16 %v1667
    %v1744 = vunpack.c.h.b16 %v1667
    %v1745 = vunpack.c.l.b16 %v1668
    %v1746 = vunpack.c.h.b16 %v1668
    %v1747 = vunpack.c.l.b16 %v1669
    %v1748 = vunpack.c.h.b16 %v1669
    %v1749 = vunpack.c.l.b16 %v1670
    %v1750 = vunpack.c.h.b16 %v1670
    %v1751 = vunpack.c.l.b16 %v1671
    %v1752 = vunpack.c.h.b16 %v1671
    %v1753 = vunpack.c.l.b16 %v1672
    %v1754 = vunpack.c.h.b16 %v1672
    %v1755 = vunpack.c.l.b16 %v1673
    %v1756 = vunpack.c.h.b16 %v1673
    %v1757 = vunpack.c.l.b16 %v1674
    %v1758 = vunpack.c.h.b16 %v1674
    %v1759 = vunpack.c.l.b16 %v1675
    %v1760 = vunpack.c.h.b16 %v1675
    %v1761 = vunpack.c.l.b16 %v1676
    %v1762 = vunpack.c.h.b16 %v1676
    %v1763 = vunpack.c.l.b16 %v1677
    %v1764 = vunpack.c.h.b16 %v1677
    %v1765 = vunpack.c.l.b16 %v1678
    %v1766 = vunpack.c.h.b16 %v1678
    %v1767 = vunpack.c.l.b16 %v1679
    %v1768 = vunpack.c.h.b16 %v1679
    %v1769 = vunpack.c.l.b16 %v1680
    %v1770 = vunpack.c.h.b16 %v1680
    %v1771 = vunpack.c.l.b16 %v1681
    %v1772 = vunpack.c.h.b16 %v1681
    %v1773 = vunpack.c.l.b16 %v1682
    %v1774 = vunpack.c.h.b16 %v1682
    %v1775 = vunpack.c.l.b16 %v1683
    %v1776 = vunpack.c.h.b16 %v1683
    %v1777 = vunpack.c.l.b16 %v1684
    %v1778 = vunpack.c.h.b16 %v1684
    %v1779 = vunpack.c.l.b16 %v1685
    %v1780 = vunpack.c.h.b16 %v1685
    %v1781 = vunpack.c.l.b16 %v1686
    %v1782 = vunpack.c.h.b16 %v1686
    %v1783 = vpack.c.b16 %v1723, %v1719
    %v1784 = vpack.c.b16 %v1724, %v1720
    %v1785 = vpack.c.b16 %v1725, %v1721
    %v1786 = vpack.c.b16 %v1726, %v1722
    %v1787 = vpack.c.b16 %v1731, %v1727
    %v1788 = vpack.c.b16 %v1732, %v1728
    %v1789 = vpack.c.b16 %v1733, %v1729
    %v1790 = vpack.c.b16 %v1734, %v1730
    %v1791 = vpack.c.b16 %v1739, %v1735
    %v1792 = vpack.c.b16 %v1740, %v1736
    %v1793 = vpack.c.b16 %v1741, %v1737
    %v1794 = vpack.c.b16 %v1742, %v1738
    %v1795 = vpack.c.b16 %v1747, %v1743
    %v1796 = vpack.c.b16 %v1748, %v1744
    %v1797 = vpack.c.b16 %v1749, %v1745
    %v1798 = vpack.c.b16 %v1750, %v1746
    %v1799 = vpack.c.b16 %v1755, %v1751
    %v1800 = vpack.c.b16 %v1756, %v1752
    %v1801 = vpack.c.b16 %v1757, %v1753
    %v1802 = vpack.c.b16 %v1758, %v1754
    %v1803 = vpack.c.b16 %v1763, %v1759
    %v1804 = vpack.c.b16 %v1764, %v1760
    %v1805 = vpack.c.b16 %v1765, %v1761
    %v1806 = vpack.c.b16 %v1766, %v1762
    %v1807 = vpack.c.b16 %v1771, %v1767
    %v1808 = vpack.c.b16 %v1772, %v1768
    %v1809 = vpack.c.b16 %v1773, %v1769
    %v1810 = vpack.c.b16 %v1774, %v1770
    %v1811 = vpack.c.b16 %v1779, %v1775
    %v1812 = vpack.c.b16 %v1780, %v1776
    %v1813 = vpack.c.b16 %v1781, %v1777
    %v1814 = vpack.c.b16 %v1782, %v1778
    %1847 = vmatpush.bf16.msra.mxu0 %v1811
    %1848 = vmatpush.bf16.msra.mxu0 %v1807
    %1849 = vmatpush.bf16.msra.mxu0 %v1803
    %1850 = vmatpush.bf16.msra.mxu0 %v1799
    %1851 = vmatpush.bf16.msra.mxu0 %v1795
    %1852 = vmatpush.bf16.msra.mxu0 %v1791
    %1853 = vmatpush.bf16.msra.mxu0 %v1787
    %1854 = vmatpush.bf16.msra.mxu0 %v1783
    %1855 = vmatmul.bf16.gmra.mxu0 %v1654
    %v1856 = vpop.f32.mrf.mxu0
    %v1857 = vadd.f32 0.0, %v1856
    %v1858 = vpop.f32.mrf.mxu0
    %1859 = vdwg.mxu0
    %1860 = vmatpush.bf16.msra.mxu0 %v1812
    %1861 = vmatpush.bf16.msra.mxu0 %v1808
    %1862 = vmatpush.bf16.msra.mxu0 %v1804
    %1863 = vmatpush.bf16.msra.mxu0 %v1800
    %1864 = vmatpush.bf16.msra.mxu0 %v1796
    %1865 = vmatpush.bf16.msra.mxu0 %v1792
    %1866 = vmatpush.bf16.msra.mxu0 %v1788
    %1867 = vmatpush.bf16.msra.mxu0 %v1784
    %1868 = vmatmul.bf16.gmra.mxu0 %v1654
    %v1869 = vpop.f32.mrf.mxu0
    %v1870 = vadd.f32 0.0, %v1869
    %v1871 = vpop.f32.mrf.mxu0
    %1872 = vdwg.mxu0
    %1873 = vmatpush.bf16.msra.mxu0 %v1813
    %1874 = vmatpush.bf16.msra.mxu0 %v1809
    %1875 = vmatpush.bf16.msra.mxu0 %v1805
    %1876 = vmatpush.bf16.msra.mxu0 %v1801
    %1877 = vmatpush.bf16.msra.mxu0 %v1797
    %1878 = vmatpush.bf16.msra.mxu0 %v1793
    %1879 = vmatpush.bf16.msra.mxu0 %v1789
    %1880 = vmatpush.bf16.msra.mxu0 %v1785
    %1881 = vmatmul.bf16.gmra.mxu0 %v1654
    %v1882 = vpop.f32.mrf.mxu0
    %v1883 = vadd.f32 0.0, %v1882
    %v1884 = vpop.f32.mrf.mxu0
    %1885 = vdwg.mxu0
    %1886 = vmatpush.bf16.msra.mxu0 %v1814
    %1887 = vmatpush.bf16.msra.mxu0 %v1810
    %1888 = vmatpush.bf16.msra.mxu0 %v1806
    %1889 = vmatpush.bf16.msra.mxu0 %v1802
    %1890 = vmatpush.bf16.msra.mxu0 %v1798
    %1891 = vmatpush.bf16.msra.mxu0 %v1794
    %1892 = vmatpush.bf16.msra.mxu0 %v1790
    %1893 = vmatpush.bf16.msra.mxu0 %v1786
    %1894 = vmatmul.bf16.gmra.mxu0 %v1654
    %v1895 = vpop.f32.mrf.mxu0
    %v1896 = vadd.f32 0.0, %v1895
    %v1897 = vpop.f32.mrf.mxu0
    %1898 = vdwg.mxu0
    %v1899 = vadd.f32 %v1650, %v1857
    %v1900 = vadd.f32 %v1651, %v1870
    %v1901 = vadd.f32 %v1652, %v1883
    %v1902 = vadd.f32 %v1653, %v1896
    %v1903 = vmul.f32 %v1899, 0.5
    %v1904 = vtanh.pop %v1903
    %v1905 = vmul.f32 %v1904, 0.5
    %v1906 = vadd.f32 %v1905, 0.5
    %v1907 = vmul.f32 %v1900, 0.5
    %v1908 = vtanh.pop %v1907
    %v1909 = vmul.f32 %v1908, 0.5
    %v1910 = vadd.f32 %v1909, 0.5
    %v1911 = vtanh.pop %v1901
    %v1912 = vmul.f32 %v1902, 0.5
    %v1913 = vtanh.pop %v1912
    %v1914 = vmul.f32 %v1913, 0.5
    %v1915 = vadd.f32 %v1914, 0.5
    %v1916 = vmul.f32 %v1910, %v1646
    %v1917 = vmul.f32 %v1906, %v1911
    %v1918 = vadd.f32 %v1916, %v1917
    %v1919 = vtanh.pop %v1918
    %v1920 = vmul.f32 %v1915, %v1919
    %1921 = vst [vmem:[#allocation3 + $0x20] sm:$0xff] %v1920
    %v1922 = vld [vmem:[#allocation2 + $0xa0] sm:$0xff]
    %v1923 = vld [vmem:[#allocation2 + $0xa8] sm:$0xff]
    %v1924 = vld [vmem:[#allocation2 + $0xb0] sm:$0xff]
    %v1925 = vld [vmem:[#allocation2 + $0xb8] sm:$0xff]
    %v1926 = vpack.c.bf16 %v1920, %v1920
    %v1927 = vld [vmem:[#allocation9] sm:$0xff]
    %v1928 = vld [vmem:[#allocation9 + $0x8] sm:$0xff]
    %v1929 = vld [vmem:[#allocation9 + $0x10] sm:$0xff]
    %v1930 = vld [vmem:[#allocation9 + $0x18] sm:$0xff]
    %v1931 = vld [vmem:[#allocation9 + $0x20] sm:$0xff]
    %v1932 = vld [vmem:[#allocation9 + $0x28] sm:$0xff]
    %v1933 = vld [vmem:[#allocation9 + $0x30] sm:$0xff]
    %v1934 = vld [vmem:[#allocation9 + $0x38] sm:$0xff]
    %v1935 = vld [vmem:[#allocation9 + $0x40] sm:$0xff]
    %v1936 = vld [vmem:[#allocation9 + $0x48] sm:$0xff]
    %v1937 = vld [vmem:[#allocation9 + $0x50] sm:$0xff]
    %v1938 = vld [vmem:[#allocation9 + $0x58] sm:$0xff]
    %v1939 = vld [vmem:[#allocation9 + $0x60] sm:$0xff]
    %v1940 = vld [vmem:[#allocation9 + $0x68] sm:$0xff]
    %v1941 = vld [vmem:[#allocation9 + $0x70] sm:$0xff]
    %v1942 = vld [vmem:[#allocation9 + $0x78] sm:$0xff]
    %v1943 = vld [vmem:[#allocation9 + $0x80] sm:$0xff]
    %v1944 = vld [vmem:[#allocation9 + $0x88] sm:$0xff]
    %v1945 = vld [vmem:[#allocation9 + $0x90] sm:$0xff]
    %v1946 = vld [vmem:[#allocation9 + $0x98] sm:$0xff]
    %v1947 = vld [vmem:[#allocation9 + $0xa0] sm:$0xff]
    %v1948 = vld [vmem:[#allocation9 + $0xa8] sm:$0xff]
    %v1949 = vld [vmem:[#allocation9 + $0xb0] sm:$0xff]
    %v1950 = vld [vmem:[#allocation9 + $0xb8] sm:$0xff]
    %v1951 = vld [vmem:[#allocation9 + $0xc0] sm:$0xff]
    %v1952 = vld [vmem:[#allocation9 + $0xc8] sm:$0xff]
    %v1953 = vld [vmem:[#allocation9 + $0xd0] sm:$0xff]
    %v1954 = vld [vmem:[#allocation9 + $0xd8] sm:$0xff]
    %v1955 = vld [vmem:[#allocation9 + $0xe0] sm:$0xff]
    %v1956 = vld [vmem:[#allocation9 + $0xe8] sm:$0xff]
    %v1957 = vld [vmem:[#allocation9 + $0xf0] sm:$0xff]
    %v1958 = vld [vmem:[#allocation9 + $0xf8] sm:$0xff]
    %v1991 = vunpack.c.l.b16 %v1927
    %v1992 = vunpack.c.h.b16 %v1927
    %v1993 = vunpack.c.l.b16 %v1928
    %v1994 = vunpack.c.h.b16 %v1928
    %v1995 = vunpack.c.l.b16 %v1929
    %v1996 = vunpack.c.h.b16 %v1929
    %v1997 = vunpack.c.l.b16 %v1930
    %v1998 = vunpack.c.h.b16 %v1930
    %v1999 = vunpack.c.l.b16 %v1931
    %v2000 = vunpack.c.h.b16 %v1931
    %v2001 = vunpack.c.l.b16 %v1932
    %v2002 = vunpack.c.h.b16 %v1932
    %v2003 = vunpack.c.l.b16 %v1933
    %v2004 = vunpack.c.h.b16 %v1933
    %v2005 = vunpack.c.l.b16 %v1934
    %v2006 = vunpack.c.h.b16 %v1934
    %v2007 = vunpack.c.l.b16 %v1935
    %v2008 = vunpack.c.h.b16 %v1935
    %v2009 = vunpack.c.l.b16 %v1936
    %v2010 = vunpack.c.h.b16 %v1936
    %v2011 = vunpack.c.l.b16 %v1937
    %v2012 = vunpack.c.h.b16 %v1937
    %v2013 = vunpack.c.l.b16 %v1938
    %v2014 = vunpack.c.h.b16 %v1938
    %v2015 = vunpack.c.l.b16 %v1939
    %v2016 = vunpack.c.h.b16 %v1939
    %v2017 = vunpack.c.l.b16 %v1940
    %v2018 = vunpack.c.h.b16 %v1940
    %v2019 = vunpack.c.l.b16 %v1941
    %v2020 = vunpack.c.h.b16 %v1941
    %v2021 = vunpack.c.l.b16 %v1942
    %v2022 = vunpack.c.h.b16 %v1942
    %v2023 = vunpack.c.l.b16 %v1943
    %v2024 = vunpack.c.h.b16 %v1943
    %v2025 = vunpack.c.l.b16 %v1944
    %v2026 = vunpack.c.h.b16 %v1944
    %v2027 = vunpack.c.l.b16 %v1945
    %v2028 = vunpack.c.h.b16 %v1945
    %v2029 = vunpack.c.l.b16 %v1946
    %v2030 = vunpack.c.h.b16 %v1946
    %v2031 = vunpack.c.l.b16 %v1947
    %v2032 = vunpack.c.h.b16 %v1947
    %v2033 = vunpack.c.l.b16 %v1948
    %v2034 = vunpack.c.h.b16 %v1948
    %v2035 = vunpack.c.l.b16 %v1949
    %v2036 = vunpack.c.h.b16 %v1949
    %v2037 = vunpack.c.l.b16 %v1950
    %v2038 = vunpack.c.h.b16 %v1950
    %v2039 = vunpack.c.l.b16 %v1951
    %v2040 = vunpack.c.h.b16 %v1951
    %v2041 = vunpack.c.l.b16 %v1952
    %v2042 = vunpack.c.h.b16 %v1952
    %v2043 = vunpack.c.l.b16 %v1953
    %v2044 = vunpack.c.h.b16 %v1953
    %v2045 = vunpack.c.l.b16 %v1954
    %v2046 = vunpack.c.h.b16 %v1954
    %v2047 = vunpack.c.l.b16 %v1955
    %v2048 = vunpack.c.h.b16 %v1955
    %v2049 = vunpack.c.l.b16 %v1956
    %v2050 = vunpack.c.h.b16 %v1956
    %v2051 = vunpack.c.l.b16 %v1957
    %v2052 = vunpack.c.h.b16 %v1957
    %v2053 = vunpack.c.l.b16 %v1958
    %v2054 = vunpack.c.h.b16 %v1958
    %v2055 = vpack.c.b16 %v1995, %v1991
    %v2056 = vpack.c.b16 %v1996, %v1992
    %v2057 = vpack.c.b16 %v1997, %v1993
    %v2058 = vpack.c.b16 %v1998, %v1994
    %v2059 = vpack.c.b16 %v2003, %v1999
    %v2060 = vpack.c.b16 %v2004, %v2000
    %v2061 = vpack.c.b16 %v2005, %v2001
    %v2062 = vpack.c.b16 %v2006, %v2002
    %v2063 = vpack.c.b16 %v2011, %v2007
    %v2064 = vpack.c.b16 %v2012, %v2008
    %v2065 = vpack.c.b16 %v2013, %v2009
    %v2066 = vpack.c.b16 %v2014, %v2010
    %v2067 = vpack.c.b16 %v2019, %v2015
    %v2068 = vpack.c.b16 %v2020, %v2016
    %v2069 = vpack.c.b16 %v2021, %v2017
    %v2070 = vpack.c.b16 %v2022, %v2018
    %v2071 = vpack.c.b16 %v2027, %v2023
    %v2072 = vpack.c.b16 %v2028, %v2024
    %v2073 = vpack.c.b16 %v2029, %v2025
    %v2074 = vpack.c.b16 %v2030, %v2026
    %v2075 = vpack.c.b16 %v2035, %v2031
    %v2076 = vpack.c.b16 %v2036, %v2032
    %v2077 = vpack.c.b16 %v2037, %v2033
    %v2078 = vpack.c.b16 %v2038, %v2034
    %v2079 = vpack.c.b16 %v2043, %v2039
    %v2080 = vpack.c.b16 %v2044, %v2040
    %v2081 = vpack.c.b16 %v2045, %v2041
    %v2082 = vpack.c.b16 %v2046, %v2042
    %v2083 = vpack.c.b16 %v2051, %v2047
    %v2084 = vpack.c.b16 %v2052, %v2048
    %v2085 = vpack.c.b16 %v2053, %v2049
    %v2086 = vpack.c.b16 %v2054, %v2050
    %2119 = vmatpush.bf16.msra.mxu0 %v2083
    %2120 = vmatpush.bf16.msra.mxu0 %v2079
    %2121 = vmatpush.bf16.msra.mxu0 %v2075
    %2122 = vmatpush.bf16.msra.mxu0 %v2071
    %2123 = vmatpush.bf16.msra.mxu0 %v2067
    %2124 = vmatpush.bf16.msra.mxu0 %v2063
    %2125 = vmatpush.bf16.msra.mxu0 %v2059
    %2126 = vmatpush.bf16.msra.mxu0 %v2055
    %2127 = vmatmul.bf16.gmra.mxu0 %v1926
    %v2128 = vpop.f32.mrf.mxu0
    %v2129 = vadd.f32 0.0, %v2128
    %v2130 = vpop.f32.mrf.mxu0
    %2131 = vdwg.mxu0
    %2132 = vmatpush.bf16.msra.mxu0 %v2084
    %2133 = vmatpush.bf16.msra.mxu0 %v2080
    %2134 = vmatpush.bf16.msra.mxu0 %v2076
    %2135 = vmatpush.bf16.msra.mxu0 %v2072
    %2136 = vmatpush.bf16.msra.mxu0 %v2068
    %2137 = vmatpush.bf16.msra.mxu0 %v2064
    %2138 = vmatpush.bf16.msra.mxu0 %v2060
    %2139 = vmatpush.bf16.msra.mxu0 %v2056
    %2140 = vmatmul.bf16.gmra.mxu0 %v1926
    %v2141 = vpop.f32.mrf.mxu0
    %v2142 = vadd.f32 0.0, %v2141
    %v2143 = vpop.f32.mrf.mxu0
    %2144 = vdwg.mxu0
    %2145 = vmatpush.bf16.msra.mxu0 %v2085
    %2146 = vmatpush.bf16.msra.mxu0 %v2081
    %2147 = vmatpush.bf16.msra.mxu0 %v2077
    %2148 = vmatpush.bf16.msra.mxu0 %v2073
    %2149 = vmatpush.bf16.msra.mxu0 %v2069
    %2150 = vmatpush.bf16.msra.mxu0 %v2065
    %2151 = vmatpush.bf16.msra.mxu0 %v2061
    %2152 = vmatpush.bf16.msra.mxu0 %v2057
    %2153 = vmatmul.bf16.gmra.mxu0 %v1926
    %v2154 = vpop.f32.mrf.mxu0
    %v2155 = vadd.f32 0.0, %v2154
    %v2156 = vpop.f32.mrf.mxu0
    %2157 = vdwg.mxu0
    %2158 = vmatpush.bf16.msra.mxu0 %v2086
    %2159 = vmatpush.bf16.msra.mxu0 %v2082
    %2160 = vmatpush.bf16.msra.mxu0 %v2078
    %2161 = vmatpush.bf16.msra.mxu0 %v2074
    %2162 = vmatpush.bf16.msra.mxu0 %v2070
    %2163 = vmatpush.bf16.msra.mxu0 %v2066
    %2164 = vmatpush.bf16.msra.mxu0 %v2062
    %2165 = vmatpush.bf16.msra.mxu0 %v2058
    %2166 = vmatmul.bf16.gmra.mxu0 %v1926
    %v2167 = vpop.f32.mrf.mxu0
    %v2168 = vadd.f32 0.0, %v2167
    %v2169 = vpop.f32.mrf.mxu0
    %2170 = vdwg.mxu0
    %v2171 = vadd.f32 %v1922, %v2129
    %v2172 = vadd.f32 %v1923, %v2142
    %v2173 = vadd.f32 %v1924, %v2155
    %v2174 = vadd.f32 %v1925, %v2168
    %v2175 = vmul.f32 %v2171, 0.5
    %v2176 = vtanh.pop %v2175
    %v2177 = vmul.f32 %v2176, 0.5
    %v2178 = vadd.f32 %v2177, 0.5
    %v2179 = vmul.f32 %v2172, 0.5
    %v2180 = vtanh.pop %v2179
    %v2181 = vmul.f32 %v2180, 0.5
    %v2182 = vadd.f32 %v2181, 0.5
    %v2183 = vtanh.pop %v2173
    %v2184 = vmul.f32 %v2174, 0.5
    %v2185 = vtanh.pop %v2184
    %v2186 = vmul.f32 %v2185, 0.5
    %v2187 = vadd.f32 %v2186, 0.5
    %v2188 = vmul.f32 %v2182, %v1918
    %v2189 = vmul.f32 %v2178, %v2183
    %v2190 = vadd.f32 %v2188, %v2189
    %v2191 = vtanh.pop %v2190
    %v2192 = vmul.f32 %v2187, %v2191
    %2193 = vst [vmem:[#allocation3 + $0x28] sm:$0xff] %v2192
    %v2194 = vld [vmem:[#allocation2 + $0xc0] sm:$0xff]
    %v2195 = vld [vmem:[#allocation2 + $0xc8] sm:$0xff]
    %v2196 = vld [vmem:[#allocation2 + $0xd0] sm:$0xff]
    %v2197 = vld [vmem:[#allocation2 + $0xd8] sm:$0xff]
    %v2198 = vpack.c.bf16 %v2192, %v2192
    %v2199 = vld [vmem:[#allocation9] sm:$0xff]
    %v2200 = vld [vmem:[#allocation9 + $0x8] sm:$0xff]
    %v2201 = vld [vmem:[#allocation9 + $0x10] sm:$0xff]
    %v2202 = vld [vmem:[#allocation9 + $0x18] sm:$0xff]
    %v2203 = vld [vmem:[#allocation9 + $0x20] sm:$0xff]
    %v2204 = vld [vmem:[#allocation9 + $0x28] sm:$0xff]
    %v2205 = vld [vmem:[#allocation9 + $0x30] sm:$0xff]
    %v2206 = vld [vmem:[#allocation9 + $0x38] sm:$0xff]
    %v2207 = vld [vmem:[#allocation9 + $0x40] sm:$0xff]
    %v2208 = vld [vmem:[#allocation9 + $0x48] sm:$0xff]
    %v2209 = vld [vmem:[#allocation9 + $0x50] sm:$0xff]
    %v2210 = vld [vmem:[#allocation9 + $0x58] sm:$0xff]
    %v2211 = vld [vmem:[#allocation9 + $0x60] sm:$0xff]
    %v2212 = vld [vmem:[#allocation9 + $0x68] sm:$0xff]
    %v2213 = vld [vmem:[#allocation9 + $0x70] sm:$0xff]
    %v2214 = vld [vmem:[#allocation9 + $0x78] sm:$0xff]
    %v2215 = vld [vmem:[#allocation9 + $0x80] sm:$0xff]
    %v2216 = vld [vmem:[#allocation9 + $0x88] sm:$0xff]
    %v2217 = vld [vmem:[#allocation9 + $0x90] sm:$0xff]
    %v2218 = vld [vmem:[#allocation9 + $0x98] sm:$0xff]
    %v2219 = vld [vmem:[#allocation9 + $0xa0] sm:$0xff]
    %v2220 = vld [vmem:[#allocation9 + $0xa8] sm:$0xff]
    %v2221 = vld [vmem:[#allocation9 + $0xb0] sm:$0xff]
    %v2222 = vld [vmem:[#allocation9 + $0xb8] sm:$0xff]
    %v2223 = vld [vmem:[#allocation9 + $0xc0] sm:$0xff]
    %v2224 = vld [vmem:[#allocation9 + $0xc8] sm:$0xff]
    %v2225 = vld [vmem:[#allocation9 + $0xd0] sm:$0xff]
    %v2226 = vld [vmem:[#allocation9 + $0xd8] sm:$0xff]
    %v2227 = vld [vmem:[#allocation9 + $0xe0] sm:$0xff]
    %v2228 = vld [vmem:[#allocation9 + $0xe8] sm:$0xff]
    %v2229 = vld [vmem:[#allocation9 + $0xf0] sm:$0xff]
    %v2230 = vld [vmem:[#allocation9 + $0xf8] sm:$0xff]
    %v2263 = vunpack.c.l.b16 %v2199
    %v2264 = vunpack.c.h.b16 %v2199
    %v2265 = vunpack.c.l.b16 %v2200
    %v2266 = vunpack.c.h.b16 %v2200
    %v2267 = vunpack.c.l.b16 %v2201
    %v2268 = vunpack.c.h.b16 %v2201
    %v2269 = vunpack.c.l.b16 %v2202
    %v2270 = vunpack.c.h.b16 %v2202
    %v2271 = vunpack.c.l.b16 %v2203
    %v2272 = vunpack.c.h.b16 %v2203
    %v2273 = vunpack.c.l.b16 %v2204
    %v2274 = vunpack.c.h.b16 %v2204
    %v2275 = vunpack.c.l.b16 %v2205
    %v2276 = vunpack.c.h.b16 %v2205
    %v2277 = vunpack.c.l.b16 %v2206
    %v2278 = vunpack.c.h.b16 %v2206
    %v2279 = vunpack.c.l.b16 %v2207
    %v2280 = vunpack.c.h.b16 %v2207
    %v2281 = vunpack.c.l.b16 %v2208
    %v2282 = vunpack.c.h.b16 %v2208
    %v2283 = vunpack.c.l.b16 %v2209
    %v2284 = vunpack.c.h.b16 %v2209
    %v2285 = vunpack.c.l.b16 %v2210
    %v2286 = vunpack.c.h.b16 %v2210
    %v2287 = vunpack.c.l.b16 %v2211
    %v2288 = vunpack.c.h.b16 %v2211
    %v2289 = vunpack.c.l.b16 %v2212
    %v2290 = vunpack.c.h.b16 %v2212
    %v2291 = vunpack.c.l.b16 %v2213
    %v2292 = vunpack.c.h.b16 %v2213
    %v2293 = vunpack.c.l.b16 %v2214
    %v2294 = vunpack.c.h.b16 %v2214
    %v2295 = vunpack.c.l.b16 %v2215
    %v2296 = vunpack.c.h.b16 %v2215
    %v2297 = vunpack.c.l.b16 %v2216
    %v2298 = vunpack.c.h.b16 %v2216
    %v2299 = vunpack.c.l.b16 %v2217
    %v2300 = vunpack.c.h.b16 %v2217
    %v2301 = vunpack.c.l.b16 %v2218
    %v2302 = vunpack.c.h.b16 %v2218
    %v2303 = vunpack.c.l.b16 %v2219
    %v2304 = vunpack.c.h.b16 %v2219
    %v2305 = vunpack.c.l.b16 %v2220
    %v2306 = vunpack.c.h.b16 %v2220
    %v2307 = vunpack.c.l.b16 %v2221
    %v2308 = vunpack.c.h.b16 %v2221
    %v2309 = vunpack.c.l.b16 %v2222
    %v2310 = vunpack.c.h.b16 %v2222
    %v2311 = vunpack.c.l.b16 %v2223
    %v2312 = vunpack.c.h.b16 %v2223
    %v2313 = vunpack.c.l.b16 %v2224
    %v2314 = vunpack.c.h.b16 %v2224
    %v2315 = vunpack.c.l.b16 %v2225
    %v2316 = vunpack.c.h.b16 %v2225
    %v2317 = vunpack.c.l.b16 %v2226
    %v2318 = vunpack.c.h.b16 %v2226
    %v2319 = vunpack.c.l.b16 %v2227
    %v2320 = vunpack.c.h.b16 %v2227
    %v2321 = vunpack.c.l.b16 %v2228
    %v2322 = vunpack.c.h.b16 %v2228
    %v2323 = vunpack.c.l.b16 %v2229
    %v2324 = vunpack.c.h.b16 %v2229
    %v2325 = vunpack.c.l.b16 %v2230
    %v2326 = vunpack.c.h.b16 %v2230
    %v2327 = vpack.c.b16 %v2267, %v2263
    %v2328 = vpack.c.b16 %v2268, %v2264
    %v2329 = vpack.c.b16 %v2269, %v2265
    %v2330 = vpack.c.b16 %v2270, %v2266
    %v2331 = vpack.c.b16 %v2275, %v2271
    %v2332 = vpack.c.b16 %v2276, %v2272
    %v2333 = vpack.c.b16 %v2277, %v2273
    %v2334 = vpack.c.b16 %v2278, %v2274
    %v2335 = vpack.c.b16 %v2283, %v2279
    %v2336 = vpack.c.b16 %v2284, %v2280
    %v2337 = vpack.c.b16 %v2285, %v2281
    %v2338 = vpack.c.b16 %v2286, %v2282
    %v2339 = vpack.c.b16 %v2291, %v2287
    %v2340 = vpack.c.b16 %v2292, %v2288
    %v2341 = vpack.c.b16 %v2293, %v2289
    %v2342 = vpack.c.b16 %v2294, %v2290
    %v2343 = vpack.c.b16 %v2299, %v2295
    %v2344 = vpack.c.b16 %v2300, %v2296
    %v2345 = vpack.c.b16 %v2301, %v2297
    %v2346 = vpack.c.b16 %v2302, %v2298
    %v2347 = vpack.c.b16 %v2307, %v2303
    %v2348 = vpack.c.b16 %v2308, %v2304
    %v2349 = vpack.c.b16 %v2309, %v2305
    %v2350 = vpack.c.b16 %v2310, %v2306
    %v2351 = vpack.c.b16 %v2315, %v2311
    %v2352 = vpack.c.b16 %v2316, %v2312
    %v2353 = vpack.c.b16 %v2317, %v2313
    %v2354 = vpack.c.b16 %v2318, %v2314
    %v2355 = vpack.c.b16 %v2323, %v2319
    %v2356 = vpack.c.b16 %v2324, %v2320
    %v2357 = vpack.c.b16 %v2325, %v2321
    %v2358 = vpack.c.b16 %v2326, %v2322
    %2391 = vmatpush.bf16.msra.mxu0 %v2355
    %2392 = vmatpush.bf16.msra.mxu0 %v2351
    %2393 = vmatpush.bf16.msra.mxu0 %v2347
    %2394 = vmatpush.bf16.msra.mxu0 %v2343
    %2395 = vmatpush.bf16.msra.mxu0 %v2339
    %2396 = vmatpush.bf16.msra.mxu0 %v2335
    %2397 = vmatpush.bf16.msra.mxu0 %v2331
    %2398 = vmatpush.bf16.msra.mxu0 %v2327
    %2399 = vmatmul.bf16.gmra.mxu0 %v2198
    %v2400 = vpop.f32.mrf.mxu0
    %v2401 = vadd.f32 0.0, %v2400
    %v2402 = vpop.f32.mrf.mxu0
    %2403 = vdwg.mxu0
    %2404 = vmatpush.bf16.msra.mxu0 %v2356
    %2405 = vmatpush.bf16.msra.mxu0 %v2352
    %2406 = vmatpush.bf16.msra.mxu0 %v2348
    %2407 = vmatpush.bf16.msra.mxu0 %v2344
    %2408 = vmatpush.bf16.msra.mxu0 %v2340
    %2409 = vmatpush.bf16.msra.mxu0 %v2336
    %2410 = vmatpush.bf16.msra.mxu0 %v2332
    %2411 = vmatpush.bf16.msra.mxu0 %v2328
    %2412 = vmatmul.bf16.gmra.mxu0 %v2198
    %v2413 = vpop.f32.mrf.mxu0
    %v2414 = vadd.f32 0.0, %v2413
    %v2415 = vpop.f32.mrf.mxu0
    %2416 = vdwg.mxu0
    %2417 = vmatpush.bf16.msra.mxu0 %v2357
    %2418 = vmatpush.bf16.msra.mxu0 %v2353
    %2419 = vmatpush.bf16.msra.mxu0 %v2349
    %2420 = vmatpush.bf16.msra.mxu0 %v2345
    %2421 = vmatpush.bf16.msra.mxu0 %v2341
    %2422 = vmatpush.bf16.msra.mxu0 %v2337
    %2423 = vmatpush.bf16.msra.mxu0 %v2333
    %2424 = vmatpush.bf16.msra.mxu0 %v2329
    %2425 = vmatmul.bf16.gmra.mxu0 %v2198
    %v2426 = vpop.f32.mrf.mxu0
    %v2427 = vadd.f32 0.0, %v2426
    %v2428 = vpop.f32.mrf.mxu0
    %2429 = vdwg.mxu0
    %2430 = vmatpush.bf16.msra.mxu0 %v2358
    %2431 = vmatpush.bf16.msra.mxu0 %v2354
    %2432 = vmatpush.bf16.msra.mxu0 %v2350
    %2433 = vmatpush.bf16.msra.mxu0 %v2346
    %2434 = vmatpush.bf16.msra.mxu0 %v2342
    %2435 = vmatpush.bf16.msra.mxu0 %v2338
    %2436 = vmatpush.bf16.msra.mxu0 %v2334
    %2437 = vmatpush.bf16.msra.mxu0 %v2330
    %2438 = vmatmul.bf16.gmra.mxu0 %v2198
    %v2439 = vpop.f32.mrf.mxu0
    %v2440 = vadd.f32 0.0, %v2439
    %v2441 = vpop.f32.mrf.mxu0
    %2442 = vdwg.mxu0
    %v2443 = vadd.f32 %v2194, %v2401
    %v2444 = vadd.f32 %v2195, %v2414
    %v2445 = vadd.f32 %v2196, %v2427
    %v2446 = vadd.f32 %v2197, %v2440
    %v2447 = vmul.f32 %v2443, 0.5
    %v2448 = vtanh.pop %v2447
    %v2449 = vmul.f32 %v2448, 0.5
    %v2450 = vadd.f32 %v2449, 0.5
    %v2451 = vmul.f32 %v2444, 0.5
    %v2452 = vtanh.pop %v2451
    %v2453 = vmul.f32 %v2452, 0.5
    %v2454 = vadd.f32 %v2453, 0.5
    %v2455 = vtanh.pop %v2445
    %v2456 = vmul.f32 %v2446, 0.5
    %v2457 = vtanh.pop %v2456
    %v2458 = vmul.f32 %v2457, 0.5
    %v2459 = vadd.f32 %v2458, 0.5
    %v2460 = vmul.f32 %v2454, %v2190
    %v2461 = vmul.f32 %v2450, %v2455
    %v2462 = vadd.f32 %v2460, %v2461
    %v2463 = vtanh.pop %v2462
    %v2464 = vmul.f32 %v2459, %v2463
    %2465 = vst [vmem:[#allocation3 + $0x30] sm:$0xff] %v2464
    %v2466 = vld [vmem:[#allocation2 + $0xe0] sm:$0xff]
    %v2467 = vld [vmem:[#allocation2 + $0xe8] sm:$0xff]
    %v2468 = vld [vmem:[#allocation2 + $0xf0] sm:$0xff]
    %v2469 = vld [vmem:[#allocation2 + $0xf8] sm:$0xff]
    %v2470 = vpack.c.bf16 %v2464, %v2464
    %v2471 = vld [vmem:[#allocation9] sm:$0xff]
    %v2472 = vld [vmem:[#allocation9 + $0x8] sm:$0xff]
    %v2473 = vld [vmem:[#allocation9 + $0x10] sm:$0xff]
    %v2474 = vld [vmem:[#allocation9 + $0x18] sm:$0xff]
    %v2475 = vld [vmem:[#allocation9 + $0x20] sm:$0xff]
    %v2476 = vld [vmem:[#allocation9 + $0x28] sm:$0xff]
    %v2477 = vld [vmem:[#allocation9 + $0x30] sm:$0xff]
    %v2478 = vld [vmem:[#allocation9 + $0x38] sm:$0xff]
    %v2479 = vld [vmem:[#allocation9 + $0x40] sm:$0xff]
    %v2480 = vld [vmem:[#allocation9 + $0x48] sm:$0xff]
    %v2481 = vld [vmem:[#allocation9 + $0x50] sm:$0xff]
    %v2482 = vld [vmem:[#allocation9 + $0x58] sm:$0xff]
    %v2483 = vld [vmem:[#allocation9 + $0x60] sm:$0xff]
    %v2484 = vld [vmem:[#allocation9 + $0x68] sm:$0xff]
    %v2485 = vld [vmem:[#allocation9 + $0x70] sm:$0xff]
    %v2486 = vld [vmem:[#allocation9 + $0x78] sm:$0xff]
    %v2487 = vld [vmem:[#allocation9 + $0x80] sm:$0xff]
    %v2488 = vld [vmem:[#allocation9 + $0x88] sm:$0xff]
    %v2489 = vld [vmem:[#allocation9 + $0x90] sm:$0xff]
    %v2490 = vld [vmem:[#allocation9 + $0x98] sm:$0xff]
    %v2491 = vld [vmem:[#allocation9 + $0xa0] sm:$0xff]
    %v2492 = vld [vmem:[#allocation9 + $0xa8] sm:$0xff]
    %v2493 = vld [vmem:[#allocation9 + $0xb0] sm:$0xff]
    %v2494 = vld [vmem:[#allocation9 + $0xb8] sm:$0xff]
    %v2495 = vld [vmem:[#allocation9 + $0xc0] sm:$0xff]
    %v2496 = vld [vmem:[#allocation9 + $0xc8] sm:$0xff]
    %v2497 = vld [vmem:[#allocation9 + $0xd0] sm:$0xff]
    %v2498 = vld [vmem:[#allocation9 + $0xd8] sm:$0xff]
    %v2499 = vld [vmem:[#allocation9 + $0xe0] sm:$0xff]
    %v2500 = vld [vmem:[#allocation9 + $0xe8] sm:$0xff]
    %v2501 = vld [vmem:[#allocation9 + $0xf0] sm:$0xff]
    %v2502 = vld [vmem:[#allocation9 + $0xf8] sm:$0xff]
    %v2535 = vunpack.c.l.b16 %v2471
    %v2536 = vunpack.c.h.b16 %v2471
    %v2537 = vunpack.c.l.b16 %v2472
    %v2538 = vunpack.c.h.b16 %v2472
    %v2539 = vunpack.c.l.b16 %v2473
    %v2540 = vunpack.c.h.b16 %v2473
    %v2541 = vunpack.c.l.b16 %v2474
    %v2542 = vunpack.c.h.b16 %v2474
    %v2543 = vunpack.c.l.b16 %v2475
    %v2544 = vunpack.c.h.b16 %v2475
    %v2545 = vunpack.c.l.b16 %v2476
    %v2546 = vunpack.c.h.b16 %v2476
    %v2547 = vunpack.c.l.b16 %v2477
    %v2548 = vunpack.c.h.b16 %v2477
    %v2549 = vunpack.c.l.b16 %v2478
    %v2550 = vunpack.c.h.b16 %v2478
    %v2551 = vunpack.c.l.b16 %v2479
    %v2552 = vunpack.c.h.b16 %v2479
    %v2553 = vunpack.c.l.b16 %v2480
    %v2554 = vunpack.c.h.b16 %v2480
    %v2555 = vunpack.c.l.b16 %v2481
    %v2556 = vunpack.c.h.b16 %v2481
    %v2557 = vunpack.c.l.b16 %v2482
    %v2558 = vunpack.c.h.b16 %v2482
    %v2559 = vunpack.c.l.b16 %v2483
    %v2560 = vunpack.c.h.b16 %v2483
    %v2561 = vunpack.c.l.b16 %v2484
    %v2562 = vunpack.c.h.b16 %v2484
    %v2563 = vunpack.c.l.b16 %v2485
    %v2564 = vunpack.c.h.b16 %v2485
    %v2565 = vunpack.c.l.b16 %v2486
    %v2566 = vunpack.c.h.b16 %v2486
    %v2567 = vunpack.c.l.b16 %v2487
    %v2568 = vunpack.c.h.b16 %v2487
    %v2569 = vunpack.c.l.b16 %v2488
    %v2570 = vunpack.c.h.b16 %v2488
    %v2571 = vunpack.c.l.b16 %v2489
    %v2572 = vunpack.c.h.b16 %v2489
    %v2573 = vunpack.c.l.b16 %v2490
    %v2574 = vunpack.c.h.b16 %v2490
    %v2575 = vunpack.c.l.b16 %v2491
    %v2576 = vunpack.c.h.b16 %v2491
    %v2577 = vunpack.c.l.b16 %v2492
    %v2578 = vunpack.c.h.b16 %v2492
    %v2579 = vunpack.c.l.b16 %v2493
    %v2580 = vunpack.c.h.b16 %v2493
    %v2581 = vunpack.c.l.b16 %v2494
    %v2582 = vunpack.c.h.b16 %v2494
    %v2583 = vunpack.c.l.b16 %v2495
    %v2584 = vunpack.c.h.b16 %v2495
    %v2585 = vunpack.c.l.b16 %v2496
    %v2586 = vunpack.c.h.b16 %v2496
    %v2587 = vunpack.c.l.b16 %v2497
    %v2588 = vunpack.c.h.b16 %v2497
    %v2589 = vunpack.c.l.b16 %v2498
    %v2590 = vunpack.c.h.b16 %v2498
    %v2591 = vunpack.c.l.b16 %v2499
    %v2592 = vunpack.c.h.b16 %v2499
    %v2593 = vunpack.c.l.b16 %v2500
    %v2594 = vunpack.c.h.b16 %v2500
    %v2595 = vunpack.c.l.b16 %v2501
    %v2596 = vunpack.c.h.b16 %v2501
    %v2597 = vunpack.c.l.b16 %v2502
    %v2598 = vunpack.c.h.b16 %v2502
    %v2599 = vpack.c.b16 %v2539, %v2535
    %v2600 = vpack.c.b16 %v2540, %v2536
    %v2601 = vpack.c.b16 %v2541, %v2537
    %v2602 = vpack.c.b16 %v2542, %v2538
    %v2603 = vpack.c.b16 %v2547, %v2543
    %v2604 = vpack.c.b16 %v2548, %v2544
    %v2605 = vpack.c.b16 %v2549, %v2545
    %v2606 = vpack.c.b16 %v2550, %v2546
    %v2607 = vpack.c.b16 %v2555, %v2551
    %v2608 = vpack.c.b16 %v2556, %v2552
    %v2609 = vpack.c.b16 %v2557, %v2553
    %v2610 = vpack.c.b16 %v2558, %v2554
    %v2611 = vpack.c.b16 %v2563, %v2559
    %v2612 = vpack.c.b16 %v2564, %v2560
    %v2613 = vpack.c.b16 %v2565, %v2561
    %v2614 = vpack.c.b16 %v2566, %v2562
    %v2615 = vpack.c.b16 %v2571, %v2567
    %v2616 = vpack.c.b16 %v2572, %v2568
    %v2617 = vpack.c.b16 %v2573, %v2569
    %v2618 = vpack.c.b16 %v2574, %v2570
    %v2619 = vpack.c.b16 %v2579, %v2575
    %v2620 = vpack.c.b16 %v2580, %v2576
    %v2621 = vpack.c.b16 %v2581, %v2577
    %v2622 = vpack.c.b16 %v2582, %v2578
    %v2623 = vpack.c.b16 %v2587, %v2583
    %v2624 = vpack.c.b16 %v2588, %v2584
    %v2625 = vpack.c.b16 %v2589, %v2585
    %v2626 = vpack.c.b16 %v2590, %v2586
    %v2627 = vpack.c.b16 %v2595, %v2591
    %v2628 = vpack.c.b16 %v2596, %v2592
    %v2629 = vpack.c.b16 %v2597, %v2593
    %v2630 = vpack.c.b16 %v2598, %v2594
    %2663 = vmatpush.bf16.msra.mxu0 %v2627
    %2664 = vmatpush.bf16.msra.mxu0 %v2623
    %2665 = vmatpush.bf16.msra.mxu0 %v2619
    %2666 = vmatpush.bf16.msra.mxu0 %v2615
    %2667 = vmatpush.bf16.msra.mxu0 %v2611
    %2668 = vmatpush.bf16.msra.mxu0 %v2607
    %2669 = vmatpush.bf16.msra.mxu0 %v2603
    %2670 = vmatpush.bf16.msra.mxu0 %v2599
    %2671 = vmatmul.bf16.gmra.mxu0 %v2470
    %v2672 = vpop.f32.mrf.mxu0
    %v2673 = vadd.f32 0.0, %v2672
    %v2674 = vpop.f32.mrf.mxu0
    %2675 = vdwg.mxu0
    %2676 = vmatpush.bf16.msra.mxu0 %v2628
    %2677 = vmatpush.bf16.msra.mxu0 %v2624
    %2678 = vmatpush.bf16.msra.mxu0 %v2620
    %2679 = vmatpush.bf16.msra.mxu0 %v2616
    %2680 = vmatpush.bf16.msra.mxu0 %v2612
    %2681 = vmatpush.bf16.msra.mxu0 %v2608
    %2682 = vmatpush.bf16.msra.mxu0 %v2604
    %2683 = vmatpush.bf16.msra.mxu0 %v2600
    %2684 = vmatmul.bf16.gmra.mxu0 %v2470
    %v2685 = vpop.f32.mrf.mxu0
    %v2686 = vadd.f32 0.0, %v2685
    %v2687 = vpop.f32.mrf.mxu0
    %2688 = vdwg.mxu0
    %2689 = vmatpush.bf16.msra.mxu0 %v2629
    %2690 = vmatpush.bf16.msra.mxu0 %v2625
    %2691 = vmatpush.bf16.msra.mxu0 %v2621
    %2692 = vmatpush.bf16.msra.mxu0 %v2617
    %2693 = vmatpush.bf16.msra.mxu0 %v2613
    %2694 = vmatpush.bf16.msra.mxu0 %v2609
    %2695 = vmatpush.bf16.msra.mxu0 %v2605
    %2696 = vmatpush.bf16.msra.mxu0 %v2601
    %2697 = vmatmul.bf16.gmra.mxu0 %v2470
    %v2698 = vpop.f32.mrf.mxu0
    %v2699 = vadd.f32 0.0, %v2698
    %v2700 = vpop.f32.mrf.mxu0
    %2701 = vdwg.mxu0
    %2702 = vmatpush.bf16.msra.mxu0 %v2630
    %2703 = vmatpush.bf16.msra.mxu0 %v2626
    %2704 = vmatpush.bf16.msra.mxu0 %v2622
    %2705 = vmatpush.bf16.msra.mxu0 %v2618
    %2706 = vmatpush.bf16.msra.mxu0 %v2614
    %2707 = vmatpush.bf16.msra.mxu0 %v2610
    %2708 = vmatpush.bf16.msra.mxu0 %v2606
    %2709 = vmatpush.bf16.msra.mxu0 %v2602
    %2710 = vmatmul.bf16.gmra.mxu0 %v2470
    %v2711 = vpop.f32.mrf.mxu0
    %v2712 = vadd.f32 0.0, %v2711
    %v2713 = vpop.f32.mrf.mxu0
    %2714 = vdwg.mxu0
    %v2715 = vadd.f32 %v2466, %v2673
    %v2716 = vadd.f32 %v2467, %v2686
    %v2717 = vadd.f32 %v2468, %v2699
    %v2718 = vadd.f32 %v2469, %v2712
    %v2719 = vmul.f32 %v2715, 0.5
    %v2720 = vtanh.pop %v2719
    %v2721 = vmul.f32 %v2720, 0.5
    %v2722 = vadd.f32 %v2721, 0.5
    %v2723 = vmul.f32 %v2716, 0.5
    %v2724 = vtanh.pop %v2723
    %v2725 = vmul.f32 %v2724, 0.5
    %v2726 = vadd.f32 %v2725, 0.5
    %v2727 = vtanh.pop %v2717
    %v2728 = vmul.f32 %v2718, 0.5
    %v2729 = vtanh.pop %v2728
    %v2730 = vmul.f32 %v2729, 0.5
    %v2731 = vadd.f32 %v2730, 0.5
    %v2732 = vmul.f32 %v2726, %v2462
    %v2733 = vmul.f32 %v2722, %v2727
    %v2734 = vadd.f32 %v2732, %v2733
    %v2735 = vtanh.pop %v2734
    %v2736 = vmul.f32 %v2731, %v2735
    %2737 = vst [vmem:[#allocation3 + $0x38] sm:$0xff] %v2736
    %v2738 = vld [vmem:[#allocation3] sm:$0xff]
    %v2739 = vld [vmem:[#allocation3 + $0x8] sm:$0xff]
    %v2740 = vld [vmem:[#allocation3 + $0x10] sm:$0xff]
    %v2741 = vld [vmem:[#allocation3 + $0x18] sm:$0xff]
    %v2742 = vld [vmem:[#allocation3 + $0x20] sm:$0xff]
    %v2743 = vld [vmem:[#allocation3 + $0x28] sm:$0xff]
    %v2744 = vld [vmem:[#allocation3 + $0x30] sm:$0xff]
    %v2745 = vld [vmem:[#allocation3 + $0x38] sm:$0xff]
    %v2746 = vpack.c.bf16 %v2739, %v2738
    %v2747 = vpack.c.bf16 %v2741, %v2740
    %v2748 = vpack.c.bf16 %v2743, %v2742
    %v2749 = vpack.c.bf16 %v2745, %v2744
    %v2750 = vld [vmem:[#allocation12] sm:$0xff]
    %v2751 = vld [vmem:[#allocation12 + $0x8] sm:$0xff]
    %v2752 = vld [vmem:[#allocation12 + $0x10] sm:$0xff]
    %v2753 = vld [vmem:[#allocation12 + $0x18] sm:$0xff]
    %v2754 = vld [vmem:[#allocation12 + $0x20] sm:$0xff]
    %v2755 = vld [vmem:[#allocation12 + $0x28] sm:$0xff]
    %v2756 = vld [vmem:[#allocation12 + $0x30] sm:$0xff]
    %v2757 = vld [vmem:[#allocation12 + $0x38] sm:$0xff]
    %v2758 = vld [vmem:[#allocation12 + $0x40] sm:$0xff]
    %v2759 = vld [vmem:[#allocation12 + $0x48] sm:$0xff]
    %v2760 = vld [vmem:[#allocation12 + $0x50] sm:$0xff]
    %v2761 = vld [vmem:[#allocation12 + $0x58] sm:$0xff]
    %v2762 = vld [vmem:[#allocation12 + $0x60] sm:$0xff]
    %v2763 = vld [vmem:[#allocation12 + $0x68] sm:$0xff]
    %v2764 = vld [vmem:[#allocation12 + $0x70] sm:$0xff]
    %v2765 = vld [vmem:[#allocation12 + $0x78] sm:$0xff]
    %v2766 = vld [vmem:[#allocation12 + $0x80] sm:$0xff]
    %v2767 = vld [vmem:[#allocation12 + $0x88] sm:$0xff]
    %v2768 = vld [vmem:[#allocation12 + $0x90] sm:$0xff]
    %v2769 = vld [vmem:[#allocation12 + $0x98] sm:$0xff]
    %v2770 = vld [vmem:[#allocation12 + $0xa0] sm:$0xff]
    %v2771 = vld [vmem:[#allocation12 + $0xa8] sm:$0xff]
    %v2772 = vld [vmem:[#allocation12 + $0xb0] sm:$0xff]
    %v2773 = vld [vmem:[#allocation12 + $0xb8] sm:$0xff]
    %v2774 = vld [vmem:[#allocation12 + $0xc0] sm:$0xff]
    %v2775 = vld [vmem:[#allocation12 + $0xc8] sm:$0xff]
    %v2776 = vld [vmem:[#allocation12 + $0xd0] sm:$0xff]
    %v2777 = vld [vmem:[#allocation12 + $0xd8] sm:$0xff]
    %v2778 = vld [vmem:[#allocation12 + $0xe0] sm:$0xff]
    %v2779 = vld [vmem:[#allocation12 + $0xe8] sm:$0xff]
    %v2780 = vld [vmem:[#allocation12 + $0xf0] sm:$0xff]
    %v2781 = vld [vmem:[#allocation12 + $0xf8] sm:$0xff]
    %v2782 = vld [vmem:[%s6] sm:$0xf]
    %v2784 = vperm.slane %v2782, 0
    %v2785 = vperm.slane %v2782, 1
    %v2786 = vperm.slane %v2782, 2
    %v2787 = vperm.slane %v2782, 3
    %v2824 = vunpack.c.l.b16 %v2750
    %v2825 = vunpack.c.h.b16 %v2750
    %v2826 = vunpack.c.l.b16 %v2751
    %v2827 = vunpack.c.h.b16 %v2751
    %v2828 = vunpack.c.l.b16 %v2752
    %v2829 = vunpack.c.h.b16 %v2752
    %v2830 = vunpack.c.l.b16 %v2753
    %v2831 = vunpack.c.h.b16 %v2753
    %v2832 = vunpack.c.l.b16 %v2754
    %v2833 = vunpack.c.h.b16 %v2754
    %v2834 = vunpack.c.l.b16 %v2755
    %v2835 = vunpack.c.h.b16 %v2755
    %v2836 = vunpack.c.l.b16 %v2756
    %v2837 = vunpack.c.h.b16 %v2756
    %v2838 = vunpack.c.l.b16 %v2757
    %v2839 = vunpack.c.h.b16 %v2757
    %v2840 = vunpack.c.l.b16 %v2758
    %v2841 = vunpack.c.h.b16 %v2758
    %v2842 = vunpack.c.l.b16 %v2759
    %v2843 = vunpack.c.h.b16 %v2759
    %v2844 = vunpack.c.l.b16 %v2760
    %v2845 = vunpack.c.h.b16 %v2760
    %v2846 = vunpack.c.l.b16 %v2761
    %v2847 = vunpack.c.h.b16 %v2761
    %v2848 = vunpack.c.l.b16 %v2762
    %v2849 = vunpack.c.h.b16 %v2762
    %v2850 = vunpack.c.l.b16 %v2763
    %v2851 = vunpack.c.h.b16 %v2763
    %v2852 = vunpack.c.l.b16 %v2764
    %v2853 = vunpack.c.h.b16 %v2764
    %v2854 = vunpack.c.l.b16 %v2765
    %v2855 = vunpack.c.h.b16 %v2765
    %v2856 = vunpack.c.l.b16 %v2766
    %v2857 = vunpack.c.h.b16 %v2766
    %v2858 = vunpack.c.l.b16 %v2767
    %v2859 = vunpack.c.h.b16 %v2767
    %v2860 = vunpack.c.l.b16 %v2768
    %v2861 = vunpack.c.h.b16 %v2768
    %v2862 = vunpack.c.l.b16 %v2769
    %v2863 = vunpack.c.h.b16 %v2769
    %v2864 = vunpack.c.l.b16 %v2770
    %v2865 = vunpack.c.h.b16 %v2770
    %v2866 = vunpack.c.l.b16 %v2771
    %v2867 = vunpack.c.h.b16 %v2771
    %v2868 = vunpack.c.l.b16 %v2772
    %v2869 = vunpack.c.h.b16 %v2772
    %v2870 = vunpack.c.l.b16 %v2773
    %v2871 = vunpack.c.h.b16 %v2773
    %v2872 = vunpack.c.l.b16 %v2774
    %v2873 = vunpack.c.h.b16 %v2774
    %v2874 = vunpack.c.l.b16 %v2775
    %v2875 = vunpack.c.h.b16 %v2775
    %v2876 = vunpack.c.l.b16 %v2776
    %v2877 = vunpack.c.h.b16 %v2776
    %v2878 = vunpack.c.l.b16 %v2777
    %v2879 = vunpack.c.h.b16 %v2777
    %v2880 = vunpack.c.l.b16 %v2778
    %v2881 = vunpack.c.h.b16 %v2778
    %v2882 = vunpack.c.l.b16 %v2779
    %v2883 = vunpack.c.h.b16 %v2779
    %v2884 = vunpack.c.l.b16 %v2780
    %v2885 = vunpack.c.h.b16 %v2780
    %v2886 = vunpack.c.l.b16 %v2781
    %v2887 = vunpack.c.h.b16 %v2781
    %v2888 = vpack.c.b16 %v2828, %v2824
    %v2889 = vpack.c.b16 %v2829, %v2825
    %v2890 = vpack.c.b16 %v2830, %v2826
    %v2891 = vpack.c.b16 %v2831, %v2827
    %v2892 = vpack.c.b16 %v2836, %v2832
    %v2893 = vpack.c.b16 %v2837, %v2833
    %v2894 = vpack.c.b16 %v2838, %v2834
    %v2895 = vpack.c.b16 %v2839, %v2835
    %v2896 = vpack.c.b16 %v2844, %v2840
    %v2897 = vpack.c.b16 %v2845, %v2841
    %v2898 = vpack.c.b16 %v2846, %v2842
    %v2899 = vpack.c.b16 %v2847, %v2843
    %v2900 = vpack.c.b16 %v2852, %v2848
    %v2901 = vpack.c.b16 %v2853, %v2849
    %v2902 = vpack.c.b16 %v2854, %v2850
    %v2903 = vpack.c.b16 %v2855, %v2851
    %v2904 = vpack.c.b16 %v2860, %v2856
    %v2905 = vpack.c.b16 %v2861, %v2857
    %v2906 = vpack.c.b16 %v2862, %v2858
    %v2907 = vpack.c.b16 %v2863, %v2859
    %v2908 = vpack.c.b16 %v2868, %v2864
    %v2909 = vpack.c.b16 %v2869, %v2865
    %v2910 = vpack.c.b16 %v2870, %v2866
    %v2911 = vpack.c.b16 %v2871, %v2867
    %v2912 = vpack.c.b16 %v2876, %v2872
    %v2913 = vpack.c.b16 %v2877, %v2873
    %v2914 = vpack.c.b16 %v2878, %v2874
    %v2915 = vpack.c.b16 %v2879, %v2875
    %v2916 = vpack.c.b16 %v2884, %v2880
    %v2917 = vpack.c.b16 %v2885, %v2881
    %v2918 = vpack.c.b16 %v2886, %v2882
    %v2919 = vpack.c.b16 %v2887, %v2883
    %2952 = vmatpush.bf16.msra.mxu0 %v2916
    %2953 = vmatpush.bf16.msra.mxu0 %v2912
    %2954 = vmatpush.bf16.msra.mxu0 %v2908
    %2955 = vmatpush.bf16.msra.mxu0 %v2904
    %2956 = vmatpush.bf16.msra.mxu0 %v2900
    %2957 = vmatpush.bf16.msra.mxu0 %v2896
    %2958 = vmatpush.bf16.msra.mxu0 %v2892
    %2959 = vmatpush.bf16.msra.mxu0 %v2888
    %2960 = vmatmul.bf16.gmra.mxu0 %v2746
    %v2961 = vpop.f32.mrf.mxu0
    %v2962 = vadd.f32 %v2784, %v2961
    %v2963 = vpop.f32.mrf.mxu0
    %v2964 = vadd.f32 %v2784, %v2963
    %2965 = vmatmul.bf16.gmra.mxu0 %v2747
    %v2966 = vpop.f32.mrf.mxu0
    %v2967 = vadd.f32 %v2784, %v2966
    %v2968 = vpop.f32.mrf.mxu0
    %v2969 = vadd.f32 %v2784, %v2968
    %2970 = vmatmul.bf16.gmra.mxu0 %v2748
    %v2971 = vpop.f32.mrf.mxu0
    %v2972 = vadd.f32 %v2784, %v2971
    %v2973 = vpop.f32.mrf.mxu0
    %v2974 = vadd.f32 %v2784, %v2973
    %2975 = vmatmul.bf16.gmra.mxu0 %v2749
    %v2976 = vpop.f32.mrf.mxu0
    %v2977 = vadd.f32 %v2784, %v2976
    %v2978 = vpop.f32.mrf.mxu0
    %v2979 = vadd.f32 %v2784, %v2978
    %2980 = vdwg.mxu0
    %2981 = vmatpush.bf16.msra.mxu0 %v2917
    %2982 = vmatpush.bf16.msra.mxu0 %v2913
    %2983 = vmatpush.bf16.msra.mxu0 %v2909
    %2984 = vmatpush.bf16.msra.mxu0 %v2905
    %2985 = vmatpush.bf16.msra.mxu0 %v2901
    %2986 = vmatpush.bf16.msra.mxu0 %v2897
    %2987 = vmatpush.bf16.msra.mxu0 %v2893
    %2988 = vmatpush.bf16.msra.mxu0 %v2889
    %2989 = vmatmul.bf16.gmra.mxu0 %v2746
    %v2990 = vpop.f32.mrf.mxu0
    %v2991 = vadd.f32 %v2785, %v2990
    %v2992 = vpop.f32.mrf.mxu0
    %v2993 = vadd.f32 %v2785, %v2992
    %2994 = vmatmul.bf16.gmra.mxu0 %v2747
    %v2995 = vpop.f32.mrf.mxu0
    %v2996 = vadd.f32 %v2785, %v2995
    %v2997 = vpop.f32.mrf.mxu0
    %v2998 = vadd.f32 %v2785, %v2997
    %2999 = vmatmul.bf16.gmra.mxu0 %v2748
    %v3000 = vpop.f32.mrf.mxu0
    %v3001 = vadd.f32 %v2785, %v3000
    %v3002 = vpop.f32.mrf.mxu0
    %v3003 = vadd.f32 %v2785, %v3002
    %3004 = vmatmul.bf16.gmra.mxu0 %v2749
    %v3005 = vpop.f32.mrf.mxu0
    %v3006 = vadd.f32 %v2785, %v3005
    %v3007 = vpop.f32.mrf.mxu0
    %v3008 = vadd.f32 %v2785, %v3007
    %3009 = vdwg.mxu0
    %3010 = vmatpush.bf16.msra.mxu0 %v2918
    %3011 = vmatpush.bf16.msra.mxu0 %v2914
    %3012 = vmatpush.bf16.msra.mxu0 %v2910
    %3013 = vmatpush.bf16.msra.mxu0 %v2906
    %3014 = vmatpush.bf16.msra.mxu0 %v2902
    %3015 = vmatpush.bf16.msra.mxu0 %v2898
    %3016 = vmatpush.bf16.msra.mxu0 %v2894
    %3017 = vmatpush.bf16.msra.mxu0 %v2890
    %3018 = vmatmul.bf16.gmra.mxu0 %v2746
    %v3019 = vpop.f32.mrf.mxu0
    %v3020 = vadd.f32 %v2786, %v3019
    %v3021 = vpop.f32.mrf.mxu0
    %v3022 = vadd.f32 %v2786, %v3021
    %3023 = vmatmul.bf16.gmra.mxu0 %v2747
    %v3024 = vpop.f32.mrf.mxu0
    %v3025 = vadd.f32 %v2786, %v3024
    %v3026 = vpop.f32.mrf.mxu0
    %v3027 = vadd.f32 %v2786, %v3026
    %3028 = vmatmul.bf16.gmra.mxu0 %v2748
    %v3029 = vpop.f32.mrf.mxu0
    %v3030 = vadd.f32 %v2786, %v3029
    %v3031 = vpop.f32.mrf.mxu0
    %v3032 = vadd.f32 %v2786, %v3031
    %3033 = vmatmul.bf16.gmra.mxu0 %v2749
    %v3034 = vpop.f32.mrf.mxu0
    %v3035 = vadd.f32 %v2786, %v3034
    %v3036 = vpop.f32.mrf.mxu0
    %v3037 = vadd.f32 %v2786, %v3036
    %3038 = vdwg.mxu0
    %3039 = vmatpush.bf16.msra.mxu0 %v2919
    %3040 = vmatpush.bf16.msra.mxu0 %v2915
    %3041 = vmatpush.bf16.msra.mxu0 %v2911
    %3042 = vmatpush.bf16.msra.mxu0 %v2907
    %3043 = vmatpush.bf16.msra.mxu0 %v2903
    %3044 = vmatpush.bf16.msra.mxu0 %v2899
    %3045 = vmatpush.bf16.msra.mxu0 %v2895
    %3046 = vmatpush.bf16.msra.mxu0 %v2891
    %3047 = vmatmul.bf16.gmra.mxu0 %v2746
    %v3048 = vpop.f32.mrf.mxu0
    %v3049 = vadd.f32 %v2787, %v3048
    %v3050 = vpop.f32.mrf.mxu0
    %v3051 = vadd.f32 %v2787, %v3050
    %3052 = vmatmul.bf16.gmra.mxu0 %v2747
    %v3053 = vpop.f32.mrf.mxu0
    %v3054 = vadd.f32 %v2787, %v3053
    %v3055 = vpop.f32.mrf.mxu0
    %v3056 = vadd.f32 %v2787, %v3055
    %3057 = vmatmul.bf16.gmra.mxu0 %v2748
    %v3058 = vpop.f32.mrf.mxu0
    %v3059 = vadd.f32 %v2787, %v3058
    %v3060 = vpop.f32.mrf.mxu0
    %v3061 = vadd.f32 %v2787, %v3060
    %3062 = vmatmul.bf16.gmra.mxu0 %v2749
    %v3063 = vpop.f32.mrf.mxu0
    %v3064 = vadd.f32 %v2787, %v3063
    %v3065 = vpop.f32.mrf.mxu0
    %v3066 = vadd.f32 %v2787, %v3065
    %3067 = vdwg.mxu0
    %3068 = vst [vmem:[#allocation2] sm:$0xff] %v2962
    %3069 = vst [vmem:[#allocation2 + $0x8] sm:$0xff] %v2991
    %3070 = vst [vmem:[#allocation2 + $0x10] sm:$0xff] %v3020
    %3071 = vst [vmem:[#allocation2 + $0x18] sm:$0xff] %v3049
    %3072 = vst [vmem:[#allocation2 + $0x20] sm:$0xff] %v2964
    %3073 = vst [vmem:[#allocation2 + $0x28] sm:$0xff] %v2993
    %3074 = vst [vmem:[#allocation2 + $0x30] sm:$0xff] %v3022
    %3075 = vst [vmem:[#allocation2 + $0x38] sm:$0xff] %v3051
    %3076 = vst [vmem:[#allocation2 + $0x40] sm:$0xff] %v2967
    %3077 = vst [vmem:[#allocation2 + $0x48] sm:$0xff] %v2996
    %3078 = vst [vmem:[#allocation2 + $0x50] sm:$0xff] %v3025
    %3079 = vst [vmem:[#allocation2 + $0x58] sm:$0xff] %v3054
    %3080 = vst [vmem:[#allocation2 + $0x60] sm:$0xff] %v2969
    %3081 = vst [vmem:[#allocation2 + $0x68] sm:$0xff] %v2998
    %3082 = vst [vmem:[#allocation2 + $0x70] sm:$0xff] %v3027
    %3083 = vst [vmem:[#allocation2 + $0x78] sm:$0xff] %v3056
    %3084 = vst [vmem:[#allocation2 + $0x80] sm:$0xff] %v2972
    %3085 = vst [vmem:[#allocation2 + $0x88] sm:$0xff] %v3001
    %3086 = vst [vmem:[#allocation2 + $0x90] sm:$0xff] %v3030
    %3087 = vst [vmem:[#allocation2 + $0x98] sm:$0xff] %v3059
    %3088 = vst [vmem:[#allocation2 + $0xa0] sm:$0xff] %v2974
    %3089 = vst [vmem:[#allocation2 + $0xa8] sm:$0xff] %v3003
    %3090 = vst [vmem:[#allocation2 + $0xb0] sm:$0xff] %v3032
    %3091 = vst [vmem:[#allocation2 + $0xb8] sm:$0xff] %v3061
    %3092 = vst [vmem:[#allocation2 + $0xc0] sm:$0xff] %v2977
    %3093 = vst [vmem:[#allocation2 + $0xc8] sm:$0xff] %v3006
    %3094 = vst [vmem:[#allocation2 + $0xd0] sm:$0xff] %v3035
    %3095 = vst [vmem:[#allocation2 + $0xd8] sm:$0xff] %v3064
    %3096 = vst [vmem:[#allocation2 + $0xe0] sm:$0xff] %v2979
    %3097 = vst [vmem:[#allocation2 + $0xe8] sm:$0xff] %v3008
    %3098 = vst [vmem:[#allocation2 + $0xf0] sm:$0xff] %v3037
    %3099 = vst [vmem:[#allocation2 + $0xf8] sm:$0xff] %v3066
    %v3100 = vld [vmem:[#allocation2] sm:$0xff]
    %v3101 = vld [vmem:[#allocation2 + $0x8] sm:$0xff]
    %v3102 = vld [vmem:[#allocation2 + $0x10] sm:$0xff]
    %v3103 = vld [vmem:[#allocation2 + $0x18] sm:$0xff]
    %v3104 = vld [vmem:[#allocation13] sm:$0xff]
    %v3105 = vld [vmem:[#allocation13 + $0x8] sm:$0xff]
    %v3106 = vld [vmem:[#allocation13 + $0x10] sm:$0xff]
    %v3107 = vld [vmem:[#allocation13 + $0x18] sm:$0xff]
    %v3108 = vld [vmem:[#allocation13 + $0x20] sm:$0xff]
    %v3109 = vld [vmem:[#allocation13 + $0x28] sm:$0xff]
    %v3110 = vld [vmem:[#allocation13 + $0x30] sm:$0xff]
    %v3111 = vld [vmem:[#allocation13 + $0x38] sm:$0xff]
    %v3112 = vld [vmem:[#allocation13 + $0x40] sm:$0xff]
    %v3113 = vld [vmem:[#allocation13 + $0x48] sm:$0xff]
    %v3114 = vld [vmem:[#allocation13 + $0x50] sm:$0xff]
    %v3115 = vld [vmem:[#allocation13 + $0x58] sm:$0xff]
    %v3116 = vld [vmem:[#allocation13 + $0x60] sm:$0xff]
    %v3117 = vld [vmem:[#allocation13 + $0x68] sm:$0xff]
    %v3118 = vld [vmem:[#allocation13 + $0x70] sm:$0xff]
    %v3119 = vld [vmem:[#allocation13 + $0x78] sm:$0xff]
    %v3120 = vld [vmem:[#allocation13 + $0x80] sm:$0xff]
    %v3121 = vld [vmem:[#allocation13 + $0x88] sm:$0xff]
    %v3122 = vld [vmem:[#allocation13 + $0x90] sm:$0xff]
    %v3123 = vld [vmem:[#allocation13 + $0x98] sm:$0xff]
    %v3124 = vld [vmem:[#allocation13 + $0xa0] sm:$0xff]
    %v3125 = vld [vmem:[#allocation13 + $0xa8] sm:$0xff]
    %v3126 = vld [vmem:[#allocation13 + $0xb0] sm:$0xff]
    %v3127 = vld [vmem:[#allocation13 + $0xb8] sm:$0xff]
    %v3128 = vld [vmem:[#allocation13 + $0xc0] sm:$0xff]
    %v3129 = vld [vmem:[#allocation13 + $0xc8] sm:$0xff]
    %v3130 = vld [vmem:[#allocation13 + $0xd0] sm:$0xff]
    %v3131 = vld [vmem:[#allocation13 + $0xd8] sm:$0xff]
    %v3132 = vld [vmem:[#allocation13 + $0xe0] sm:$0xff]
    %v3133 = vld [vmem:[#allocation13 + $0xe8] sm:$0xff]
    %v3134 = vld [vmem:[#allocation13 + $0xf0] sm:$0xff]
    %v3135 = vld [vmem:[#allocation13 + $0xf8] sm:$0xff]
    %v3168 = vunpack.c.l.b16 %v3104
    %v3169 = vunpack.c.h.b16 %v3104
    %v3170 = vunpack.c.l.b16 %v3105
    %v3171 = vunpack.c.h.b16 %v3105
    %v3172 = vunpack.c.l.b16 %v3106
    %v3173 = vunpack.c.h.b16 %v3106
    %v3174 = vunpack.c.l.b16 %v3107
    %v3175 = vunpack.c.h.b16 %v3107
    %v3176 = vunpack.c.l.b16 %v3108
    %v3177 = vunpack.c.h.b16 %v3108
    %v3178 = vunpack.c.l.b16 %v3109
    %v3179 = vunpack.c.h.b16 %v3109
    %v3180 = vunpack.c.l.b16 %v3110
    %v3181 = vunpack.c.h.b16 %v3110
    %v3182 = vunpack.c.l.b16 %v3111
    %v3183 = vunpack.c.h.b16 %v3111
    %v3184 = vunpack.c.l.b16 %v3112
    %v3185 = vunpack.c.h.b16 %v3112
    %v3186 = vunpack.c.l.b16 %v3113
    %v3187 = vunpack.c.h.b16 %v3113
    %v3188 = vunpack.c.l.b16 %v3114
    %v3189 = vunpack.c.h.b16 %v3114
    %v3190 = vunpack.c.l.b16 %v3115
    %v3191 = vunpack.c.h.b16 %v3115
    %v3192 = vunpack.c.l.b16 %v3116
    %v3193 = vunpack.c.h.b16 %v3116
    %v3194 = vunpack.c.l.b16 %v3117
    %v3195 = vunpack.c.h.b16 %v3117
    %v3196 = vunpack.c.l.b16 %v3118
    %v3197 = vunpack.c.h.b16 %v3118
    %v3198 = vunpack.c.l.b16 %v3119
    %v3199 = vunpack.c.h.b16 %v3119
    %v3200 = vunpack.c.l.b16 %v3120
    %v3201 = vunpack.c.h.b16 %v3120
    %v3202 = vunpack.c.l.b16 %v3121
    %v3203 = vunpack.c.h.b16 %v3121
    %v3204 = vunpack.c.l.b16 %v3122
    %v3205 = vunpack.c.h.b16 %v3122
    %v3206 = vunpack.c.l.b16 %v3123
    %v3207 = vunpack.c.h.b16 %v3123
    %v3208 = vunpack.c.l.b16 %v3124
    %v3209 = vunpack.c.h.b16 %v3124
    %v3210 = vunpack.c.l.b16 %v3125
    %v3211 = vunpack.c.h.b16 %v3125
    %v3212 = vunpack.c.l.b16 %v3126
    %v3213 = vunpack.c.h.b16 %v3126
    %v3214 = vunpack.c.l.b16 %v3127
    %v3215 = vunpack.c.h.b16 %v3127
    %v3216 = vunpack.c.l.b16 %v3128
    %v3217 = vunpack.c.h.b16 %v3128
    %v3218 = vunpack.c.l.b16 %v3129
    %v3219 = vunpack.c.h.b16 %v3129
    %v3220 = vunpack.c.l.b16 %v3130
    %v3221 = vunpack.c.h.b16 %v3130
    %v3222 = vunpack.c.l.b16 %v3131
    %v3223 = vunpack.c.h.b16 %v3131
    %v3224 = vunpack.c.l.b16 %v3132
    %v3225 = vunpack.c.h.b16 %v3132
    %v3226 = vunpack.c.l.b16 %v3133
    %v3227 = vunpack.c.h.b16 %v3133
    %v3228 = vunpack.c.l.b16 %v3134
    %v3229 = vunpack.c.h.b16 %v3134
    %v3230 = vunpack.c.l.b16 %v3135
    %v3231 = vunpack.c.h.b16 %v3135
    %v3232 = vpack.c.b16 %v3172, %v3168
    %v3233 = vpack.c.b16 %v3173, %v3169
    %v3234 = vpack.c.b16 %v3174, %v3170
    %v3235 = vpack.c.b16 %v3175, %v3171
    %v3236 = vpack.c.b16 %v3180, %v3176
    %v3237 = vpack.c.b16 %v3181, %v3177
    %v3238 = vpack.c.b16 %v3182, %v3178
    %v3239 = vpack.c.b16 %v3183, %v3179
    %v3240 = vpack.c.b16 %v3188, %v3184
    %v3241 = vpack.c.b16 %v3189, %v3185
    %v3242 = vpack.c.b16 %v3190, %v3186
    %v3243 = vpack.c.b16 %v3191, %v3187
    %v3244 = vpack.c.b16 %v3196, %v3192
    %v3245 = vpack.c.b16 %v3197, %v3193
    %v3246 = vpack.c.b16 %v3198, %v3194
    %v3247 = vpack.c.b16 %v3199, %v3195
    %v3248 = vpack.c.b16 %v3204, %v3200
    %v3249 = vpack.c.b16 %v3205, %v3201
    %v3250 = vpack.c.b16 %v3206, %v3202
    %v3251 = vpack.c.b16 %v3207, %v3203
    %v3252 = vpack.c.b16 %v3212, %v3208
    %v3253 = vpack.c.b16 %v3213, %v3209
    %v3254 = vpack.c.b16 %v3214, %v3210
    %v3255 = vpack.c.b16 %v3215, %v3211
    %v3256 = vpack.c.b16 %v3220, %v3216
    %v3257 = vpack.c.b16 %v3221, %v3217
    %v3258 = vpack.c.b16 %v3222, %v3218
    %v3259 = vpack.c.b16 %v3223, %v3219
    %v3260 = vpack.c.b16 %v3228, %v3224
    %v3261 = vpack.c.b16 %v3229, %v3225
    %v3262 = vpack.c.b16 %v3230, %v3226
    %v3263 = vpack.c.b16 %v3231, %v3227
    %3296 = vmatpush.bf16.msra.mxu0 %v3260
    %3297 = vmatpush.bf16.msra.mxu0 %v3256
    %3298 = vmatpush.bf16.msra.mxu0 %v3252
    %3299 = vmatpush.bf16.msra.mxu0 %v3248
    %3300 = vmatpush.bf16.msra.mxu0 %v3244
    %3301 = vmatpush.bf16.msra.mxu0 %v3240
    %3302 = vmatpush.bf16.msra.mxu0 %v3236
    %3303 = vmatpush.bf16.msra.mxu0 %v3232
    %3304 = vmatmul.bf16.gmra.mxu0 0
    %v3305 = vpop.f32.mrf.mxu0
    %v3306 = vadd.f32 0.0, %v3305
    %v3307 = vpop.f32.mrf.mxu0
    %3308 = vdwg.mxu0
    %3309 = vmatpush.bf16.msra.mxu0 %v3261
    %3310 = vmatpush.bf16.msra.mxu0 %v3257
    %3311 = vmatpush.bf16.msra.mxu0 %v3253
    %3312 = vmatpush.bf16.msra.mxu0 %v3249
    %3313 = vmatpush.bf16.msra.mxu0 %v3245
    %3314 = vmatpush.bf16.msra.mxu0 %v3241
    %3315 = vmatpush.bf16.msra.mxu0 %v3237
    %3316 = vmatpush.bf16.msra.mxu0 %v3233
    %3317 = vmatmul.bf16.gmra.mxu0 0
    %v3318 = vpop.f32.mrf.mxu0
    %v3319 = vadd.f32 0.0, %v3318
    %v3320 = vpop.f32.mrf.mxu0
    %3321 = vdwg.mxu0
    %3322 = vmatpush.bf16.msra.mxu0 %v3262
    %3323 = vmatpush.bf16.msra.mxu0 %v3258
    %3324 = vmatpush.bf16.msra.mxu0 %v3254
    %3325 = vmatpush.bf16.msra.mxu0 %v3250
    %3326 = vmatpush.bf16.msra.mxu0 %v3246
    %3327 = vmatpush.bf16.msra.mxu0 %v3242
    %3328 = vmatpush.bf16.msra.mxu0 %v3238
    %3329 = vmatpush.bf16.msra.mxu0 %v3234
    %3330 = vmatmul.bf16.gmra.mxu0 0
    %v3331 = vpop.f32.mrf.mxu0
    %v3332 = vadd.f32 0.0, %v3331
    %v3333 = vpop.f32.mrf.mxu0
    %3334 = vdwg.mxu0
    %3335 = vmatpush.bf16.msra.mxu0 %v3263
    %3336 = vmatpush.bf16.msra.mxu0 %v3259
    %3337 = vmatpush.bf16.msra.mxu0 %v3255
    %3338 = vmatpush.bf16.msra.mxu0 %v3251
    %3339 = vmatpush.bf16.msra.mxu0 %v3247
    %3340 = vmatpush.bf16.msra.mxu0 %v3243
    %3341 = vmatpush.bf16.msra.mxu0 %v3239
    %3342 = vmatpush.bf16.msra.mxu0 %v3235
    %3343 = vmatmul.bf16.gmra.mxu0 0
    %v3344 = vpop.f32.mrf.mxu0
    %v3345 = vadd.f32 0.0, %v3344
    %v3346 = vpop.f32.mrf.mxu0
    %3347 = vdwg.mxu0
    %v3348 = vadd.f32 %v3100, %v3306
    %v3349 = vadd.f32 %v3101, %v3319
    %v3350 = vadd.f32 %v3102, %v3332
    %v3351 = vadd.f32 %v3103, %v3345
    %v3352 = vmul.f32 %v3348, 0.5
    %v3353 = vtanh.pop %v3352
    %v3354 = vmul.f32 %v3353, 0.5
    %v3355 = vadd.f32 %v3354, 0.5
    %v3356 = vmul.f32 %v3349, 0.5
    %v3357 = vtanh.pop %v3356
    %v3358 = vmul.f32 %v3357, 0.5
    %v3359 = vadd.f32 %v3358, 0.5
    %v3360 = vtanh.pop %v3350
    %v3361 = vmul.f32 %v3351, 0.5
    %v3362 = vtanh.pop %v3361
    %v3363 = vmul.f32 %v3362, 0.5
    %v3364 = vadd.f32 %v3363, 0.5
    %v3365 = vmul.f32 %v3359, 0.0
    %v3366 = vmul.f32 %v3355, %v3360
    %v3367 = vadd.f32 %v3365, %v3366
    %v3368 = vtanh.pop %v3367
    %v3369 = vmul.f32 %v3364, %v3368
    %3370 = vst [vmem:[#allocation3] sm:$0xff] %v3369
    %v3371 = vld [vmem:[#allocation2 + $0x20] sm:$0xff]
    %v3372 = vld [vmem:[#allocation2 + $0x28] sm:$0xff]
    %v3373 = vld [vmem:[#allocation2 + $0x30] sm:$0xff]
    %v3374 = vld [vmem:[#allocation2 + $0x38] sm:$0xff]
    %v3375 = vpack.c.bf16 %v3369, %v3369
    %v3376 = vld [vmem:[#allocation13] sm:$0xff]
    %v3377 = vld [vmem:[#allocation13 + $0x8] sm:$0xff]
    %v3378 = vld [vmem:[#allocation13 + $0x10] sm:$0xff]
    %v3379 = vld [vmem:[#allocation13 + $0x18] sm:$0xff]
    %v3380 = vld [vmem:[#allocation13 + $0x20] sm:$0xff]
    %v3381 = vld [vmem:[#allocation13 + $0x28] sm:$0xff]
    %v3382 = vld [vmem:[#allocation13 + $0x30] sm:$0xff]
    %v3383 = vld [vmem:[#allocation13 + $0x38] sm:$0xff]
    %v3384 = vld [vmem:[#allocation13 + $0x40] sm:$0xff]
    %v3385 = vld [vmem:[#allocation13 + $0x48] sm:$0xff]
    %v3386 = vld [vmem:[#allocation13 + $0x50] sm:$0xff]
    %v3387 = vld [vmem:[#allocation13 + $0x58] sm:$0xff]
    %v3388 = vld [vmem:[#allocation13 + $0x60] sm:$0xff]
    %v3389 = vld [vmem:[#allocation13 + $0x68] sm:$0xff]
    %v3390 = vld [vmem:[#allocation13 + $0x70] sm:$0xff]
    %v3391 = vld [vmem:[#allocation13 + $0x78] sm:$0xff]
    %v3392 = vld [vmem:[#allocation13 + $0x80] sm:$0xff]
    %v3393 = vld [vmem:[#allocation13 + $0x88] sm:$0xff]
    %v3394 = vld [vmem:[#allocation13 + $0x90] sm:$0xff]
    %v3395 = vld [vmem:[#allocation13 + $0x98] sm:$0xff]
    %v3396 = vld [vmem:[#allocation13 + $0xa0] sm:$0xff]
    %v3397 = vld [vmem:[#allocation13 + $0xa8] sm:$0xff]
    %v3398 = vld [vmem:[#allocation13 + $0xb0] sm:$0xff]
    %v3399 = vld [vmem:[#allocation13 + $0xb8] sm:$0xff]
    %v3400 = vld [vmem:[#allocation13 + $0xc0] sm:$0xff]
    %v3401 = vld [vmem:[#allocation13 + $0xc8] sm:$0xff]
    %v3402 = vld [vmem:[#allocation13 + $0xd0] sm:$0xff]
    %v3403 = vld [vmem:[#allocation13 + $0xd8] sm:$0xff]
    %v3404 = vld [vmem:[#allocation13 + $0xe0] sm:$0xff]
    %v3405 = vld [vmem:[#allocation13 + $0xe8] sm:$0xff]
    %v3406 = vld [vmem:[#allocation13 + $0xf0] sm:$0xff]
    %v3407 = vld [vmem:[#allocation13 + $0xf8] sm:$0xff]
    %v3440 = vunpack.c.l.b16 %v3376
    %v3441 = vunpack.c.h.b16 %v3376
    %v3442 = vunpack.c.l.b16 %v3377
    %v3443 = vunpack.c.h.b16 %v3377
    %v3444 = vunpack.c.l.b16 %v3378
    %v3445 = vunpack.c.h.b16 %v3378
    %v3446 = vunpack.c.l.b16 %v3379
    %v3447 = vunpack.c.h.b16 %v3379
    %v3448 = vunpack.c.l.b16 %v3380
    %v3449 = vunpack.c.h.b16 %v3380
    %v3450 = vunpack.c.l.b16 %v3381
    %v3451 = vunpack.c.h.b16 %v3381
    %v3452 = vunpack.c.l.b16 %v3382
    %v3453 = vunpack.c.h.b16 %v3382
    %v3454 = vunpack.c.l.b16 %v3383
    %v3455 = vunpack.c.h.b16 %v3383
    %v3456 = vunpack.c.l.b16 %v3384
    %v3457 = vunpack.c.h.b16 %v3384
    %v3458 = vunpack.c.l.b16 %v3385
    %v3459 = vunpack.c.h.b16 %v3385
    %v3460 = vunpack.c.l.b16 %v3386
    %v3461 = vunpack.c.h.b16 %v3386
    %v3462 = vunpack.c.l.b16 %v3387
    %v3463 = vunpack.c.h.b16 %v3387
    %v3464 = vunpack.c.l.b16 %v3388
    %v3465 = vunpack.c.h.b16 %v3388
    %v3466 = vunpack.c.l.b16 %v3389
    %v3467 = vunpack.c.h.b16 %v3389
    %v3468 = vunpack.c.l.b16 %v3390
    %v3469 = vunpack.c.h.b16 %v3390
    %v3470 = vunpack.c.l.b16 %v3391
    %v3471 = vunpack.c.h.b16 %v3391
    %v3472 = vunpack.c.l.b16 %v3392
    %v3473 = vunpack.c.h.b16 %v3392
    %v3474 = vunpack.c.l.b16 %v3393
    %v3475 = vunpack.c.h.b16 %v3393
    %v3476 = vunpack.c.l.b16 %v3394
    %v3477 = vunpack.c.h.b16 %v3394
    %v3478 = vunpack.c.l.b16 %v3395
    %v3479 = vunpack.c.h.b16 %v3395
    %v3480 = vunpack.c.l.b16 %v3396
    %v3481 = vunpack.c.h.b16 %v3396
    %v3482 = vunpack.c.l.b16 %v3397
    %v3483 = vunpack.c.h.b16 %v3397
    %v3484 = vunpack.c.l.b16 %v3398
    %v3485 = vunpack.c.h.b16 %v3398
    %v3486 = vunpack.c.l.b16 %v3399
    %v3487 = vunpack.c.h.b16 %v3399
    %v3488 = vunpack.c.l.b16 %v3400
    %v3489 = vunpack.c.h.b16 %v3400
    %v3490 = vunpack.c.l.b16 %v3401
    %v3491 = vunpack.c.h.b16 %v3401
    %v3492 = vunpack.c.l.b16 %v3402
    %v3493 = vunpack.c.h.b16 %v3402
    %v3494 = vunpack.c.l.b16 %v3403
    %v3495 = vunpack.c.h.b16 %v3403
    %v3496 = vunpack.c.l.b16 %v3404
    %v3497 = vunpack.c.h.b16 %v3404
    %v3498 = vunpack.c.l.b16 %v3405
    %v3499 = vunpack.c.h.b16 %v3405
    %v3500 = vunpack.c.l.b16 %v3406
    %v3501 = vunpack.c.h.b16 %v3406
    %v3502 = vunpack.c.l.b16 %v3407
    %v3503 = vunpack.c.h.b16 %v3407
    %v3504 = vpack.c.b16 %v3444, %v3440
    %v3505 = vpack.c.b16 %v3445, %v3441
    %v3506 = vpack.c.b16 %v3446, %v3442
    %v3507 = vpack.c.b16 %v3447, %v3443
    %v3508 = vpack.c.b16 %v3452, %v3448
    %v3509 = vpack.c.b16 %v3453, %v3449
    %v3510 = vpack.c.b16 %v3454, %v3450
    %v3511 = vpack.c.b16 %v3455, %v3451
    %v3512 = vpack.c.b16 %v3460, %v3456
    %v3513 = vpack.c.b16 %v3461, %v3457
    %v3514 = vpack.c.b16 %v3462, %v3458
    %v3515 = vpack.c.b16 %v3463, %v3459
    %v3516 = vpack.c.b16 %v3468, %v3464
    %v3517 = vpack.c.b16 %v3469, %v3465
    %v3518 = vpack.c.b16 %v3470, %v3466
    %v3519 = vpack.c.b16 %v3471, %v3467
    %v3520 = vpack.c.b16 %v3476, %v3472
    %v3521 = vpack.c.b16 %v3477, %v3473
    %v3522 = vpack.c.b16 %v3478, %v3474
    %v3523 = vpack.c.b16 %v3479, %v3475
    %v3524 = vpack.c.b16 %v3484, %v3480
    %v3525 = vpack.c.b16 %v3485, %v3481
    %v3526 = vpack.c.b16 %v3486, %v3482
    %v3527 = vpack.c.b16 %v3487, %v3483
    %v3528 = vpack.c.b16 %v3492, %v3488
    %v3529 = vpack.c.b16 %v3493, %v3489
    %v3530 = vpack.c.b16 %v3494, %v3490
    %v3531 = vpack.c.b16 %v3495, %v3491
    %v3532 = vpack.c.b16 %v3500, %v3496
    %v3533 = vpack.c.b16 %v3501, %v3497
    %v3534 = vpack.c.b16 %v3502, %v3498
    %v3535 = vpack.c.b16 %v3503, %v3499
    %3568 = vmatpush.bf16.msra.mxu0 %v3532
    %3569 = vmatpush.bf16.msra.mxu0 %v3528
    %3570 = vmatpush.bf16.msra.mxu0 %v3524
    %3571 = vmatpush.bf16.msra.mxu0 %v3520
    %3572 = vmatpush.bf16.msra.mxu0 %v3516
    %3573 = vmatpush.bf16.msra.mxu0 %v3512
    %3574 = vmatpush.bf16.msra.mxu0 %v3508
    %3575 = vmatpush.bf16.msra.mxu0 %v3504
    %3576 = vmatmul.bf16.gmra.mxu0 %v3375
    %v3577 = vpop.f32.mrf.mxu0
    %v3578 = vadd.f32 0.0, %v3577
    %v3579 = vpop.f32.mrf.mxu0
    %3580 = vdwg.mxu0
    %3581 = vmatpush.bf16.msra.mxu0 %v3533
    %3582 = vmatpush.bf16.msra.mxu0 %v3529
    %3583 = vmatpush.bf16.msra.mxu0 %v3525
    %3584 = vmatpush.bf16.msra.mxu0 %v3521
    %3585 = vmatpush.bf16.msra.mxu0 %v3517
    %3586 = vmatpush.bf16.msra.mxu0 %v3513
    %3587 = vmatpush.bf16.msra.mxu0 %v3509
    %3588 = vmatpush.bf16.msra.mxu0 %v3505
    %3589 = vmatmul.bf16.gmra.mxu0 %v3375
    %v3590 = vpop.f32.mrf.mxu0
    %v3591 = vadd.f32 0.0, %v3590
    %v3592 = vpop.f32.mrf.mxu0
    %3593 = vdwg.mxu0
    %3594 = vmatpush.bf16.msra.mxu0 %v3534
    %3595 = vmatpush.bf16.msra.mxu0 %v3530
    %3596 = vmatpush.bf16.msra.mxu0 %v3526
    %3597 = vmatpush.bf16.msra.mxu0 %v3522
    %3598 = vmatpush.bf16.msra.mxu0 %v3518
    %3599 = vmatpush.bf16.msra.mxu0 %v3514
    %3600 = vmatpush.bf16.msra.mxu0 %v3510
    %3601 = vmatpush.bf16.msra.mxu0 %v3506
    %3602 = vmatmul.bf16.gmra.mxu0 %v3375
    %v3603 = vpop.f32.mrf.mxu0
    %v3604 = vadd.f32 0.0, %v3603
    %v3605 = vpop.f32.mrf.mxu0
    %3606 = vdwg.mxu0
    %3607 = vmatpush.bf16.msra.mxu0 %v3535
    %3608 = vmatpush.bf16.msra.mxu0 %v3531
    %3609 = vmatpush.bf16.msra.mxu0 %v3527
    %3610 = vmatpush.bf16.msra.mxu0 %v3523
    %3611 = vmatpush.bf16.msra.mxu0 %v3519
    %3612 = vmatpush.bf16.msra.mxu0 %v3515
    %3613 = vmatpush.bf16.msra.mxu0 %v3511
    %3614 = vmatpush.bf16.msra.mxu0 %v3507
    %3615 = vmatmul.bf16.gmra.mxu0 %v3375
    %v3616 = vpop.f32.mrf.mxu0
    %v3617 = vadd.f32 0.0, %v3616
    %v3618 = vpop.f32.mrf.mxu0
    %3619 = vdwg.mxu0
    %v3620 = vadd.f32 %v3371, %v3578
    %v3621 = vadd.f32 %v3372, %v3591
    %v3622 = vadd.f32 %v3373, %v3604
    %v3623 = vadd.f32 %v3374, %v3617
    %v3624 = vmul.f32 %v3620, 0.5
    %v3625 = vtanh.pop %v3624
    %v3626 = vmul.f32 %v3625, 0.5
    %v3627 = vadd.f32 %v3626, 0.5
    %v3628 = vmul.f32 %v3621, 0.5
    %v3629 = vtanh.pop %v3628
    %v3630 = vmul.f32 %v3629, 0.5
    %v3631 = vadd.f32 %v3630, 0.5
    %v3632 = vtanh.pop %v3622
    %v3633 = vmul.f32 %v3623, 0.5
    %v3634 = vtanh.pop %v3633
    %v3635 = vmul.f32 %v3634, 0.5
    %v3636 = vadd.f32 %v3635, 0.5
    %v3637 = vmul.f32 %v3631, %v3367
    %v3638 = vmul.f32 %v3627, %v3632
    %v3639 = vadd.f32 %v3637, %v3638
    %v3640 = vtanh.pop %v3639
    %v3641 = vmul.f32 %v3636, %v3640
    %3642 = vst [vmem:[#allocation3 + $0x8] sm:$0xff] %v3641
    %v3643 = vld [vmem:[#allocation2 + $0x40] sm:$0xff]
    %v3644 = vld [vmem:[#allocation2 + $0x48] sm:$0xff]
    %v3645 = vld [vmem:[#allocation2 + $0x50] sm:$0xff]
    %v3646 = vld [vmem:[#allocation2 + $0x58] sm:$0xff]
    %v3647 = vpack.c.bf16 %v3641, %v3641
    %v3648 = vld [vmem:[#allocation13] sm:$0xff]
    %v3649 = vld [vmem:[#allocation13 + $0x8] sm:$0xff]
    %v3650 = vld [vmem:[#allocation13 + $0x10] sm:$0xff]
    %v3651 = vld [vmem:[#allocation13 + $0x18] sm:$0xff]
    %v3652 = vld [vmem:[#allocation13 + $0x20] sm:$0xff]
    %v3653 = vld [vmem:[#allocation13 + $0x28] sm:$0xff]
    %v3654 = vld [vmem:[#allocation13 + $0x30] sm:$0xff]
    %v3655 = vld [vmem:[#allocation13 + $0x38] sm:$0xff]
    %v3656 = vld [vmem:[#allocation13 + $0x40] sm:$0xff]
    %v3657 = vld [vmem:[#allocation13 + $0x48] sm:$0xff]
    %v3658 = vld [vmem:[#allocation13 + $0x50] sm:$0xff]
    %v3659 = vld [vmem:[#allocation13 + $0x58] sm:$0xff]
    %v3660 = vld [vmem:[#allocation13 + $0x60] sm:$0xff]
    %v3661 = vld [vmem:[#allocation13 + $0x68] sm:$0xff]
    %v3662 = vld [vmem:[#allocation13 + $0x70] sm:$0xff]
    %v3663 = vld [vmem:[#allocation13 + $0x78] sm:$0xff]
    %v3664 = vld [vmem:[#allocation13 + $0x80] sm:$0xff]
    %v3665 = vld [vmem:[#allocation13 + $0x88] sm:$0xff]
    %v3666 = vld [vmem:[#allocation13 + $0x90] sm:$0xff]
    %v3667 = vld [vmem:[#allocation13 + $0x98] sm:$0xff]
    %v3668 = vld [vmem:[#allocation13 + $0xa0] sm:$0xff]
    %v3669 = vld [vmem:[#allocation13 + $0xa8] sm:$0xff]
    %v3670 = vld [vmem:[#allocation13 + $0xb0] sm:$0xff]
    %v3671 = vld [vmem:[#allocation13 + $0xb8] sm:$0xff]
    %v3672 = vld [vmem:[#allocation13 + $0xc0] sm:$0xff]
    %v3673 = vld [vmem:[#allocation13 + $0xc8] sm:$0xff]
    %v3674 = vld [vmem:[#allocation13 + $0xd0] sm:$0xff]
    %v3675 = vld [vmem:[#allocation13 + $0xd8] sm:$0xff]
    %v3676 = vld [vmem:[#allocation13 + $0xe0] sm:$0xff]
    %v3677 = vld [vmem:[#allocation13 + $0xe8] sm:$0xff]
    %v3678 = vld [vmem:[#allocation13 + $0xf0] sm:$0xff]
    %v3679 = vld [vmem:[#allocation13 + $0xf8] sm:$0xff]
    %v3712 = vunpack.c.l.b16 %v3648
    %v3713 = vunpack.c.h.b16 %v3648
    %v3714 = vunpack.c.l.b16 %v3649
    %v3715 = vunpack.c.h.b16 %v3649
    %v3716 = vunpack.c.l.b16 %v3650
    %v3717 = vunpack.c.h.b16 %v3650
    %v3718 = vunpack.c.l.b16 %v3651
    %v3719 = vunpack.c.h.b16 %v3651
    %v3720 = vunpack.c.l.b16 %v3652
    %v3721 = vunpack.c.h.b16 %v3652
    %v3722 = vunpack.c.l.b16 %v3653
    %v3723 = vunpack.c.h.b16 %v3653
    %v3724 = vunpack.c.l.b16 %v3654
    %v3725 = vunpack.c.h.b16 %v3654
    %v3726 = vunpack.c.l.b16 %v3655
    %v3727 = vunpack.c.h.b16 %v3655
    %v3728 = vunpack.c.l.b16 %v3656
    %v3729 = vunpack.c.h.b16 %v3656
    %v3730 = vunpack.c.l.b16 %v3657
    %v3731 = vunpack.c.h.b16 %v3657
    %v3732 = vunpack.c.l.b16 %v3658
    %v3733 = vunpack.c.h.b16 %v3658
    %v3734 = vunpack.c.l.b16 %v3659
    %v3735 = vunpack.c.h.b16 %v3659
    %v3736 = vunpack.c.l.b16 %v3660
    %v3737 = vunpack.c.h.b16 %v3660
    %v3738 = vunpack.c.l.b16 %v3661
    %v3739 = vunpack.c.h.b16 %v3661
    %v3740 = vunpack.c.l.b16 %v3662
    %v3741 = vunpack.c.h.b16 %v3662
    %v3742 = vunpack.c.l.b16 %v3663
    %v3743 = vunpack.c.h.b16 %v3663
    %v3744 = vunpack.c.l.b16 %v3664
    %v3745 = vunpack.c.h.b16 %v3664
    %v3746 = vunpack.c.l.b16 %v3665
    %v3747 = vunpack.c.h.b16 %v3665
    %v3748 = vunpack.c.l.b16 %v3666
    %v3749 = vunpack.c.h.b16 %v3666
    %v3750 = vunpack.c.l.b16 %v3667
    %v3751 = vunpack.c.h.b16 %v3667
    %v3752 = vunpack.c.l.b16 %v3668
    %v3753 = vunpack.c.h.b16 %v3668
    %v3754 = vunpack.c.l.b16 %v3669
    %v3755 = vunpack.c.h.b16 %v3669
    %v3756 = vunpack.c.l.b16 %v3670
    %v3757 = vunpack.c.h.b16 %v3670
    %v3758 = vunpack.c.l.b16 %v3671
    %v3759 = vunpack.c.h.b16 %v3671
    %v3760 = vunpack.c.l.b16 %v3672
    %v3761 = vunpack.c.h.b16 %v3672
    %v3762 = vunpack.c.l.b16 %v3673
    %v3763 = vunpack.c.h.b16 %v3673
    %v3764 = vunpack.c.l.b16 %v3674
    %v3765 = vunpack.c.h.b16 %v3674
    %v3766 = vunpack.c.l.b16 %v3675
    %v3767 = vunpack.c.h.b16 %v3675
    %v3768 = vunpack.c.l.b16 %v3676
    %v3769 = vunpack.c.h.b16 %v3676
    %v3770 = vunpack.c.l.b16 %v3677
    %v3771 = vunpack.c.h.b16 %v3677
    %v3772 = vunpack.c.l.b16 %v3678
    %v3773 = vunpack.c.h.b16 %v3678
    %v3774 = vunpack.c.l.b16 %v3679
    %v3775 = vunpack.c.h.b16 %v3679
    %v3776 = vpack.c.b16 %v3716, %v3712
    %v3777 = vpack.c.b16 %v3717, %v3713
    %v3778 = vpack.c.b16 %v3718, %v3714
    %v3779 = vpack.c.b16 %v3719, %v3715
    %v3780 = vpack.c.b16 %v3724, %v3720
    %v3781 = vpack.c.b16 %v3725, %v3721
    %v3782 = vpack.c.b16 %v3726, %v3722
    %v3783 = vpack.c.b16 %v3727, %v3723
    %v3784 = vpack.c.b16 %v3732, %v3728
    %v3785 = vpack.c.b16 %v3733, %v3729
    %v3786 = vpack.c.b16 %v3734, %v3730
    %v3787 = vpack.c.b16 %v3735, %v3731
    %v3788 = vpack.c.b16 %v3740, %v3736
    %v3789 = vpack.c.b16 %v3741, %v3737
    %v3790 = vpack.c.b16 %v3742, %v3738
    %v3791 = vpack.c.b16 %v3743, %v3739
    %v3792 = vpack.c.b16 %v3748, %v3744
    %v3793 = vpack.c.b16 %v3749, %v3745
    %v3794 = vpack.c.b16 %v3750, %v3746
    %v3795 = vpack.c.b16 %v3751, %v3747
    %v3796 = vpack.c.b16 %v3756, %v3752
    %v3797 = vpack.c.b16 %v3757, %v3753
    %v3798 = vpack.c.b16 %v3758, %v3754
    %v3799 = vpack.c.b16 %v3759, %v3755
    %v3800 = vpack.c.b16 %v3764, %v3760
    %v3801 = vpack.c.b16 %v3765, %v3761
    %v3802 = vpack.c.b16 %v3766, %v3762
    %v3803 = vpack.c.b16 %v3767, %v3763
    %v3804 = vpack.c.b16 %v3772, %v3768
    %v3805 = vpack.c.b16 %v3773, %v3769
    %v3806 = vpack.c.b16 %v3774, %v3770
    %v3807 = vpack.c.b16 %v3775, %v3771
    %3840 = vmatpush.bf16.msra.mxu0 %v3804
    %3841 = vmatpush.bf16.msra.mxu0 %v3800
    %3842 = vmatpush.bf16.msra.mxu0 %v3796
    %3843 = vmatpush.bf16.msra.mxu0 %v3792
    %3844 = vmatpush.bf16.msra.mxu0 %v3788
    %3845 = vmatpush.bf16.msra.mxu0 %v3784
    %3846 = vmatpush.bf16.msra.mxu0 %v3780
    %3847 = vmatpush.bf16.msra.mxu0 %v3776
    %3848 = vmatmul.bf16.gmra.mxu0 %v3647
    %v3849 = vpop.f32.mrf.mxu0
    %v3850 = vadd.f32 0.0, %v3849
    %v3851 = vpop.f32.mrf.mxu0
    %3852 = vdwg.mxu0
    %3853 = vmatpush.bf16.msra.mxu0 %v3805
    %3854 = vmatpush.bf16.msra.mxu0 %v3801
    %3855 = vmatpush.bf16.msra.mxu0 %v3797
    %3856 = vmatpush.bf16.msra.mxu0 %v3793
    %3857 = vmatpush.bf16.msra.mxu0 %v3789
    %3858 = vmatpush.bf16.msra.mxu0 %v3785
    %3859 = vmatpush.bf16.msra.mxu0 %v3781
    %3860 = vmatpush.bf16.msra.mxu0 %v3777
    %3861 = vmatmul.bf16.gmra.mxu0 %v3647
    %v3862 = vpop.f32.mrf.mxu0
    %v3863 = vadd.f32 0.0, %v3862
    %v3864 = vpop.f32.mrf.mxu0
    %3865 = vdwg.mxu0
    %3866 = vmatpush.bf16.msra.mxu0 %v3806
    %3867 = vmatpush.bf16.msra.mxu0 %v3802
    %3868 = vmatpush.bf16.msra.mxu0 %v3798
    %3869 = vmatpush.bf16.msra.mxu0 %v3794
    %3870 = vmatpush.bf16.msra.mxu0 %v3790
    %3871 = vmatpush.bf16.msra.mxu0 %v3786
    %3872 = vmatpush.bf16.msra.mxu0 %v3782
    %3873 = vmatpush.bf16.msra.mxu0 %v3778
    %3874 = vmatmul.bf16.gmra.mxu0 %v3647
    %v3875 = vpop.f32.mrf.mxu0
    %v3876 = vadd.f32 0.0, %v3875
    %v3877 = vpop.f32.mrf.mxu0
    %3878 = vdwg.mxu0
    %3879 = vmatpush.bf16.msra.mxu0 %v3807
    %3880 = vmatpush.bf16.msra.mxu0 %v3803
    %3881 = vmatpush.bf16.msra.mxu0 %v3799
    %3882 = vmatpush.bf16.msra.mxu0 %v3795
    %3883 = vmatpush.bf16.msra.mxu0 %v3791
    %3884 = vmatpush.bf16.msra.mxu0 %v3787
    %3885 = vmatpush.bf16.msra.mxu0 %v3783
    %3886 = vmatpush.bf16.msra.mxu0 %v3779
    %3887 = vmatmul.bf16.gmra.mxu0 %v3647
    %v3888 = vpop.f32.mrf.mxu0
    %v3889 = vadd.f32 0.0, %v3888
    %v3890 = vpop.f32.mrf.mxu0
    %3891 = vdwg.mxu0
    %v3892 = vadd.f32 %v3643, %v3850
    %v3893 = vadd.f32 %v3644, %v3863
    %v3894 = vadd.f32 %v3645, %v3876
    %v3895 = vadd.f32 %v3646, %v3889
    %v3896 = vmul.f32 %v3892, 0.5
    %v3897 = vtanh.pop %v3896
    %v3898 = vmul.f32 %v3897, 0.5
    %v3899 = vadd.f32 %v3898, 0.5
    %v3900 = vmul.f32 %v3893, 0.5
    %v3901 = vtanh.pop %v3900
    %v3902 = vmul.f32 %v3901, 0.5
    %v3903 = vadd.f32 %v3902, 0.5
    %v3904 = vtanh.pop %v3894
    %v3905 = vmul.f32 %v3895, 0.5
    %v3906 = vtanh.pop %v3905
    %v3907 = vmul.f32 %v3906, 0.5
    %v3908 = vadd.f32 %v3907, 0.5
    %v3909 = vmul.f32 %v3903, %v3639
    %v3910 = vmul.f32 %v3899, %v3904
    %v3911 = vadd.f32 %v3909, %v3910
    %v3912 = vtanh.pop %v3911
    %v3913 = vmul.f32 %v3908, %v3912
    %3914 = vst [vmem:[#allocation3 + $0x10] sm:$0xff] %v3913
    %v3915 = vld [vmem:[#allocation2 + $0x60] sm:$0xff]
    %v3916 = vld [vmem:[#allocation2 + $0x68] sm:$0xff]
    %v3917 = vld [vmem:[#allocation2 + $0x70] sm:$0xff]
    %v3918 = vld [vmem:[#allocation2 + $0x78] sm:$0xff]
    %v3919 = vpack.c.bf16 %v3913, %v3913
    %v3920 = vld [vmem:[#allocation13] sm:$0xff]
    %v3921 = vld [vmem:[#allocation13 + $0x8] sm:$0xff]
    %v3922 = vld [vmem:[#allocation13 + $0x10] sm:$0xff]
    %v3923 = vld [vmem:[#allocation13 + $0x18] sm:$0xff]
    %v3924 = vld [vmem:[#allocation13 + $0x20] sm:$0xff]
    %v3925 = vld [vmem:[#allocation13 + $0x28] sm:$0xff]
    %v3926 = vld [vmem:[#allocation13 + $0x30] sm:$0xff]
    %v3927 = vld [vmem:[#allocation13 + $0x38] sm:$0xff]
    %v3928 = vld [vmem:[#allocation13 + $0x40] sm:$0xff]
    %v3929 = vld [vmem:[#allocation13 + $0x48] sm:$0xff]
    %v3930 = vld [vmem:[#allocation13 + $0x50] sm:$0xff]
    %v3931 = vld [vmem:[#allocation13 + $0x58] sm:$0xff]
    %v3932 = vld [vmem:[#allocation13 + $0x60] sm:$0xff]
    %v3933 = vld [vmem:[#allocation13 + $0x68] sm:$0xff]
    %v3934 = vld [vmem:[#allocation13 + $0x70] sm:$0xff]
    %v3935 = vld [vmem:[#allocation13 + $0x78] sm:$0xff]
    %v3936 = vld [vmem:[#allocation13 + $0x80] sm:$0xff]
    %v3937 = vld [vmem:[#allocation13 + $0x88] sm:$0xff]
    %v3938 = vld [vmem:[#allocation13 + $0x90] sm:$0xff]
    %v3939 = vld [vmem:[#allocation13 + $0x98] sm:$0xff]
    %v3940 = vld [vmem:[#allocation13 + $0xa0] sm:$0xff]
    %v3941 = vld [vmem:[#allocation13 + $0xa8] sm:$0xff]
    %v3942 = vld [vmem:[#allocation13 + $0xb0] sm:$0xff]
    %v3943 = vld [vmem:[#allocation13 + $0xb8] sm:$0xff]
    %v3944 = vld [vmem:[#allocation13 + $0xc0] sm:$0xff]
    %v3945 = vld [vmem:[#allocation13 + $0xc8] sm:$0xff]
    %v3946 = vld [vmem:[#allocation13 + $0xd0] sm:$0xff]
    %v3947 = vld [vmem:[#allocation13 + $0xd8] sm:$0xff]
    %v3948 = vld [vmem:[#allocation13 + $0xe0] sm:$0xff]
    %v3949 = vld [vmem:[#allocation13 + $0xe8] sm:$0xff]
    %v3950 = vld [vmem:[#allocation13 + $0xf0] sm:$0xff]
    %v3951 = vld [vmem:[#allocation13 + $0xf8] sm:$0xff]
    %v3984 = vunpack.c.l.b16 %v3920
    %v3985 = vunpack.c.h.b16 %v3920
    %v3986 = vunpack.c.l.b16 %v3921
    %v3987 = vunpack.c.h.b16 %v3921
    %v3988 = vunpack.c.l.b16 %v3922
    %v3989 = vunpack.c.h.b16 %v3922
    %v3990 = vunpack.c.l.b16 %v3923
    %v3991 = vunpack.c.h.b16 %v3923
    %v3992 = vunpack.c.l.b16 %v3924
    %v3993 = vunpack.c.h.b16 %v3924
    %v3994 = vunpack.c.l.b16 %v3925
    %v3995 = vunpack.c.h.b16 %v3925
    %v3996 = vunpack.c.l.b16 %v3926
    %v3997 = vunpack.c.h.b16 %v3926
    %v3998 = vunpack.c.l.b16 %v3927
    %v3999 = vunpack.c.h.b16 %v3927
    %v4000 = vunpack.c.l.b16 %v3928
    %v4001 = vunpack.c.h.b16 %v3928
    %v4002 = vunpack.c.l.b16 %v3929
    %v4003 = vunpack.c.h.b16 %v3929
    %v4004 = vunpack.c.l.b16 %v3930
    %v4005 = vunpack.c.h.b16 %v3930
    %v4006 = vunpack.c.l.b16 %v3931
    %v4007 = vunpack.c.h.b16 %v3931
    %v4008 = vunpack.c.l.b16 %v3932
    %v4009 = vunpack.c.h.b16 %v3932
    %v4010 = vunpack.c.l.b16 %v3933
    %v4011 = vunpack.c.h.b16 %v3933
    %v4012 = vunpack.c.l.b16 %v3934
    %v4013 = vunpack.c.h.b16 %v3934
    %v4014 = vunpack.c.l.b16 %v3935
    %v4015 = vunpack.c.h.b16 %v3935
    %v4016 = vunpack.c.l.b16 %v3936
    %v4017 = vunpack.c.h.b16 %v3936
    %v4018 = vunpack.c.l.b16 %v3937
    %v4019 = vunpack.c.h.b16 %v3937
    %v4020 = vunpack.c.l.b16 %v3938
    %v4021 = vunpack.c.h.b16 %v3938
    %v4022 = vunpack.c.l.b16 %v3939
    %v4023 = vunpack.c.h.b16 %v3939
    %v4024 = vunpack.c.l.b16 %v3940
    %v4025 = vunpack.c.h.b16 %v3940
    %v4026 = vunpack.c.l.b16 %v3941
    %v4027 = vunpack.c.h.b16 %v3941
    %v4028 = vunpack.c.l.b16 %v3942
    %v4029 = vunpack.c.h.b16 %v3942
    %v4030 = vunpack.c.l.b16 %v3943
    %v4031 = vunpack.c.h.b16 %v3943
    %v4032 = vunpack.c.l.b16 %v3944
    %v4033 = vunpack.c.h.b16 %v3944
    %v4034 = vunpack.c.l.b16 %v3945
    %v4035 = vunpack.c.h.b16 %v3945
    %v4036 = vunpack.c.l.b16 %v3946
    %v4037 = vunpack.c.h.b16 %v3946
    %v4038 = vunpack.c.l.b16 %v3947
    %v4039 = vunpack.c.h.b16 %v3947
    %v4040 = vunpack.c.l.b16 %v3948
    %v4041 = vunpack.c.h.b16 %v3948
    %v4042 = vunpack.c.l.b16 %v3949
    %v4043 = vunpack.c.h.b16 %v3949
    %v4044 = vunpack.c.l.b16 %v3950
    %v4045 = vunpack.c.h.b16 %v3950
    %v4046 = vunpack.c.l.b16 %v3951
    %v4047 = vunpack.c.h.b16 %v3951
    %v4048 = vpack.c.b16 %v3988, %v3984
    %v4049 = vpack.c.b16 %v3989, %v3985
    %v4050 = vpack.c.b16 %v3990, %v3986
    %v4051 = vpack.c.b16 %v3991, %v3987
    %v4052 = vpack.c.b16 %v3996, %v3992
    %v4053 = vpack.c.b16 %v3997, %v3993
    %v4054 = vpack.c.b16 %v3998, %v3994
    %v4055 = vpack.c.b16 %v3999, %v3995
    %v4056 = vpack.c.b16 %v4004, %v4000
    %v4057 = vpack.c.b16 %v4005, %v4001
    %v4058 = vpack.c.b16 %v4006, %v4002
    %v4059 = vpack.c.b16 %v4007, %v4003
    %v4060 = vpack.c.b16 %v4012, %v4008
    %v4061 = vpack.c.b16 %v4013, %v4009
    %v4062 = vpack.c.b16 %v4014, %v4010
    %v4063 = vpack.c.b16 %v4015, %v4011
    %v4064 = vpack.c.b16 %v4020, %v4016
    %v4065 = vpack.c.b16 %v4021, %v4017
    %v4066 = vpack.c.b16 %v4022, %v4018
    %v4067 = vpack.c.b16 %v4023, %v4019
    %v4068 = vpack.c.b16 %v4028, %v4024
    %v4069 = vpack.c.b16 %v4029, %v4025
    %v4070 = vpack.c.b16 %v4030, %v4026
    %v4071 = vpack.c.b16 %v4031, %v4027
    %v4072 = vpack.c.b16 %v4036, %v4032
    %v4073 = vpack.c.b16 %v4037, %v4033
    %v4074 = vpack.c.b16 %v4038, %v4034
    %v4075 = vpack.c.b16 %v4039, %v4035
    %v4076 = vpack.c.b16 %v4044, %v4040
    %v4077 = vpack.c.b16 %v4045, %v4041
    %v4078 = vpack.c.b16 %v4046, %v4042
    %v4079 = vpack.c.b16 %v4047, %v4043
    %4112 = vmatpush.bf16.msra.mxu0 %v4076
    %4113 = vmatpush.bf16.msra.mxu0 %v4072
    %4114 = vmatpush.bf16.msra.mxu0 %v4068
    %4115 = vmatpush.bf16.msra.mxu0 %v4064
    %4116 = vmatpush.bf16.msra.mxu0 %v4060
    %4117 = vmatpush.bf16.msra.mxu0 %v4056
    %4118 = vmatpush.bf16.msra.mxu0 %v4052
    %4119 = vmatpush.bf16.msra.mxu0 %v4048
    %4120 = vmatmul.bf16.gmra.mxu0 %v3919
    %v4121 = vpop.f32.mrf.mxu0
    %v4122 = vadd.f32 0.0, %v4121
    %v4123 = vpop.f32.mrf.mxu0
    %4124 = vdwg.mxu0
    %4125 = vmatpush.bf16.msra.mxu0 %v4077
    %4126 = vmatpush.bf16.msra.mxu0 %v4073
    %4127 = vmatpush.bf16.msra.mxu0 %v4069
    %4128 = vmatpush.bf16.msra.mxu0 %v4065
    %4129 = vmatpush.bf16.msra.mxu0 %v4061
    %4130 = vmatpush.bf16.msra.mxu0 %v4057
    %4131 = vmatpush.bf16.msra.mxu0 %v4053
    %4132 = vmatpush.bf16.msra.mxu0 %v4049
    %4133 = vmatmul.bf16.gmra.mxu0 %v3919
    %v4134 = vpop.f32.mrf.mxu0
    %v4135 = vadd.f32 0.0, %v4134
    %v4136 = vpop.f32.mrf.mxu0
    %4137 = vdwg.mxu0
    %4138 = vmatpush.bf16.msra.mxu0 %v4078
    %4139 = vmatpush.bf16.msra.mxu0 %v4074
    %4140 = vmatpush.bf16.msra.mxu0 %v4070
    %4141 = vmatpush.bf16.msra.mxu0 %v4066
    %4142 = vmatpush.bf16.msra.mxu0 %v4062
    %4143 = vmatpush.bf16.msra.mxu0 %v4058
    %4144 = vmatpush.bf16.msra.mxu0 %v4054
    %4145 = vmatpush.bf16.msra.mxu0 %v4050
    %4146 = vmatmul.bf16.gmra.mxu0 %v3919
    %v4147 = vpop.f32.mrf.mxu0
    %v4148 = vadd.f32 0.0, %v4147
    %v4149 = vpop.f32.mrf.mxu0
    %4150 = vdwg.mxu0
    %4151 = vmatpush.bf16.msra.mxu0 %v4079
    %4152 = vmatpush.bf16.msra.mxu0 %v4075
    %4153 = vmatpush.bf16.msra.mxu0 %v4071
    %4154 = vmatpush.bf16.msra.mxu0 %v4067
    %4155 = vmatpush.bf16.msra.mxu0 %v4063
    %4156 = vmatpush.bf16.msra.mxu0 %v4059
    %4157 = vmatpush.bf16.msra.mxu0 %v4055
    %4158 = vmatpush.bf16.msra.mxu0 %v4051
    %4159 = vmatmul.bf16.gmra.mxu0 %v3919
    %v4160 = vpop.f32.mrf.mxu0
    %v4161 = vadd.f32 0.0, %v4160
    %v4162 = vpop.f32.mrf.mxu0
    %4163 = vdwg.mxu0
    %v4164 = vadd.f32 %v3915, %v4122
    %v4165 = vadd.f32 %v3916, %v4135
    %v4166 = vadd.f32 %v3917, %v4148
    %v4167 = vadd.f32 %v3918, %v4161
    %v4168 = vmul.f32 %v4164, 0.5
    %v4169 = vtanh.pop %v4168
    %v4170 = vmul.f32 %v4169, 0.5
    %v4171 = vadd.f32 %v4170, 0.5
    %v4172 = vmul.f32 %v4165, 0.5
    %v4173 = vtanh.pop %v4172
    %v4174 = vmul.f32 %v4173, 0.5
    %v4175 = vadd.f32 %v4174, 0.5
    %v4176 = vtanh.pop %v4166
    %v4177 = vmul.f32 %v4167, 0.5
    %v4178 = vtanh.pop %v4177
    %v4179 = vmul.f32 %v4178, 0.5
    %v4180 = vadd.f32 %v4179, 0.5
    %v4181 = vmul.f32 %v4175, %v3911
    %v4182 = vmul.f32 %v4171, %v4176
    %v4183 = vadd.f32 %v4181, %v4182
    %v4184 = vtanh.pop %v4183
    %v4185 = vmul.f32 %v4180, %v4184
    %4186 = vst [vmem:[#allocation3 + $0x18] sm:$0xff] %v4185
    %v4187 = vld [vmem:[#allocation2 + $0x80] sm:$0xff]
    %v4188 = vld [vmem:[#allocation2 + $0x88] sm:$0xff]
    %v4189 = vld [vmem:[#allocation2 + $0x90] sm:$0xff]
    %v4190 = vld [vmem:[#allocation2 + $0x98] sm:$0xff]
    %v4191 = vpack.c.bf16 %v4185, %v4185
    %v4192 = vld [vmem:[#allocation13] sm:$0xff]
    %v4193 = vld [vmem:[#allocation13 + $0x8] sm:$0xff]
    %v4194 = vld [vmem:[#allocation13 + $0x10] sm:$0xff]
    %v4195 = vld [vmem:[#allocation13 + $0x18] sm:$0xff]
    %v4196 = vld [vmem:[#allocation13 + $0x20] sm:$0xff]
    %v4197 = vld [vmem:[#allocation13 + $0x28] sm:$0xff]
    %v4198 = vld [vmem:[#allocation13 + $0x30] sm:$0xff]
    %v4199 = vld [vmem:[#allocation13 + $0x38] sm:$0xff]
    %v4200 = vld [vmem:[#allocation13 + $0x40] sm:$0xff]
    %v4201 = vld [vmem:[#allocation13 + $0x48] sm:$0xff]
    %v4202 = vld [vmem:[#allocation13 + $0x50] sm:$0xff]
    %v4203 = vld [vmem:[#allocation13 + $0x58] sm:$0xff]
    %v4204 = vld [vmem:[#allocation13 + $0x60] sm:$0xff]
    %v4205 = vld [vmem:[#allocation13 + $0x68] sm:$0xff]
    %v4206 = vld [vmem:[#allocation13 + $0x70] sm:$0xff]
    %v4207 = vld [vmem:[#allocation13 + $0x78] sm:$0xff]
    %v4208 = vld [vmem:[#allocation13 + $0x80] sm:$0xff]
    %v4209 = vld [vmem:[#allocation13 + $0x88] sm:$0xff]
    %v4210 = vld [vmem:[#allocation13 + $0x90] sm:$0xff]
    %v4211 = vld [vmem:[#allocation13 + $0x98] sm:$0xff]
    %v4212 = vld [vmem:[#allocation13 + $0xa0] sm:$0xff]
    %v4213 = vld [vmem:[#allocation13 + $0xa8] sm:$0xff]
    %v4214 = vld [vmem:[#allocation13 + $0xb0] sm:$0xff]
    %v4215 = vld [vmem:[#allocation13 + $0xb8] sm:$0xff]
    %v4216 = vld [vmem:[#allocation13 + $0xc0] sm:$0xff]
    %v4217 = vld [vmem:[#allocation13 + $0xc8] sm:$0xff]
    %v4218 = vld [vmem:[#allocation13 + $0xd0] sm:$0xff]
    %v4219 = vld [vmem:[#allocation13 + $0xd8] sm:$0xff]
    %v4220 = vld [vmem:[#allocation13 + $0xe0] sm:$0xff]
    %v4221 = vld [vmem:[#allocation13 + $0xe8] sm:$0xff]
    %v4222 = vld [vmem:[#allocation13 + $0xf0] sm:$0xff]
    %v4223 = vld [vmem:[#allocation13 + $0xf8] sm:$0xff]
    %v4256 = vunpack.c.l.b16 %v4192
    %v4257 = vunpack.c.h.b16 %v4192
    %v4258 = vunpack.c.l.b16 %v4193
    %v4259 = vunpack.c.h.b16 %v4193
    %v4260 = vunpack.c.l.b16 %v4194
    %v4261 = vunpack.c.h.b16 %v4194
    %v4262 = vunpack.c.l.b16 %v4195
    %v4263 = vunpack.c.h.b16 %v4195
    %v4264 = vunpack.c.l.b16 %v4196
    %v4265 = vunpack.c.h.b16 %v4196
    %v4266 = vunpack.c.l.b16 %v4197
    %v4267 = vunpack.c.h.b16 %v4197
    %v4268 = vunpack.c.l.b16 %v4198
    %v4269 = vunpack.c.h.b16 %v4198
    %v4270 = vunpack.c.l.b16 %v4199
    %v4271 = vunpack.c.h.b16 %v4199
    %v4272 = vunpack.c.l.b16 %v4200
    %v4273 = vunpack.c.h.b16 %v4200
    %v4274 = vunpack.c.l.b16 %v4201
    %v4275 = vunpack.c.h.b16 %v4201
    %v4276 = vunpack.c.l.b16 %v4202
    %v4277 = vunpack.c.h.b16 %v4202
    %v4278 = vunpack.c.l.b16 %v4203
    %v4279 = vunpack.c.h.b16 %v4203
    %v4280 = vunpack.c.l.b16 %v4204
    %v4281 = vunpack.c.h.b16 %v4204
    %v4282 = vunpack.c.l.b16 %v4205
    %v4283 = vunpack.c.h.b16 %v4205
    %v4284 = vunpack.c.l.b16 %v4206
    %v4285 = vunpack.c.h.b16 %v4206
    %v4286 = vunpack.c.l.b16 %v4207
    %v4287 = vunpack.c.h.b16 %v4207
    %v4288 = vunpack.c.l.b16 %v4208
    %v4289 = vunpack.c.h.b16 %v4208
    %v4290 = vunpack.c.l.b16 %v4209
    %v4291 = vunpack.c.h.b16 %v4209
    %v4292 = vunpack.c.l.b16 %v4210
    %v4293 = vunpack.c.h.b16 %v4210
    %v4294 = vunpack.c.l.b16 %v4211
    %v4295 = vunpack.c.h.b16 %v4211
    %v4296 = vunpack.c.l.b16 %v4212
    %v4297 = vunpack.c.h.b16 %v4212
    %v4298 = vunpack.c.l.b16 %v4213
    %v4299 = vunpack.c.h.b16 %v4213
    %v4300 = vunpack.c.l.b16 %v4214
    %v4301 = vunpack.c.h.b16 %v4214
    %v4302 = vunpack.c.l.b16 %v4215
    %v4303 = vunpack.c.h.b16 %v4215
    %v4304 = vunpack.c.l.b16 %v4216
    %v4305 = vunpack.c.h.b16 %v4216
    %v4306 = vunpack.c.l.b16 %v4217
    %v4307 = vunpack.c.h.b16 %v4217
    %v4308 = vunpack.c.l.b16 %v4218
    %v4309 = vunpack.c.h.b16 %v4218
    %v4310 = vunpack.c.l.b16 %v4219
    %v4311 = vunpack.c.h.b16 %v4219
    %v4312 = vunpack.c.l.b16 %v4220
    %v4313 = vunpack.c.h.b16 %v4220
    %v4314 = vunpack.c.l.b16 %v4221
    %v4315 = vunpack.c.h.b16 %v4221
    %v4316 = vunpack.c.l.b16 %v4222
    %v4317 = vunpack.c.h.b16 %v4222
    %v4318 = vunpack.c.l.b16 %v4223
    %v4319 = vunpack.c.h.b16 %v4223
    %v4320 = vpack.c.b16 %v4260, %v4256
    %v4321 = vpack.c.b16 %v4261, %v4257
    %v4322 = vpack.c.b16 %v4262, %v4258
    %v4323 = vpack.c.b16 %v4263, %v4259
    %v4324 = vpack.c.b16 %v4268, %v4264
    %v4325 = vpack.c.b16 %v4269, %v4265
    %v4326 = vpack.c.b16 %v4270, %v4266
    %v4327 = vpack.c.b16 %v4271, %v4267
    %v4328 = vpack.c.b16 %v4276, %v4272
    %v4329 = vpack.c.b16 %v4277, %v4273
    %v4330 = vpack.c.b16 %v4278, %v4274
    %v4331 = vpack.c.b16 %v4279, %v4275
    %v4332 = vpack.c.b16 %v4284, %v4280
    %v4333 = vpack.c.b16 %v4285, %v4281
    %v4334 = vpack.c.b16 %v4286, %v4282
    %v4335 = vpack.c.b16 %v4287, %v4283
    %v4336 = vpack.c.b16 %v4292, %v4288
    %v4337 = vpack.c.b16 %v4293, %v4289
    %v4338 = vpack.c.b16 %v4294, %v4290
    %v4339 = vpack.c.b16 %v4295, %v4291
    %v4340 = vpack.c.b16 %v4300, %v4296
    %v4341 = vpack.c.b16 %v4301, %v4297
    %v4342 = vpack.c.b16 %v4302, %v4298
    %v4343 = vpack.c.b16 %v4303, %v4299
    %v4344 = vpack.c.b16 %v4308, %v4304
    %v4345 = vpack.c.b16 %v4309, %v4305
    %v4346 = vpack.c.b16 %v4310, %v4306
    %v4347 = vpack.c.b16 %v4311, %v4307
    %v4348 = vpack.c.b16 %v4316, %v4312
    %v4349 = vpack.c.b16 %v4317, %v4313
    %v4350 = vpack.c.b16 %v4318, %v4314
    %v4351 = vpack.c.b16 %v4319, %v4315
    %4384 = vmatpush.bf16.msra.mxu0 %v4348
    %4385 = vmatpush.bf16.msra.mxu0 %v4344
    %4386 = vmatpush.bf16.msra.mxu0 %v4340
    %4387 = vmatpush.bf16.msra.mxu0 %v4336
    %4388 = vmatpush.bf16.msra.mxu0 %v4332
    %4389 = vmatpush.bf16.msra.mxu0 %v4328
    %4390 = vmatpush.bf16.msra.mxu0 %v4324
    %4391 = vmatpush.bf16.msra.mxu0 %v4320
    %4392 = vmatmul.bf16.gmra.mxu0 %v4191
    %v4393 = vpop.f32.mrf.mxu0
    %v4394 = vadd.f32 0.0, %v4393
    %v4395 = vpop.f32.mrf.mxu0
    %4396 = vdwg.mxu0
    %4397 = vmatpush.bf16.msra.mxu0 %v4349
    %4398 = vmatpush.bf16.msra.mxu0 %v4345
    %4399 = vmatpush.bf16.msra.mxu0 %v4341
    %4400 = vmatpush.bf16.msra.mxu0 %v4337
    %4401 = vmatpush.bf16.msra.mxu0 %v4333
    %4402 = vmatpush.bf16.msra.mxu0 %v4329
    %4403 = vmatpush.bf16.msra.mxu0 %v4325
    %4404 = vmatpush.bf16.msra.mxu0 %v4321
    %4405 = vmatmul.bf16.gmra.mxu0 %v4191
    %v4406 = vpop.f32.mrf.mxu0
    %v4407 = vadd.f32 0.0, %v4406
    %v4408 = vpop.f32.mrf.mxu0
    %4409 = vdwg.mxu0
    %4410 = vmatpush.bf16.msra.mxu0 %v4350
    %4411 = vmatpush.bf16.msra.mxu0 %v4346
    %4412 = vmatpush.bf16.msra.mxu0 %v4342
    %4413 = vmatpush.bf16.msra.mxu0 %v4338
    %4414 = vmatpush.bf16.msra.mxu0 %v4334
    %4415 = vmatpush.bf16.msra.mxu0 %v4330
    %4416 = vmatpush.bf16.msra.mxu0 %v4326
    %4417 = vmatpush.bf16.msra.mxu0 %v4322
    %4418 = vmatmul.bf16.gmra.mxu0 %v4191
    %v4419 = vpop.f32.mrf.mxu0
    %v4420 = vadd.f32 0.0, %v4419
    %v4421 = vpop.f32.mrf.mxu0
    %4422 = vdwg.mxu0
    %4423 = vmatpush.bf16.msra.mxu0 %v4351
    %4424 = vmatpush.bf16.msra.mxu0 %v4347
    %4425 = vmatpush.bf16.msra.mxu0 %v4343
    %4426 = vmatpush.bf16.msra.mxu0 %v4339
    %4427 = vmatpush.bf16.msra.mxu0 %v4335
    %4428 = vmatpush.bf16.msra.mxu0 %v4331
    %4429 = vmatpush.bf16.msra.mxu0 %v4327
    %4430 = vmatpush.bf16.msra.mxu0 %v4323
    %4431 = vmatmul.bf16.gmra.mxu0 %v4191
    %v4432 = vpop.f32.mrf.mxu0
    %v4433 = vadd.f32 0.0, %v4432
    %v4434 = vpop.f32.mrf.mxu0
    %4435 = vdwg.mxu0
    %v4436 = vadd.f32 %v4187, %v4394
    %v4437 = vadd.f32 %v4188, %v4407
    %v4438 = vadd.f32 %v4189, %v4420
    %v4439 = vadd.f32 %v4190, %v4433
    %v4440 = vmul.f32 %v4436, 0.5
    %v4441 = vtanh.pop %v4440
    %v4442 = vmul.f32 %v4441, 0.5
    %v4443 = vadd.f32 %v4442, 0.5
    %v4444 = vmul.f32 %v4437, 0.5
    %v4445 = vtanh.pop %v4444
    %v4446 = vmul.f32 %v4445, 0.5
    %v4447 = vadd.f32 %v4446, 0.5
    %v4448 = vtanh.pop %v4438
    %v4449 = vmul.f32 %v4439, 0.5
    %v4450 = vtanh.pop %v4449
    %v4451 = vmul.f32 %v4450, 0.5
    %v4452 = vadd.f32 %v4451, 0.5
    %v4453 = vmul.f32 %v4447, %v4183
    %v4454 = vmul.f32 %v4443, %v4448
    %v4455 = vadd.f32 %v4453, %v4454
    %v4456 = vtanh.pop %v4455
    %v4457 = vmul.f32 %v4452, %v4456
    %4458 = vst [vmem:[#allocation3 + $0x20] sm:$0xff] %v4457
    %v4459 = vld [vmem:[#allocation2 + $0xa0] sm:$0xff]
    %v4460 = vld [vmem:[#allocation2 + $0xa8] sm:$0xff]
    %v4461 = vld [vmem:[#allocation2 + $0xb0] sm:$0xff]
    %v4462 = vld [vmem:[#allocation2 + $0xb8] sm:$0xff]
    %v4463 = vpack.c.bf16 %v4457, %v4457
    %v4464 = vld [vmem:[#allocation13] sm:$0xff]
    %v4465 = vld [vmem:[#allocation13 + $0x8] sm:$0xff]
    %v4466 = vld [vmem:[#allocation13 + $0x10] sm:$0xff]
    %v4467 = vld [vmem:[#allocation13 + $0x18] sm:$0xff]
    %v4468 = vld [vmem:[#allocation13 + $0x20] sm:$0xff]
    %v4469 = vld [vmem:[#allocation13 + $0x28] sm:$0xff]
    %v4470 = vld [vmem:[#allocation13 + $0x30] sm:$0xff]
    %v4471 = vld [vmem:[#allocation13 + $0x38] sm:$0xff]
    %v4472 = vld [vmem:[#allocation13 + $0x40] sm:$0xff]
    %v4473 = vld [vmem:[#allocation13 + $0x48] sm:$0xff]
    %v4474 = vld [vmem:[#allocation13 + $0x50] sm:$0xff]
    %v4475 = vld [vmem:[#allocation13 + $0x58] sm:$0xff]
    %v4476 = vld [vmem:[#allocation13 + $0x60] sm:$0xff]
    %v4477 = vld [vmem:[#allocation13 + $0x68] sm:$0xff]
    %v4478 = vld [vmem:[#allocation13 + $0x70] sm:$0xff]
    %v4479 = vld [vmem:[#allocation13 + $0x78] sm:$0xff]
    %v4480 = vld [vmem:[#allocation13 + $0x80] sm:$0xff]
    %v4481 = vld [vmem:[#allocation13 + $0x88] sm:$0xff]
    %v4482 = vld [vmem:[#allocation13 + $0x90] sm:$0xff]
    %v4483 = vld [vmem:[#allocation13 + $0x98] sm:$0xff]
    %v4484 = vld [vmem:[#allocation13 + $0xa0] sm:$0xff]
    %v4485 = vld [vmem:[#allocation13 + $0xa8] sm:$0xff]
    %v4486 = vld [vmem:[#allocation13 + $0xb0] sm:$0xff]
    %v4487 = vld [vmem:[#allocation13 + $0xb8] sm:$0xff]
    %v4488 = vld [vmem:[#allocation13 + $0xc0] sm:$0xff]
    %v4489 = vld [vmem:[#allocation13 + $0xc8] sm:$0xff]
    %v4490 = vld [vmem:[#allocation13 + $0xd0] sm:$0xff]
    %v4491 = vld [vmem:[#allocation13 + $0xd8] sm:$0xff]
    %v4492 = vld [vmem:[#allocation13 + $0xe0] sm:$0xff]
    %v4493 = vld [vmem:[#allocation13 + $0xe8] sm:$0xff]
    %v4494 = vld [vmem:[#allocation13 + $0xf0] sm:$0xff]
    %v4495 = vld [vmem:[#allocation13 + $0xf8] sm:$0xff]
    %v4528 = vunpack.c.l.b16 %v4464
    %v4529 = vunpack.c.h.b16 %v4464
    %v4530 = vunpack.c.l.b16 %v4465
    %v4531 = vunpack.c.h.b16 %v4465
    %v4532 = vunpack.c.l.b16 %v4466
    %v4533 = vunpack.c.h.b16 %v4466
    %v4534 = vunpack.c.l.b16 %v4467
    %v4535 = vunpack.c.h.b16 %v4467
    %v4536 = vunpack.c.l.b16 %v4468
    %v4537 = vunpack.c.h.b16 %v4468
    %v4538 = vunpack.c.l.b16 %v4469
    %v4539 = vunpack.c.h.b16 %v4469
    %v4540 = vunpack.c.l.b16 %v4470
    %v4541 = vunpack.c.h.b16 %v4470
    %v4542 = vunpack.c.l.b16 %v4471
    %v4543 = vunpack.c.h.b16 %v4471
    %v4544 = vunpack.c.l.b16 %v4472
    %v4545 = vunpack.c.h.b16 %v4472
    %v4546 = vunpack.c.l.b16 %v4473
    %v4547 = vunpack.c.h.b16 %v4473
    %v4548 = vunpack.c.l.b16 %v4474
    %v4549 = vunpack.c.h.b16 %v4474
    %v4550 = vunpack.c.l.b16 %v4475
    %v4551 = vunpack.c.h.b16 %v4475
    %v4552 = vunpack.c.l.b16 %v4476
    %v4553 = vunpack.c.h.b16 %v4476
    %v4554 = vunpack.c.l.b16 %v4477
    %v4555 = vunpack.c.h.b16 %v4477
    %v4556 = vunpack.c.l.b16 %v4478
    %v4557 = vunpack.c.h.b16 %v4478
    %v4558 = vunpack.c.l.b16 %v4479
    %v4559 = vunpack.c.h.b16 %v4479
    %v4560 = vunpack.c.l.b16 %v4480
    %v4561 = vunpack.c.h.b16 %v4480
    %v4562 = vunpack.c.l.b16 %v4481
    %v4563 = vunpack.c.h.b16 %v4481
    %v4564 = vunpack.c.l.b16 %v4482
    %v4565 = vunpack.c.h.b16 %v4482
    %v4566 = vunpack.c.l.b16 %v4483
    %v4567 = vunpack.c.h.b16 %v4483
    %v4568 = vunpack.c.l.b16 %v4484
    %v4569 = vunpack.c.h.b16 %v4484
    %v4570 = vunpack.c.l.b16 %v4485
    %v4571 = vunpack.c.h.b16 %v4485
    %v4572 = vunpack.c.l.b16 %v4486
    %v4573 = vunpack.c.h.b16 %v4486
    %v4574 = vunpack.c.l.b16 %v4487
    %v4575 = vunpack.c.h.b16 %v4487
    %v4576 = vunpack.c.l.b16 %v4488
    %v4577 = vunpack.c.h.b16 %v4488
    %v4578 = vunpack.c.l.b16 %v4489
    %v4579 = vunpack.c.h.b16 %v4489
    %v4580 = vunpack.c.l.b16 %v4490
    %v4581 = vunpack.c.h.b16 %v4490
    %v4582 = vunpack.c.l.b16 %v4491
    %v4583 = vunpack.c.h.b16 %v4491
    %v4584 = vunpack.c.l.b16 %v4492
    %v4585 = vunpack.c.h.b16 %v4492
    %v4586 = vunpack.c.l.b16 %v4493
    %v4587 = vunpack.c.h.b16 %v4493
    %v4588 = vunpack.c.l.b16 %v4494
    %v4589 = vunpack.c.h.b16 %v4494
    %v4590 = vunpack.c.l.b16 %v4495
    %v4591 = vunpack.c.h.b16 %v4495
    %v4592 = vpack.c.b16 %v4532, %v4528
    %v4593 = vpack.c.b16 %v4533, %v4529
    %v4594 = vpack.c.b16 %v4534, %v4530
    %v4595 = vpack.c.b16 %v4535, %v4531
    %v4596 = vpack.c.b16 %v4540, %v4536
    %v4597 = vpack.c.b16 %v4541, %v4537
    %v4598 = vpack.c.b16 %v4542, %v4538
    %v4599 = vpack.c.b16 %v4543, %v4539
    %v4600 = vpack.c.b16 %v4548, %v4544
    %v4601 = vpack.c.b16 %v4549, %v4545
    %v4602 = vpack.c.b16 %v4550, %v4546
    %v4603 = vpack.c.b16 %v4551, %v4547
    %v4604 = vpack.c.b16 %v4556, %v4552
    %v4605 = vpack.c.b16 %v4557, %v4553
    %v4606 = vpack.c.b16 %v4558, %v4554
    %v4607 = vpack.c.b16 %v4559, %v4555
    %v4608 = vpack.c.b16 %v4564, %v4560
    %v4609 = vpack.c.b16 %v4565, %v4561
    %v4610 = vpack.c.b16 %v4566, %v4562
    %v4611 = vpack.c.b16 %v4567, %v4563
    %v4612 = vpack.c.b16 %v4572, %v4568
    %v4613 = vpack.c.b16 %v4573, %v4569
    %v4614 = vpack.c.b16 %v4574, %v4570
    %v4615 = vpack.c.b16 %v4575, %v4571
    %v4616 = vpack.c.b16 %v4580, %v4576
    %v4617 = vpack.c.b16 %v4581, %v4577
    %v4618 = vpack.c.b16 %v4582, %v4578
    %v4619 = vpack.c.b16 %v4583, %v4579
    %v4620 = vpack.c.b16 %v4588, %v4584
    %v4621 = vpack.c.b16 %v4589, %v4585
    %v4622 = vpack.c.b16 %v4590, %v4586
    %v4623 = vpack.c.b16 %v4591, %v4587
    %4656 = vmatpush.bf16.msra.mxu0 %v4620
    %4657 = vmatpush.bf16.msra.mxu0 %v4616
    %4658 = vmatpush.bf16.msra.mxu0 %v4612
    %4659 = vmatpush.bf16.msra.mxu0 %v4608
    %4660 = vmatpush.bf16.msra.mxu0 %v4604
    %4661 = vmatpush.bf16.msra.mxu0 %v4600
    %4662 = vmatpush.bf16.msra.mxu0 %v4596
    %4663 = vmatpush.bf16.msra.mxu0 %v4592
    %4664 = vmatmul.bf16.gmra.mxu0 %v4463
    %v4665 = vpop.f32.mrf.mxu0
    %v4666 = vadd.f32 0.0, %v4665
    %v4667 = vpop.f32.mrf.mxu0
    %4668 = vdwg.mxu0
    %4669 = vmatpush.bf16.msra.mxu0 %v4621
    %4670 = vmatpush.bf16.msra.mxu0 %v4617
    %4671 = vmatpush.bf16.msra.mxu0 %v4613
    %4672 = vmatpush.bf16.msra.mxu0 %v4609
    %4673 = vmatpush.bf16.msra.mxu0 %v4605
    %4674 = vmatpush.bf16.msra.mxu0 %v4601
    %4675 = vmatpush.bf16.msra.mxu0 %v4597
    %4676 = vmatpush.bf16.msra.mxu0 %v4593
    %4677 = vmatmul.bf16.gmra.mxu0 %v4463
    %v4678 = vpop.f32.mrf.mxu0
    %v4679 = vadd.f32 0.0, %v4678
    %v4680 = vpop.f32.mrf.mxu0
    %4681 = vdwg.mxu0
    %4682 = vmatpush.bf16.msra.mxu0 %v4622
    %4683 = vmatpush.bf16.msra.mxu0 %v4618
    %4684 = vmatpush.bf16.msra.mxu0 %v4614
    %4685 = vmatpush.bf16.msra.mxu0 %v4610
    %4686 = vmatpush.bf16.msra.mxu0 %v4606
    %4687 = vmatpush.bf16.msra.mxu0 %v4602
    %4688 = vmatpush.bf16.msra.mxu0 %v4598
    %4689 = vmatpush.bf16.msra.mxu0 %v4594
    %4690 = vmatmul.bf16.gmra.mxu0 %v4463
    %v4691 = vpop.f32.mrf.mxu0
    %v4692 = vadd.f32 0.0, %v4691
    %v4693 = vpop.f32.mrf.mxu0
    %4694 = vdwg.mxu0
    %4695 = vmatpush.bf16.msra.mxu0 %v4623
    %4696 = vmatpush.bf16.msra.mxu0 %v4619
    %4697 = vmatpush.bf16.msra.mxu0 %v4615
    %4698 = vmatpush.bf16.msra.mxu0 %v4611
    %4699 = vmatpush.bf16.msra.mxu0 %v4607
    %4700 = vmatpush.bf16.msra.mxu0 %v4603
    %4701 = vmatpush.bf16.msra.mxu0 %v4599
    %4702 = vmatpush.bf16.msra.mxu0 %v4595
    %4703 = vmatmul.bf16.gmra.mxu0 %v4463
    %v4704 = vpop.f32.mrf.mxu0
    %v4705 = vadd.f32 0.0, %v4704
    %v4706 = vpop.f32.mrf.mxu0
    %4707 = vdwg.mxu0
    %v4708 = vadd.f32 %v4459, %v4666
    %v4709 = vadd.f32 %v4460, %v4679
    %v4710 = vadd.f32 %v4461, %v4692
    %v4711 = vadd.f32 %v4462, %v4705
    %v4712 = vmul.f32 %v4708, 0.5
    %v4713 = vtanh.pop %v4712
    %v4714 = vmul.f32 %v4713, 0.5
    %v4715 = vadd.f32 %v4714, 0.5
    %v4716 = vmul.f32 %v4709, 0.5
    %v4717 = vtanh.pop %v4716
    %v4718 = vmul.f32 %v4717, 0.5
    %v4719 = vadd.f32 %v4718, 0.5
    %v4720 = vtanh.pop %v4710
    %v4721 = vmul.f32 %v4711, 0.5
    %v4722 = vtanh.pop %v4721
    %v4723 = vmul.f32 %v4722, 0.5
    %v4724 = vadd.f32 %v4723, 0.5
    %v4725 = vmul.f32 %v4719, %v4455
    %v4726 = vmul.f32 %v4715, %v4720
    %v4727 = vadd.f32 %v4725, %v4726
    %v4728 = vtanh.pop %v4727
    %v4729 = vmul.f32 %v4724, %v4728
    %4730 = vst [vmem:[#allocation3 + $0x28] sm:$0xff] %v4729
    %v4731 = vld [vmem:[#allocation2 + $0xc0] sm:$0xff]
    %v4732 = vld [vmem:[#allocation2 + $0xc8] sm:$0xff]
    %v4733 = vld [vmem:[#allocation2 + $0xd0] sm:$0xff]
    %v4734 = vld [vmem:[#allocation2 + $0xd8] sm:$0xff]
    %v4735 = vpack.c.bf16 %v4729, %v4729
    %v4736 = vld [vmem:[#allocation13] sm:$0xff]
    %v4737 = vld [vmem:[#allocation13 + $0x8] sm:$0xff]
    %v4738 = vld [vmem:[#allocation13 + $0x10] sm:$0xff]
    %v4739 = vld [vmem:[#allocation13 + $0x18] sm:$0xff]
    %v4740 = vld [vmem:[#allocation13 + $0x20] sm:$0xff]
    %v4741 = vld [vmem:[#allocation13 + $0x28] sm:$0xff]
    %v4742 = vld [vmem:[#allocation13 + $0x30] sm:$0xff]
    %v4743 = vld [vmem:[#allocation13 + $0x38] sm:$0xff]
    %v4744 = vld [vmem:[#allocation13 + $0x40] sm:$0xff]
    %v4745 = vld [vmem:[#allocation13 + $0x48] sm:$0xff]
    %v4746 = vld [vmem:[#allocation13 + $0x50] sm:$0xff]
    %v4747 = vld [vmem:[#allocation13 + $0x58] sm:$0xff]
    %v4748 = vld [vmem:[#allocation13 + $0x60] sm:$0xff]
    %v4749 = vld [vmem:[#allocation13 + $0x68] sm:$0xff]
    %v4750 = vld [vmem:[#allocation13 + $0x70] sm:$0xff]
    %v4751 = vld [vmem:[#allocation13 + $0x78] sm:$0xff]
    %v4752 = vld [vmem:[#allocation13 + $0x80] sm:$0xff]
    %v4753 = vld [vmem:[#allocation13 + $0x88] sm:$0xff]
    %v4754 = vld [vmem:[#allocation13 + $0x90] sm:$0xff]
    %v4755 = vld [vmem:[#allocation13 + $0x98] sm:$0xff]
    %v4756 = vld [vmem:[#allocation13 + $0xa0] sm:$0xff]
    %v4757 = vld [vmem:[#allocation13 + $0xa8] sm:$0xff]
    %v4758 = vld [vmem:[#allocation13 + $0xb0] sm:$0xff]
    %v4759 = vld [vmem:[#allocation13 + $0xb8] sm:$0xff]
    %v4760 = vld [vmem:[#allocation13 + $0xc0] sm:$0xff]
    %v4761 = vld [vmem:[#allocation13 + $0xc8] sm:$0xff]
    %v4762 = vld [vmem:[#allocation13 + $0xd0] sm:$0xff]
    %v4763 = vld [vmem:[#allocation13 + $0xd8] sm:$0xff]
    %v4764 = vld [vmem:[#allocation13 + $0xe0] sm:$0xff]
    %v4765 = vld [vmem:[#allocation13 + $0xe8] sm:$0xff]
    %v4766 = vld [vmem:[#allocation13 + $0xf0] sm:$0xff]
    %v4767 = vld [vmem:[#allocation13 + $0xf8] sm:$0xff]
    %v4800 = vunpack.c.l.b16 %v4736
    %v4801 = vunpack.c.h.b16 %v4736
    %v4802 = vunpack.c.l.b16 %v4737
    %v4803 = vunpack.c.h.b16 %v4737
    %v4804 = vunpack.c.l.b16 %v4738
    %v4805 = vunpack.c.h.b16 %v4738
    %v4806 = vunpack.c.l.b16 %v4739
    %v4807 = vunpack.c.h.b16 %v4739
    %v4808 = vunpack.c.l.b16 %v4740
    %v4809 = vunpack.c.h.b16 %v4740
    %v4810 = vunpack.c.l.b16 %v4741
    %v4811 = vunpack.c.h.b16 %v4741
    %v4812 = vunpack.c.l.b16 %v4742
    %v4813 = vunpack.c.h.b16 %v4742
    %v4814 = vunpack.c.l.b16 %v4743
    %v4815 = vunpack.c.h.b16 %v4743
    %v4816 = vunpack.c.l.b16 %v4744
    %v4817 = vunpack.c.h.b16 %v4744
    %v4818 = vunpack.c.l.b16 %v4745
    %v4819 = vunpack.c.h.b16 %v4745
    %v4820 = vunpack.c.l.b16 %v4746
    %v4821 = vunpack.c.h.b16 %v4746
    %v4822 = vunpack.c.l.b16 %v4747
    %v4823 = vunpack.c.h.b16 %v4747
    %v4824 = vunpack.c.l.b16 %v4748
    %v4825 = vunpack.c.h.b16 %v4748
    %v4826 = vunpack.c.l.b16 %v4749
    %v4827 = vunpack.c.h.b16 %v4749
    %v4828 = vunpack.c.l.b16 %v4750
    %v4829 = vunpack.c.h.b16 %v4750
    %v4830 = vunpack.c.l.b16 %v4751
    %v4831 = vunpack.c.h.b16 %v4751
    %v4832 = vunpack.c.l.b16 %v4752
    %v4833 = vunpack.c.h.b16 %v4752
    %v4834 = vunpack.c.l.b16 %v4753
    %v4835 = vunpack.c.h.b16 %v4753
    %v4836 = vunpack.c.l.b16 %v4754
    %v4837 = vunpack.c.h.b16 %v4754
    %v4838 = vunpack.c.l.b16 %v4755
    %v4839 = vunpack.c.h.b16 %v4755
    %v4840 = vunpack.c.l.b16 %v4756
    %v4841 = vunpack.c.h.b16 %v4756
    %v4842 = vunpack.c.l.b16 %v4757
    %v4843 = vunpack.c.h.b16 %v4757
    %v4844 = vunpack.c.l.b16 %v4758
    %v4845 = vunpack.c.h.b16 %v4758
    %v4846 = vunpack.c.l.b16 %v4759
    %v4847 = vunpack.c.h.b16 %v4759
    %v4848 = vunpack.c.l.b16 %v4760
    %v4849 = vunpack.c.h.b16 %v4760
    %v4850 = vunpack.c.l.b16 %v4761
    %v4851 = vunpack.c.h.b16 %v4761
    %v4852 = vunpack.c.l.b16 %v4762
    %v4853 = vunpack.c.h.b16 %v4762
    %v4854 = vunpack.c.l.b16 %v4763
    %v4855 = vunpack.c.h.b16 %v4763
    %v4856 = vunpack.c.l.b16 %v4764
    %v4857 = vunpack.c.h.b16 %v4764
    %v4858 = vunpack.c.l.b16 %v4765
    %v4859 = vunpack.c.h.b16 %v4765
    %v4860 = vunpack.c.l.b16 %v4766
    %v4861 = vunpack.c.h.b16 %v4766
    %v4862 = vunpack.c.l.b16 %v4767
    %v4863 = vunpack.c.h.b16 %v4767
    %v4864 = vpack.c.b16 %v4804, %v4800
    %v4865 = vpack.c.b16 %v4805, %v4801
    %v4866 = vpack.c.b16 %v4806, %v4802
    %v4867 = vpack.c.b16 %v4807, %v4803
    %v4868 = vpack.c.b16 %v4812, %v4808
    %v4869 = vpack.c.b16 %v4813, %v4809
    %v4870 = vpack.c.b16 %v4814, %v4810
    %v4871 = vpack.c.b16 %v4815, %v4811
    %v4872 = vpack.c.b16 %v4820, %v4816
    %v4873 = vpack.c.b16 %v4821, %v4817
    %v4874 = vpack.c.b16 %v4822, %v4818
    %v4875 = vpack.c.b16 %v4823, %v4819
    %v4876 = vpack.c.b16 %v4828, %v4824
    %v4877 = vpack.c.b16 %v4829, %v4825
    %v4878 = vpack.c.b16 %v4830, %v4826
    %v4879 = vpack.c.b16 %v4831, %v4827
    %v4880 = vpack.c.b16 %v4836, %v4832
    %v4881 = vpack.c.b16 %v4837, %v4833
    %v4882 = vpack.c.b16 %v4838, %v4834
    %v4883 = vpack.c.b16 %v4839, %v4835
    %v4884 = vpack.c.b16 %v4844, %v4840
    %v4885 = vpack.c.b16 %v4845, %v4841
    %v4886 = vpack.c.b16 %v4846, %v4842
    %v4887 = vpack.c.b16 %v4847, %v4843
    %v4888 = vpack.c.b16 %v4852, %v4848
    %v4889 = vpack.c.b16 %v4853, %v4849
    %v4890 = vpack.c.b16 %v4854, %v4850
    %v4891 = vpack.c.b16 %v4855, %v4851
    %v4892 = vpack.c.b16 %v4860, %v4856
    %v4893 = vpack.c.b16 %v4861, %v4857
    %v4894 = vpack.c.b16 %v4862, %v4858
    %v4895 = vpack.c.b16 %v4863, %v4859
    %4928 = vmatpush.bf16.msra.mxu0 %v4892
    %4929 = vmatpush.bf16.msra.mxu0 %v4888
    %4930 = vmatpush.bf16.msra.mxu0 %v4884
    %4931 = vmatpush.bf16.msra.mxu0 %v4880
    %4932 = vmatpush.bf16.msra.mxu0 %v4876
    %4933 = vmatpush.bf16.msra.mxu0 %v4872
    %4934 = vmatpush.bf16.msra.mxu0 %v4868
    %4935 = vmatpush.bf16.msra.mxu0 %v4864
    %4936 = vmatmul.bf16.gmra.mxu0 %v4735
    %v4937 = vpop.f32.mrf.mxu0
    %v4938 = vadd.f32 0.0, %v4937
    %v4939 = vpop.f32.mrf.mxu0
    %4940 = vdwg.mxu0
    %4941 = vmatpush.bf16.msra.mxu0 %v4893
    %4942 = vmatpush.bf16.msra.mxu0 %v4889
    %4943 = vmatpush.bf16.msra.mxu0 %v4885
    %4944 = vmatpush.bf16.msra.mxu0 %v4881
    %4945 = vmatpush.bf16.msra.mxu0 %v4877
    %4946 = vmatpush.bf16.msra.mxu0 %v4873
    %4947 = vmatpush.bf16.msra.mxu0 %v4869
    %4948 = vmatpush.bf16.msra.mxu0 %v4865
    %4949 = vmatmul.bf16.gmra.mxu0 %v4735
    %v4950 = vpop.f32.mrf.mxu0
    %v4951 = vadd.f32 0.0, %v4950
    %v4952 = vpop.f32.mrf.mxu0
    %4953 = vdwg.mxu0
    %4954 = vmatpush.bf16.msra.mxu0 %v4894
    %4955 = vmatpush.bf16.msra.mxu0 %v4890
    %4956 = vmatpush.bf16.msra.mxu0 %v4886
    %4957 = vmatpush.bf16.msra.mxu0 %v4882
    %4958 = vmatpush.bf16.msra.mxu0 %v4878
    %4959 = vmatpush.bf16.msra.mxu0 %v4874
    %4960 = vmatpush.bf16.msra.mxu0 %v4870
    %4961 = vmatpush.bf16.msra.mxu0 %v4866
    %4962 = vmatmul.bf16.gmra.mxu0 %v4735
    %v4963 = vpop.f32.mrf.mxu0
    %v4964 = vadd.f32 0.0, %v4963
    %v4965 = vpop.f32.mrf.mxu0
    %4966 = vdwg.mxu0
    %4967 = vmatpush.bf16.msra.mxu0 %v4895
    %4968 = vmatpush.bf16.msra.mxu0 %v4891
    %4969 = vmatpush.bf16.msra.mxu0 %v4887
    %4970 = vmatpush.bf16.msra.mxu0 %v4883
    %4971 = vmatpush.bf16.msra.mxu0 %v4879
    %4972 = vmatpush.bf16.msra.mxu0 %v4875
    %4973 = vmatpush.bf16.msra.mxu0 %v4871
    %4974 = vmatpush.bf16.msra.mxu0 %v4867
    %4975 = vmatmul.bf16.gmra.mxu0 %v4735
    %v4976 = vpop.f32.mrf.mxu0
    %v4977 = vadd.f32 0.0, %v4976
    %v4978 = vpop.f32.mrf.mxu0
    %4979 = vdwg.mxu0
    %v4980 = vadd.f32 %v4731, %v4938
    %v4981 = vadd.f32 %v4732, %v4951
    %v4982 = vadd.f32 %v4733, %v4964
    %v4983 = vadd.f32 %v4734, %v4977
    %v4984 = vmul.f32 %v4980, 0.5
    %v4985 = vtanh.pop %v4984
    %v4986 = vmul.f32 %v4985, 0.5
    %v4987 = vadd.f32 %v4986, 0.5
    %v4988 = vmul.f32 %v4981, 0.5
    %v4989 = vtanh.pop %v4988
    %v4990 = vmul.f32 %v4989, 0.5
    %v4991 = vadd.f32 %v4990, 0.5
    %v4992 = vtanh.pop %v4982
    %v4993 = vmul.f32 %v4983, 0.5
    %v4994 = vtanh.pop %v4993
    %v4995 = vmul.f32 %v4994, 0.5
    %v4996 = vadd.f32 %v4995, 0.5
    %v4997 = vmul.f32 %v4991, %v4727
    %v4998 = vmul.f32 %v4987, %v4992
    %v4999 = vadd.f32 %v4997, %v4998
    %v5000 = vtanh.pop %v4999
    %v5001 = vmul.f32 %v4996, %v5000
    %5002 = vst [vmem:[#allocation3 + $0x30] sm:$0xff] %v5001
    %v5003 = vld [vmem:[#allocation2 + $0xe0] sm:$0xff]
    %v5004 = vld [vmem:[#allocation2 + $0xe8] sm:$0xff]
    %v5005 = vld [vmem:[#allocation2 + $0xf0] sm:$0xff]
    %v5006 = vld [vmem:[#allocation2 + $0xf8] sm:$0xff]
    %v5007 = vpack.c.bf16 %v5001, %v5001
    %v5008 = vld [vmem:[#allocation13] sm:$0xff]
    %v5009 = vld [vmem:[#allocation13 + $0x8] sm:$0xff]
    %v5010 = vld [vmem:[#allocation13 + $0x10] sm:$0xff]
    %v5011 = vld [vmem:[#allocation13 + $0x18] sm:$0xff]
    %v5012 = vld [vmem:[#allocation13 + $0x20] sm:$0xff]
    %v5013 = vld [vmem:[#allocation13 + $0x28] sm:$0xff]
    %v5014 = vld [vmem:[#allocation13 + $0x30] sm:$0xff]
    %v5015 = vld [vmem:[#allocation13 + $0x38] sm:$0xff]
    %v5016 = vld [vmem:[#allocation13 + $0x40] sm:$0xff]
    %v5017 = vld [vmem:[#allocation13 + $0x48] sm:$0xff]
    %v5018 = vld [vmem:[#allocation13 + $0x50] sm:$0xff]
    %v5019 = vld [vmem:[#allocation13 + $0x58] sm:$0xff]
    %v5020 = vld [vmem:[#allocation13 + $0x60] sm:$0xff]
    %v5021 = vld [vmem:[#allocation13 + $0x68] sm:$0xff]
    %v5022 = vld [vmem:[#allocation13 + $0x70] sm:$0xff]
    %v5023 = vld [vmem:[#allocation13 + $0x78] sm:$0xff]
    %v5024 = vld [vmem:[#allocation13 + $0x80] sm:$0xff]
    %v5025 = vld [vmem:[#allocation13 + $0x88] sm:$0xff]
    %v5026 = vld [vmem:[#allocation13 + $0x90] sm:$0xff]
    %v5027 = vld [vmem:[#allocation13 + $0x98] sm:$0xff]
    %v5028 = vld [vmem:[#allocation13 + $0xa0] sm:$0xff]
    %v5029 = vld [vmem:[#allocation13 + $0xa8] sm:$0xff]
    %v5030 = vld [vmem:[#allocation13 + $0xb0] sm:$0xff]
    %v5031 = vld [vmem:[#allocation13 + $0xb8] sm:$0xff]
    %v5032 = vld [vmem:[#allocation13 + $0xc0] sm:$0xff]
    %v5033 = vld [vmem:[#allocation13 + $0xc8] sm:$0xff]
    %v5034 = vld [vmem:[#allocation13 + $0xd0] sm:$0xff]
    %v5035 = vld [vmem:[#allocation13 + $0xd8] sm:$0xff]
    %v5036 = vld [vmem:[#allocation13 + $0xe0] sm:$0xff]
    %v5037 = vld [vmem:[#allocation13 + $0xe8] sm:$0xff]
    %v5038 = vld [vmem:[#allocation13 + $0xf0] sm:$0xff]
    %v5039 = vld [vmem:[#allocation13 + $0xf8] sm:$0xff]
    %v5072 = vunpack.c.l.b16 %v5008
    %v5073 = vunpack.c.h.b16 %v5008
    %v5074 = vunpack.c.l.b16 %v5009
    %v5075 = vunpack.c.h.b16 %v5009
    %v5076 = vunpack.c.l.b16 %v5010
    %v5077 = vunpack.c.h.b16 %v5010
    %v5078 = vunpack.c.l.b16 %v5011
    %v5079 = vunpack.c.h.b16 %v5011
    %v5080 = vunpack.c.l.b16 %v5012
    %v5081 = vunpack.c.h.b16 %v5012
    %v5082 = vunpack.c.l.b16 %v5013
    %v5083 = vunpack.c.h.b16 %v5013
    %v5084 = vunpack.c.l.b16 %v5014
    %v5085 = vunpack.c.h.b16 %v5014
    %v5086 = vunpack.c.l.b16 %v5015
    %v5087 = vunpack.c.h.b16 %v5015
    %v5088 = vunpack.c.l.b16 %v5016
    %v5089 = vunpack.c.h.b16 %v5016
    %v5090 = vunpack.c.l.b16 %v5017
    %v5091 = vunpack.c.h.b16 %v5017
    %v5092 = vunpack.c.l.b16 %v5018
    %v5093 = vunpack.c.h.b16 %v5018
    %v5094 = vunpack.c.l.b16 %v5019
    %v5095 = vunpack.c.h.b16 %v5019
    %v5096 = vunpack.c.l.b16 %v5020
    %v5097 = vunpack.c.h.b16 %v5020
    %v5098 = vunpack.c.l.b16 %v5021
    %v5099 = vunpack.c.h.b16 %v5021
    %v5100 = vunpack.c.l.b16 %v5022
    %v5101 = vunpack.c.h.b16 %v5022
    %v5102 = vunpack.c.l.b16 %v5023
    %v5103 = vunpack.c.h.b16 %v5023
    %v5104 = vunpack.c.l.b16 %v5024
    %v5105 = vunpack.c.h.b16 %v5024
    %v5106 = vunpack.c.l.b16 %v5025
    %v5107 = vunpack.c.h.b16 %v5025
    %v5108 = vunpack.c.l.b16 %v5026
    %v5109 = vunpack.c.h.b16 %v5026
    %v5110 = vunpack.c.l.b16 %v5027
    %v5111 = vunpack.c.h.b16 %v5027
    %v5112 = vunpack.c.l.b16 %v5028
    %v5113 = vunpack.c.h.b16 %v5028
    %v5114 = vunpack.c.l.b16 %v5029
    %v5115 = vunpack.c.h.b16 %v5029
    %v5116 = vunpack.c.l.b16 %v5030
    %v5117 = vunpack.c.h.b16 %v5030
    %v5118 = vunpack.c.l.b16 %v5031
    %v5119 = vunpack.c.h.b16 %v5031
    %v5120 = vunpack.c.l.b16 %v5032
    %v5121 = vunpack.c.h.b16 %v5032
    %v5122 = vunpack.c.l.b16 %v5033
    %v5123 = vunpack.c.h.b16 %v5033
    %v5124 = vunpack.c.l.b16 %v5034
    %v5125 = vunpack.c.h.b16 %v5034
    %v5126 = vunpack.c.l.b16 %v5035
    %v5127 = vunpack.c.h.b16 %v5035
    %v5128 = vunpack.c.l.b16 %v5036
    %v5129 = vunpack.c.h.b16 %v5036
    %v5130 = vunpack.c.l.b16 %v5037
    %v5131 = vunpack.c.h.b16 %v5037
    %v5132 = vunpack.c.l.b16 %v5038
    %v5133 = vunpack.c.h.b16 %v5038
    %v5134 = vunpack.c.l.b16 %v5039
    %v5135 = vunpack.c.h.b16 %v5039
    %v5136 = vpack.c.b16 %v5076, %v5072
    %v5137 = vpack.c.b16 %v5077, %v5073
    %v5138 = vpack.c.b16 %v5078, %v5074
    %v5139 = vpack.c.b16 %v5079, %v5075
    %v5140 = vpack.c.b16 %v5084, %v5080
    %v5141 = vpack.c.b16 %v5085, %v5081
    %v5142 = vpack.c.b16 %v5086, %v5082
    %v5143 = vpack.c.b16 %v5087, %v5083
    %v5144 = vpack.c.b16 %v5092, %v5088
    %v5145 = vpack.c.b16 %v5093, %v5089
    %v5146 = vpack.c.b16 %v5094, %v5090
    %v5147 = vpack.c.b16 %v5095, %v5091
    %v5148 = vpack.c.b16 %v5100, %v5096
    %v5149 = vpack.c.b16 %v5101, %v5097
    %v5150 = vpack.c.b16 %v5102, %v5098
    %v5151 = vpack.c.b16 %v5103, %v5099
    %v5152 = vpack.c.b16 %v5108, %v5104
    %v5153 = vpack.c.b16 %v5109, %v5105
    %v5154 = vpack.c.b16 %v5110, %v5106
    %v5155 = vpack.c.b16 %v5111, %v5107
    %v5156 = vpack.c.b16 %v5116, %v5112
    %v5157 = vpack.c.b16 %v5117, %v5113
    %v5158 = vpack.c.b16 %v5118, %v5114
    %v5159 = vpack.c.b16 %v5119, %v5115
    %v5160 = vpack.c.b16 %v5124, %v5120
    %v5161 = vpack.c.b16 %v5125, %v5121
    %v5162 = vpack.c.b16 %v5126, %v5122
    %v5163 = vpack.c.b16 %v5127, %v5123
    %v5164 = vpack.c.b16 %v5132, %v5128
    %v5165 = vpack.c.b16 %v5133, %v5129
    %v5166 = vpack.c.b16 %v5134, %v5130
    %v5167 = vpack.c.b16 %v5135, %v5131
    %5200 = vmatpush.bf16.msra.mxu0 %v5164
    %5201 = vmatpush.bf16.msra.mxu0 %v5160
    %5202 = vmatpush.bf16.msra.mxu0 %v5156
    %5203 = vmatpush.bf16.msra.mxu0 %v5152
    %5204 = vmatpush.bf16.msra.mxu0 %v5148
    %5205 = vmatpush.bf16.msra.mxu0 %v5144
    %5206 = vmatpush.bf16.msra.mxu0 %v5140
    %5207 = vmatpush.bf16.msra.mxu0 %v5136
    %5208 = vmatmul.bf16.gmra.mxu0 %v5007
    %v5209 = vpop.f32.mrf.mxu0
    %v5210 = vadd.f32 0.0, %v5209
    %v5211 = vpop.f32.mrf.mxu0
    %5212 = vdwg.mxu0
    %5213 = vmatpush.bf16.msra.mxu0 %v5165
    %5214 = vmatpush.bf16.msra.mxu0 %v5161
    %5215 = vmatpush.bf16.msra.mxu0 %v5157
    %5216 = vmatpush.bf16.msra.mxu0 %v5153
    %5217 = vmatpush.bf16.msra.mxu0 %v5149
    %5218 = vmatpush.bf16.msra.mxu0 %v5145
    %5219 = vmatpush.bf16.msra.mxu0 %v5141
    %5220 = vmatpush.bf16.msra.mxu0 %v5137
    %5221 = vmatmul.bf16.gmra.mxu0 %v5007
    %v5222 = vpop.f32.mrf.mxu0
    %v5223 = vadd.f32 0.0, %v5222
    %v5224 = vpop.f32.mrf.mxu0
    %5225 = vdwg.mxu0
    %5226 = vmatpush.bf16.msra.mxu0 %v5166
    %5227 = vmatpush.bf16.msra.mxu0 %v5162
    %5228 = vmatpush.bf16.msra.mxu0 %v5158
    %5229 = vmatpush.bf16.msra.mxu0 %v5154
    %5230 = vmatpush.bf16.msra.mxu0 %v5150
    %5231 = vmatpush.bf16.msra.mxu0 %v5146
    %5232 = vmatpush.bf16.msra.mxu0 %v5142
    %5233 = vmatpush.bf16.msra.mxu0 %v5138
    %5234 = vmatmul.bf16.gmra.mxu0 %v5007
    %v5235 = vpop.f32.mrf.mxu0
    %v5236 = vadd.f32 0.0, %v5235
    %v5237 = vpop.f32.mrf.mxu0
    %5238 = vdwg.mxu0
    %5239 = vmatpush.bf16.msra.mxu0 %v5167
    %5240 = vmatpush.bf16.msra.mxu0 %v5163
    %5241 = vmatpush.bf16.msra.mxu0 %v5159
    %5242 = vmatpush.bf16.msra.mxu0 %v5155
    %5243 = vmatpush.bf16.msra.mxu0 %v5151
    %5244 = vmatpush.bf16.msra.mxu0 %v5147
    %5245 = vmatpush.bf16.msra.mxu0 %v5143
    %5246 = vmatpush.bf16.msra.mxu0 %v5139
    %5247 = vmatmul.bf16.gmra.mxu0 %v5007
    %v5248 = vpop.f32.mrf.mxu0
    %v5249 = vadd.f32 0.0, %v5248
    %v5250 = vpop.f32.mrf.mxu0
    %5251 = vdwg.mxu0
    %v5252 = vadd.f32 %v5003, %v5210
    %v5253 = vadd.f32 %v5004, %v5223
    %v5254 = vadd.f32 %v5005, %v5236
    %v5255 = vadd.f32 %v5006, %v5249
    %v5256 = vmul.f32 %v5252, 0.5
    %v5257 = vtanh.pop %v5256
    %v5258 = vmul.f32 %v5257, 0.5
    %v5259 = vadd.f32 %v5258, 0.5
    %v5260 = vmul.f32 %v5253, 0.5
    %v5261 = vtanh.pop %v5260
    %v5262 = vmul.f32 %v5261, 0.5
    %v5263 = vadd.f32 %v5262, 0.5
    %v5264 = vtanh.pop %v5254
    %v5265 = vmul.f32 %v5255, 0.5
    %v5266 = vtanh.pop %v5265
    %v5267 = vmul.f32 %v5266, 0.5
    %v5268 = vadd.f32 %v5267, 0.5
    %v5269 = vmul.f32 %v5263, %v4999
    %v5270 = vmul.f32 %v5259, %v5264
    %v5271 = vadd.f32 %v5269, %v5270
    %v5272 = vtanh.pop %v5271
    %v5273 = vmul.f32 %v5268, %v5272
    %5274 = vst [vmem:[#allocation3 + $0x38] sm:$0xff] %v5273
    %v5275 = vld [vmem:[#allocation3] sm:$0xff]
    %v5276 = vld [vmem:[#allocation3 + $0x8] sm:$0xff]
    %v5277 = vld [vmem:[#allocation3 + $0x10] sm:$0xff]
    %v5278 = vld [vmem:[#allocation3 + $0x18] sm:$0xff]
    %v5279 = vld [vmem:[#allocation3 + $0x20] sm:$0xff]
    %v5280 = vld [vmem:[#allocation3 + $0x28] sm:$0xff]
    %v5281 = vld [vmem:[#allocation3 + $0x30] sm:$0xff]
    %v5282 = vld [vmem:[#allocation3 + $0x38] sm:$0xff]
    %v5283 = vpack.c.bf16 %v5276, %v5275
    %v5284 = vpack.c.bf16 %v5278, %v5277
    %v5285 = vpack.c.bf16 %v5280, %v5279
    %v5286 = vpack.c.bf16 %v5282, %v5281
    %v5287 = vld [vmem:[#allocation15] sm:$0xff]
    %v5288 = vld [vmem:[#allocation15 + $0x8] sm:$0xff]
    %v5289 = vld [vmem:[#allocation15 + $0x10] sm:$0xff]
    %v5290 = vld [vmem:[#allocation15 + $0x18] sm:$0xff]
    %v5291 = vld [vmem:[#allocation15 + $0x20] sm:$0xff]
    %v5292 = vld [vmem:[#allocation15 + $0x28] sm:$0xff]
    %v5293 = vld [vmem:[#allocation15 + $0x30] sm:$0xff]
    %v5294 = vld [vmem:[#allocation15 + $0x38] sm:$0xff]
    %v5295 = vld [vmem:[#allocation15 + $0x40] sm:$0xff]
    %v5296 = vld [vmem:[#allocation15 + $0x48] sm:$0xff]
    %v5297 = vld [vmem:[#allocation15 + $0x50] sm:$0xff]
    %v5298 = vld [vmem:[#allocation15 + $0x58] sm:$0xff]
    %v5299 = vld [vmem:[#allocation15 + $0x60] sm:$0xff]
    %v5300 = vld [vmem:[#allocation15 + $0x68] sm:$0xff]
    %v5301 = vld [vmem:[#allocation15 + $0x70] sm:$0xff]
    %v5302 = vld [vmem:[#allocation15 + $0x78] sm:$0xff]
    %v5303 = vld [vmem:[#allocation15 + $0x80] sm:$0xff]
    %v5304 = vld [vmem:[#allocation15 + $0x88] sm:$0xff]
    %v5305 = vld [vmem:[#allocation15 + $0x90] sm:$0xff]
    %v5306 = vld [vmem:[#allocation15 + $0x98] sm:$0xff]
    %v5307 = vld [vmem:[#allocation15 + $0xa0] sm:$0xff]
    %v5308 = vld [vmem:[#allocation15 + $0xa8] sm:$0xff]
    %v5309 = vld [vmem:[#allocation15 + $0xb0] sm:$0xff]
    %v5310 = vld [vmem:[#allocation15 + $0xb8] sm:$0xff]
    %v5311 = vld [vmem:[#allocation15 + $0xc0] sm:$0xff]
    %v5312 = vld [vmem:[#allocation15 + $0xc8] sm:$0xff]
    %v5313 = vld [vmem:[#allocation15 + $0xd0] sm:$0xff]
    %v5314 = vld [vmem:[#allocation15 + $0xd8] sm:$0xff]
    %v5315 = vld [vmem:[#allocation15 + $0xe0] sm:$0xff]
    %v5316 = vld [vmem:[#allocation15 + $0xe8] sm:$0xff]
    %v5317 = vld [vmem:[#allocation15 + $0xf0] sm:$0xff]
    %v5318 = vld [vmem:[#allocation15 + $0xf8] sm:$0xff]
    %v5319 = vld [vmem:[%s9] sm:$0xf]
    %v5321 = vperm.slane %v5319, 0
    %v5322 = vperm.slane %v5319, 1
    %v5323 = vperm.slane %v5319, 2
    %v5324 = vperm.slane %v5319, 3
    %v5361 = vunpack.c.l.b16 %v5287
    %v5362 = vunpack.c.h.b16 %v5287
    %v5363 = vunpack.c.l.b16 %v5288
    %v5364 = vunpack.c.h.b16 %v5288
    %v5365 = vunpack.c.l.b16 %v5289
    %v5366 = vunpack.c.h.b16 %v5289
    %v5367 = vunpack.c.l.b16 %v5290
    %v5368 = vunpack.c.h.b16 %v5290
    %v5369 = vunpack.c.l.b16 %v5291
    %v5370 = vunpack.c.h.b16 %v5291
    %v5371 = vunpack.c.l.b16 %v5292
    %v5372 = vunpack.c.h.b16 %v5292
    %v5373 = vunpack.c.l.b16 %v5293
    %v5374 = vunpack.c.h.b16 %v5293
    %v5375 = vunpack.c.l.b16 %v5294
    %v5376 = vunpack.c.h.b16 %v5294
    %v5377 = vunpack.c.l.b16 %v5295
    %v5378 = vunpack.c.h.b16 %v5295
    %v5379 = vunpack.c.l.b16 %v5296
    %v5380 = vunpack.c.h.b16 %v5296
    %v5381 = vunpack.c.l.b16 %v5297
    %v5382 = vunpack.c.h.b16 %v5297
    %v5383 = vunpack.c.l.b16 %v5298
    %v5384 = vunpack.c.h.b16 %v5298
    %v5385 = vunpack.c.l.b16 %v5299
    %v5386 = vunpack.c.h.b16 %v5299
    %v5387 = vunpack.c.l.b16 %v5300
    %v5388 = vunpack.c.h.b16 %v5300
    %v5389 = vunpack.c.l.b16 %v5301
    %v5390 = vunpack.c.h.b16 %v5301
    %v5391 = vunpack.c.l.b16 %v5302
    %v5392 = vunpack.c.h.b16 %v5302
    %v5393 = vunpack.c.l.b16 %v5303
    %v5394 = vunpack.c.h.b16 %v5303
    %v5395 = vunpack.c.l.b16 %v5304
    %v5396 = vunpack.c.h.b16 %v5304
    %v5397 = vunpack.c.l.b16 %v5305
    %v5398 = vunpack.c.h.b16 %v5305
    %v5399 = vunpack.c.l.b16 %v5306
    %v5400 = vunpack.c.h.b16 %v5306
    %v5401 = vunpack.c.l.b16 %v5307
    %v5402 = vunpack.c.h.b16 %v5307
    %v5403 = vunpack.c.l.b16 %v5308
    %v5404 = vunpack.c.h.b16 %v5308
    %v5405 = vunpack.c.l.b16 %v5309
    %v5406 = vunpack.c.h.b16 %v5309
    %v5407 = vunpack.c.l.b16 %v5310
    %v5408 = vunpack.c.h.b16 %v5310
    %v5409 = vunpack.c.l.b16 %v5311
    %v5410 = vunpack.c.h.b16 %v5311
    %v5411 = vunpack.c.l.b16 %v5312
    %v5412 = vunpack.c.h.b16 %v5312
    %v5413 = vunpack.c.l.b16 %v5313
    %v5414 = vunpack.c.h.b16 %v5313
    %v5415 = vunpack.c.l.b16 %v5314
    %v5416 = vunpack.c.h.b16 %v5314
    %v5417 = vunpack.c.l.b16 %v5315
    %v5418 = vunpack.c.h.b16 %v5315
    %v5419 = vunpack.c.l.b16 %v5316
    %v5420 = vunpack.c.h.b16 %v5316
    %v5421 = vunpack.c.l.b16 %v5317
    %v5422 = vunpack.c.h.b16 %v5317
    %v5423 = vunpack.c.l.b16 %v5318
    %v5424 = vunpack.c.h.b16 %v5318
    %v5425 = vpack.c.b16 %v5365, %v5361
    %v5426 = vpack.c.b16 %v5366, %v5362
    %v5427 = vpack.c.b16 %v5367, %v5363
    %v5428 = vpack.c.b16 %v5368, %v5364
    %v5429 = vpack.c.b16 %v5373, %v5369
    %v5430 = vpack.c.b16 %v5374, %v5370
    %v5431 = vpack.c.b16 %v5375, %v5371
    %v5432 = vpack.c.b16 %v5376, %v5372
    %v5433 = vpack.c.b16 %v5381, %v5377
    %v5434 = vpack.c.b16 %v5382, %v5378
    %v5435 = vpack.c.b16 %v5383, %v5379
    %v5436 = vpack.c.b16 %v5384, %v5380
    %v5437 = vpack.c.b16 %v5389, %v5385
    %v5438 = vpack.c.b16 %v5390, %v5386
    %v5439 = vpack.c.b16 %v5391, %v5387
    %v5440 = vpack.c.b16 %v5392, %v5388
    %v5441 = vpack.c.b16 %v5397, %v5393
    %v5442 = vpack.c.b16 %v5398, %v5394
    %v5443 = vpack.c.b16 %v5399, %v5395
    %v5444 = vpack.c.b16 %v5400, %v5396
    %v5445 = vpack.c.b16 %v5405, %v5401
    %v5446 = vpack.c.b16 %v5406, %v5402
    %v5447 = vpack.c.b16 %v5407, %v5403
    %v5448 = vpack.c.b16 %v5408, %v5404
    %v5449 = vpack.c.b16 %v5413, %v5409
    %v5450 = vpack.c.b16 %v5414, %v5410
    %v5451 = vpack.c.b16 %v5415, %v5411
    %v5452 = vpack.c.b16 %v5416, %v5412
    %v5453 = vpack.c.b16 %v5421, %v5417
    %v5454 = vpack.c.b16 %v5422, %v5418
    %v5455 = vpack.c.b16 %v5423, %v5419
    %v5456 = vpack.c.b16 %v5424, %v5420
    %5489 = vmatpush.bf16.msra.mxu0 %v5453
    %5490 = vmatpush.bf16.msra.mxu0 %v5449
    %5491 = vmatpush.bf16.msra.mxu0 %v5445
    %5492 = vmatpush.bf16.msra.mxu0 %v5441
    %5493 = vmatpush.bf16.msra.mxu0 %v5437
    %5494 = vmatpush.bf16.msra.mxu0 %v5433
    %5495 = vmatpush.bf16.msra.mxu0 %v5429
    %5496 = vmatpush.bf16.msra.mxu0 %v5425
    %5497 = vmatmul.bf16.gmra.mxu0 %v5283
    %v5498 = vpop.f32.mrf.mxu0
    %v5499 = vadd.f32 %v5321, %v5498
    %v5500 = vpop.f32.mrf.mxu0
    %v5501 = vadd.f32 %v5321, %v5500
    %5502 = vmatmul.bf16.gmra.mxu0 %v5284
    %v5503 = vpop.f32.mrf.mxu0
    %v5504 = vadd.f32 %v5321, %v5503
    %v5505 = vpop.f32.mrf.mxu0
    %v5506 = vadd.f32 %v5321, %v5505
    %5507 = vmatmul.bf16.gmra.mxu0 %v5285
    %v5508 = vpop.f32.mrf.mxu0
    %v5509 = vadd.f32 %v5321, %v5508
    %v5510 = vpop.f32.mrf.mxu0
    %v5511 = vadd.f32 %v5321, %v5510
    %5512 = vmatmul.bf16.gmra.mxu0 %v5286
    %v5513 = vpop.f32.mrf.mxu0
    %v5514 = vadd.f32 %v5321, %v5513
    %v5515 = vpop.f32.mrf.mxu0
    %v5516 = vadd.f32 %v5321, %v5515
    %5517 = vdwg.mxu0
    %5518 = vmatpush.bf16.msra.mxu0 %v5454
    %5519 = vmatpush.bf16.msra.mxu0 %v5450
    %5520 = vmatpush.bf16.msra.mxu0 %v5446
    %5521 = vmatpush.bf16.msra.mxu0 %v5442
    %5522 = vmatpush.bf16.msra.mxu0 %v5438
    %5523 = vmatpush.bf16.msra.mxu0 %v5434
    %5524 = vmatpush.bf16.msra.mxu0 %v5430
    %5525 = vmatpush.bf16.msra.mxu0 %v5426
    %5526 = vmatmul.bf16.gmra.mxu0 %v5283
    %v5527 = vpop.f32.mrf.mxu0
    %v5528 = vadd.f32 %v5322, %v5527
    %v5529 = vpop.f32.mrf.mxu0
    %v5530 = vadd.f32 %v5322, %v5529
    %5531 = vmatmul.bf16.gmra.mxu0 %v5284
    %v5532 = vpop.f32.mrf.mxu0
    %v5533 = vadd.f32 %v5322, %v5532
    %v5534 = vpop.f32.mrf.mxu0
    %v5535 = vadd.f32 %v5322, %v5534
    %5536 = vmatmul.bf16.gmra.mxu0 %v5285
    %v5537 = vpop.f32.mrf.mxu0
    %v5538 = vadd.f32 %v5322, %v5537
    %v5539 = vpop.f32.mrf.mxu0
    %v5540 = vadd.f32 %v5322, %v5539
    %5541 = vmatmul.bf16.gmra.mxu0 %v5286
    %v5542 = vpop.f32.mrf.mxu0
    %v5543 = vadd.f32 %v5322, %v5542
    %v5544 = vpop.f32.mrf.mxu0
    %v5545 = vadd.f32 %v5322, %v5544
    %5546 = vdwg.mxu0
    %5547 = vmatpush.bf16.msra.mxu0 %v5455
    %5548 = vmatpush.bf16.msra.mxu0 %v5451
    %5549 = vmatpush.bf16.msra.mxu0 %v5447
    %5550 = vmatpush.bf16.msra.mxu0 %v5443
    %5551 = vmatpush.bf16.msra.mxu0 %v5439
    %5552 = vmatpush.bf16.msra.mxu0 %v5435
    %5553 = vmatpush.bf16.msra.mxu0 %v5431
    %5554 = vmatpush.bf16.msra.mxu0 %v5427
    %5555 = vmatmul.bf16.gmra.mxu0 %v5283
    %v5556 = vpop.f32.mrf.mxu0
    %v5557 = vadd.f32 %v5323, %v5556
    %v5558 = vpop.f32.mrf.mxu0
    %v5559 = vadd.f32 %v5323, %v5558
    %5560 = vmatmul.bf16.gmra.mxu0 %v5284
    %v5561 = vpop.f32.mrf.mxu0
    %v5562 = vadd.f32 %v5323, %v5561
    %v5563 = vpop.f32.mrf.mxu0
    %v5564 = vadd.f32 %v5323, %v5563
    %5565 = vmatmul.bf16.gmra.mxu0 %v5285
    %v5566 = vpop.f32.mrf.mxu0
    %v5567 = vadd.f32 %v5323, %v5566
    %v5568 = vpop.f32.mrf.mxu0
    %v5569 = vadd.f32 %v5323, %v5568
    %5570 = vmatmul.bf16.gmra.mxu0 %v5286
    %v5571 = vpop.f32.mrf.mxu0
    %v5572 = vadd.f32 %v5323, %v5571
    %v5573 = vpop.f32.mrf.mxu0
    %v5574 = vadd.f32 %v5323, %v5573
    %5575 = vdwg.mxu0
    %5576 = vmatpush.bf16.msra.mxu0 %v5456
    %5577 = vmatpush.bf16.msra.mxu0 %v5452
    %5578 = vmatpush.bf16.msra.mxu0 %v5448
    %5579 = vmatpush.bf16.msra.mxu0 %v5444
    %5580 = vmatpush.bf16.msra.mxu0 %v5440
    %5581 = vmatpush.bf16.msra.mxu0 %v5436
    %5582 = vmatpush.bf16.msra.mxu0 %v5432
    %5583 = vmatpush.bf16.msra.mxu0 %v5428
    %5584 = vmatmul.bf16.gmra.mxu0 %v5283
    %v5585 = vpop.f32.mrf.mxu0
    %v5586 = vadd.f32 %v5324, %v5585
    %v5587 = vpop.f32.mrf.mxu0
    %v5588 = vadd.f32 %v5324, %v5587
    %5589 = vmatmul.bf16.gmra.mxu0 %v5284
    %v5590 = vpop.f32.mrf.mxu0
    %v5591 = vadd.f32 %v5324, %v5590
    %v5592 = vpop.f32.mrf.mxu0
    %v5593 = vadd.f32 %v5324, %v5592
    %5594 = vmatmul.bf16.gmra.mxu0 %v5285
    %v5595 = vpop.f32.mrf.mxu0
    %v5596 = vadd.f32 %v5324, %v5595
    %v5597 = vpop.f32.mrf.mxu0
    %v5598 = vadd.f32 %v5324, %v5597
    %5599 = vmatmul.bf16.gmra.mxu0 %v5286
    %v5600 = vpop.f32.mrf.mxu0
    %v5601 = vadd.f32 %v5324, %v5600
    %v5602 = vpop.f32.mrf.mxu0
    %v5603 = vadd.f32 %v5324, %v5602
    %5604 = vdwg.mxu0
    %5605 = vst [vmem:[#allocation2] sm:$0xff] %v5499
    %5606 = vst [vmem:[#allocation2 + $0x8] sm:$0xff] %v5528
    %5607 = vst [vmem:[#allocation2 + $0x10] sm:$0xff] %v5557
    %5608 = vst [vmem:[#allocation2 + $0x18] sm:$0xff] %v5586
    %5609 = vst [vmem:[#allocation2 + $0x20] sm:$0xff] %v5501
    %5610 = vst [vmem:[#allocation2 + $0x28] sm:$0xff] %v5530
    %5611 = vst [vmem:[#allocation2 + $0x30] sm:$0xff] %v5559
    %5612 = vst [vmem:[#allocation2 + $0x38] sm:$0xff] %v5588
    %5613 = vst [vmem:[#allocation2 + $0x40] sm:$0xff] %v5504
    %5614 = vst [vmem:[#allocation2 + $0x48] sm:$0xff] %v5533
    %5615 = vst [vmem:[#allocation2 + $0x50] sm:$0xff] %v5562
    %5616 = vst [vmem:[#allocation2 + $0x58] sm:$0xff] %v5591
    %5617 = vst [vmem:[#allocation2 + $0x60] sm:$0xff] %v5506
    %5618 = vst [vmem:[#allocation2 + $0x68] sm:$0xff] %v5535
    %5619 = vst [vmem:[#allocation2 + $0x70] sm:$0xff] %v5564
    %5620 = vst [vmem:[#allocation2 + $0x78] sm:$0xff] %v5593
    %5621 = vst [vmem:[#allocation2 + $0x80] sm:$0xff] %v5509
    %5622 = vst [vmem:[#allocation2 + $0x88] sm:$0xff] %v5538
    %5623 = vst [vmem:[#allocation2 + $0x90] sm:$0xff] %v5567
    %5624 = vst [vmem:[#allocation2 + $0x98] sm:$0xff] %v5596
    %5625 = vst [vmem:[#allocation2 + $0xa0] sm:$0xff] %v5511
    %5626 = vst [vmem:[#allocation2 + $0xa8] sm:$0xff] %v5540
    %5627 = vst [vmem:[#allocation2 + $0xb0] sm:$0xff] %v5569
    %5628 = vst [vmem:[#allocation2 + $0xb8] sm:$0xff] %v5598
    %5629 = vst [vmem:[#allocation2 + $0xc0] sm:$0xff] %v5514
    %5630 = vst [vmem:[#allocation2 + $0xc8] sm:$0xff] %v5543
    %5631 = vst [vmem:[#allocation2 + $0xd0] sm:$0xff] %v5572
    %5632 = vst [vmem:[#allocation2 + $0xd8] sm:$0xff] %v5601
    %5633 = vst [vmem:[#allocation2 + $0xe0] sm:$0xff] %v5516
    %5634 = vst [vmem:[#allocation2 + $0xe8] sm:$0xff] %v5545
    %5635 = vst [vmem:[#allocation2 + $0xf0] sm:$0xff] %v5574
    %5636 = vst [vmem:[#allocation2 + $0xf8] sm:$0xff] %v5603
    %v5637 = vld [vmem:[#allocation2] sm:$0xff]
    %v5638 = vld [vmem:[#allocation2 + $0x8] sm:$0xff]
    %v5639 = vld [vmem:[#allocation2 + $0x10] sm:$0xff]
    %v5640 = vld [vmem:[#allocation2 + $0x18] sm:$0xff]
    %v5641 = vld [vmem:[#allocation16] sm:$0xff]
    %v5642 = vld [vmem:[#allocation16 + $0x8] sm:$0xff]
    %v5643 = vld [vmem:[#allocation16 + $0x10] sm:$0xff]
    %v5644 = vld [vmem:[#allocation16 + $0x18] sm:$0xff]
    %v5645 = vld [vmem:[#allocation16 + $0x20] sm:$0xff]
    %v5646 = vld [vmem:[#allocation16 + $0x28] sm:$0xff]
    %v5647 = vld [vmem:[#allocation16 + $0x30] sm:$0xff]
    %v5648 = vld [vmem:[#allocation16 + $0x38] sm:$0xff]
    %v5649 = vld [vmem:[#allocation16 + $0x40] sm:$0xff]
    %v5650 = vld [vmem:[#allocation16 + $0x48] sm:$0xff]
    %v5651 = vld [vmem:[#allocation16 + $0x50] sm:$0xff]
    %v5652 = vld [vmem:[#allocation16 + $0x58] sm:$0xff]
    %v5653 = vld [vmem:[#allocation16 + $0x60] sm:$0xff]
    %v5654 = vld [vmem:[#allocation16 + $0x68] sm:$0xff]
    %v5655 = vld [vmem:[#allocation16 + $0x70] sm:$0xff]
    %v5656 = vld [vmem:[#allocation16 + $0x78] sm:$0xff]
    %v5657 = vld [vmem:[#allocation16 + $0x80] sm:$0xff]
    %v5658 = vld [vmem:[#allocation16 + $0x88] sm:$0xff]
    %v5659 = vld [vmem:[#allocation16 + $0x90] sm:$0xff]
    %v5660 = vld [vmem:[#allocation16 + $0x98] sm:$0xff]
    %v5661 = vld [vmem:[#allocation16 + $0xa0] sm:$0xff]
    %v5662 = vld [vmem:[#allocation16 + $0xa8] sm:$0xff]
    %v5663 = vld [vmem:[#allocation16 + $0xb0] sm:$0xff]
    %v5664 = vld [vmem:[#allocation16 + $0xb8] sm:$0xff]
    %v5665 = vld [vmem:[#allocation16 + $0xc0] sm:$0xff]
    %v5666 = vld [vmem:[#allocation16 + $0xc8] sm:$0xff]
    %v5667 = vld [vmem:[#allocation16 + $0xd0] sm:$0xff]
    %v5668 = vld [vmem:[#allocation16 + $0xd8] sm:$0xff]
    %v5669 = vld [vmem:[#allocation16 + $0xe0] sm:$0xff]
    %v5670 = vld [vmem:[#allocation16 + $0xe8] sm:$0xff]
    %v5671 = vld [vmem:[#allocation16 + $0xf0] sm:$0xff]
    %v5672 = vld [vmem:[#allocation16 + $0xf8] sm:$0xff]
    %v5705 = vunpack.c.l.b16 %v5641
    %v5706 = vunpack.c.h.b16 %v5641
    %v5707 = vunpack.c.l.b16 %v5642
    %v5708 = vunpack.c.h.b16 %v5642
    %v5709 = vunpack.c.l.b16 %v5643
    %v5710 = vunpack.c.h.b16 %v5643
    %v5711 = vunpack.c.l.b16 %v5644
    %v5712 = vunpack.c.h.b16 %v5644
    %v5713 = vunpack.c.l.b16 %v5645
    %v5714 = vunpack.c.h.b16 %v5645
    %v5715 = vunpack.c.l.b16 %v5646
    %v5716 = vunpack.c.h.b16 %v5646
    %v5717 = vunpack.c.l.b16 %v5647
    %v5718 = vunpack.c.h.b16 %v5647
    %v5719 = vunpack.c.l.b16 %v5648
    %v5720 = vunpack.c.h.b16 %v5648
    %v5721 = vunpack.c.l.b16 %v5649
    %v5722 = vunpack.c.h.b16 %v5649
    %v5723 = vunpack.c.l.b16 %v5650
    %v5724 = vunpack.c.h.b16 %v5650
    %v5725 = vunpack.c.l.b16 %v5651
    %v5726 = vunpack.c.h.b16 %v5651
    %v5727 = vunpack.c.l.b16 %v5652
    %v5728 = vunpack.c.h.b16 %v5652
    %v5729 = vunpack.c.l.b16 %v5653
    %v5730 = vunpack.c.h.b16 %v5653
    %v5731 = vunpack.c.l.b16 %v5654
    %v5732 = vunpack.c.h.b16 %v5654
    %v5733 = vunpack.c.l.b16 %v5655
    %v5734 = vunpack.c.h.b16 %v5655
    %v5735 = vunpack.c.l.b16 %v5656
    %v5736 = vunpack.c.h.b16 %v5656
    %v5737 = vunpack.c.l.b16 %v5657
    %v5738 = vunpack.c.h.b16 %v5657
    %v5739 = vunpack.c.l.b16 %v5658
    %v5740 = vunpack.c.h.b16 %v5658
    %v5741 = vunpack.c.l.b16 %v5659
    %v5742 = vunpack.c.h.b16 %v5659
    %v5743 = vunpack.c.l.b16 %v5660
    %v5744 = vunpack.c.h.b16 %v5660
    %v5745 = vunpack.c.l.b16 %v5661
    %v5746 = vunpack.c.h.b16 %v5661
    %v5747 = vunpack.c.l.b16 %v5662
    %v5748 = vunpack.c.h.b16 %v5662
    %v5749 = vunpack.c.l.b16 %v5663
    %v5750 = vunpack.c.h.b16 %v5663
    %v5751 = vunpack.c.l.b16 %v5664
    %v5752 = vunpack.c.h.b16 %v5664
    %v5753 = vunpack.c.l.b16 %v5665
    %v5754 = vunpack.c.h.b16 %v5665
    %v5755 = vunpack.c.l.b16 %v5666
    %v5756 = vunpack.c.h.b16 %v5666
    %v5757 = vunpack.c.l.b16 %v5667
    %v5758 = vunpack.c.h.b16 %v5667
    %v5759 = vunpack.c.l.b16 %v5668
    %v5760 = vunpack.c.h.b16 %v5668
    %v5761 = vunpack.c.l.b16 %v5669
    %v5762 = vunpack.c.h.b16 %v5669
    %v5763 = vunpack.c.l.b16 %v5670
    %v5764 = vunpack.c.h.b16 %v5670
    %v5765 = vunpack.c.l.b16 %v5671
    %v5766 = vunpack.c.h.b16 %v5671
    %v5767 = vunpack.c.l.b16 %v5672
    %v5768 = vunpack.c.h.b16 %v5672
    %v5769 = vpack.c.b16 %v5709, %v5705
    %v5770 = vpack.c.b16 %v5710, %v5706
    %v5771 = vpack.c.b16 %v5711, %v5707
    %v5772 = vpack.c.b16 %v5712, %v5708
    %v5773 = vpack.c.b16 %v5717, %v5713
    %v5774 = vpack.c.b16 %v5718, %v5714
    %v5775 = vpack.c.b16 %v5719, %v5715
    %v5776 = vpack.c.b16 %v5720, %v5716
    %v5777 = vpack.c.b16 %v5725, %v5721
    %v5778 = vpack.c.b16 %v5726, %v5722
    %v5779 = vpack.c.b16 %v5727, %v5723
    %v5780 = vpack.c.b16 %v5728, %v5724
    %v5781 = vpack.c.b16 %v5733, %v5729
    %v5782 = vpack.c.b16 %v5734, %v5730
    %v5783 = vpack.c.b16 %v5735, %v5731
    %v5784 = vpack.c.b16 %v5736, %v5732
    %v5785 = vpack.c.b16 %v5741, %v5737
    %v5786 = vpack.c.b16 %v5742, %v5738
    %v5787 = vpack.c.b16 %v5743, %v5739
    %v5788 = vpack.c.b16 %v5744, %v5740
    %v5789 = vpack.c.b16 %v5749, %v5745
    %v5790 = vpack.c.b16 %v5750, %v5746
    %v5791 = vpack.c.b16 %v5751, %v5747
    %v5792 = vpack.c.b16 %v5752, %v5748
    %v5793 = vpack.c.b16 %v5757, %v5753
    %v5794 = vpack.c.b16 %v5758, %v5754
    %v5795 = vpack.c.b16 %v5759, %v5755
    %v5796 = vpack.c.b16 %v5760, %v5756
    %v5797 = vpack.c.b16 %v5765, %v5761
    %v5798 = vpack.c.b16 %v5766, %v5762
    %v5799 = vpack.c.b16 %v5767, %v5763
    %v5800 = vpack.c.b16 %v5768, %v5764
    %5833 = vmatpush.bf16.msra.mxu0 %v5797
    %5834 = vmatpush.bf16.msra.mxu0 %v5793
    %5835 = vmatpush.bf16.msra.mxu0 %v5789
    %5836 = vmatpush.bf16.msra.mxu0 %v5785
    %5837 = vmatpush.bf16.msra.mxu0 %v5781
    %5838 = vmatpush.bf16.msra.mxu0 %v5777
    %5839 = vmatpush.bf16.msra.mxu0 %v5773
    %5840 = vmatpush.bf16.msra.mxu0 %v5769
    %5841 = vmatmul.bf16.gmra.mxu0 0
    %v5842 = vpop.f32.mrf.mxu0
    %v5843 = vadd.f32 0.0, %v5842
    %v5844 = vpop.f32.mrf.mxu0
    %5845 = vdwg.mxu0
    %5846 = vmatpush.bf16.msra.mxu0 %v5798
    %5847 = vmatpush.bf16.msra.mxu0 %v5794
    %5848 = vmatpush.bf16.msra.mxu0 %v5790
    %5849 = vmatpush.bf16.msra.mxu0 %v5786
    %5850 = vmatpush.bf16.msra.mxu0 %v5782
    %5851 = vmatpush.bf16.msra.mxu0 %v5778
    %5852 = vmatpush.bf16.msra.mxu0 %v5774
    %5853 = vmatpush.bf16.msra.mxu0 %v5770
    %5854 = vmatmul.bf16.gmra.mxu0 0
    %v5855 = vpop.f32.mrf.mxu0
    %v5856 = vadd.f32 0.0, %v5855
    %v5857 = vpop.f32.mrf.mxu0
    %5858 = vdwg.mxu0
    %5859 = vmatpush.bf16.msra.mxu0 %v5799
    %5860 = vmatpush.bf16.msra.mxu0 %v5795
    %5861 = vmatpush.bf16.msra.mxu0 %v5791
    %5862 = vmatpush.bf16.msra.mxu0 %v5787
    %5863 = vmatpush.bf16.msra.mxu0 %v5783
    %5864 = vmatpush.bf16.msra.mxu0 %v5779
    %5865 = vmatpush.bf16.msra.mxu0 %v5775
    %5866 = vmatpush.bf16.msra.mxu0 %v5771
    %5867 = vmatmul.bf16.gmra.mxu0 0
    %v5868 = vpop.f32.mrf.mxu0
    %v5869 = vadd.f32 0.0, %v5868
    %v5870 = vpop.f32.mrf.mxu0
    %5871 = vdwg.mxu0
    %5872 = vmatpush.bf16.msra.mxu0 %v5800
    %5873 = vmatpush.bf16.msra.mxu0 %v5796
    %5874 = vmatpush.bf16.msra.mxu0 %v5792
    %5875 = vmatpush.bf16.msra.mxu0 %v5788
    %5876 = vmatpush.bf16.msra.mxu0 %v5784
    %5877 = vmatpush.bf16.msra.mxu0 %v5780
    %5878 = vmatpush.bf16.msra.mxu0 %v5776
    %5879 = vmatpush.bf16.msra.mxu0 %v5772
    %5880 = vmatmul.bf16.gmra.mxu0 0
    %v5881 = vpop.f32.mrf.mxu0
    %v5882 = vadd.f32 0.0, %v5881
    %v5883 = vpop.f32.mrf.mxu0
    %5884 = vdwg.mxu0
    %v5885 = vadd.f32 %v5637, %v5843
    %v5886 = vadd.f32 %v5638, %v5856
    %v5887 = vadd.f32 %v5639, %v5869
    %v5888 = vadd.f32 %v5640, %v5882
    %v5889 = vmul.f32 %v5885, 0.5
    %v5890 = vtanh.pop %v5889
    %v5891 = vmul.f32 %v5890, 0.5
    %v5892 = vadd.f32 %v5891, 0.5
    %v5893 = vmul.f32 %v5886, 0.5
    %v5894 = vtanh.pop %v5893
    %v5895 = vmul.f32 %v5894, 0.5
    %v5896 = vadd.f32 %v5895, 0.5
    %v5897 = vtanh.pop %v5887
    %v5898 = vmul.f32 %v5888, 0.5
    %v5899 = vtanh.pop %v5898
    %v5900 = vmul.f32 %v5899, 0.5
    %v5901 = vadd.f32 %v5900, 0.5
    %v5902 = vmul.f32 %v5896, 0.0
    %v5903 = vmul.f32 %v5892, %v5897
    %v5904 = vadd.f32 %v5902, %v5903
    %v5905 = vtanh.pop %v5904
    %v5906 = vmul.f32 %v5901, %v5905
    %v5907 = vld [vmem:[#allocation2 + $0x20] sm:$0xff]
    %v5908 = vld [vmem:[#allocation2 + $0x28] sm:$0xff]
    %v5909 = vld [vmem:[#allocation2 + $0x30] sm:$0xff]
    %v5910 = vld [vmem:[#allocation2 + $0x38] sm:$0xff]
    %v5911 = vpack.c.bf16 %v5906, %v5906
    %5912 = vmatpush.bf16.msra.mxu0 %v5797
    %5913 = vmatpush.bf16.msra.mxu0 %v5793
    %5914 = vmatpush.bf16.msra.mxu0 %v5789
    %5915 = vmatpush.bf16.msra.mxu0 %v5785
    %5916 = vmatpush.bf16.msra.mxu0 %v5781
    %5917 = vmatpush.bf16.msra.mxu0 %v5777
    %5918 = vmatpush.bf16.msra.mxu0 %v5773
    %5919 = vmatpush.bf16.msra.mxu0 %v5769
    %5920 = vmatmul.bf16.gmra.mxu0 %v5911
    %v5921 = vpop.f32.mrf.mxu0
    %v5922 = vadd.f32 0.0, %v5921
    %v5923 = vpop.f32.mrf.mxu0
    %5924 = vdwg.mxu0
    %5925 = vmatpush.bf16.msra.mxu0 %v5798
    %5926 = vmatpush.bf16.msra.mxu0 %v5794
    %5927 = vmatpush.bf16.msra.mxu0 %v5790
    %5928 = vmatpush.bf16.msra.mxu0 %v5786
    %5929 = vmatpush.bf16.msra.mxu0 %v5782
    %5930 = vmatpush.bf16.msra.mxu0 %v5778
    %5931 = vmatpush.bf16.msra.mxu0 %v5774
    %5932 = vmatpush.bf16.msra.mxu0 %v5770
    %5933 = vmatmul.bf16.gmra.mxu0 %v5911
    %v5934 = vpop.f32.mrf.mxu0
    %v5935 = vadd.f32 0.0, %v5934
    %v5936 = vpop.f32.mrf.mxu0
    %5937 = vdwg.mxu0
    %5938 = vmatpush.bf16.msra.mxu0 %v5799
    %5939 = vmatpush.bf16.msra.mxu0 %v5795
    %5940 = vmatpush.bf16.msra.mxu0 %v5791
    %5941 = vmatpush.bf16.msra.mxu0 %v5787
    %5942 = vmatpush.bf16.msra.mxu0 %v5783
    %5943 = vmatpush.bf16.msra.mxu0 %v5779
    %5944 = vmatpush.bf16.msra.mxu0 %v5775
    %5945 = vmatpush.bf16.msra.mxu0 %v5771
    %5946 = vmatmul.bf16.gmra.mxu0 %v5911
    %v5947 = vpop.f32.mrf.mxu0
    %v5948 = vadd.f32 0.0, %v5947
    %v5949 = vpop.f32.mrf.mxu0
    %5950 = vdwg.mxu0
    %5951 = vmatpush.bf16.msra.mxu0 %v5800
    %5952 = vmatpush.bf16.msra.mxu0 %v5796
    %5953 = vmatpush.bf16.msra.mxu0 %v5792
    %5954 = vmatpush.bf16.msra.mxu0 %v5788
    %5955 = vmatpush.bf16.msra.mxu0 %v5784
    %5956 = vmatpush.bf16.msra.mxu0 %v5780
    %5957 = vmatpush.bf16.msra.mxu0 %v5776
    %5958 = vmatpush.bf16.msra.mxu0 %v5772
    %5959 = vmatmul.bf16.gmra.mxu0 %v5911
    %v5960 = vpop.f32.mrf.mxu0
    %v5961 = vadd.f32 0.0, %v5960
    %v5962 = vpop.f32.mrf.mxu0
    %5963 = vdwg.mxu0
    %v5964 = vadd.f32 %v5907, %v5922
    %v5965 = vadd.f32 %v5908, %v5935
    %v5966 = vadd.f32 %v5909, %v5948
    %v5967 = vadd.f32 %v5910, %v5961
    %v5968 = vmul.f32 %v5964, 0.5
    %v5969 = vtanh.pop %v5968
    %v5970 = vmul.f32 %v5969, 0.5
    %v5971 = vadd.f32 %v5970, 0.5
    %v5972 = vmul.f32 %v5965, 0.5
    %v5973 = vtanh.pop %v5972
    %v5974 = vmul.f32 %v5973, 0.5
    %v5975 = vadd.f32 %v5974, 0.5
    %v5976 = vtanh.pop %v5966
    %v5977 = vmul.f32 %v5967, 0.5
    %v5978 = vtanh.pop %v5977
    %v5979 = vmul.f32 %v5978, 0.5
    %v5980 = vadd.f32 %v5979, 0.5
    %v5981 = vmul.f32 %v5975, %v5904
    %v5982 = vmul.f32 %v5971, %v5976
    %v5983 = vadd.f32 %v5981, %v5982
    %v5984 = vtanh.pop %v5983
    %v5985 = vmul.f32 %v5980, %v5984
    %v5986 = vld [vmem:[#allocation2 + $0x40] sm:$0xff]
    %v5987 = vld [vmem:[#allocation2 + $0x48] sm:$0xff]
    %v5988 = vld [vmem:[#allocation2 + $0x50] sm:$0xff]
    %v5989 = vld [vmem:[#allocation2 + $0x58] sm:$0xff]
    %v5990 = vpack.c.bf16 %v5985, %v5985
    %5991 = vmatpush.bf16.msra.mxu0 %v5797
    %5992 = vmatpush.bf16.msra.mxu0 %v5793
    %5993 = vmatpush.bf16.msra.mxu0 %v5789
    %5994 = vmatpush.bf16.msra.mxu0 %v5785
    %5995 = vmatpush.bf16.msra.mxu0 %v5781
    %5996 = vmatpush.bf16.msra.mxu0 %v5777
    %5997 = vmatpush.bf16.msra.mxu0 %v5773
    %5998 = vmatpush.bf16.msra.mxu0 %v5769
    %5999 = vmatmul.bf16.gmra.mxu0 %v5990
    %v6000 = vpop.f32.mrf.mxu0
    %v6001 = vadd.f32 0.0, %v6000
    %v6002 = vpop.f32.mrf.mxu0
    %6003 = vdwg.mxu0
    %6004 = vmatpush.bf16.msra.mxu0 %v5798
    %6005 = vmatpush.bf16.msra.mxu0 %v5794
    %6006 = vmatpush.bf16.msra.mxu0 %v5790
    %6007 = vmatpush.bf16.msra.mxu0 %v5786
    %6008 = vmatpush.bf16.msra.mxu0 %v5782
    %6009 = vmatpush.bf16.msra.mxu0 %v5778
    %6010 = vmatpush.bf16.msra.mxu0 %v5774
    %6011 = vmatpush.bf16.msra.mxu0 %v5770
    %6012 = vmatmul.bf16.gmra.mxu0 %v5990
    %v6013 = vpop.f32.mrf.mxu0
    %v6014 = vadd.f32 0.0, %v6013
    %v6015 = vpop.f32.mrf.mxu0
    %6016 = vdwg.mxu0
    %6017 = vmatpush.bf16.msra.mxu0 %v5799
    %6018 = vmatpush.bf16.msra.mxu0 %v5795
    %6019 = vmatpush.bf16.msra.mxu0 %v5791
    %6020 = vmatpush.bf16.msra.mxu0 %v5787
    %6021 = vmatpush.bf16.msra.mxu0 %v5783
    %6022 = vmatpush.bf16.msra.mxu0 %v5779
    %6023 = vmatpush.bf16.msra.mxu0 %v5775
    %6024 = vmatpush.bf16.msra.mxu0 %v5771
    %6025 = vmatmul.bf16.gmra.mxu0 %v5990
    %v6026 = vpop.f32.mrf.mxu0
    %v6027 = vadd.f32 0.0, %v6026
    %v6028 = vpop.f32.mrf.mxu0
    %6029 = vdwg.mxu0
    %6030 = vmatpush.bf16.msra.mxu0 %v5800
    %6031 = vmatpush.bf16.msra.mxu0 %v5796
    %6032 = vmatpush.bf16.msra.mxu0 %v5792
    %6033 = vmatpush.bf16.msra.mxu0 %v5788
    %6034 = vmatpush.bf16.msra.mxu0 %v5784
    %6035 = vmatpush.bf16.msra.mxu0 %v5780
    %6036 = vmatpush.bf16.msra.mxu0 %v5776
    %6037 = vmatpush.bf16.msra.mxu0 %v5772
    %6038 = vmatmul.bf16.gmra.mxu0 %v5990
    %v6039 = vpop.f32.mrf.mxu0
    %v6040 = vadd.f32 0.0, %v6039
    %v6041 = vpop.f32.mrf.mxu0
    %6042 = vdwg.mxu0
    %v6043 = vadd.f32 %v5986, %v6001
    %v6044 = vadd.f32 %v5987, %v6014
    %v6045 = vadd.f32 %v5988, %v6027
    %v6046 = vadd.f32 %v5989, %v6040
    %v6047 = vmul.f32 %v6043, 0.5
    %v6048 = vtanh.pop %v6047
    %v6049 = vmul.f32 %v6048, 0.5
    %v6050 = vadd.f32 %v6049, 0.5
    %v6051 = vmul.f32 %v6044, 0.5
    %v6052 = vtanh.pop %v6051
    %v6053 = vmul.f32 %v6052, 0.5
    %v6054 = vadd.f32 %v6053, 0.5
    %v6055 = vtanh.pop %v6045
    %v6056 = vmul.f32 %v6046, 0.5
    %v6057 = vtanh.pop %v6056
    %v6058 = vmul.f32 %v6057, 0.5
    %v6059 = vadd.f32 %v6058, 0.5
    %v6060 = vmul.f32 %v6054, %v5983
    %v6061 = vmul.f32 %v6050, %v6055
    %v6062 = vadd.f32 %v6060, %v6061
    %v6063 = vtanh.pop %v6062
    %v6064 = vmul.f32 %v6059, %v6063
    %v6065 = vld [vmem:[#allocation2 + $0x60] sm:$0xff]
    %v6066 = vld [vmem:[#allocation2 + $0x68] sm:$0xff]
    %v6067 = vld [vmem:[#allocation2 + $0x70] sm:$0xff]
    %v6068 = vld [vmem:[#allocation2 + $0x78] sm:$0xff]
    %v6069 = vpack.c.bf16 %v6064, %v6064
    %6070 = vmatpush.bf16.msra.mxu0 %v5797
    %6071 = vmatpush.bf16.msra.mxu0 %v5793
    %6072 = vmatpush.bf16.msra.mxu0 %v5789
    %6073 = vmatpush.bf16.msra.mxu0 %v5785
    %6074 = vmatpush.bf16.msra.mxu0 %v5781
    %6075 = vmatpush.bf16.msra.mxu0 %v5777
    %6076 = vmatpush.bf16.msra.mxu0 %v5773
    %6077 = vmatpush.bf16.msra.mxu0 %v5769
    %6078 = vmatmul.bf16.gmra.mxu0 %v6069
    %v6079 = vpop.f32.mrf.mxu0
    %v6080 = vadd.f32 0.0, %v6079
    %v6081 = vpop.f32.mrf.mxu0
    %6082 = vdwg.mxu0
    %6083 = vmatpush.bf16.msra.mxu0 %v5798
    %6084 = vmatpush.bf16.msra.mxu0 %v5794
    %6085 = vmatpush.bf16.msra.mxu0 %v5790
    %6086 = vmatpush.bf16.msra.mxu0 %v5786
    %6087 = vmatpush.bf16.msra.mxu0 %v5782
    %6088 = vmatpush.bf16.msra.mxu0 %v5778
    %6089 = vmatpush.bf16.msra.mxu0 %v5774
    %6090 = vmatpush.bf16.msra.mxu0 %v5770
    %6091 = vmatmul.bf16.gmra.mxu0 %v6069
    %v6092 = vpop.f32.mrf.mxu0
    %v6093 = vadd.f32 0.0, %v6092
    %v6094 = vpop.f32.mrf.mxu0
    %6095 = vdwg.mxu0
    %6096 = vmatpush.bf16.msra.mxu0 %v5799
    %6097 = vmatpush.bf16.msra.mxu0 %v5795
    %6098 = vmatpush.bf16.msra.mxu0 %v5791
    %6099 = vmatpush.bf16.msra.mxu0 %v5787
    %6100 = vmatpush.bf16.msra.mxu0 %v5783
    %6101 = vmatpush.bf16.msra.mxu0 %v5779
    %6102 = vmatpush.bf16.msra.mxu0 %v5775
    %6103 = vmatpush.bf16.msra.mxu0 %v5771
    %6104 = vmatmul.bf16.gmra.mxu0 %v6069
    %v6105 = vpop.f32.mrf.mxu0
    %v6106 = vadd.f32 0.0, %v6105
    %v6107 = vpop.f32.mrf.mxu0
    %6108 = vdwg.mxu0
    %6109 = vmatpush.bf16.msra.mxu0 %v5800
    %6110 = vmatpush.bf16.msra.mxu0 %v5796
    %6111 = vmatpush.bf16.msra.mxu0 %v5792
    %6112 = vmatpush.bf16.msra.mxu0 %v5788
    %6113 = vmatpush.bf16.msra.mxu0 %v5784
    %6114 = vmatpush.bf16.msra.mxu0 %v5780
    %6115 = vmatpush.bf16.msra.mxu0 %v5776
    %6116 = vmatpush.bf16.msra.mxu0 %v5772
    %6117 = vmatmul.bf16.gmra.mxu0 %v6069
    %v6118 = vpop.f32.mrf.mxu0
    %v6119 = vadd.f32 0.0, %v6118
    %v6120 = vpop.f32.mrf.mxu0
    %6121 = vdwg.mxu0
    %v6122 = vadd.f32 %v6065, %v6080
    %v6123 = vadd.f32 %v6066, %v6093
    %v6124 = vadd.f32 %v6067, %v6106
    %v6125 = vadd.f32 %v6068, %v6119
    %v6126 = vmul.f32 %v6122, 0.5
    %v6127 = vtanh.pop %v6126
    %v6128 = vmul.f32 %v6127, 0.5
    %v6129 = vadd.f32 %v6128, 0.5
    %v6130 = vmul.f32 %v6123, 0.5
    %v6131 = vtanh.pop %v6130
    %v6132 = vmul.f32 %v6131, 0.5
    %v6133 = vadd.f32 %v6132, 0.5
    %v6134 = vtanh.pop %v6124
    %v6135 = vmul.f32 %v6125, 0.5
    %v6136 = vtanh.pop %v6135
    %v6137 = vmul.f32 %v6136, 0.5
    %v6138 = vadd.f32 %v6137, 0.5
    %v6139 = vmul.f32 %v6133, %v6062
    %v6140 = vmul.f32 %v6129, %v6134
    %v6141 = vadd.f32 %v6139, %v6140
    %v6142 = vtanh.pop %v6141
    %v6143 = vmul.f32 %v6138, %v6142
    %v6144 = vld [vmem:[#allocation2 + $0x80] sm:$0xff]
    %v6145 = vld [vmem:[#allocation2 + $0x88] sm:$0xff]
    %v6146 = vld [vmem:[#allocation2 + $0x90] sm:$0xff]
    %v6147 = vld [vmem:[#allocation2 + $0x98] sm:$0xff]
    %v6148 = vpack.c.bf16 %v6143, %v6143
    %6149 = vmatpush.bf16.msra.mxu0 %v5797
    %6150 = vmatpush.bf16.msra.mxu0 %v5793
    %6151 = vmatpush.bf16.msra.mxu0 %v5789
    %6152 = vmatpush.bf16.msra.mxu0 %v5785
    %6153 = vmatpush.bf16.msra.mxu0 %v5781
    %6154 = vmatpush.bf16.msra.mxu0 %v5777
    %6155 = vmatpush.bf16.msra.mxu0 %v5773
    %6156 = vmatpush.bf16.msra.mxu0 %v5769
    %6157 = vmatmul.bf16.gmra.mxu0 %v6148
    %v6158 = vpop.f32.mrf.mxu0
    %v6159 = vadd.f32 0.0, %v6158
    %v6160 = vpop.f32.mrf.mxu0
    %6161 = vdwg.mxu0
    %6162 = vmatpush.bf16.msra.mxu0 %v5798
    %6163 = vmatpush.bf16.msra.mxu0 %v5794
    %6164 = vmatpush.bf16.msra.mxu0 %v5790
    %6165 = vmatpush.bf16.msra.mxu0 %v5786
    %6166 = vmatpush.bf16.msra.mxu0 %v5782
    %6167 = vmatpush.bf16.msra.mxu0 %v5778
    %6168 = vmatpush.bf16.msra.mxu0 %v5774
    %6169 = vmatpush.bf16.msra.mxu0 %v5770
    %6170 = vmatmul.bf16.gmra.mxu0 %v6148
    %v6171 = vpop.f32.mrf.mxu0
    %v6172 = vadd.f32 0.0, %v6171
    %v6173 = vpop.f32.mrf.mxu0
    %6174 = vdwg.mxu0
    %6175 = vmatpush.bf16.msra.mxu0 %v5799
    %6176 = vmatpush.bf16.msra.mxu0 %v5795
    %6177 = vmatpush.bf16.msra.mxu0 %v5791
    %6178 = vmatpush.bf16.msra.mxu0 %v5787
    %6179 = vmatpush.bf16.msra.mxu0 %v5783
    %6180 = vmatpush.bf16.msra.mxu0 %v5779
    %6181 = vmatpush.bf16.msra.mxu0 %v5775
    %6182 = vmatpush.bf16.msra.mxu0 %v5771
    %6183 = vmatmul.bf16.gmra.mxu0 %v6148
    %v6184 = vpop.f32.mrf.mxu0
    %v6185 = vadd.f32 0.0, %v6184
    %v6186 = vpop.f32.mrf.mxu0
    %6187 = vdwg.mxu0
    %6188 = vmatpush.bf16.msra.mxu0 %v5800
    %6189 = vmatpush.bf16.msra.mxu0 %v5796
    %6190 = vmatpush.bf16.msra.mxu0 %v5792
    %6191 = vmatpush.bf16.msra.mxu0 %v5788
    %6192 = vmatpush.bf16.msra.mxu0 %v5784
    %6193 = vmatpush.bf16.msra.mxu0 %v5780
    %6194 = vmatpush.bf16.msra.mxu0 %v5776
    %6195 = vmatpush.bf16.msra.mxu0 %v5772
    %6196 = vmatmul.bf16.gmra.mxu0 %v6148
    %v6197 = vpop.f32.mrf.mxu0
    %v6198 = vadd.f32 0.0, %v6197
    %v6199 = vpop.f32.mrf.mxu0
    %6200 = vdwg.mxu0
    %v6201 = vadd.f32 %v6144, %v6159
    %v6202 = vadd.f32 %v6145, %v6172
    %v6203 = vadd.f32 %v6146, %v6185
    %v6204 = vadd.f32 %v6147, %v6198
    %v6205 = vmul.f32 %v6201, 0.5
    %v6206 = vtanh.pop %v6205
    %v6207 = vmul.f32 %v6206, 0.5
    %v6208 = vadd.f32 %v6207, 0.5
    %v6209 = vmul.f32 %v6202, 0.5
    %v6210 = vtanh.pop %v6209
    %v6211 = vmul.f32 %v6210, 0.5
    %v6212 = vadd.f32 %v6211, 0.5
    %v6213 = vtanh.pop %v6203
    %v6214 = vmul.f32 %v6204, 0.5
    %v6215 = vtanh.pop %v6214
    %v6216 = vmul.f32 %v6215, 0.5
    %v6217 = vadd.f32 %v6216, 0.5
    %v6218 = vmul.f32 %v6212, %v6141
    %v6219 = vmul.f32 %v6208, %v6213
    %v6220 = vadd.f32 %v6218, %v6219
    %v6221 = vtanh.pop %v6220
    %v6222 = vmul.f32 %v6217, %v6221
    %v6223 = vld [vmem:[#allocation2 + $0xa0] sm:$0xff]
    %v6224 = vld [vmem:[#allocation2 + $0xa8] sm:$0xff]
    %v6225 = vld [vmem:[#allocation2 + $0xb0] sm:$0xff]
    %v6226 = vld [vmem:[#allocation2 + $0xb8] sm:$0xff]
    %v6227 = vpack.c.bf16 %v6222, %v6222
    %6228 = vmatpush.bf16.msra.mxu0 %v5797
    %6229 = vmatpush.bf16.msra.mxu0 %v5793
    %6230 = vmatpush.bf16.msra.mxu0 %v5789
    %6231 = vmatpush.bf16.msra.mxu0 %v5785
    %6232 = vmatpush.bf16.msra.mxu0 %v5781
    %6233 = vmatpush.bf16.msra.mxu0 %v5777
    %6234 = vmatpush.bf16.msra.mxu0 %v5773
    %6235 = vmatpush.bf16.msra.mxu0 %v5769
    %6236 = vmatmul.bf16.gmra.mxu0 %v6227
    %v6237 = vpop.f32.mrf.mxu0
    %v6238 = vadd.f32 0.0, %v6237
    %v6239 = vpop.f32.mrf.mxu0
    %6240 = vdwg.mxu0
    %6241 = vmatpush.bf16.msra.mxu0 %v5798
    %6242 = vmatpush.bf16.msra.mxu0 %v5794
    %6243 = vmatpush.bf16.msra.mxu0 %v5790
    %6244 = vmatpush.bf16.msra.mxu0 %v5786
    %6245 = vmatpush.bf16.msra.mxu0 %v5782
    %6246 = vmatpush.bf16.msra.mxu0 %v5778
    %6247 = vmatpush.bf16.msra.mxu0 %v5774
    %6248 = vmatpush.bf16.msra.mxu0 %v5770
    %6249 = vmatmul.bf16.gmra.mxu0 %v6227
    %v6250 = vpop.f32.mrf.mxu0
    %v6251 = vadd.f32 0.0, %v6250
    %v6252 = vpop.f32.mrf.mxu0
    %6253 = vdwg.mxu0
    %6254 = vmatpush.bf16.msra.mxu0 %v5799
    %6255 = vmatpush.bf16.msra.mxu0 %v5795
    %6256 = vmatpush.bf16.msra.mxu0 %v5791
    %6257 = vmatpush.bf16.msra.mxu0 %v5787
    %6258 = vmatpush.bf16.msra.mxu0 %v5783
    %6259 = vmatpush.bf16.msra.mxu0 %v5779
    %6260 = vmatpush.bf16.msra.mxu0 %v5775
    %6261 = vmatpush.bf16.msra.mxu0 %v5771
    %6262 = vmatmul.bf16.gmra.mxu0 %v6227
    %v6263 = vpop.f32.mrf.mxu0
    %v6264 = vadd.f32 0.0, %v6263
    %v6265 = vpop.f32.mrf.mxu0
    %6266 = vdwg.mxu0
    %6267 = vmatpush.bf16.msra.mxu0 %v5800
    %6268 = vmatpush.bf16.msra.mxu0 %v5796
    %6269 = vmatpush.bf16.msra.mxu0 %v5792
    %6270 = vmatpush.bf16.msra.mxu0 %v5788
    %6271 = vmatpush.bf16.msra.mxu0 %v5784
    %6272 = vmatpush.bf16.msra.mxu0 %v5780
    %6273 = vmatpush.bf16.msra.mxu0 %v5776
    %6274 = vmatpush.bf16.msra.mxu0 %v5772
    %6275 = vmatmul.bf16.gmra.mxu0 %v6227
    %v6276 = vpop.f32.mrf.mxu0
    %v6277 = vadd.f32 0.0, %v6276
    %v6278 = vpop.f32.mrf.mxu0
    %6279 = vdwg.mxu0
    %v6280 = vadd.f32 %v6223, %v6238
    %v6281 = vadd.f32 %v6224, %v6251
    %v6282 = vadd.f32 %v6225, %v6264
    %v6283 = vadd.f32 %v6226, %v6277
    %v6284 = vmul.f32 %v6280, 0.5
    %v6285 = vtanh.pop %v6284
    %v6286 = vmul.f32 %v6285, 0.5
    %v6287 = vadd.f32 %v6286, 0.5
    %v6288 = vmul.f32 %v6281, 0.5
    %v6289 = vtanh.pop %v6288
    %v6290 = vmul.f32 %v6289, 0.5
    %v6291 = vadd.f32 %v6290, 0.5
    %v6292 = vtanh.pop %v6282
    %v6293 = vmul.f32 %v6283, 0.5
    %v6294 = vtanh.pop %v6293
    %v6295 = vmul.f32 %v6294, 0.5
    %v6296 = vadd.f32 %v6295, 0.5
    %v6297 = vmul.f32 %v6291, %v6220
    %v6298 = vmul.f32 %v6287, %v6292
    %v6299 = vadd.f32 %v6297, %v6298
    %v6300 = vtanh.pop %v6299
    %v6301 = vmul.f32 %v6296, %v6300
    %v6302 = vld [vmem:[#allocation2 + $0xc0] sm:$0xff]
    %v6303 = vld [vmem:[#allocation2 + $0xc8] sm:$0xff]
    %v6304 = vld [vmem:[#allocation2 + $0xd0] sm:$0xff]
    %v6305 = vld [vmem:[#allocation2 + $0xd8] sm:$0xff]
    %v6306 = vpack.c.bf16 %v6301, %v6301
    %6307 = vmatpush.bf16.msra.mxu0 %v5797
    %6308 = vmatpush.bf16.msra.mxu0 %v5793
    %6309 = vmatpush.bf16.msra.mxu0 %v5789
    %6310 = vmatpush.bf16.msra.mxu0 %v5785
    %6311 = vmatpush.bf16.msra.mxu0 %v5781
    %6312 = vmatpush.bf16.msra.mxu0 %v5777
    %6313 = vmatpush.bf16.msra.mxu0 %v5773
    %6314 = vmatpush.bf16.msra.mxu0 %v5769
    %6315 = vmatmul.bf16.gmra.mxu0 %v6306
    %v6316 = vpop.f32.mrf.mxu0
    %v6317 = vadd.f32 0.0, %v6316
    %v6318 = vpop.f32.mrf.mxu0
    %6319 = vdwg.mxu0
    %6320 = vmatpush.bf16.msra.mxu0 %v5798
    %6321 = vmatpush.bf16.msra.mxu0 %v5794
    %6322 = vmatpush.bf16.msra.mxu0 %v5790
    %6323 = vmatpush.bf16.msra.mxu0 %v5786
    %6324 = vmatpush.bf16.msra.mxu0 %v5782
    %6325 = vmatpush.bf16.msra.mxu0 %v5778
    %6326 = vmatpush.bf16.msra.mxu0 %v5774
    %6327 = vmatpush.bf16.msra.mxu0 %v5770
    %6328 = vmatmul.bf16.gmra.mxu0 %v6306
    %v6329 = vpop.f32.mrf.mxu0
    %v6330 = vadd.f32 0.0, %v6329
    %v6331 = vpop.f32.mrf.mxu0
    %6332 = vdwg.mxu0
    %6333 = vmatpush.bf16.msra.mxu0 %v5799
    %6334 = vmatpush.bf16.msra.mxu0 %v5795
    %6335 = vmatpush.bf16.msra.mxu0 %v5791
    %6336 = vmatpush.bf16.msra.mxu0 %v5787
    %6337 = vmatpush.bf16.msra.mxu0 %v5783
    %6338 = vmatpush.bf16.msra.mxu0 %v5779
    %6339 = vmatpush.bf16.msra.mxu0 %v5775
    %6340 = vmatpush.bf16.msra.mxu0 %v5771
    %6341 = vmatmul.bf16.gmra.mxu0 %v6306
    %v6342 = vpop.f32.mrf.mxu0
    %v6343 = vadd.f32 0.0, %v6342
    %v6344 = vpop.f32.mrf.mxu0
    %6345 = vdwg.mxu0
    %6346 = vmatpush.bf16.msra.mxu0 %v5800
    %6347 = vmatpush.bf16.msra.mxu0 %v5796
    %6348 = vmatpush.bf16.msra.mxu0 %v5792
    %6349 = vmatpush.bf16.msra.mxu0 %v5788
    %6350 = vmatpush.bf16.msra.mxu0 %v5784
    %6351 = vmatpush.bf16.msra.mxu0 %v5780
    %6352 = vmatpush.bf16.msra.mxu0 %v5776
    %6353 = vmatpush.bf16.msra.mxu0 %v5772
    %6354 = vmatmul.bf16.gmra.mxu0 %v6306
    %v6355 = vpop.f32.mrf.mxu0
    %v6356 = vadd.f32 0.0, %v6355
    %v6357 = vpop.f32.mrf.mxu0
    %6358 = vdwg.mxu0
    %v6359 = vadd.f32 %v6302, %v6317
    %v6360 = vadd.f32 %v6303, %v6330
    %v6361 = vadd.f32 %v6304, %v6343
    %v6362 = vadd.f32 %v6305, %v6356
    %v6363 = vmul.f32 %v6359, 0.5
    %v6364 = vtanh.pop %v6363
    %v6365 = vmul.f32 %v6364, 0.5
    %v6366 = vadd.f32 %v6365, 0.5
    %v6367 = vmul.f32 %v6360, 0.5
    %v6368 = vtanh.pop %v6367
    %v6369 = vmul.f32 %v6368, 0.5
    %v6370 = vadd.f32 %v6369, 0.5
    %v6371 = vtanh.pop %v6361
    %v6372 = vmul.f32 %v6362, 0.5
    %v6373 = vtanh.pop %v6372
    %v6374 = vmul.f32 %v6373, 0.5
    %v6375 = vadd.f32 %v6374, 0.5
    %v6376 = vmul.f32 %v6370, %v6299
    %v6377 = vmul.f32 %v6366, %v6371
    %v6378 = vadd.f32 %v6376, %v6377
    %v6379 = vtanh.pop %v6378
    %v6380 = vmul.f32 %v6375, %v6379
    %v6381 = vld [vmem:[#allocation2 + $0xe0] sm:$0xff]
    %v6382 = vld [vmem:[#allocation2 + $0xe8] sm:$0xff]
    %v6383 = vld [vmem:[#allocation2 + $0xf0] sm:$0xff]
    %v6384 = vld [vmem:[#allocation2 + $0xf8] sm:$0xff]
    %v6385 = vpack.c.bf16 %v6380, %v6380
    %6386 = vmatpush.bf16.msra.mxu0 %v5797
    %6387 = vmatpush.bf16.msra.mxu0 %v5793
    %6388 = vmatpush.bf16.msra.mxu0 %v5789
    %6389 = vmatpush.bf16.msra.mxu0 %v5785
    %6390 = vmatpush.bf16.msra.mxu0 %v5781
    %6391 = vmatpush.bf16.msra.mxu0 %v5777
    %6392 = vmatpush.bf16.msra.mxu0 %v5773
    %6393 = vmatpush.bf16.msra.mxu0 %v5769
    %6394 = vmatmul.bf16.gmra.mxu0 %v6385
    %v6395 = vpop.f32.mrf.mxu0
    %v6396 = vadd.f32 0.0, %v6395
    %v6397 = vpop.f32.mrf.mxu0
    %6398 = vdwg.mxu0
    %6399 = vmatpush.bf16.msra.mxu0 %v5798
    %6400 = vmatpush.bf16.msra.mxu0 %v5794
    %6401 = vmatpush.bf16.msra.mxu0 %v5790
    %6402 = vmatpush.bf16.msra.mxu0 %v5786
    %6403 = vmatpush.bf16.msra.mxu0 %v5782
    %6404 = vmatpush.bf16.msra.mxu0 %v5778
    %6405 = vmatpush.bf16.msra.mxu0 %v5774
    %6406 = vmatpush.bf16.msra.mxu0 %v5770
    %6407 = vmatmul.bf16.gmra.mxu0 %v6385
    %v6408 = vpop.f32.mrf.mxu0
    %v6409 = vadd.f32 0.0, %v6408
    %v6410 = vpop.f32.mrf.mxu0
    %6411 = vdwg.mxu0
    %6412 = vmatpush.bf16.msra.mxu0 %v5799
    %6413 = vmatpush.bf16.msra.mxu0 %v5795
    %6414 = vmatpush.bf16.msra.mxu0 %v5791
    %6415 = vmatpush.bf16.msra.mxu0 %v5787
    %6416 = vmatpush.bf16.msra.mxu0 %v5783
    %6417 = vmatpush.bf16.msra.mxu0 %v5779
    %6418 = vmatpush.bf16.msra.mxu0 %v5775
    %6419 = vmatpush.bf16.msra.mxu0 %v5771
    %6420 = vmatmul.bf16.gmra.mxu0 %v6385
    %v6421 = vpop.f32.mrf.mxu0
    %v6422 = vadd.f32 0.0, %v6421
    %v6423 = vpop.f32.mrf.mxu0
    %6424 = vdwg.mxu0
    %6425 = vmatpush.bf16.msra.mxu0 %v5800
    %6426 = vmatpush.bf16.msra.mxu0 %v5796
    %6427 = vmatpush.bf16.msra.mxu0 %v5792
    %6428 = vmatpush.bf16.msra.mxu0 %v5788
    %6429 = vmatpush.bf16.msra.mxu0 %v5784
    %6430 = vmatpush.bf16.msra.mxu0 %v5780
    %6431 = vmatpush.bf16.msra.mxu0 %v5776
    %6432 = vmatpush.bf16.msra.mxu0 %v5772
    %6433 = vmatmul.bf16.gmra.mxu0 %v6385
    %v6434 = vpop.f32.mrf.mxu0
    %v6435 = vadd.f32 0.0, %v6434
    %v6436 = vpop.f32.mrf.mxu0
    %6437 = vdwg.mxu0
    %v6438 = vadd.f32 %v6381, %v6396
    %v6439 = vadd.f32 %v6382, %v6409
    %v6440 = vadd.f32 %v6383, %v6422
    %v6441 = vadd.f32 %v6384, %v6435
    %v6442 = vmul.f32 %v6438, 0.5
    %v6443 = vtanh.pop %v6442
    %v6444 = vmul.f32 %v6443, 0.5
    %v6445 = vadd.f32 %v6444, 0.5
    %v6446 = vmul.f32 %v6439, 0.5
    %v6447 = vtanh.pop %v6446
    %v6448 = vmul.f32 %v6447, 0.5
    %v6449 = vadd.f32 %v6448, 0.5
    %v6450 = vtanh.pop %v6440
    %v6451 = vmul.f32 %v6441, 0.5
    %v6452 = vtanh.pop %v6451
    %v6453 = vmul.f32 %v6452, 0.5
    %v6454 = vadd.f32 %v6453, 0.5
    %v6455 = vmul.f32 %v6449, %v6378
    %v6456 = vmul.f32 %v6445, %v6450
    %v6457 = vadd.f32 %v6455, %v6456
    %v6458 = vtanh.pop %v6457
    %v6459 = vmul.f32 %v6454, %v6458
    %v6460 = vpack.c.bf16 %v6459, %v6459
    %v6461 = vld [vmem:[#allocation18] sm:$0xf]
    %v6462 = vld [vmem:[#allocation18 + $0x4] sm:$0xf]
    %v6463 = vld [vmem:[#allocation18 + $0x8] sm:$0xf]
    %v6464 = vld [vmem:[#allocation18 + $0xc] sm:$0xf]
    %v6465 = vld [vmem:[#allocation18 + $0x10] sm:$0xf]
    %v6466 = vld [vmem:[#allocation18 + $0x14] sm:$0xf]
    %v6467 = vld [vmem:[#allocation18 + $0x18] sm:$0xf]
    %v6468 = vld [vmem:[#allocation18 + $0x1c] sm:$0xf]
    %v6469 = vld [vmem:[#allocation18 + $0x20] sm:$0xf]
    %v6470 = vld [vmem:[#allocation18 + $0x24] sm:$0xf]
    %v6471 = vld [vmem:[#allocation18 + $0x28] sm:$0xf]
    %v6472 = vld [vmem:[#allocation18 + $0x2c] sm:$0xf]
    %v6473 = vld [vmem:[#allocation18 + $0x30] sm:$0xf]
    %v6474 = vld [vmem:[#allocation18 + $0x34] sm:$0xf]
    %v6475 = vld [vmem:[#allocation18 + $0x38] sm:$0xf]
    %v6476 = vld [vmem:[#allocation18 + $0x3c] sm:$0xf]
    %v6477 = vld [vmem:[%s11] sm:$0x1]
    %v6479 = vperm.slane %v6477, 0
    %v6497 = vunpack.c.l.b16 %v6461
    %v6498 = vunpack.c.l.b16 %v6462
    %v6499 = vunpack.c.l.b16 %v6463
    %v6500 = vunpack.c.l.b16 %v6464
    %v6501 = vunpack.c.l.b16 %v6465
    %v6502 = vunpack.c.l.b16 %v6466
    %v6503 = vunpack.c.l.b16 %v6467
    %v6504 = vunpack.c.l.b16 %v6468
    %v6505 = vunpack.c.l.b16 %v6469
    %v6506 = vunpack.c.l.b16 %v6470
    %v6507 = vunpack.c.l.b16 %v6471
    %v6508 = vunpack.c.l.b16 %v6472
    %v6509 = vunpack.c.l.b16 %v6473
    %v6510 = vunpack.c.l.b16 %v6474
    %v6511 = vunpack.c.l.b16 %v6475
    %v6512 = vunpack.c.l.b16 %v6476
    %v6513 = vpack.c.b16 %v6498, %v6497
    %v6514 = vpack.c.b16 %v6500, %v6499
    %v6515 = vpack.c.b16 %v6502, %v6501
    %v6516 = vpack.c.b16 %v6504, %v6503
    %v6517 = vpack.c.b16 %v6506, %v6505
    %v6518 = vpack.c.b16 %v6508, %v6507
    %v6519 = vpack.c.b16 %v6510, %v6509
    %v6520 = vpack.c.b16 %v6512, %v6511
    %6529 = vmatpush.bf16.msra.mxu0 %v6520
    %6530 = vmatpush.bf16.msra.mxu0 %v6519
    %6531 = vmatpush.bf16.msra.mxu0 %v6518
    %6532 = vmatpush.bf16.msra.mxu0 %v6517
    %6533 = vmatpush.bf16.msra.mxu0 %v6516
    %6534 = vmatpush.bf16.msra.mxu0 %v6515
    %6535 = vmatpush.bf16.msra.mxu0 %v6514
    %6536 = vmatpush.bf16.msra.mxu0 %v6513
    %6537 = vmatmul.bf16.gmra.mxu0 %v6460
    %v6538 = vpop.f32.mrf.mxu0
    %v6539 = vadd.f32 %v6479, %v6538
    %v6540 = vpop.f32.mrf.mxu0
    %6541 = vdwg.mxu0
    %6542 = vst [vmem:[#allocation19] sm:$0xff] %v6539
    // Predicated region
    $region86: #{tpu_custom_call.1} parent=1 // pred_check
      _
    $region87: #{tpu_custom_call.1} parent=1 // pred_check_branch
      %6544 = sbr.rel (0) target = $region89
    $region88: #{tpu_custom_call.1} parent=1 // pred_region
      %6546 = vsyncadd [#allocation6], 0
      %s6548 = sshll.u32 [#allocation19], 4
      %s6549 = int_to_ptr.vmem [resolvable:$true] %s6548
      %s6550 = sshll.u32 %s12, 4
      %s6551 = int_to_ptr.hbm [resolvable:$true] %s6550
      %6553 = dma.vmem_to_hbm [thread:$0]  %s6549, 128, %s6551, [#allocation6]
    $region89: #{tpu_custom_call.1} parent=1 // pred_fallthru
      _
    // Predicated region
    $region90: #{tpu_custom_call.1} parent=1 // pred_check
      _
    $region91: #{tpu_custom_call.1} parent=1 // pred_check_branch
      %6555 = sbr.rel (0) target = $region93
    $region92: #{tpu_custom_call.1} parent=1 // pred_region
      %6557 = dma.done [#allocation6], 128
    $region93: #{tpu_custom_call.1} parent=1 // pred_fallthru
      _
    %6558 = vsyncpa [#allocation5], 1
    %6559 = vsyncpa [#allocation8], 1
    %6560 = vsyncpa [#allocation11], 1
    %6561 = vsyncpa [#allocation14], 1
    %6562 = vsyncpa [#allocation17], 1
    %6563 = vsyncpa [#allocation6], 1

</llo_original>
